<compile_context>
chip_gen: v7x
topology: tpu7x:2x2x1
jax: 0.10.0
libtpu: 0.0.40
codegen_flags: <defaults>
</compile_context>

<pallas_src>
import math
import functools

import jax
import jax.numpy as jnp
from jax.experimental import pallas as pl
from jax.experimental.pallas import tpu as pltpu


_NEG_INF = -1e30                        # finite mask value (avoids inf - inf)


def _pick_vmem_limit():
    """Generation-specific scoped-VMEM budget: ~3/4 of physical, safe fallback."""
    default = 32 * 1024 * 1024
    try:
        info = pltpu.get_tpu_info()
    except Exception:
        return default
    cap = getattr(info, "vmem_capacity_bytes", None)
    if not cap:
        return default
    return int(min(cap * 3 // 4, 96 * 1024 * 1024))


_VMEM_LIMIT = _pick_vmem_limit()


# ----------------------------- math helpers --------------------------------

def _layer_norm(h, w, b, eps=1e-5):
    mu = jnp.mean(h, axis=-1, keepdims=True)
    var = jnp.mean((h - mu) ** 2, axis=-1, keepdims=True)
    return (h - mu) * jax.lax.rsqrt(var + eps) * w + b


def _gelu_exact(x):
    # matches torch.nn.GELU() default (erf formulation), kept in f32
    return 0.5 * x * (1.0 + jax.lax.erf(x * (1.0 / math.sqrt(2.0))))


# ------------------------- kernel 1: LN1 + QKV ------------------------------

def ln_qkv_kernel(x_ref, ln1w, ln1b, wqkv, bqkv, qkv_ref):
    x = x_ref[...].astype(jnp.float32)                          # (tq, C)
    h = _layer_norm(x, ln1w[...], ln1b[...])
    y = jnp.dot(h.astype(jnp.bfloat16), wqkv[...],
                preferred_element_type=jnp.float32) + bqkv[...]
    qkv_ref[...] = y.astype(qkv_ref.dtype)                      # bf16


# ---------------------- kernel 2: flash attention ---------------------------
# grid = (B, n_head, T//tq); full-T K/V per (b, h) stay resident in VMEM and
# the online-softmax kv loop runs inside the kernel (tkv == tq).

def flash_attn_kernel(q_ref, k_ref, v_ref, o_ref):
    tq, hd = q_ref.shape                                        # q_ref: (tq, hd)
    scale = 1.0 / math.sqrt(hd)
    qi = pl.program_id(2)

    # scale q once (cheaper than scaling every (tq, tkv) score tile)
    q = (q_ref[...].astype(jnp.float32) * scale).astype(jnp.bfloat16)

    def scores(k_tile):
        return jax.lax.dot_general(q, k_tile, (((1,), (1,)), ((), ())),
                                   preferred_element_type=jnp.float32)

    def tile_update(carry, s, v_tile):
        m, l, acc = carry
        m_new = jnp.maximum(m, jnp.max(s, axis=-1, keepdims=True))
        alpha = jnp.exp(m - m_new)
        p = jnp.exp(s - m_new)
        l = alpha * l + jnp.sum(p, axis=-1, keepdims=True)
        acc = alpha * acc + jnp.dot(p.astype(v_tile.dtype), v_tile,
                                    preferred_element_type=jnp.float32)
        return m_new, l, acc

    m0 = jnp.full((tq, 1), _NEG_INF, dtype=jnp.float32)
    l0 = jnp.zeros((tq, 1), dtype=jnp.float32)
    acc0 = jnp.zeros((tq, hd), dtype=jnp.float32)

    # interior (fully-visible) kv tiles: kv in [0, qi) -- no mask work at all
    def body(kv, carry):
        start = pl.multiple_of(kv * tq, tq)
        k_t = k_ref[pl.ds(start, tq), :]
        v_t = v_ref[pl.ds(start, tq), :]
        return tile_update(carry, scores(k_t), v_t)

    m, l, acc = jax.lax.fori_loop(0, qi, body, (m0, l0, acc0))

    # diagonal kv tile: the only one that needs the causal mask
    diag = pl.multiple_of(qi * tq, tq)
    k_t = k_ref[pl.ds(diag, tq), :]
    v_t = v_ref[pl.ds(diag, tq), :]
    s = scores(k_t)
    row = jax.lax.broadcasted_iota(jnp.int32, (tq, tq), 0)
    col = jax.lax.broadcasted_iota(jnp.int32, (tq, tq), 1)
    s = jnp.where(col <= row, s, _NEG_INF)
    m, l, acc = tile_update((m, l, acc), s, v_t)

    inv_l = pl.reciprocal(l, approx=True)
    o_ref[...] = (acc * inv_l).astype(o_ref.dtype)              # (tq, hd) bf16


# ------------- kernel 3: attn proj + residual + LN2 + MLP + residual --------

def proj_mlp_kernel(x_ref, attn_ref, wproj, bproj, ln2w, ln2b,
                    wfc, bfc, wproj2, bproj2, o_ref):
    x = x_ref[...].astype(jnp.float32)                          # (tq, C)
    a = attn_ref[...]                                           # (tq, C) bf16

    y = x + jnp.dot(a, wproj[...],
                    preferred_element_type=jnp.float32) + bproj[...]

    h2 = _layer_norm(y, ln2w[...], ln2b[...])
    fc = jnp.dot(h2.astype(jnp.bfloat16), wfc[...],
                 preferred_element_type=jnp.float32) + bfc[...]
    g = _gelu_exact(fc)
    mlp = jnp.dot(g.astype(jnp.bfloat16), wproj2[...],
                  preferred_element_type=jnp.float32) + bproj2[...]
    o_ref[...] = (y + mlp).astype(o_ref.dtype)                  # bf16 residual


# -------------------- kernel 4a: final LayerNorm (hoisted) -------------------

def lnf_kernel(x_ref, w_ref, b_ref, o_ref):
    h = _layer_norm(x_ref[...].astype(jnp.float32), w_ref[...], b_ref[...])
    o_ref[...] = h.astype(o_ref.dtype)                          # (B, C) bf16


# -------------------- kernel 4b: tied lm_head (vocab tiled) ------------------

def head_kernel(h_ref, wte_ref, o_ref):
    o_ref[...] = jax.lax.dot_general(
        h_ref[...], wte_ref[...],
        dimension_numbers=(((1,), (1,)), ((), ())),
        preferred_element_type=jnp.float32)                     # (B, tv) f32


# ------------------------------ block wrapper --------------------------------

def run_block(x, p, n_head, q_tile):
    B, T, C = x.shape
    hd = C // n_head
    tq = q_tile
    assert T % tq == 0, (T, tq)
    nq = T // tq
    nh = n_head

    def const2(shape):
        return pl.BlockSpec(shape, lambda b, i: (0,) * len(shape))

    # --- 1) LN1 + QKV projection -> (B, T, 3C) bf16 ---
    qkv = pl.pallas_call(
        ln_qkv_kernel,
        out_shape=jax.ShapeDtypeStruct((B, T, 3 * C), jnp.bfloat16),
        grid=(B, nq),
        in_specs=[
            pl.BlockSpec((None, tq, C), lambda b, i: (b, i, 0)),
            const2((1, C)), const2((1, C)),
            const2((C, 3 * C)), const2((1, 3 * C)),
        ],
        out_specs=pl.BlockSpec((None, tq, 3 * C), lambda b, i: (b, i, 0)),
        compiler_params=pltpu.CompilerParams(
            dimension_semantics=("parallel", "parallel"),
            vmem_limit_bytes=_VMEM_LIMIT),
    )(x, p["ln1_w"], p["ln1_b"], p["w_qkv"], p["b_qkv"])

    # --- 2) flash attention, heads on the grid -> (B, T, C) bf16 ---
    # K/V block index is invariant along the innermost q axis -> stays resident.
    attn = pl.pallas_call(
        flash_attn_kernel,
        out_shape=jax.ShapeDtypeStruct((B, T, C), jnp.bfloat16),
        grid=(B, nh, nq),
        in_specs=[
            # q slice of qkv: columns [h*hd, (h+1)*hd)
            pl.BlockSpec((None, tq, hd), lambda b, h, qi: (b, qi, h)),
            # full-T k slice: columns [C + h*hd, ...)
            pl.BlockSpec((None, T, hd), lambda b, h, qi: (b, 0, nh + h)),
            # full-T v slice: columns [2C + h*hd, ...)
            pl.BlockSpec((None, T, hd), lambda b, h, qi: (b, 0, 2 * nh + h)),
        ],
        out_specs=pl.BlockSpec((None, tq, hd), lambda b, h, qi: (b, qi, h)),
        compiler_params=pltpu.CompilerParams(
            dimension_semantics=("parallel", "parallel", "arbitrary"),
            vmem_limit_bytes=_VMEM_LIMIT),
    )(qkv, qkv, qkv)

    # --- 3) proj + residual + LN2 + MLP + residual -> (B, T, C) bf16 ---
    out = pl.pallas_call(
        proj_mlp_kernel,
        out_shape=jax.ShapeDtypeStruct((B, T, C), jnp.bfloat16),
        grid=(B, nq),
        in_specs=[
            pl.BlockSpec((None, tq, C), lambda b, i: (b, i, 0)),
            pl.BlockSpec((None, tq, C), lambda b, i: (b, i, 0)),
            const2((C, C)), const2((1, C)),
            const2((1, C)), const2((1, C)),
            const2((C, 4 * C)), const2((1, 4 * C)),
            const2((4 * C, C)), const2((1, C)),
        ],
        out_specs=pl.BlockSpec((None, tq, C), lambda b, i: (b, i, 0)),
        compiler_params=pltpu.CompilerParams(
            dimension_semantics=("parallel", "parallel"),
            vmem_limit_bytes=_VMEM_LIMIT),
    )(x, attn,
      p["w_proj"], p["b_proj"], p["ln2_w"], p["ln2_b"],
      p["w_fc"], p["b_fc"], p["w_proj2"], p["b_proj2"])

    return out


def run_head(x_last, lnf_w, lnf_b, wte_b, v_tile=2048):
    B, C = x_last.shape
    V = wte_b.shape[0]
    v_tile = min(v_tile, V)
    assert V % v_tile == 0, (V, v_tile)   # TODO(synk): pad vocab for non-multiples

    # LN_f + bf16 cast hoisted out of the vocab loop (computed once).
    h = pl.pallas_call(
        lnf_kernel,
        out_shape=jax.ShapeDtypeStruct((B, C), jnp.bfloat16),
        grid=(1,),
        in_specs=[
            pl.BlockSpec((B, C), lambda j: (0, 0)),
            pl.BlockSpec((1, C), lambda j: (0, 0)),
            pl.BlockSpec((1, C), lambda j: (0, 0)),
        ],
        out_specs=pl.BlockSpec((B, C), lambda j: (0, 0)),
        compiler_params=pltpu.CompilerParams(
            dimension_semantics=("arbitrary",),
            vmem_limit_bytes=_VMEM_LIMIT),
    )(x_last, lnf_w, lnf_b)

    # Pure wte-streaming matmul, large lane-dense vocab tiles.
    return pl.pallas_call(
        head_kernel,
        out_shape=jax.ShapeDtypeStruct((B, V), jnp.float32),
        grid=(V // v_tile,),
        in_specs=[
            pl.BlockSpec((B, C), lambda j: (0, 0)),
            pl.BlockSpec((v_tile, C), lambda j: (j, 0)),
        ],
        out_specs=pl.BlockSpec((B, v_tile), lambda j: (0, j)),
        compiler_params=pltpu.CompilerParams(
            dimension_semantics=("parallel",),
            vmem_limit_bytes=_VMEM_LIMIT),
    )(h, wte_b)


# ------------------------------- parameters ---------------------------------

def init_params(key, *, vocab_size, block_size, n_layer, n_embd):
    C = n_embd
    std = 0.02
    proj_std = 0.02 / math.sqrt(2 * n_layer)

    n_keys = 2 + 4 * n_layer
    keys = jax.random.split(key, n_keys)
    ki = iter(range(n_keys))

    wte = jax.random.normal(keys[next(ki)], (vocab_size, C), jnp.float32) * std
    params = {
        "wte": wte,                                  # f32 for embedding gather
        "wte_head": wte.astype(jnp.bfloat16),        # tied lm_head weight (bf16)
        "wpe": jax.random.normal(keys[next(ki)], (block_size, C), jnp.float32) * std,
        "lnf_w": jnp.ones((1, C), jnp.float32),
        "lnf_b": jnp.zeros((1, C), jnp.float32),
        "blocks": [],
    }
    for _ in range(n_layer):
        blk = {
            "ln1_w": jnp.ones((1, C), jnp.float32),
            "ln1_b": jnp.zeros((1, C), jnp.float32),
            "w_qkv": (jax.random.normal(keys[next(ki)], (C, 3 * C), jnp.float32)
                      * std).astype(jnp.bfloat16),
            "b_qkv": jnp.zeros((1, 3 * C), jnp.float32),
            "w_proj": (jax.random.normal(keys[next(ki)], (C, C), jnp.float32)
                       * proj_std).astype(jnp.bfloat16),
            "b_proj": jnp.zeros((1, C), jnp.float32),
            "ln2_w": jnp.ones((1, C), jnp.float32),
            "ln2_b": jnp.zeros((1, C), jnp.float32),
            "w_fc": (jax.random.normal(keys[next(ki)], (C, 4 * C), jnp.float32)
                     * std).astype(jnp.bfloat16),
            "b_fc": jnp.zeros((1, 4 * C), jnp.float32),
            "w_proj2": (jax.random.normal(keys[next(ki)], (4 * C, C), jnp.float32)
                        * proj_std).astype(jnp.bfloat16),
            "b_proj2": jnp.zeros((1, C), jnp.float32),
        }
        params["blocks"].append(blk)
    return params


# --------------------------------- forward ----------------------------------

def gpt_forward(params, idx, n_head, q_tile=128):
    # idx: (B, T) int32 token ids; returns logits (B, 1, V) like the PyTorch
    # inference path (targets=None).
    B, T = idx.shape
    tok_emb = jnp.take(params["wte"], idx, axis=0)              # (B, T, C)
    pos_emb = params["wpe"][:T][None, :, :]                     # (1, T, C)
    x = (tok_emb + pos_emb).astype(jnp.bfloat16)                # drop = identity (eval)

    for blk in params["blocks"]:
        x = run_block(x, blk, n_head, q_tile)

    x_last = x[:, -1, :]                                        # (B, C) bf16
    logits = run_head(x_last, params["lnf_w"], params["lnf_b"],
                      params["wte_head"])
    return logits[:, None, :]                                   # (B, 1, V)


# ----------------------------------- main ------------------------------------

if __name__ == "__main__":
    # small but lane-dense config consistent with the GPT module structure
    vocab_size = 512        # multiple of 128 (vocab-tiled lm_head)
    block_size = 128
    n_layer = 2
    n_head = 2              # head_dim = 128 (lane-dense)
    n_embd = 256
    batch = 2
    seq = 128
    q_tile = 128            # tq = tkv = 128: lane-dense score tiles, full MXU M-dim

    key = jax.random.PRNGKey(0)
    k_param, k_idx = jax.random.split(key)

    params = init_params(k_param,
                         vocab_size=vocab_size,
                         block_size=block_size,
                         n_layer=n_layer,
                         n_embd=n_embd)

    idx = jax.random.randint(k_idx, (batch, seq), 0, vocab_size, dtype=jnp.int32)

    forward = jax.jit(functools.partial(gpt_forward, n_head=n_head, q_tile=q_tile))
    logits = forward(params, idx)
    logits = jax.block_until_ready(logits)

    assert logits.shape == (batch, 1, vocab_size), logits.shape
    assert bool(jnp.all(jnp.isfinite(logits)))
    print("KERNEL_OK")
</pallas_src>

<mosaic_0001>
module attributes {stable_mosaic.version = 11 : i64} {
  func.func @flash_attn_kernel(%arg0: i32, %arg1: i32, %arg2: i32, %arg3: memref<1x128x128xbf16, #tpu.memory_space<vmem>>, %arg4: memref<1x128x128xbf16, #tpu.memory_space<vmem>>, %arg5: memref<1x128x128xbf16, #tpu.memory_space<vmem>>, %arg6: memref<1x128x128xbf16, #tpu.memory_space<vmem>>) attributes {dimension_semantics = [#tpu.dimension_semantics<parallel>, #tpu.dimension_semantics<parallel>, #tpu.dimension_semantics<arbitrary>], iteration_bounds = array<i64: 2, 2, 1>, scalar_prefetch = 0 : i64, scratch_operands = 0 : i64, tpu.core_type = #tpu.core_type<tc>, window_params = [{transform_indices = @transform_0, window_bounds = array<i64: 1, 128, 128>}, {transform_indices = @transform_1, window_bounds = array<i64: 1, 128, 128>}, {transform_indices = @transform_2, window_bounds = array<i64: 1, 128, 128>}, {transform_indices = @transform_3, window_bounds = array<i64: 1, 128, 128>}]} {
    %c0 = arith.constant 0 : index
    %c0_0 = arith.constant 0 : index
    %c0_1 = arith.constant 0 : index
    %0 = vector.load %arg3[%c0, %c0_0, %c0_1] : memref<1x128x128xbf16, #tpu.memory_space<vmem>>, vector<1x128x128xbf16>
    %1 = vector.shape_cast %0 : vector<1x128x128xbf16> to vector<128x128xbf16>
    %2 = arith.extf %1 : vector<128x128xbf16> to vector<128x128xf32>
    %cst = arith.constant 0.0883883461 : f32
    %3 = vector.broadcast %cst : f32 to vector<128x128xf32>
    %4 = arith.mulf %2, %3 : vector<128x128xf32>
    %5 = arith.truncf %4 : vector<128x128xf32> to vector<128x128xbf16>
    %cst_2 = arith.constant -1.000000e+30 : f32
    %6 = vector.broadcast %cst_2 : f32 to vector<128x1xf32>
    %cst_3 = arith.constant 0.000000e+00 : f32
    %7 = vector.broadcast %cst_3 : f32 to vector<128x1xf32>
    %cst_4 = arith.constant 0.000000e+00 : f32
    %8 = vector.broadcast %cst_4 : f32 to vector<128x128xf32>
    %c0_i32 = arith.constant 0 : i32
    %9 = arith.subi %arg2, %c0_i32 : i32
    %10 = arith.addi %c0_i32, %9 : i32
    %c1_i32 = arith.constant 1 : i32
    %11:3 = scf.for %arg7 = %c0_i32 to %10 step %c1_i32 iter_args(%arg8 = %6, %arg9 = %7, %arg10 = %8) -> (vector<128x1xf32>, vector<128x1xf32>, vector<128x128xf32>)  : i32 {
      %c128_i32_17 = arith.constant 128 : i32
      %50 = arith.muli %arg7, %c128_i32_17 : i32
      %51 = tpu.assume_multiple %50, 128 : i32
      %c0_18 = arith.constant 0 : index
      %52 = arith.index_cast %51 : i32 to index
      %c0_19 = arith.constant 0 : index
      %53 = vector.load %arg4[%c0_18, %52, %c0_19] : memref<1x128x128xbf16, #tpu.memory_space<vmem>>, vector<1x128x128xbf16>
      %54 = vector.shape_cast %53 : vector<1x128x128xbf16> to vector<128x128xbf16>
      %c0_20 = arith.constant 0 : index
      %55 = arith.index_cast %51 : i32 to index
      %c0_21 = arith.constant 0 : index
      %56 = vector.load %arg5[%c0_20, %55, %c0_21] : memref<1x128x128xbf16, #tpu.memory_space<vmem>>, vector<1x128x128xbf16>
      %57 = vector.shape_cast %56 : vector<1x128x128xbf16> to vector<128x128xbf16>
      %cst_22 = arith.constant dense<0.000000e+00> : vector<128x128xf32>
      %58 = tpu.matmul %5, %54, %cst_22 {dimension_numbers = #tpu.dot_dimension_numbers<[1], [1], [0], [0], [0, 0, 1, 0], [], []>} : vector<128x128xbf16>, vector<128x128xbf16>, vector<128x128xf32> -> vector<128x128xf32>
      %cst_23 = arith.constant dense<0xFF800000> : vector<128xf32>
      %59 = vector.multi_reduction <maximumf>, %58, %cst_23 [1] : vector<128x128xf32> to vector<128xf32>
      %60 = vector.shape_cast %59 : vector<128xf32> to vector<128x1xf32>
      %61 = arith.maximumf %arg8, %60 : vector<128x1xf32>
      %62 = arith.subf %arg8, %61 : vector<128x1xf32>
      %63 = math.exp %62 : vector<128x1xf32>
      %64 = vector.broadcast %61 : vector<128x1xf32> to vector<128x128xf32>
      %65 = arith.subf %58, %64 : vector<128x128xf32>
      %66 = math.exp %65 : vector<128x128xf32>
      %67 = arith.mulf %63, %arg9 : vector<128x1xf32>
      %cst_24 = arith.constant dense<0.000000e+00> : vector<128xf32>
      %68 = vector.multi_reduction <add>, %66, %cst_24 [1] : vector<128x128xf32> to vector<128xf32>
      %69 = vector.shape_cast %68 : vector<128xf32> to vector<128x1xf32>
      %70 = arith.addf %67, %69 : vector<128x1xf32>
      %71 = vector.broadcast %63 : vector<128x1xf32> to vector<128x128xf32>
      %72 = arith.mulf %71, %arg10 : vector<128x128xf32>
      %73 = arith.truncf %66 : vector<128x128xf32> to vector<128x128xbf16>
      %cst_25 = arith.constant dense<0.000000e+00> : vector<128x128xf32>
      %74 = tpu.matmul %73, %57, %cst_25 {dimension_numbers = #tpu.dot_dimension_numbers<[1], [0], [0], [1], [0, 0, 1, 1], [], []>} : vector<128x128xbf16>, vector<128x128xbf16>, vector<128x128xf32> -> vector<128x128xf32>
      %75 = arith.addf %72, %74 : vector<128x128xf32>
      scf.yield %61, %70, %75 : vector<128x1xf32>, vector<128x1xf32>, vector<128x128xf32>
    }
    %c128_i32 = arith.constant 128 : i32
    %12 = arith.muli %arg2, %c128_i32 : i32
    %13 = tpu.assume_multiple %12, 128 : i32
    %c0_5 = arith.constant 0 : index
    %14 = arith.index_cast %13 : i32 to index
    %c0_6 = arith.constant 0 : index
    %15 = vector.load %arg4[%c0_5, %14, %c0_6] : memref<1x128x128xbf16, #tpu.memory_space<vmem>>, vector<1x128x128xbf16>
    %16 = vector.shape_cast %15 : vector<1x128x128xbf16> to vector<128x128xbf16>
    %c0_7 = arith.constant 0 : index
    %17 = arith.index_cast %13 : i32 to index
    %c0_8 = arith.constant 0 : index
    %18 = vector.load %arg5[%c0_7, %17, %c0_8] : memref<1x128x128xbf16, #tpu.memory_space<vmem>>, vector<1x128x128xbf16>
    %19 = vector.shape_cast %18 : vector<1x128x128xbf16> to vector<128x128xbf16>
    %cst_9 = arith.constant dense<0.000000e+00> : vector<128x128xf32>
    %20 = tpu.matmul %5, %16, %cst_9 {dimension_numbers = #tpu.dot_dimension_numbers<[1], [1], [0], [0], [0, 0, 1, 0], [], []>} : vector<128x128xbf16>, vector<128x128xbf16>, vector<128x128xf32> -> vector<128x128xf32>
    %21 = tpu.iota {dimensions = array<i32: 0>} : vector<128x128xi32>
    %22 = tpu.iota {dimensions = array<i32: 1>} : vector<128x128xi32>
    %23 = arith.cmpi sle, %22, %21 : vector<128x128xi32>
    %cst_10 = arith.constant -1.000000e+30 : f32
    %24 = vector.broadcast %cst_10 : f32 to vector<128x128xf32>
    %25 = arith.select %23, %20, %24 : vector<128x128xi1>, vector<128x128xf32>
    %cst_11 = arith.constant dense<0xFF800000> : vector<128xf32>
    %26 = vector.multi_reduction <maximumf>, %25, %cst_11 [1] : vector<128x128xf32> to vector<128xf32>
    %27 = vector.shape_cast %26 : vector<128xf32> to vector<128x1xf32>
    %28 = arith.maximumf %11#0, %27 : vector<128x1xf32>
    %29 = arith.subf %11#0, %28 : vector<128x1xf32>
    %30 = math.exp %29 : vector<128x1xf32>
    %31 = vector.broadcast %28 : vector<128x1xf32> to vector<128x128xf32>
    %32 = arith.subf %25, %31 : vector<128x128xf32>
    %33 = math.exp %32 : vector<128x128xf32>
    %34 = arith.mulf %30, %11#1 : vector<128x1xf32>
    %cst_12 = arith.constant dense<0.000000e+00> : vector<128xf32>
    %35 = vector.multi_reduction <add>, %33, %cst_12 [1] : vector<128x128xf32> to vector<128xf32>
    %36 = vector.shape_cast %35 : vector<128xf32> to vector<128x1xf32>
    %37 = arith.addf %34, %36 : vector<128x1xf32>
    %38 = vector.broadcast %30 : vector<128x1xf32> to vector<128x128xf32>
    %39 = arith.mulf %38, %11#2 : vector<128x128xf32>
    %40 = arith.truncf %33 : vector<128x128xf32> to vector<128x128xbf16>
    %cst_13 = arith.constant dense<0.000000e+00> : vector<128x128xf32>
    %41 = tpu.matmul %40, %19, %cst_13 {dimension_numbers = #tpu.dot_dimension_numbers<[1], [0], [0], [1], [0, 0, 1, 1], [], []>} : vector<128x128xbf16>, vector<128x128xbf16>, vector<128x128xf32> -> vector<128x128xf32>
    %42 = arith.addf %39, %41 : vector<128x128xf32>
    %43 = tpu.reciprocal %37 {approx = true} : vector<128x1xf32> -> vector<128x1xf32>
    %44 = vector.broadcast %43 : vector<128x1xf32> to vector<128x128xf32>
    %45 = arith.mulf %42, %44 : vector<128x128xf32>
    %46 = arith.truncf %45 : vector<128x128xf32> to vector<128x128xbf16>
    %c0_14 = arith.constant 0 : index
    %c0_15 = arith.constant 0 : index
    %c0_16 = arith.constant 0 : index
    %47 = vector.load %arg6[%c0_14, %c0_15, %c0_16] : memref<1x128x128xbf16, #tpu.memory_space<vmem>>, vector<1x128x128xbf16>
    %48 = vector.shape_cast %47 : vector<1x128x128xbf16> to vector<128x128xbf16>
    %49 = vector.shape_cast %46 : vector<128x128xbf16> to vector<1x128x128xbf16>
    tpu.vector_store %arg6[%c0_14, %c0_15, %c0_16], %49 {strides = array<i32>} : memref<1x128x128xbf16, #tpu.memory_space<vmem>>, vector<1x128x128xbf16>,
    return
  }
  func.func @transform_0(%arg0: i32, %arg1: i32, %arg2: i32) -> (i32, i32, i32) {
    %c0_i32 = arith.constant 0 : i32
    return %arg0, %arg2, %arg1 : i32, i32, i32
  }
  func.func @transform_1(%arg0: i32, %arg1: i32, %arg2: i32) -> (i32, i32, i32) {
    %c2_i32 = arith.constant 2 : i32
    %0 = arith.addi %c2_i32, %arg1 : i32
    %c0_i32 = arith.constant 0 : i32
    %c0_i32_0 = arith.constant 0 : i32
    return %arg0, %c0_i32, %0 : i32, i32, i32
  }
  func.func @transform_2(%arg0: i32, %arg1: i32, %arg2: i32) -> (i32, i32, i32) {
    %c4_i32 = arith.constant 4 : i32
    %0 = arith.addi %c4_i32, %arg1 : i32
    %c0_i32 = arith.constant 0 : i32
    %c0_i32_0 = arith.constant 0 : i32
    return %arg0, %c0_i32, %0 : i32, i32, i32
  }
  func.func @transform_3(%arg0: i32, %arg1: i32, %arg2: i32) -> (i32, i32, i32) {
    %c0_i32 = arith.constant 0 : i32
    return %arg0, %arg2, %arg1 : i32, i32, i32
  }
}

module attributes {stable_mosaic.version = 11 : i64} {
  func.func @proj_mlp_kernel(%arg0: i32, %arg1: i32, %arg2: memref<1x128x256xbf16, #tpu.memory_space<vmem>>, %arg3: memref<1x128x256xbf16, #tpu.memory_space<vmem>>, %arg4: memref<256x256xbf16, #tpu.memory_space<vmem>>, %arg5: memref<1x256xf32, #tpu.memory_space<vmem>>, %arg6: memref<1x256xf32, #tpu.memory_space<vmem>>, %arg7: memref<1x256xf32, #tpu.memory_space<vmem>>, %arg8: memref<256x1024xbf16, #tpu.memory_space<vmem>>, %arg9: memref<1x1024xf32, #tpu.memory_space<vmem>>, %arg10: memref<1024x256xbf16, #tpu.memory_space<vmem>>, %arg11: memref<1x256xf32, #tpu.memory_space<vmem>>, %arg12: memref<1x128x256xbf16, #tpu.memory_space<vmem>>) attributes {dimension_semantics = [#tpu.dimension_semantics<parallel>, #tpu.dimension_semantics<parallel>], iteration_bounds = array<i64: 2, 1>, scalar_prefetch = 0 : i64, scratch_operands = 0 : i64, tpu.core_type = #tpu.core_type<tc>, window_params = [{transform_indices = @transform_0, window_bounds = array<i64: 1, 128, 256>}, {transform_indices = @transform_1, window_bounds = array<i64: 1, 128, 256>}, {pipeline_mode = #tpu.pipeline_mode<synchronous>, transform_indices = @transform_2, window_bounds = array<i64: 256, 256>}, {pipeline_mode = #tpu.pipeline_mode<synchronous>, transform_indices = @transform_3, window_bounds = array<i64: 1, 256>}, {pipeline_mode = #tpu.pipeline_mode<synchronous>, transform_indices = @transform_4, window_bounds = array<i64: 1, 256>}, {pipeline_mode = #tpu.pipeline_mode<synchronous>, transform_indices = @transform_5, window_bounds = array<i64: 1, 256>}, {pipeline_mode = #tpu.pipeline_mode<synchronous>, transform_indices = @transform_6, window_bounds = array<i64: 256, 1024>}, {pipeline_mode = #tpu.pipeline_mode<synchronous>, transform_indices = @transform_7, window_bounds = array<i64: 1, 1024>}, {pipeline_mode = #tpu.pipeline_mode<synchronous>, transform_indices = @transform_8, window_bounds = array<i64: 1024, 256>}, {pipeline_mode = #tpu.pipeline_mode<synchronous>, transform_indices = @transform_9, window_bounds = array<i64: 1, 256>}, {transform_indices = @transform_10, window_bounds = array<i64: 1, 128, 256>}]} {
    %c0 = arith.constant 0 : index
    %c0_0 = arith.constant 0 : index
    %c0_1 = arith.constant 0 : index
    %0 = vector.load %arg2[%c0, %c0_0, %c0_1] : memref<1x128x256xbf16, #tpu.memory_space<vmem>>, vector<1x128x256xbf16>
    %1 = vector.shape_cast %0 : vector<1x128x256xbf16> to vector<128x256xbf16>
    %2 = arith.extf %1 : vector<128x256xbf16> to vector<128x256xf32>
    %c0_2 = arith.constant 0 : index
    %c0_3 = arith.constant 0 : index
    %c0_4 = arith.constant 0 : index
    %3 = vector.load %arg3[%c0_2, %c0_3, %c0_4] : memref<1x128x256xbf16, #tpu.memory_space<vmem>>, vector<1x128x256xbf16>
    %4 = vector.shape_cast %3 : vector<1x128x256xbf16> to vector<128x256xbf16>
    %c0_5 = arith.constant 0 : index
    %c0_6 = arith.constant 0 : index
    %5 = vector.load %arg4[%c0_5, %c0_6] : memref<256x256xbf16, #tpu.memory_space<vmem>>, vector<256x256xbf16>
    %cst = arith.constant dense<0.000000e+00> : vector<128x256xf32>
    %6 = tpu.matmul %4, %5, %cst {dimension_numbers = #tpu.dot_dimension_numbers<[1], [0], [0], [1], [0, 0, 1, 1], [], []>} : vector<128x256xbf16>, vector<256x256xbf16>, vector<128x256xf32> -> vector<128x256xf32>
    %7 = arith.addf %2, %6 : vector<128x256xf32>
    %c0_7 = arith.constant 0 : index
    %c0_8 = arith.constant 0 : index
    %8 = vector.load %arg5[%c0_7, %c0_8] : memref<1x256xf32, #tpu.memory_space<vmem>>, vector<1x256xf32>
    %9 = vector.broadcast %8 : vector<1x256xf32> to vector<128x256xf32>
    %10 = arith.addf %7, %9 : vector<128x256xf32>
    %c0_9 = arith.constant 0 : index
    %c0_10 = arith.constant 0 : index
    %11 = vector.load %arg6[%c0_9, %c0_10] : memref<1x256xf32, #tpu.memory_space<vmem>>, vector<1x256xf32>
    %c0_11 = arith.constant 0 : index
    %c0_12 = arith.constant 0 : index
    %12 = vector.load %arg7[%c0_11, %c0_12] : memref<1x256xf32, #tpu.memory_space<vmem>>, vector<1x256xf32>
    %cst_13 = arith.constant dense<0.000000e+00> : vector<128xf32>
    %13 = vector.multi_reduction <add>, %10, %cst_13 [1] : vector<128x256xf32> to vector<128xf32>
    %14 = vector.shape_cast %13 : vector<128xf32> to vector<128x1xf32>
    %cst_14 = arith.constant 2.560000e+02 : f32
    %15 = vector.broadcast %cst_14 : f32 to vector<128x1xf32>
    %16 = arith.divf %14, %15 : vector<128x1xf32>
    %17 = vector.broadcast %16 : vector<128x1xf32> to vector<128x256xf32>
    %18 = arith.subf %10, %17 : vector<128x256xf32>
    %19 = arith.mulf %18, %18 : vector<128x256xf32>
    %cst_15 = arith.constant dense<0.000000e+00> : vector<128xf32>
    %20 = vector.multi_reduction <add>, %19, %cst_15 [1] : vector<128x256xf32> to vector<128xf32>
    %21 = vector.shape_cast %20 : vector<128xf32> to vector<128x1xf32>
    %cst_16 = arith.constant 2.560000e+02 : f32
    %22 = vector.broadcast %cst_16 : f32 to vector<128x1xf32>
    %23 = arith.divf %21, %22 : vector<128x1xf32>
    %24 = vector.broadcast %16 : vector<128x1xf32> to vector<128x256xf32>
    %25 = arith.subf %10, %24 : vector<128x256xf32>
    %cst_17 = arith.constant 9.99999974E-6 : f32
    %26 = vector.broadcast %cst_17 : f32 to vector<128x1xf32>
    %27 = arith.addf %23, %26 : vector<128x1xf32>
    %28 = math.rsqrt %27 : vector<128x1xf32>
    %29 = vector.broadcast %28 : vector<128x1xf32> to vector<128x256xf32>
    %30 = arith.mulf %25, %29 : vector<128x256xf32>
    %31 = vector.broadcast %11 : vector<1x256xf32> to vector<128x256xf32>
    %32 = arith.mulf %30, %31 : vector<128x256xf32>
    %33 = vector.broadcast %12 : vector<1x256xf32> to vector<128x256xf32>
    %34 = arith.addf %32, %33 : vector<128x256xf32>
    %35 = arith.truncf %34 : vector<128x256xf32> to vector<128x256xbf16>
    %c0_18 = arith.constant 0 : index
    %c0_19 = arith.constant 0 : index
    %36 = vector.load %arg8[%c0_18, %c0_19] : memref<256x1024xbf16, #tpu.memory_space<vmem>>, vector<256x1024xbf16>
    %cst_20 = arith.constant dense<0.000000e+00> : vector<128x1024xf32>
    %37 = tpu.matmul %35, %36, %cst_20 {dimension_numbers = #tpu.dot_dimension_numbers<[1], [0], [0], [1], [0, 0, 1, 1], [], []>} : vector<128x256xbf16>, vector<256x1024xbf16>, vector<128x1024xf32> -> vector<128x1024xf32>
    %c0_21 = arith.constant 0 : index
    %c0_22 = arith.constant 0 : index
    %38 = vector.load %arg9[%c0_21, %c0_22] : memref<1x1024xf32, #tpu.memory_space<vmem>>, vector<1x1024xf32>
    %39 = vector.broadcast %38 : vector<1x1024xf32> to vector<128x1024xf32>
    %40 = arith.addf %37, %39 : vector<128x1024xf32>
    %cst_23 = arith.constant 5.000000e-01 : f32
    %41 = vector.broadcast %cst_23 : f32 to vector<128x1024xf32>
    %42 = arith.mulf %41, %40 : vector<128x1024xf32>
    %cst_24 = arith.constant 0.707106769 : f32
    %43 = vector.broadcast %cst_24 : f32 to vector<128x1024xf32>
    %44 = arith.mulf %40, %43 : vector<128x1024xf32>
    %45 = math.erf %44 : vector<128x1024xf32>
    %cst_25 = arith.constant 1.000000e+00 : f32
    %46 = vector.broadcast %cst_25 : f32 to vector<128x1024xf32>
    %47 = arith.addf %46, %45 : vector<128x1024xf32>
    %48 = arith.mulf %42, %47 : vector<128x1024xf32>
    %49 = arith.truncf %48 : vector<128x1024xf32> to vector<128x1024xbf16>
    %c0_26 = arith.constant 0 : index
    %c0_27 = arith.constant 0 : index
    %50 = vector.load %arg10[%c0_26, %c0_27] : memref<1024x256xbf16, #tpu.memory_space<vmem>>, vector<1024x256xbf16>
    %cst_28 = arith.constant dense<0.000000e+00> : vector<128x256xf32>
    %51 = tpu.matmul %49, %50, %cst_28 {dimension_numbers = #tpu.dot_dimension_numbers<[1], [0], [0], [1], [0, 0, 1, 1], [], []>} : vector<128x1024xbf16>, vector<1024x256xbf16>, vector<128x256xf32> -> vector<128x256xf32>
    %c0_29 = arith.constant 0 : index
    %c0_30 = arith.constant 0 : index
    %52 = vector.load %arg11[%c0_29, %c0_30] : memref<1x256xf32, #tpu.memory_space<vmem>>, vector<1x256xf32>
    %53 = vector.broadcast %52 : vector<1x256xf32> to vector<128x256xf32>
    %54 = arith.addf %51, %53 : vector<128x256xf32>
    %55 = arith.addf %10, %54 : vector<128x256xf32>
    %56 = arith.truncf %55 : vector<128x256xf32> to vector<128x256xbf16>
    %c0_31 = arith.constant 0 : index
    %c0_32 = arith.constant 0 : index
    %c0_33 = arith.constant 0 : index
    %57 = vector.load %arg12[%c0_31, %c0_32, %c0_33] : memref<1x128x256xbf16, #tpu.memory_space<vmem>>, vector<1x128x256xbf16>
    %58 = vector.shape_cast %57 : vector<1x128x256xbf16> to vector<128x256xbf16>
    %59 = vector.shape_cast %56 : vector<128x256xbf16> to vector<1x128x256xbf16>
    tpu.vector_store %arg12[%c0_31, %c0_32, %c0_33], %59 {strides = array<i32>} : memref<1x128x256xbf16, #tpu.memory_space<vmem>>, vector<1x128x256xbf16>,
    return
  }
  func.func @transform_0(%arg0: i32, %arg1: i32) -> (i32, i32, i32) {
    %c0_i32 = arith.constant 0 : i32
    %c0_i32_0 = arith.constant 0 : i32
    return %arg0, %arg1, %c0_i32 : i32, i32, i32
  }
  func.func @transform_1(%arg0: i32, %arg1: i32) -> (i32, i32, i32) {
    %c0_i32 = arith.constant 0 : i32
    %c0_i32_0 = arith.constant 0 : i32
    return %arg0, %arg1, %c0_i32 : i32, i32, i32
  }
  func.func @transform_2(%arg0: i32, %arg1: i32) -> (i32, i32) {
    %c0_i32 = arith.constant 0 : i32
    %c0_i32_0 = arith.constant 0 : i32
    %c0_i32_1 = arith.constant 0 : i32
    return %c0_i32, %c0_i32_0 : i32, i32
  }
  func.func @transform_3(%arg0: i32, %arg1: i32) -> (i32, i32) {
    %c0_i32 = arith.constant 0 : i32
    %c0_i32_0 = arith.constant 0 : i32
    %c0_i32_1 = arith.constant 0 : i32
    return %c0_i32, %c0_i32_0 : i32, i32
  }
  func.func @transform_4(%arg0: i32, %arg1: i32) -> (i32, i32) {
    %c0_i32 = arith.constant 0 : i32
    %c0_i32_0 = arith.constant 0 : i32
    %c0_i32_1 = arith.constant 0 : i32
    return %c0_i32, %c0_i32_0 : i32, i32
  }
  func.func @transform_5(%arg0: i32, %arg1: i32) -> (i32, i32) {
    %c0_i32 = arith.constant 0 : i32
    %c0_i32_0 = arith.constant 0 : i32
    %c0_i32_1 = arith.constant 0 : i32
    return %c0_i32, %c0_i32_0 : i32, i32
  }
  func.func @transform_6(%arg0: i32, %arg1: i32) -> (i32, i32) {
    %c0_i32 = arith.constant 0 : i32
    %c0_i32_0 = arith.constant 0 : i32
    %c0_i32_1 = arith.constant 0 : i32
    return %c0_i32, %c0_i32_0 : i32, i32
  }
  func.func @transform_7(%arg0: i32, %arg1: i32) -> (i32, i32) {
    %c0_i32 = arith.constant 0 : i32
    %c0_i32_0 = arith.constant 0 : i32
    %c0_i32_1 = arith.constant 0 : i32
    return %c0_i32, %c0_i32_0 : i32, i32
  }
  func.func @transform_8(%arg0: i32, %arg1: i32) -> (i32, i32) {
    %c0_i32 = arith.constant 0 : i32
    %c0_i32_0 = arith.constant 0 : i32
    %c0_i32_1 = arith.constant 0 : i32
    return %c0_i32, %c0_i32_0 : i32, i32
  }
  func.func @transform_9(%arg0: i32, %arg1: i32) -> (i32, i32) {
    %c0_i32 = arith.constant 0 : i32
    %c0_i32_0 = arith.constant 0 : i32
    %c0_i32_1 = arith.constant 0 : i32
    return %c0_i32, %c0_i32_0 : i32, i32
  }
  func.func @transform_10(%arg0: i32, %arg1: i32) -> (i32, i32, i32) {
    %c0_i32 = arith.constant 0 : i32
    %c0_i32_0 = arith.constant 0 : i32
    return %arg0, %arg1, %c0_i32 : i32, i32, i32
  }
}

module attributes {stable_mosaic.version = 11 : i64} {
  func.func @lnf_kernel(%arg0: i32, %arg1: memref<2x256xbf16, #tpu.memory_space<vmem>>, %arg2: memref<1x256xf32, #tpu.memory_space<vmem>>, %arg3: memref<1x256xf32, #tpu.memory_space<vmem>>, %arg4: memref<2x256xbf16, #tpu.memory_space<vmem>>) attributes {dimension_semantics = [#tpu.dimension_semantics<arbitrary>], iteration_bounds = array<i64: 1>, scalar_prefetch = 0 : i64, scratch_operands = 0 : i64, tpu.core_type = #tpu.core_type<tc>, window_params = [{pipeline_mode = #tpu.pipeline_mode<synchronous>, transform_indices = @transform_0, window_bounds = array<i64: 2, 256>}, {pipeline_mode = #tpu.pipeline_mode<synchronous>, transform_indices = @transform_1, window_bounds = array<i64: 1, 256>}, {pipeline_mode = #tpu.pipeline_mode<synchronous>, transform_indices = @transform_2, window_bounds = array<i64: 1, 256>}, {pipeline_mode = #tpu.pipeline_mode<synchronous>, transform_indices = @transform_3, window_bounds = array<i64: 2, 256>}]} {
    %c0 = arith.constant 0 : index
    %c0_0 = arith.constant 0 : index
    %0 = vector.load %arg1[%c0, %c0_0] : memref<2x256xbf16, #tpu.memory_space<vmem>>, vector<2x256xbf16>
    %1 = arith.extf %0 : vector<2x256xbf16> to vector<2x256xf32>
    %c0_1 = arith.constant 0 : index
    %c0_2 = arith.constant 0 : index
    %2 = vector.load %arg2[%c0_1, %c0_2] : memref<1x256xf32, #tpu.memory_space<vmem>>, vector<1x256xf32>
    %c0_3 = arith.constant 0 : index
    %c0_4 = arith.constant 0 : index
    %3 = vector.load %arg3[%c0_3, %c0_4] : memref<1x256xf32, #tpu.memory_space<vmem>>, vector<1x256xf32>
    %cst = arith.constant dense<0.000000e+00> : vector<2xf32>
    %4 = vector.multi_reduction <add>, %1, %cst [1] : vector<2x256xf32> to vector<2xf32>
    %5 = vector.shape_cast %4 : vector<2xf32> to vector<2x1xf32>
    %cst_5 = arith.constant 2.560000e+02 : f32
    %6 = vector.broadcast %cst_5 : f32 to vector<2x1xf32>
    %7 = arith.divf %5, %6 : vector<2x1xf32>
    %8 = vector.broadcast %7 : vector<2x1xf32> to vector<2x256xf32>
    %9 = arith.subf %1, %8 : vector<2x256xf32>
    %10 = arith.mulf %9, %9 : vector<2x256xf32>
    %cst_6 = arith.constant dense<0.000000e+00> : vector<2xf32>
    %11 = vector.multi_reduction <add>, %10, %cst_6 [1] : vector<2x256xf32> to vector<2xf32>
    %12 = vector.shape_cast %11 : vector<2xf32> to vector<2x1xf32>
    %cst_7 = arith.constant 2.560000e+02 : f32
    %13 = vector.broadcast %cst_7 : f32 to vector<2x1xf32>
    %14 = arith.divf %12, %13 : vector<2x1xf32>
    %15 = vector.broadcast %7 : vector<2x1xf32> to vector<2x256xf32>
    %16 = arith.subf %1, %15 : vector<2x256xf32>
    %cst_8 = arith.constant 9.99999974E-6 : f32
    %17 = vector.broadcast %cst_8 : f32 to vector<2x1xf32>
    %18 = arith.addf %14, %17 : vector<2x1xf32>
    %19 = math.rsqrt %18 : vector<2x1xf32>
    %20 = vector.broadcast %19 : vector<2x1xf32> to vector<2x256xf32>
    %21 = arith.mulf %16, %20 : vector<2x256xf32>
    %22 = vector.broadcast %2 : vector<1x256xf32> to vector<2x256xf32>
    %23 = arith.mulf %21, %22 : vector<2x256xf32>
    %24 = vector.broadcast %3 : vector<1x256xf32> to vector<2x256xf32>
    %25 = arith.addf %23, %24 : vector<2x256xf32>
    %26 = arith.truncf %25 : vector<2x256xf32> to vector<2x256xbf16>
    %c0_9 = arith.constant 0 : index
    %c0_10 = arith.constant 0 : index
    %27 = vector.load %arg4[%c0_9, %c0_10] : memref<2x256xbf16, #tpu.memory_space<vmem>>, vector<2x256xbf16>
    tpu.vector_store %arg4[%c0_9, %c0_10], %26 {strides = array<i32>} : memref<2x256xbf16, #tpu.memory_space<vmem>>, vector<2x256xbf16>,
    return
  }
  func.func @transform_0(%arg0: i32) -> (i32, i32) {
    %c0_i32 = arith.constant 0 : i32
    %c0_i32_0 = arith.constant 0 : i32
    %c0_i32_1 = arith.constant 0 : i32
    return %c0_i32, %c0_i32_0 : i32, i32
  }
  func.func @transform_1(%arg0: i32) -> (i32, i32) {
    %c0_i32 = arith.constant 0 : i32
    %c0_i32_0 = arith.constant 0 : i32
    %c0_i32_1 = arith.constant 0 : i32
    return %c0_i32, %c0_i32_0 : i32, i32
  }
  func.func @transform_2(%arg0: i32) -> (i32, i32) {
    %c0_i32 = arith.constant 0 : i32
    %c0_i32_0 = arith.constant 0 : i32
    %c0_i32_1 = arith.constant 0 : i32
    return %c0_i32, %c0_i32_0 : i32, i32
  }
  func.func @transform_3(%arg0: i32) -> (i32, i32) {
    %c0_i32 = arith.constant 0 : i32
    %c0_i32_0 = arith.constant 0 : i32
    %c0_i32_1 = arith.constant 0 : i32
    return %c0_i32, %c0_i32_0 : i32, i32
  }
}

module attributes {stable_mosaic.version = 11 : i64} {
  func.func @ln_qkv_kernel(%arg0: i32, %arg1: i32, %arg2: memref<1x128x256xbf16, #tpu.memory_space<vmem>>, %arg3: memref<1x256xf32, #tpu.memory_space<vmem>>, %arg4: memref<1x256xf32, #tpu.memory_space<vmem>>, %arg5: memref<256x768xbf16, #tpu.memory_space<vmem>>, %arg6: memref<1x768xf32, #tpu.memory_space<vmem>>, %arg7: memref<1x128x768xbf16, #tpu.memory_space<vmem>>) attributes {dimension_semantics = [#tpu.dimension_semantics<parallel>, #tpu.dimension_semantics<parallel>], iteration_bounds = array<i64: 2, 1>, scalar_prefetch = 0 : i64, scratch_operands = 0 : i64, tpu.core_type = #tpu.core_type<tc>, window_params = [{transform_indices = @transform_0, window_bounds = array<i64: 1, 128, 256>}, {pipeline_mode = #tpu.pipeline_mode<synchronous>, transform_indices = @transform_1, window_bounds = array<i64: 1, 256>}, {pipeline_mode = #tpu.pipeline_mode<synchronous>, transform_indices = @transform_2, window_bounds = array<i64: 1, 256>}, {pipeline_mode = #tpu.pipeline_mode<synchronous>, transform_indices = @transform_3, window_bounds = array<i64: 256, 768>}, {pipeline_mode = #tpu.pipeline_mode<synchronous>, transform_indices = @transform_4, window_bounds = array<i64: 1, 768>}, {transform_indices = @transform_5, window_bounds = array<i64: 1, 128, 768>}]} {
    %c0 = arith.constant 0 : index
    %c0_0 = arith.constant 0 : index
    %c0_1 = arith.constant 0 : index
    %0 = vector.load %arg2[%c0, %c0_0, %c0_1] : memref<1x128x256xbf16, #tpu.memory_space<vmem>>, vector<1x128x256xbf16>
    %1 = vector.shape_cast %0 : vector<1x128x256xbf16> to vector<128x256xbf16>
    %2 = arith.extf %1 : vector<128x256xbf16> to vector<128x256xf32>
    %c0_2 = arith.constant 0 : index
    %c0_3 = arith.constant 0 : index
    %3 = vector.load %arg3[%c0_2, %c0_3] : memref<1x256xf32, #tpu.memory_space<vmem>>, vector<1x256xf32>
    %c0_4 = arith.constant 0 : index
    %c0_5 = arith.constant 0 : index
    %4 = vector.load %arg4[%c0_4, %c0_5] : memref<1x256xf32, #tpu.memory_space<vmem>>, vector<1x256xf32>
    %cst = arith.constant dense<0.000000e+00> : vector<128xf32>
    %5 = vector.multi_reduction <add>, %2, %cst [1] : vector<128x256xf32> to vector<128xf32>
    %6 = vector.shape_cast %5 : vector<128xf32> to vector<128x1xf32>
    %cst_6 = arith.constant 2.560000e+02 : f32
    %7 = vector.broadcast %cst_6 : f32 to vector<128x1xf32>
    %8 = arith.divf %6, %7 : vector<128x1xf32>
    %9 = vector.broadcast %8 : vector<128x1xf32> to vector<128x256xf32>
    %10 = arith.subf %2, %9 : vector<128x256xf32>
    %11 = arith.mulf %10, %10 : vector<128x256xf32>
    %cst_7 = arith.constant dense<0.000000e+00> : vector<128xf32>
    %12 = vector.multi_reduction <add>, %11, %cst_7 [1] : vector<128x256xf32> to vector<128xf32>
    %13 = vector.shape_cast %12 : vector<128xf32> to vector<128x1xf32>
    %cst_8 = arith.constant 2.560000e+02 : f32
    %14 = vector.broadcast %cst_8 : f32 to vector<128x1xf32>
    %15 = arith.divf %13, %14 : vector<128x1xf32>
    %16 = vector.broadcast %8 : vector<128x1xf32> to vector<128x256xf32>
    %17 = arith.subf %2, %16 : vector<128x256xf32>
    %cst_9 = arith.constant 9.99999974E-6 : f32
    %18 = vector.broadcast %cst_9 : f32 to vector<128x1xf32>
    %19 = arith.addf %15, %18 : vector<128x1xf32>
    %20 = math.rsqrt %19 : vector<128x1xf32>
    %21 = vector.broadcast %20 : vector<128x1xf32> to vector<128x256xf32>
    %22 = arith.mulf %17, %21 : vector<128x256xf32>
    %23 = vector.broadcast %3 : vector<1x256xf32> to vector<128x256xf32>
    %24 = arith.mulf %22, %23 : vector<128x256xf32>
    %25 = vector.broadcast %4 : vector<1x256xf32> to vector<128x256xf32>
    %26 = arith.addf %24, %25 : vector<128x256xf32>
    %27 = arith.truncf %26 : vector<128x256xf32> to vector<128x256xbf16>
    %c0_10 = arith.constant 0 : index
    %c0_11 = arith.constant 0 : index
    %28 = vector.load %arg5[%c0_10, %c0_11] : memref<256x768xbf16, #tpu.memory_space<vmem>>, vector<256x768xbf16>
    %cst_12 = arith.constant dense<0.000000e+00> : vector<128x768xf32>
    %29 = tpu.matmul %27, %28, %cst_12 {dimension_numbers = #tpu.dot_dimension_numbers<[1], [0], [0], [1], [0, 0, 1, 1], [], []>} : vector<128x256xbf16>, vector<256x768xbf16>, vector<128x768xf32> -> vector<128x768xf32>
    %c0_13 = arith.constant 0 : index
    %c0_14 = arith.constant 0 : index
    %30 = vector.load %arg6[%c0_13, %c0_14] : memref<1x768xf32, #tpu.memory_space<vmem>>, vector<1x768xf32>
    %31 = vector.broadcast %30 : vector<1x768xf32> to vector<128x768xf32>
    %32 = arith.addf %29, %31 : vector<128x768xf32>
    %33 = arith.truncf %32 : vector<128x768xf32> to vector<128x768xbf16>
    %c0_15 = arith.constant 0 : index
    %c0_16 = arith.constant 0 : index
    %c0_17 = arith.constant 0 : index
    %34 = vector.load %arg7[%c0_15, %c0_16, %c0_17] : memref<1x128x768xbf16, #tpu.memory_space<vmem>>, vector<1x128x768xbf16>
    %35 = vector.shape_cast %34 : vector<1x128x768xbf16> to vector<128x768xbf16>
    %36 = vector.shape_cast %33 : vector<128x768xbf16> to vector<1x128x768xbf16>
    tpu.vector_store %arg7[%c0_15, %c0_16, %c0_17], %36 {strides = array<i32>} : memref<1x128x768xbf16, #tpu.memory_space<vmem>>, vector<1x128x768xbf16>,
    return
  }
  func.func @transform_0(%arg0: i32, %arg1: i32) -> (i32, i32, i32) {
    %c0_i32 = arith.constant 0 : i32
    %c0_i32_0 = arith.constant 0 : i32
    return %arg0, %arg1, %c0_i32 : i32, i32, i32
  }
  func.func @transform_1(%arg0: i32, %arg1: i32) -> (i32, i32) {
    %c0_i32 = arith.constant 0 : i32
    %c0_i32_0 = arith.constant 0 : i32
    %c0_i32_1 = arith.constant 0 : i32
    return %c0_i32, %c0_i32_0 : i32, i32
  }
  func.func @transform_2(%arg0: i32, %arg1: i32) -> (i32, i32) {
    %c0_i32 = arith.constant 0 : i32
    %c0_i32_0 = arith.constant 0 : i32
    %c0_i32_1 = arith.constant 0 : i32
    return %c0_i32, %c0_i32_0 : i32, i32
  }
  func.func @transform_3(%arg0: i32, %arg1: i32) -> (i32, i32) {
    %c0_i32 = arith.constant 0 : i32
    %c0_i32_0 = arith.constant 0 : i32
    %c0_i32_1 = arith.constant 0 : i32
    return %c0_i32, %c0_i32_0 : i32, i32
  }
  func.func @transform_4(%arg0: i32, %arg1: i32) -> (i32, i32) {
    %c0_i32 = arith.constant 0 : i32
    %c0_i32_0 = arith.constant 0 : i32
    %c0_i32_1 = arith.constant 0 : i32
    return %c0_i32, %c0_i32_0 : i32, i32
  }
  func.func @transform_5(%arg0: i32, %arg1: i32) -> (i32, i32, i32) {
    %c0_i32 = arith.constant 0 : i32
    %c0_i32_0 = arith.constant 0 : i32
    return %arg0, %arg1, %c0_i32 : i32, i32, i32
  }
}

module attributes {stable_mosaic.version = 11 : i64} {
  func.func @head_kernel(%arg0: i32, %arg1: memref<2x256xbf16, #tpu.memory_space<vmem>>, %arg2: memref<512x256xbf16, #tpu.memory_space<vmem>>, %arg3: memref<2x512xf32, #tpu.memory_space<vmem>>) attributes {dimension_semantics = [#tpu.dimension_semantics<parallel>], iteration_bounds = array<i64: 1>, scalar_prefetch = 0 : i64, scratch_operands = 0 : i64, tpu.core_type = #tpu.core_type<tc>, window_params = [{pipeline_mode = #tpu.pipeline_mode<synchronous>, transform_indices = @transform_0, window_bounds = array<i64: 2, 256>}, {transform_indices = @transform_1, window_bounds = array<i64: 512, 256>}, {transform_indices = @transform_2, window_bounds = array<i64: 2, 512>}]} {
    %c0 = arith.constant 0 : index
    %c0_0 = arith.constant 0 : index
    %0 = vector.load %arg1[%c0, %c0_0] : memref<2x256xbf16, #tpu.memory_space<vmem>>, vector<2x256xbf16>
    %c0_1 = arith.constant 0 : index
    %c0_2 = arith.constant 0 : index
    %1 = vector.load %arg2[%c0_1, %c0_2] : memref<512x256xbf16, #tpu.memory_space<vmem>>, vector<512x256xbf16>
    %cst = arith.constant dense<0.000000e+00> : vector<2x512xf32>
    %2 = tpu.matmul %0, %1, %cst {dimension_numbers = #tpu.dot_dimension_numbers<[1], [1], [0], [0], [0, 0, 1, 0], [], []>} : vector<2x256xbf16>, vector<512x256xbf16>, vector<2x512xf32> -> vector<2x512xf32>
    %c0_3 = arith.constant 0 : index
    %c0_4 = arith.constant 0 : index
    %3 = vector.load %arg3[%c0_3, %c0_4] : memref<2x512xf32, #tpu.memory_space<vmem>>, vector<2x512xf32>
    tpu.vector_store %arg3[%c0_3, %c0_4], %2 {strides = array<i32>} : memref<2x512xf32, #tpu.memory_space<vmem>>, vector<2x512xf32>,
    return
  }
  func.func @transform_0(%arg0: i32) -> (i32, i32) {
    %c0_i32 = arith.constant 0 : i32
    %c0_i32_0 = arith.constant 0 : i32
    %c0_i32_1 = arith.constant 0 : i32
    return %c0_i32, %c0_i32_0 : i32, i32
  }
  func.func @transform_1(%arg0: i32) -> (i32, i32) {
    %c0_i32 = arith.constant 0 : i32
    %c0_i32_0 = arith.constant 0 : i32
    return %arg0, %c0_i32 : i32, i32
  }
  func.func @transform_2(%arg0: i32) -> (i32, i32) {
    %c0_i32 = arith.constant 0 : i32
    %c0_i32_0 = arith.constant 0 : i32
    return %c0_i32, %arg0 : i32, i32
  }
}

</mosaic_0001>

<llo_original>
// kernel: gpt_forward.14
$region0: #{gpt_forward.14}
  #allocation0 [shape = 'u32[]', space=smem, size = 0x4, offset = 0x4, fixed_abs, tag = 'smem constant byte address 0x4 - core index']
  #allocation1 [shape = 'u32[144,128]{1,0:T(1,128)}', space=vmem, size = 0x12000, scoped, tag = 'internal scratch']
  %s0 = inlined_call_operand.vmem [shape: bf16[2,256], index: 0, kind: input, shape index: {}]
  %s1 = inlined_call_operand.vmem [shape: f32[1,256], index: 1, kind: input, shape index: {}]
  %s2 = inlined_call_operand.vmem [shape: f32[1,256], index: 2, kind: input, shape index: {}]
  %s3 = inlined_call_operand.vmem [shape: bf16[2,256], index: 3, kind: output, shape index: {}]
  %s4 = sld [smem:[#allocation0]]
  $region22: #{gpt_forward.14} parent=0
    _
  %s6 = ssub.s32 1, %s4
  %s7 = scalar_select 0, %s6, %s4
  // Predicated region
  $region2: #{gpt_forward.14} parent=0 // pred_check
    _
  $region3: #{gpt_forward.14} parent=0 // pred_check_branch
    %9 = sbr.rel (0) target = $region5
  $region4: #{gpt_forward.14} parent=0 // pred_region
    _
  $region5: #{gpt_forward.14} parent=0 // pred_fallthru
    _
  // Predicated region
  $region6: #{gpt_forward.14} parent=0 // pred_check
    _
  $region7: #{gpt_forward.14} parent=0 // pred_check_branch
    %11 = sbr.rel (0) target = $region9
  $region8: #{gpt_forward.14} parent=0 // pred_region
    _
  $region9: #{gpt_forward.14} parent=0 // pred_fallthru
    _
  // Predicated region
  $region10: #{gpt_forward.14} parent=0 // pred_check
    _
  $region11: #{gpt_forward.14} parent=0 // pred_check_branch
    %13 = sbr.rel (0) target = $region13
  $region12: #{gpt_forward.14} parent=0 // pred_region
    _
  $region13: #{gpt_forward.14} parent=0 // pred_fallthru
    _
  %v14 = vld [vmem:[%s0] sm:$0x3]
  %v15 = vunpack.c.l.bf16 %v14
  %v16 = vld [vmem:[%s1] sm:$0x3]
  %v17 = vld [vmem:[%s2] sm:$0x3]
  %v20 = vunpack.c.l.s4 1983009808
  %v21 = vunpack.c.0.s8 %v20
  %v22 = vlaneseq
  %v23 = vshrl.u32 %v22, 7
  %v24 = vsub.s32 %v21, %v23
  %v25 = vrot.slane %v15, %v24
  %v26 = vcombine.high %v25, %v25
  %vm29 = vcmask 1041408
  %v30 = vsel %vm29, %v25, 0.0
  %v31 = vsel %vm29, %v26, 0.0
  %v32 = vadd.f32 %v30, %v31
  %33 = vadd.xlane.f32.xlu0 %v32
  %v34 = vpop.xlane.xlu0 %33
  %v35 = vrcp.pop 256.0
  %v36 = vmul.f32 %v34, %v35
  %v39 = vunpack.c.l.s4 269488144
  %v40 = vunpack.c.0.s8 %v39
  %v41 = vlaneseq
  %v42 = vshrl.u32 %v41, 7
  %v43 = vsub.s32 %v40, %v42
  %v44 = vrot.slane %v36, %v43
  %v46 = vsub.f32 %v15, %v44
  %v47 = vmul.f32 %v46, %v46
  %v50 = vunpack.c.l.s4 1983009808
  %v51 = vunpack.c.0.s8 %v50
  %v52 = vlaneseq
  %v53 = vshrl.u32 %v52, 7
  %v54 = vsub.s32 %v51, %v53
  %v55 = vrot.slane %v47, %v54
  %v56 = vcombine.high %v55, %v55
  %v59 = vsel %vm29, %v55, 0.0
  %v60 = vsel %vm29, %v56, 0.0
  %v61 = vadd.f32 %v59, %v60
  %62 = vadd.xlane.f32.xlu0 %v61
  %v63 = vpop.xlane.xlu0 %62
  %v64 = vmul.f32 %v63, %v35
  %v65 = vadd.f32 %v64, 1e-05
  %v66 = vrsqrt.pop %v65
  %v69 = vunpack.c.l.s4 269488144
  %v70 = vunpack.c.0.s8 %v69
  %v71 = vlaneseq
  %v72 = vshrl.u32 %v71, 7
  %v73 = vsub.s32 %v70, %v72
  %v74 = vrot.slane %v66, %v73
  %v76 = vmul.f32 %v46, %v74
  %v78 = vlaneseq
  %v79 = vshrl.u32 %v78, 7
  %v80 = vsub.s32 0, %v79
  %v81 = vrot.slane %v16, %v80
  %v82 = vlaneseq
  %v83 = vshrl.u32 %v82, 7
  %v84 = vsub.s32 1, %v83
  %v85 = vrot.slane %v16, %v84
  %v86 = vcombine.low %v81, %v85
  %v88 = vunpack.c.l.s4 1983009808
  %v89 = vunpack.c.0.s8 %v88
  %v90 = vlaneseq
  %v91 = vshrl.u32 %v90, 7
  %v92 = vsub.s32 %v89, %v91
  %v93 = vrot.slane %v86, %v92
  %v95 = vmul.f32 %v76, %v93
  %v97 = vlaneseq
  %v98 = vshrl.u32 %v97, 7
  %v99 = vsub.s32 0, %v98
  %v100 = vrot.slane %v17, %v99
  %v101 = vlaneseq
  %v102 = vshrl.u32 %v101, 7
  %v103 = vsub.s32 1, %v102
  %v104 = vrot.slane %v17, %v103
  %v105 = vcombine.low %v100, %v104
  %v107 = vunpack.c.l.s4 1983009808
  %v108 = vunpack.c.0.s8 %v107
  %v109 = vlaneseq
  %v110 = vshrl.u32 %v109, 7
  %v111 = vsub.s32 %v108, %v110
  %v112 = vrot.slane %v105, %v111
  %v114 = vadd.f32 %v95, %v112
  %v117 = vunpack.c.l.s4 1983009808
  %v118 = vunpack.c.0.s8 %v117
  %v119 = vlaneseq
  %v120 = vshrl.u32 %v119, 7
  %v121 = vsub.s32 %v118, %v120
  %v122 = vrot.slane %v114, %v121
  %v123 = vcombine.high %v122, %v122
  %v126 = vpack.c.bf16 %v122, %v122
  %v127 = vpack.c.bf16 %v123, %v123
  %v130 = vcombine.low %v126, %v127
  %v132 = vunpack.c.l.s4 1966171168
  %v133 = vunpack.c.0.s8 %v132
  %v134 = vlaneseq
  %v135 = vshrl.u32 %v134, 7
  %v136 = vsub.s32 %v133, %v135
  %v137 = vrot.slane %v130, %v136
  %v139 = vunpack.c.l.s4 1966171168
  %v140 = vunpack.c.0.s8 %v139
  %v141 = vlaneseq
  %v142 = vshrl.u32 %v141, 7
  %v143 = vsub.s32 %v140, %v142
  %v144 = vrot.slane %v137, %v143
  %146 = vst [vmem:[%s3] sm:$0x3] %v144
  // Predicated region
  $region14: #{gpt_forward.14} parent=0 // pred_check
    _
  $region15: #{gpt_forward.14} parent=0 // pred_check_branch
    %148 = sbr.rel (0) target = $region17
  $region16: #{gpt_forward.14} parent=0 // pred_region
    _
  $region17: #{gpt_forward.14} parent=0 // pred_fallthru
    _
  // Predicated region
  $region18: #{gpt_forward.14} parent=0 // pred_check
    _
  $region19: #{gpt_forward.14} parent=0 // pred_check_branch
    %150 = sbr.rel (0) target = $region21
  $region20: #{gpt_forward.14} parent=0 // pred_region
    _
  $region21: #{gpt_forward.14} parent=0 // pred_fallthru
    _

// kernel: gpt_forward.9
$region0: #{gpt_forward.9}
  #allocation0 [shape = 'u32[]', space=smem, size = 0x4, offset = 0x4, fixed_abs, tag = 'smem constant byte address 0x4 - core index']
  #allocation1 [shape = 'u32[144,128]{1,0:T(1,128)}', space=vmem, size = 0x12000, scoped, tag = 'internal scratch']
  %s0 = inlined_call_operand.vmem [shape: bf16[2,128,768], index: 0, kind: input, shape index: {}, may-alias: {0,1,2}]
  %s1 = inlined_call_operand.vmem [shape: bf16[2,128,768], index: 1, kind: input, shape index: {}, may-alias: {0,1,2}]
  %s2 = inlined_call_operand.vmem [shape: bf16[2,128,768], index: 2, kind: input, shape index: {}, may-alias: {0,1,2}]
  %s3 = inlined_call_operand.vmem [shape: bf16[2,128,256], index: 3, kind: output, shape index: {}]
  %s4 = sld [smem:[#allocation0]]
  $region212: #{gpt_forward.9} parent=0
    _
  %s6 = ssub.s32 1, %s4
  %s7 = scalar_select 0, %s6, %s4
  $region1: #{gpt_forward.9} parent=0
    #allocation2 [shape = 'u8[65536]{0}', space=vmem, size = 0x10000, scoped, tag = 'input window, operand 0']
    #allocation3 [shape = 'u8[65536]{0}', space=vmem, size = 0x10000, scoped, tag = 'input window, operand 1']
    #allocation4 [shape = 'u8[65536]{0}', space=vmem, size = 0x10000, scoped, tag = 'input window, operand 2']
    #allocation5 [shape = 'u8[65536]{0}', space=vmem, size = 0x10000, scoped, tag = 'output window, operand 0']
    loop: start=0, step=1, limit=6
    $region2: #{gpt_forward.9} parent=1 // loop_pre_header
      _
    $region3: #{gpt_forward.9} parent=1 // loop_header
      %s9 = sphi 0, %s13
      %p10 = scmp.ge.s32.totalorder %s9, 6
      %s16 = sphi 0, %s35
      %s17 = sphi 0, %s31
      %s18 = sphi 0, %s27
      %s19 = sphi 0, %s16
      %s20 = sphi 0, %s17
      %s21 = sphi 0, %s18
      %s22 = sphi 0, %s19
      %s23 = sphi 0, %s20
      %s24 = sphi 0, %s21
      %s42 = sphi 0, %s44
      %s45 = sphi 0, %s42
      %s46 = sphi 0, %s45
      %s62 = sphi 0, %s46
      %s72 = sphi 0, %s74
      %s75 = sphi 0, %s72
      %s76 = sphi 0, %s75
      %s92 = sphi 0, %s76
      %s102 = sphi 0, %s104
      %s105 = sphi 0, %s102
      %s106 = sphi 0, %s105
      %s122 = sphi 0, %s106
      %s132 = sphi 0, %s134
      %s135 = sphi 0, %s132
      %s136 = sphi 0, %s135
      %s152 = sphi 0, %s136
    $region4: #{gpt_forward.9} parent=1 // loop_header_branch
      %12 = sbr.rel (%p10) target = $region8
    $region5: #{gpt_forward.9} parent=1 // loop_body
      %s14 = ssub.s32 %s9, 1
      %s15 = ssub.s32 %s9, 2
      %s25 = sadd.s32 1, %s18
      %p26 = scmp.ge.s32.totalorder %s25, 1
      %s27 = scalar_select %p26, 0, %s25
      %s28 = sadd.s32 1, %s17
      %s29 = scalar_select %p26, %s28, %s17
      %p30 = scmp.ge.s32.totalorder %s29, 2
      %s31 = scalar_select %p30, 0, %s29
      %s32 = sadd.s32 1, %s16
      %s33 = scalar_select %p30, %s32, %s16
      %p34 = scmp.ge.s32.totalorder %s33, 2
      %s35 = scalar_select %p34, 0, %s33
      %s36 = ssub.s32 %s16, %s35
      %s37 = ssub.s32 %s18, %s27
      %s38 = sor.u32 %s36, %s37
      %s39 = ssub.s32 %s17, %s31
      %s40 = sor.u32 %s38, %s39
      %p41 = scmp.eq.s32.totalorder %s40, 0
      %s43 = sadd.s32 %s42, 1
      %s44 = scalar_select %p41, %s42, %s43
      %p47 = pneg %p41
      %p48 = scmp.eq.s32.totalorder %s9, 3
      %p49 = por %p47, %p48
      %p50 = scmp.ne.s32.totalorder %s42, %s45
      %p51 = scmp.eq.s32.totalorder %s9, 0
      %p52 = por %p50, %p51
      %p53 = scmp.ne.s32.totalorder %s42, %s45
      %p54 = scmp.eq.s32.totalorder %s14, 3
      %p55 = por %p53, %p54
      %p56 = scmp.ne.s32.totalorder %s45, %s46
      %p57 = scmp.eq.s32.totalorder %s14, 0
      %p58 = por %p56, %p57
      %p59 = scmp.ne.s32.totalorder %s45, %s46
      %p60 = scmp.eq.s32.totalorder %s15, 3
      %p61 = por %p59, %p60
      %p63 = scmp.ne.s32.totalorder %s46, %s62
      %p64 = scmp.eq.s32.totalorder %s15, 0
      %p65 = por %p63, %p64
      %s66 = sadd.s32 %s17, 2
      %s67 = sadd.s32 %s31, 2
      %s68 = ssub.s32 %s16, %s35
      %s69 = ssub.s32 %s66, %s67
      %s70 = sor.u32 %s68, %s69
      %p71 = scmp.eq.s32.totalorder %s70, 0
      %s73 = sadd.s32 %s72, 1
      %s74 = scalar_select %p71, %s72, %s73
      %p77 = pneg %p71
      %p78 = scmp.eq.s32.totalorder %s9, 3
      %p79 = por %p77, %p78
      %p80 = scmp.ne.s32.totalorder %s72, %s75
      %p81 = scmp.eq.s32.totalorder %s9, 0
      %p82 = por %p80, %p81
      %p83 = scmp.ne.s32.totalorder %s72, %s75
      %p84 = scmp.eq.s32.totalorder %s14, 3
      %p85 = por %p83, %p84
      %p86 = scmp.ne.s32.totalorder %s75, %s76
      %p87 = scmp.eq.s32.totalorder %s14, 0
      %p88 = por %p86, %p87
      %p89 = scmp.ne.s32.totalorder %s75, %s76
      %p90 = scmp.eq.s32.totalorder %s15, 3
      %p91 = por %p89, %p90
      %p93 = scmp.ne.s32.totalorder %s76, %s92
      %p94 = scmp.eq.s32.totalorder %s15, 0
      %p95 = por %p93, %p94
      %s96 = sadd.s32 %s17, 4
      %s97 = sadd.s32 %s31, 4
      %s98 = ssub.s32 %s16, %s35
      %s99 = ssub.s32 %s96, %s97
      %s100 = sor.u32 %s98, %s99
      %p101 = scmp.eq.s32.totalorder %s100, 0
      %s103 = sadd.s32 %s102, 1
      %s104 = scalar_select %p101, %s102, %s103
      %p107 = pneg %p101
      %p108 = scmp.eq.s32.totalorder %s9, 3
      %p109 = por %p107, %p108
      %p110 = scmp.ne.s32.totalorder %s102, %s105
      %p111 = scmp.eq.s32.totalorder %s9, 0
      %p112 = por %p110, %p111
      %p113 = scmp.ne.s32.totalorder %s102, %s105
      %p114 = scmp.eq.s32.totalorder %s14, 3
      %p115 = por %p113, %p114
      %p116 = scmp.ne.s32.totalorder %s105, %s106
      %p117 = scmp.eq.s32.totalorder %s14, 0
      %p118 = por %p116, %p117
      %p119 = scmp.ne.s32.totalorder %s105, %s106
      %p120 = scmp.eq.s32.totalorder %s15, 3
      %p121 = por %p119, %p120
      %p123 = scmp.ne.s32.totalorder %s106, %s122
      %p124 = scmp.eq.s32.totalorder %s15, 0
      %p125 = por %p123, %p124
      %s126 = ssub.s32 %s16, %s35
      %s127 = ssub.s32 %s18, %s27
      %s128 = sor.u32 %s126, %s127
      %s129 = ssub.s32 %s17, %s31
      %s130 = sor.u32 %s128, %s129
      %p131 = scmp.eq.s32.totalorder %s130, 0
      %s133 = sadd.s32 %s132, 1
      %s134 = scalar_select %p131, %s132, %s133
      %p137 = pneg %p131
      %p138 = scmp.eq.s32.totalorder %s9, 3
      %p139 = por %p137, %p138
      %p140 = scmp.ne.s32.totalorder %s132, %s135
      %p141 = scmp.eq.s32.totalorder %s9, 0
      %p142 = por %p140, %p141
      %p143 = scmp.ne.s32.totalorder %s132, %s135
      %p144 = scmp.eq.s32.totalorder %s14, 3
      %p145 = por %p143, %p144
      %p146 = scmp.ne.s32.totalorder %s135, %s136
      %p147 = scmp.eq.s32.totalorder %s14, 0
      %p148 = por %p146, %p147
      %p149 = scmp.ne.s32.totalorder %s135, %s136
      %p150 = scmp.eq.s32.totalorder %s15, 3
      %p151 = por %p149, %p150
      %p153 = scmp.ne.s32.totalorder %s136, %s152
      %p154 = scmp.eq.s32.totalorder %s15, 0
      %p155 = por %p153, %p154
      %p156 = scmp.le.s32.totalorder 1, %s9
      %p157 = scmp.lt.s32.totalorder %s9, 5
      %p158 = pnand %p156, %p157
      %p159 = pneg %p158
      // Predicated region
      $region9: #{gpt_forward.9} parent=5 // pred_check
        _
      $region10: #{gpt_forward.9} parent=5 // pred_check_branch
        %161 = sbr.rel (%p158) target = $region12
      $region11: #{gpt_forward.9} parent=5 // pred_region
        %s162 = ssub.s32 %s9, 1
      $region12: #{gpt_forward.9} parent=5 // pred_fallthru
        _
      %p163 = scmp.lt.s32.totalorder %s9, 4
      // Predicated region
      $region13: #{gpt_forward.9} parent=5 // pred_check
        %p164 = pneg %p163
      $region14: #{gpt_forward.9} parent=5 // pred_check_branch
        %166 = sbr.rel (%p164) target = $region16
      $region15: #{gpt_forward.9} parent=5 // pred_region
        // Predicated region
        $region17: #{gpt_forward.9} parent=15 // pred_check
          %p167 = pneg %p52
        $region18: #{gpt_forward.9} parent=15 // pred_check_branch
          %169 = sbr.rel (%p167) target = $region20
        $region19: #{gpt_forward.9} parent=15 // pred_region
          %s170 = sand.u32 %s42, 1
          %s171 = sand.u32 %s42, 1
          %s172 = smul.addr %s171, 64
          %s173 = scalar_lea.vmem [#allocation2], %s172
          %s174 = smul.u32 16, %s18
          %s175 = smul.addr %s174, 6
          %s176 = sadd.s32 %s17, %s175
          %s177 = smul.addr %s16, 96
          %s178 = sadd.s32 %s176, %s177
          %s179 = smul.addr %s178, 4
          %s180 = scalar_lea.vmem %s0, %s179
          // Predicated region
          $region21: #{gpt_forward.9} parent=19 // pred_check
            _
          $region22: #{gpt_forward.9} parent=19 // pred_check_branch
            %182 = sbr.rel (0) target = $region24
          $region23: #{gpt_forward.9} parent=19 // pred_region
            // Predicated region
            $region25: #{gpt_forward.9} parent=23 // pred_check
              _
            $region26: #{gpt_forward.9} parent=23 // pred_check_branch
              %184 = sbr.rel target = $region28
            $region27: #{gpt_forward.9} parent=23 // pred_region
              // Predicated region
              $region40: #{gpt_forward.9} parent=27 // pred_check
                _
              $region41: #{gpt_forward.9} parent=27 // pred_check_branch
                %229 = sbr.rel (0) target = $region43
              $region42: #{gpt_forward.9} parent=27 // pred_region
                loop: start=0, step=1, limit=1
                $region44: #{gpt_forward.9} parent=42 // loop_pre_header
                  _
                $region45: #{gpt_forward.9} parent=42 // loop_header
                  %s231 = sphi 0, %s235
                  %p232 = scmp.ge.s32.totalorder %s231, 1
                  %s236 = sphi %s180, %s180
                  %s237 = sphi %s173, %s173
                $region46: #{gpt_forward.9} parent=42 // loop_header_branch
                  %234 = sbr.rel (%p232) target = $region50
                $region47: #{gpt_forward.9} parent=42 // loop_body
                  _
                $region48: #{gpt_forward.9} parent=42 // loop_footer
                  %s235 = sadd.s32 1, %s231
                $region49: #{gpt_forward.9} parent=42 // loop_footer_branch
                  %230 = sbr.rel target = $region45
                $region50: #{gpt_forward.9} parent=42 // loop_exit
                  _
                loop: start=0, step=1, limit=1
                $region51: #{gpt_forward.9} parent=42 // loop_pre_header
                  _
                $region52: #{gpt_forward.9} parent=42 // loop_header
                  %s240 = sphi 0, %s244
                  %p241 = scmp.ge.s32.totalorder %s240, 1
                  %s245 = sphi %s180, %s180
                  %s246 = sphi %s173, %s173
                $region53: #{gpt_forward.9} parent=42 // loop_header_branch
                  %243 = sbr.rel (%p241) target = $region57
                $region54: #{gpt_forward.9} parent=42 // loop_body
                  %v247 = vld [vmem:[%s245] sm:$0xf]
                  %248 = vst [vmem:[%s246] sm:$0xf] %v247
                  %v249 = vld [vmem:[%s245 + $0x18] sm:$0xf]
                  %250 = vst [vmem:[%s246 + $0x4] sm:$0xf] %v249
                  %v251 = vld [vmem:[%s245 + $0x30] sm:$0xf]
                  %252 = vst [vmem:[%s246 + $0x8] sm:$0xf] %v251
                  %v253 = vld [vmem:[%s245 + $0x48] sm:$0xf]
                  %254 = vst [vmem:[%s246 + $0xc] sm:$0xf] %v253
                  %v255 = vld [vmem:[%s245 + $0x60] sm:$0xf]
                  %256 = vst [vmem:[%s246 + $0x10] sm:$0xf] %v255
                  %v257 = vld [vmem:[%s245 + $0x78] sm:$0xf]
                  %258 = vst [vmem:[%s246 + $0x14] sm:$0xf] %v257
                  %v259 = vld [vmem:[%s245 + $0x90] sm:$0xf]
                  %260 = vst [vmem:[%s246 + $0x18] sm:$0xf] %v259
                  %v261 = vld [vmem:[%s245 + $0xa8] sm:$0xf]
                  %262 = vst [vmem:[%s246 + $0x1c] sm:$0xf] %v261
                  %v263 = vld [vmem:[%s245 + $0xc0] sm:$0xf]
                  %264 = vst [vmem:[%s246 + $0x20] sm:$0xf] %v263
                  %v265 = vld [vmem:[%s245 + $0xd8] sm:$0xf]
                  %266 = vst [vmem:[%s246 + $0x24] sm:$0xf] %v265
                  %v267 = vld [vmem:[%s245 + $0xf0] sm:$0xf]
                  %268 = vst [vmem:[%s246 + $0x28] sm:$0xf] %v267
                  %v269 = vld [vmem:[%s245 + $0x108] sm:$0xf]
                  %270 = vst [vmem:[%s246 + $0x2c] sm:$0xf] %v269
                  %v271 = vld [vmem:[%s245 + $0x120] sm:$0xf]
                  %272 = vst [vmem:[%s246 + $0x30] sm:$0xf] %v271
                  %v273 = vld [vmem:[%s245 + $0x138] sm:$0xf]
                  %274 = vst [vmem:[%s246 + $0x34] sm:$0xf] %v273
                  %v275 = vld [vmem:[%s245 + $0x150] sm:$0xf]
                  %276 = vst [vmem:[%s246 + $0x38] sm:$0xf] %v275
                  %v277 = vld [vmem:[%s245 + $0x168] sm:$0xf]
                  %278 = vst [vmem:[%s246 + $0x3c] sm:$0xf] %v277
                $region55: #{gpt_forward.9} parent=42 // loop_footer
                  %s244 = sadd.s32 1, %s240
                $region56: #{gpt_forward.9} parent=42 // loop_footer_branch
                  %239 = sbr.rel target = $region52
                $region57: #{gpt_forward.9} parent=42 // loop_exit
                  _
              $region43: #{gpt_forward.9} parent=27 // pred_fallthru
                _
            $region28: #{gpt_forward.9} parent=23 // pred_fallthru
              _
            // Predicated region
            $region29: #{gpt_forward.9} parent=23 // pred_check
              _
            $region30: #{gpt_forward.9} parent=23 // pred_check_branch
              %186 = sbr.rel (0) target = $region32
            $region31: #{gpt_forward.9} parent=23 // pred_region
              loop: start=0, step=1, limit=1
              $region33: #{gpt_forward.9} parent=31 // loop_pre_header
                _
              $region34: #{gpt_forward.9} parent=31 // loop_header
                %s189 = sphi 0, %s193
                %p190 = scmp.ge.s32.totalorder %s189, 1
                %s194 = sphi %s180, %s180
                %s195 = sphi %s173, %s173
              $region35: #{gpt_forward.9} parent=31 // loop_header_branch
                %192 = sbr.rel (%p190) target = $region39
              $region36: #{gpt_forward.9} parent=31 // loop_body
                %v196 = vld [vmem:[%s194] sm:$0xf]
                %197 = vst [vmem:[%s195] sm:$0xf] %v196
                %v198 = vld [vmem:[%s194 + $0x18] sm:$0xf]
                %199 = vst [vmem:[%s195 + $0x4] sm:$0xf] %v198
                %v200 = vld [vmem:[%s194 + $0x30] sm:$0xf]
                %201 = vst [vmem:[%s195 + $0x8] sm:$0xf] %v200
                %v202 = vld [vmem:[%s194 + $0x48] sm:$0xf]
                %203 = vst [vmem:[%s195 + $0xc] sm:$0xf] %v202
                %v204 = vld [vmem:[%s194 + $0x60] sm:$0xf]
                %205 = vst [vmem:[%s195 + $0x10] sm:$0xf] %v204
                %v206 = vld [vmem:[%s194 + $0x78] sm:$0xf]
                %207 = vst [vmem:[%s195 + $0x14] sm:$0xf] %v206
                %v208 = vld [vmem:[%s194 + $0x90] sm:$0xf]
                %209 = vst [vmem:[%s195 + $0x18] sm:$0xf] %v208
                %v210 = vld [vmem:[%s194 + $0xa8] sm:$0xf]
                %211 = vst [vmem:[%s195 + $0x1c] sm:$0xf] %v210
                %v212 = vld [vmem:[%s194 + $0xc0] sm:$0xf]
                %213 = vst [vmem:[%s195 + $0x20] sm:$0xf] %v212
                %v214 = vld [vmem:[%s194 + $0xd8] sm:$0xf]
                %215 = vst [vmem:[%s195 + $0x24] sm:$0xf] %v214
                %v216 = vld [vmem:[%s194 + $0xf0] sm:$0xf]
                %217 = vst [vmem:[%s195 + $0x28] sm:$0xf] %v216
                %v218 = vld [vmem:[%s194 + $0x108] sm:$0xf]
                %219 = vst [vmem:[%s195 + $0x2c] sm:$0xf] %v218
                %v220 = vld [vmem:[%s194 + $0x120] sm:$0xf]
                %221 = vst [vmem:[%s195 + $0x30] sm:$0xf] %v220
                %v222 = vld [vmem:[%s194 + $0x138] sm:$0xf]
                %223 = vst [vmem:[%s195 + $0x34] sm:$0xf] %v222
                %v224 = vld [vmem:[%s194 + $0x150] sm:$0xf]
                %225 = vst [vmem:[%s195 + $0x38] sm:$0xf] %v224
                %v226 = vld [vmem:[%s194 + $0x168] sm:$0xf]
                %227 = vst [vmem:[%s195 + $0x3c] sm:$0xf] %v226
              $region37: #{gpt_forward.9} parent=31 // loop_footer
                %s193 = sadd.s32 1, %s189
              $region38: #{gpt_forward.9} parent=31 // loop_footer_branch
                %188 = sbr.rel target = $region34
              $region39: #{gpt_forward.9} parent=31 // loop_exit
                _
            $region32: #{gpt_forward.9} parent=23 // pred_fallthru
              _
          $region24: #{gpt_forward.9} parent=19 // pred_fallthru
            _
          %279 = vnop
        $region20: #{gpt_forward.9} parent=15 // pred_fallthru
          _
        // Predicated region
        $region58: #{gpt_forward.9} parent=15 // pred_check
          %p280 = pneg %p82
        $region59: #{gpt_forward.9} parent=15 // pred_check_branch
          %282 = sbr.rel (%p280) target = $region61
        $region60: #{gpt_forward.9} parent=15 // pred_region
          %s283 = sand.u32 %s72, 1
          %s284 = sand.u32 %s72, 1
          %s285 = smul.addr %s284, 64
          %s286 = scalar_lea.vmem [#allocation3], %s285
          %s287 = sadd.s32 %s17, 2
          %s288 = smul.addr %s16, 96
          %s289 = sadd.s32 %s287, %s288
          %s290 = smul.addr %s289, 4
          %s291 = scalar_lea.vmem %s1, %s290
          // Predicated region
          $region62: #{gpt_forward.9} parent=60 // pred_check
            _
          $region63: #{gpt_forward.9} parent=60 // pred_check_branch
            %293 = sbr.rel (0) target = $region65
          $region64: #{gpt_forward.9} parent=60 // pred_region
            // Predicated region
            $region66: #{gpt_forward.9} parent=64 // pred_check
              _
            $region67: #{gpt_forward.9} parent=64 // pred_check_branch
              %295 = sbr.rel target = $region69
            $region68: #{gpt_forward.9} parent=64 // pred_region
              // Predicated region
              $region81: #{gpt_forward.9} parent=68 // pred_check
                _
              $region82: #{gpt_forward.9} parent=68 // pred_check_branch
                %340 = sbr.rel (0) target = $region84
              $region83: #{gpt_forward.9} parent=68 // pred_region
                loop: start=0, step=1, limit=1
                $region85: #{gpt_forward.9} parent=83 // loop_pre_header
                  _
                $region86: #{gpt_forward.9} parent=83 // loop_header
                  %s342 = sphi 0, %s346
                  %p343 = scmp.ge.s32.totalorder %s342, 1
                  %s347 = sphi %s291, %s291
                  %s348 = sphi %s286, %s286
                $region87: #{gpt_forward.9} parent=83 // loop_header_branch
                  %345 = sbr.rel (%p343) target = $region91
                $region88: #{gpt_forward.9} parent=83 // loop_body
                  _
                $region89: #{gpt_forward.9} parent=83 // loop_footer
                  %s346 = sadd.s32 1, %s342
                $region90: #{gpt_forward.9} parent=83 // loop_footer_branch
                  %341 = sbr.rel target = $region86
                $region91: #{gpt_forward.9} parent=83 // loop_exit
                  _
                loop: start=0, step=1, limit=1
                $region92: #{gpt_forward.9} parent=83 // loop_pre_header
                  _
                $region93: #{gpt_forward.9} parent=83 // loop_header
                  %s351 = sphi 0, %s355
                  %p352 = scmp.ge.s32.totalorder %s351, 1
                  %s356 = sphi %s291, %s291
                  %s357 = sphi %s286, %s286
                $region94: #{gpt_forward.9} parent=83 // loop_header_branch
                  %354 = sbr.rel (%p352) target = $region98
                $region95: #{gpt_forward.9} parent=83 // loop_body
                  %v358 = vld [vmem:[%s356] sm:$0xf]
                  %359 = vst [vmem:[%s357] sm:$0xf] %v358
                  %v360 = vld [vmem:[%s356 + $0x18] sm:$0xf]
                  %361 = vst [vmem:[%s357 + $0x4] sm:$0xf] %v360
                  %v362 = vld [vmem:[%s356 + $0x30] sm:$0xf]
                  %363 = vst [vmem:[%s357 + $0x8] sm:$0xf] %v362
                  %v364 = vld [vmem:[%s356 + $0x48] sm:$0xf]
                  %365 = vst [vmem:[%s357 + $0xc] sm:$0xf] %v364
                  %v366 = vld [vmem:[%s356 + $0x60] sm:$0xf]
                  %367 = vst [vmem:[%s357 + $0x10] sm:$0xf] %v366
                  %v368 = vld [vmem:[%s356 + $0x78] sm:$0xf]
                  %369 = vst [vmem:[%s357 + $0x14] sm:$0xf] %v368
                  %v370 = vld [vmem:[%s356 + $0x90] sm:$0xf]
                  %371 = vst [vmem:[%s357 + $0x18] sm:$0xf] %v370
                  %v372 = vld [vmem:[%s356 + $0xa8] sm:$0xf]
                  %373 = vst [vmem:[%s357 + $0x1c] sm:$0xf] %v372
                  %v374 = vld [vmem:[%s356 + $0xc0] sm:$0xf]
                  %375 = vst [vmem:[%s357 + $0x20] sm:$0xf] %v374
                  %v376 = vld [vmem:[%s356 + $0xd8] sm:$0xf]
                  %377 = vst [vmem:[%s357 + $0x24] sm:$0xf] %v376
                  %v378 = vld [vmem:[%s356 + $0xf0] sm:$0xf]
                  %379 = vst [vmem:[%s357 + $0x28] sm:$0xf] %v378
                  %v380 = vld [vmem:[%s356 + $0x108] sm:$0xf]
                  %381 = vst [vmem:[%s357 + $0x2c] sm:$0xf] %v380
                  %v382 = vld [vmem:[%s356 + $0x120] sm:$0xf]
                  %383 = vst [vmem:[%s357 + $0x30] sm:$0xf] %v382
                  %v384 = vld [vmem:[%s356 + $0x138] sm:$0xf]
                  %385 = vst [vmem:[%s357 + $0x34] sm:$0xf] %v384
                  %v386 = vld [vmem:[%s356 + $0x150] sm:$0xf]
                  %387 = vst [vmem:[%s357 + $0x38] sm:$0xf] %v386
                  %v388 = vld [vmem:[%s356 + $0x168] sm:$0xf]
                  %389 = vst [vmem:[%s357 + $0x3c] sm:$0xf] %v388
                $region96: #{gpt_forward.9} parent=83 // loop_footer
                  %s355 = sadd.s32 1, %s351
                $region97: #{gpt_forward.9} parent=83 // loop_footer_branch
                  %350 = sbr.rel target = $region93
                $region98: #{gpt_forward.9} parent=83 // loop_exit
                  _
              $region84: #{gpt_forward.9} parent=68 // pred_fallthru
                _
            $region69: #{gpt_forward.9} parent=64 // pred_fallthru
              _
            // Predicated region
            $region70: #{gpt_forward.9} parent=64 // pred_check
              _
            $region71: #{gpt_forward.9} parent=64 // pred_check_branch
              %297 = sbr.rel (0) target = $region73
            $region72: #{gpt_forward.9} parent=64 // pred_region
              loop: start=0, step=1, limit=1
              $region74: #{gpt_forward.9} parent=72 // loop_pre_header
                _
              $region75: #{gpt_forward.9} parent=72 // loop_header
                %s300 = sphi 0, %s304
                %p301 = scmp.ge.s32.totalorder %s300, 1
                %s305 = sphi %s291, %s291
                %s306 = sphi %s286, %s286
              $region76: #{gpt_forward.9} parent=72 // loop_header_branch
                %303 = sbr.rel (%p301) target = $region80
              $region77: #{gpt_forward.9} parent=72 // loop_body
                %v307 = vld [vmem:[%s305] sm:$0xf]
                %308 = vst [vmem:[%s306] sm:$0xf] %v307
                %v309 = vld [vmem:[%s305 + $0x18] sm:$0xf]
                %310 = vst [vmem:[%s306 + $0x4] sm:$0xf] %v309
                %v311 = vld [vmem:[%s305 + $0x30] sm:$0xf]
                %312 = vst [vmem:[%s306 + $0x8] sm:$0xf] %v311
                %v313 = vld [vmem:[%s305 + $0x48] sm:$0xf]
                %314 = vst [vmem:[%s306 + $0xc] sm:$0xf] %v313
                %v315 = vld [vmem:[%s305 + $0x60] sm:$0xf]
                %316 = vst [vmem:[%s306 + $0x10] sm:$0xf] %v315
                %v317 = vld [vmem:[%s305 + $0x78] sm:$0xf]
                %318 = vst [vmem:[%s306 + $0x14] sm:$0xf] %v317
                %v319 = vld [vmem:[%s305 + $0x90] sm:$0xf]
                %320 = vst [vmem:[%s306 + $0x18] sm:$0xf] %v319
                %v321 = vld [vmem:[%s305 + $0xa8] sm:$0xf]
                %322 = vst [vmem:[%s306 + $0x1c] sm:$0xf] %v321
                %v323 = vld [vmem:[%s305 + $0xc0] sm:$0xf]
                %324 = vst [vmem:[%s306 + $0x20] sm:$0xf] %v323
                %v325 = vld [vmem:[%s305 + $0xd8] sm:$0xf]
                %326 = vst [vmem:[%s306 + $0x24] sm:$0xf] %v325
                %v327 = vld [vmem:[%s305 + $0xf0] sm:$0xf]
                %328 = vst [vmem:[%s306 + $0x28] sm:$0xf] %v327
                %v329 = vld [vmem:[%s305 + $0x108] sm:$0xf]
                %330 = vst [vmem:[%s306 + $0x2c] sm:$0xf] %v329
                %v331 = vld [vmem:[%s305 + $0x120] sm:$0xf]
                %332 = vst [vmem:[%s306 + $0x30] sm:$0xf] %v331
                %v333 = vld [vmem:[%s305 + $0x138] sm:$0xf]
                %334 = vst [vmem:[%s306 + $0x34] sm:$0xf] %v333
                %v335 = vld [vmem:[%s305 + $0x150] sm:$0xf]
                %336 = vst [vmem:[%s306 + $0x38] sm:$0xf] %v335
                %v337 = vld [vmem:[%s305 + $0x168] sm:$0xf]
                %338 = vst [vmem:[%s306 + $0x3c] sm:$0xf] %v337
              $region78: #{gpt_forward.9} parent=72 // loop_footer
                %s304 = sadd.s32 1, %s300
              $region79: #{gpt_forward.9} parent=72 // loop_footer_branch
                %299 = sbr.rel target = $region75
              $region80: #{gpt_forward.9} parent=72 // loop_exit
                _
            $region73: #{gpt_forward.9} parent=64 // pred_fallthru
              _
          $region65: #{gpt_forward.9} parent=60 // pred_fallthru
            _
          %390 = vnop
        $region61: #{gpt_forward.9} parent=15 // pred_fallthru
          _
        // Predicated region
        $region99: #{gpt_forward.9} parent=15 // pred_check
          %p391 = pneg %p112
        $region100: #{gpt_forward.9} parent=15 // pred_check_branch
          %393 = sbr.rel (%p391) target = $region102
        $region101: #{gpt_forward.9} parent=15 // pred_region
          %s394 = sand.u32 %s102, 1
          %s395 = sand.u32 %s102, 1
          %s396 = smul.addr %s395, 64
          %s397 = scalar_lea.vmem [#allocation4], %s396
          %s398 = sadd.s32 %s17, 4
          %s399 = smul.addr %s16, 96
          %s400 = sadd.s32 %s398, %s399
          %s401 = smul.addr %s400, 4
          %s402 = scalar_lea.vmem %s2, %s401
          // Predicated region
          $region103: #{gpt_forward.9} parent=101 // pred_check
            _
          $region104: #{gpt_forward.9} parent=101 // pred_check_branch
            %404 = sbr.rel (0) target = $region106
          $region105: #{gpt_forward.9} parent=101 // pred_region
            // Predicated region
            $region107: #{gpt_forward.9} parent=105 // pred_check
              _
            $region108: #{gpt_forward.9} parent=105 // pred_check_branch
              %406 = sbr.rel target = $region110
            $region109: #{gpt_forward.9} parent=105 // pred_region
              // Predicated region
              $region122: #{gpt_forward.9} parent=109 // pred_check
                _
              $region123: #{gpt_forward.9} parent=109 // pred_check_branch
                %451 = sbr.rel (0) target = $region125
              $region124: #{gpt_forward.9} parent=109 // pred_region
                loop: start=0, step=1, limit=1
                $region126: #{gpt_forward.9} parent=124 // loop_pre_header
                  _
                $region127: #{gpt_forward.9} parent=124 // loop_header
                  %s453 = sphi 0, %s457
                  %p454 = scmp.ge.s32.totalorder %s453, 1
                  %s458 = sphi %s402, %s402
                  %s459 = sphi %s397, %s397
                $region128: #{gpt_forward.9} parent=124 // loop_header_branch
                  %456 = sbr.rel (%p454) target = $region132
                $region129: #{gpt_forward.9} parent=124 // loop_body
                  _
                $region130: #{gpt_forward.9} parent=124 // loop_footer
                  %s457 = sadd.s32 1, %s453
                $region131: #{gpt_forward.9} parent=124 // loop_footer_branch
                  %452 = sbr.rel target = $region127
                $region132: #{gpt_forward.9} parent=124 // loop_exit
                  _
                loop: start=0, step=1, limit=1
                $region133: #{gpt_forward.9} parent=124 // loop_pre_header
                  _
                $region134: #{gpt_forward.9} parent=124 // loop_header
                  %s462 = sphi 0, %s466
                  %p463 = scmp.ge.s32.totalorder %s462, 1
                  %s467 = sphi %s402, %s402
                  %s468 = sphi %s397, %s397
                $region135: #{gpt_forward.9} parent=124 // loop_header_branch
                  %465 = sbr.rel (%p463) target = $region139
                $region136: #{gpt_forward.9} parent=124 // loop_body
                  %v469 = vld [vmem:[%s467] sm:$0xf]
                  %470 = vst [vmem:[%s468] sm:$0xf] %v469
                  %v471 = vld [vmem:[%s467 + $0x18] sm:$0xf]
                  %472 = vst [vmem:[%s468 + $0x4] sm:$0xf] %v471
                  %v473 = vld [vmem:[%s467 + $0x30] sm:$0xf]
                  %474 = vst [vmem:[%s468 + $0x8] sm:$0xf] %v473
                  %v475 = vld [vmem:[%s467 + $0x48] sm:$0xf]
                  %476 = vst [vmem:[%s468 + $0xc] sm:$0xf] %v475
                  %v477 = vld [vmem:[%s467 + $0x60] sm:$0xf]
                  %478 = vst [vmem:[%s468 + $0x10] sm:$0xf] %v477
                  %v479 = vld [vmem:[%s467 + $0x78] sm:$0xf]
                  %480 = vst [vmem:[%s468 + $0x14] sm:$0xf] %v479
                  %v481 = vld [vmem:[%s467 + $0x90] sm:$0xf]
                  %482 = vst [vmem:[%s468 + $0x18] sm:$0xf] %v481
                  %v483 = vld [vmem:[%s467 + $0xa8] sm:$0xf]
                  %484 = vst [vmem:[%s468 + $0x1c] sm:$0xf] %v483
                  %v485 = vld [vmem:[%s467 + $0xc0] sm:$0xf]
                  %486 = vst [vmem:[%s468 + $0x20] sm:$0xf] %v485
                  %v487 = vld [vmem:[%s467 + $0xd8] sm:$0xf]
                  %488 = vst [vmem:[%s468 + $0x24] sm:$0xf] %v487
                  %v489 = vld [vmem:[%s467 + $0xf0] sm:$0xf]
                  %490 = vst [vmem:[%s468 + $0x28] sm:$0xf] %v489
                  %v491 = vld [vmem:[%s467 + $0x108] sm:$0xf]
                  %492 = vst [vmem:[%s468 + $0x2c] sm:$0xf] %v491
                  %v493 = vld [vmem:[%s467 + $0x120] sm:$0xf]
                  %494 = vst [vmem:[%s468 + $0x30] sm:$0xf] %v493
                  %v495 = vld [vmem:[%s467 + $0x138] sm:$0xf]
                  %496 = vst [vmem:[%s468 + $0x34] sm:$0xf] %v495
                  %v497 = vld [vmem:[%s467 + $0x150] sm:$0xf]
                  %498 = vst [vmem:[%s468 + $0x38] sm:$0xf] %v497
                  %v499 = vld [vmem:[%s467 + $0x168] sm:$0xf]
                  %500 = vst [vmem:[%s468 + $0x3c] sm:$0xf] %v499
                $region137: #{gpt_forward.9} parent=124 // loop_footer
                  %s466 = sadd.s32 1, %s462
                $region138: #{gpt_forward.9} parent=124 // loop_footer_branch
                  %461 = sbr.rel target = $region134
                $region139: #{gpt_forward.9} parent=124 // loop_exit
                  _
              $region125: #{gpt_forward.9} parent=109 // pred_fallthru
                _
            $region110: #{gpt_forward.9} parent=105 // pred_fallthru
              _
            // Predicated region
            $region111: #{gpt_forward.9} parent=105 // pred_check
              _
            $region112: #{gpt_forward.9} parent=105 // pred_check_branch
              %408 = sbr.rel (0) target = $region114
            $region113: #{gpt_forward.9} parent=105 // pred_region
              loop: start=0, step=1, limit=1
              $region115: #{gpt_forward.9} parent=113 // loop_pre_header
                _
              $region116: #{gpt_forward.9} parent=113 // loop_header
                %s411 = sphi 0, %s415
                %p412 = scmp.ge.s32.totalorder %s411, 1
                %s416 = sphi %s402, %s402
                %s417 = sphi %s397, %s397
              $region117: #{gpt_forward.9} parent=113 // loop_header_branch
                %414 = sbr.rel (%p412) target = $region121
              $region118: #{gpt_forward.9} parent=113 // loop_body
                %v418 = vld [vmem:[%s416] sm:$0xf]
                %419 = vst [vmem:[%s417] sm:$0xf] %v418
                %v420 = vld [vmem:[%s416 + $0x18] sm:$0xf]
                %421 = vst [vmem:[%s417 + $0x4] sm:$0xf] %v420
                %v422 = vld [vmem:[%s416 + $0x30] sm:$0xf]
                %423 = vst [vmem:[%s417 + $0x8] sm:$0xf] %v422
                %v424 = vld [vmem:[%s416 + $0x48] sm:$0xf]
                %425 = vst [vmem:[%s417 + $0xc] sm:$0xf] %v424
                %v426 = vld [vmem:[%s416 + $0x60] sm:$0xf]
                %427 = vst [vmem:[%s417 + $0x10] sm:$0xf] %v426
                %v428 = vld [vmem:[%s416 + $0x78] sm:$0xf]
                %429 = vst [vmem:[%s417 + $0x14] sm:$0xf] %v428
                %v430 = vld [vmem:[%s416 + $0x90] sm:$0xf]
                %431 = vst [vmem:[%s417 + $0x18] sm:$0xf] %v430
                %v432 = vld [vmem:[%s416 + $0xa8] sm:$0xf]
                %433 = vst [vmem:[%s417 + $0x1c] sm:$0xf] %v432
                %v434 = vld [vmem:[%s416 + $0xc0] sm:$0xf]
                %435 = vst [vmem:[%s417 + $0x20] sm:$0xf] %v434
                %v436 = vld [vmem:[%s416 + $0xd8] sm:$0xf]
                %437 = vst [vmem:[%s417 + $0x24] sm:$0xf] %v436
                %v438 = vld [vmem:[%s416 + $0xf0] sm:$0xf]
                %439 = vst [vmem:[%s417 + $0x28] sm:$0xf] %v438
                %v440 = vld [vmem:[%s416 + $0x108] sm:$0xf]
                %441 = vst [vmem:[%s417 + $0x2c] sm:$0xf] %v440
                %v442 = vld [vmem:[%s416 + $0x120] sm:$0xf]
                %443 = vst [vmem:[%s417 + $0x30] sm:$0xf] %v442
                %v444 = vld [vmem:[%s416 + $0x138] sm:$0xf]
                %445 = vst [vmem:[%s417 + $0x34] sm:$0xf] %v444
                %v446 = vld [vmem:[%s416 + $0x150] sm:$0xf]
                %447 = vst [vmem:[%s417 + $0x38] sm:$0xf] %v446
                %v448 = vld [vmem:[%s416 + $0x168] sm:$0xf]
                %449 = vst [vmem:[%s417 + $0x3c] sm:$0xf] %v448
              $region119: #{gpt_forward.9} parent=113 // loop_footer
                %s415 = sadd.s32 1, %s411
              $region120: #{gpt_forward.9} parent=113 // loop_footer_branch
                %410 = sbr.rel target = $region116
              $region121: #{gpt_forward.9} parent=113 // loop_exit
                _
            $region114: #{gpt_forward.9} parent=105 // pred_fallthru
              _
          $region106: #{gpt_forward.9} parent=101 // pred_fallthru
            _
          %501 = vnop
        $region102: #{gpt_forward.9} parent=15 // pred_fallthru
          _
      $region16: #{gpt_forward.9} parent=5 // pred_fallthru
        _
      %p502 = scmp.le.s32.totalorder 1, %s9
      %p503 = scmp.lt.s32.totalorder %s9, 5
      %p504 = pnand %p502, %p503
      %p505 = pneg %p504
      // Predicated region
      $region140: #{gpt_forward.9} parent=5 // pred_check
        _
      $region141: #{gpt_forward.9} parent=5 // pred_check_branch
        %507 = sbr.rel (%p504) target = $region143
      $region142: #{gpt_forward.9} parent=5 // pred_region
        %s508 = ssub.s32 %s9, 1
        %s509 = sand.u32 %s45, 1
        %s510 = sand.u32 %s45, 1
        %s511 = smul.addr %s510, 64
        %s512 = scalar_lea.vmem [#allocation2], %s511
        // Predicated region
        $region144: #{gpt_forward.9} parent=142 // pred_check
          %p513 = pneg %p58
        $region145: #{gpt_forward.9} parent=142 // pred_check_branch
          %515 = sbr.rel (%p513) target = $region147
        $region146: #{gpt_forward.9} parent=142 // pred_region
          _
        $region147: #{gpt_forward.9} parent=142 // pred_fallthru
          _
        %s516 = sand.u32 %s75, 1
        %s517 = sand.u32 %s75, 1
        %s518 = smul.addr %s517, 64
        %s519 = scalar_lea.vmem [#allocation3], %s518
        // Predicated region
        $region148: #{gpt_forward.9} parent=142 // pred_check
          %p520 = pneg %p88
        $region149: #{gpt_forward.9} parent=142 // pred_check_branch
          %522 = sbr.rel (%p520) target = $region151
        $region150: #{gpt_forward.9} parent=142 // pred_region
          _
        $region151: #{gpt_forward.9} parent=142 // pred_fallthru
          _
        %s523 = sand.u32 %s105, 1
        %s524 = sand.u32 %s105, 1
        %s525 = smul.addr %s524, 64
        %s526 = scalar_lea.vmem [#allocation4], %s525
        // Predicated region
        $region152: #{gpt_forward.9} parent=142 // pred_check
          %p527 = pneg %p118
        $region153: #{gpt_forward.9} parent=142 // pred_check_branch
          %529 = sbr.rel (%p527) target = $region155
        $region154: #{gpt_forward.9} parent=142 // pred_region
          _
        $region155: #{gpt_forward.9} parent=142 // pred_fallthru
          _
        %s530 = sand.u32 %s45, 1
        %s531 = sand.u32 %s45, 1
        %s532 = smul.addr %s531, 64
        %s533 = scalar_lea.vmem [#allocation2], %s532
        %p534 = pneg %p58
        %p535 = pneg %p55
        %s536 = sand.u32 %s75, 1
        %s537 = sand.u32 %s75, 1
        %s538 = smul.addr %s537, 64
        %s539 = scalar_lea.vmem [#allocation3], %s538
        %p540 = pneg %p88
        %p541 = pneg %p85
        %s542 = sand.u32 %s105, 1
        %s543 = sand.u32 %s105, 1
        %s544 = smul.addr %s543, 64
        %s545 = scalar_lea.vmem [#allocation4], %s544
        %p546 = pneg %p118
        %p547 = pneg %p115
        %p548 = pneg %p148
        %p549 = pneg %p145
        %s550 = sand.u32 %s135, 1
        %s551 = sand.u32 %s135, 1
        %s552 = smul.addr %s551, 64
        %s553 = scalar_lea.vmem [#allocation5], %s552
        %s554 = smul.u32 16, %s21
        %s555 = sadd.s32 %s20, 2
        %s556 = sadd.s32 %s20, 4
        %s557 = smul.u32 16, %s21
        %v559 = vld [vmem:[%s512] sm:$0xf]
        %v560 = vld [vmem:[%s512 + $0x4] sm:$0xf]
        %v561 = vld [vmem:[%s512 + $0x8] sm:$0xf]
        %v562 = vld [vmem:[%s512 + $0xc] sm:$0xf]
        %v563 = vld [vmem:[%s512 + $0x10] sm:$0xf]
        %v564 = vld [vmem:[%s512 + $0x14] sm:$0xf]
        %v565 = vld [vmem:[%s512 + $0x18] sm:$0xf]
        %v566 = vld [vmem:[%s512 + $0x1c] sm:$0xf]
        %v567 = vld [vmem:[%s512 + $0x20] sm:$0xf]
        %v568 = vld [vmem:[%s512 + $0x24] sm:$0xf]
        %v569 = vld [vmem:[%s512 + $0x28] sm:$0xf]
        %v570 = vld [vmem:[%s512 + $0x2c] sm:$0xf]
        %v571 = vld [vmem:[%s512 + $0x30] sm:$0xf]
        %v572 = vld [vmem:[%s512 + $0x34] sm:$0xf]
        %v573 = vld [vmem:[%s512 + $0x38] sm:$0xf]
        %v574 = vld [vmem:[%s512 + $0x3c] sm:$0xf]
        %v575 = vunpack.c.l.bf16 %v559
        %v576 = vunpack.c.l.bf16 %v560
        %v577 = vunpack.c.l.bf16 %v561
        %v578 = vunpack.c.l.bf16 %v562
        %v579 = vunpack.c.l.bf16 %v563
        %v580 = vunpack.c.l.bf16 %v564
        %v581 = vunpack.c.l.bf16 %v565
        %v582 = vunpack.c.l.bf16 %v566
        %v583 = vunpack.c.l.bf16 %v567
        %v584 = vunpack.c.l.bf16 %v568
        %v585 = vunpack.c.l.bf16 %v569
        %v586 = vunpack.c.l.bf16 %v570
        %v587 = vunpack.c.l.bf16 %v571
        %v588 = vunpack.c.l.bf16 %v572
        %v589 = vunpack.c.l.bf16 %v573
        %v590 = vunpack.c.l.bf16 %v574
        %v591 = vmul.f32 %v575, 0.088388346
        %v592 = vmul.f32 %v576, 0.088388346
        %v593 = vmul.f32 %v577, 0.088388346
        %v594 = vmul.f32 %v578, 0.088388346
        %v595 = vmul.f32 %v579, 0.088388346
        %v596 = vmul.f32 %v580, 0.088388346
        %v597 = vmul.f32 %v581, 0.088388346
        %v598 = vmul.f32 %v582, 0.088388346
        %v599 = vmul.f32 %v583, 0.088388346
        %v600 = vmul.f32 %v584, 0.088388346
        %v601 = vmul.f32 %v585, 0.088388346
        %v602 = vmul.f32 %v586, 0.088388346
        %v603 = vmul.f32 %v587, 0.088388346
        %v604 = vmul.f32 %v588, 0.088388346
        %v605 = vmul.f32 %v589, 0.088388346
        %v606 = vmul.f32 %v590, 0.088388346
        %v607 = vpack.c.bf16 %v592, %v591
        %v608 = vpack.c.bf16 %v594, %v593
        %v609 = vpack.c.bf16 %v596, %v595
        %v610 = vpack.c.bf16 %v598, %v597
        %v611 = vpack.c.bf16 %v600, %v599
        %v612 = vpack.c.bf16 %v602, %v601
        %v613 = vpack.c.bf16 %v604, %v603
        %v614 = vpack.c.bf16 %v606, %v605
        // While loop
        $region156: #{gpt_forward.9} parent=142 // loop_pre_header
          _
        $region157: #{gpt_forward.9} parent=142 // loop_header
          %s616 = sphi 0, %s618
          %p617 = scmp.ge.s32.totalorder %s616, %s21
          %v621 = vphi -1e+30, %v885
          %v622 = vphi -1e+30, %v886
          %v623 = vphi -1e+30, %v887
          %v624 = vphi -1e+30, %v888
          %v625 = vphi -1e+30, %v889
          %v626 = vphi -1e+30, %v890
          %v627 = vphi -1e+30, %v891
          %v628 = vphi -1e+30, %v892
          %v629 = vphi -1e+30, %v893
          %v630 = vphi -1e+30, %v894
          %v631 = vphi -1e+30, %v895
          %v632 = vphi -1e+30, %v896
          %v633 = vphi -1e+30, %v897
          %v634 = vphi -1e+30, %v898
          %v635 = vphi -1e+30, %v899
          %v636 = vphi -1e+30, %v900
          %v637 = vphi 0.0, %v1045
          %v638 = vphi 0.0, %v1046
          %v639 = vphi 0.0, %v1047
          %v640 = vphi 0.0, %v1048
          %v641 = vphi 0.0, %v1049
          %v642 = vphi 0.0, %v1050
          %v643 = vphi 0.0, %v1051
          %v644 = vphi 0.0, %v1052
          %v645 = vphi 0.0, %v1053
          %v646 = vphi 0.0, %v1054
          %v647 = vphi 0.0, %v1055
          %v648 = vphi 0.0, %v1056
          %v649 = vphi 0.0, %v1057
          %v650 = vphi 0.0, %v1058
          %v651 = vphi 0.0, %v1059
          %v652 = vphi 0.0, %v1060
          %v653 = vphi 0.0, %v1230
          %v654 = vphi 0.0, %v1231
          %v655 = vphi 0.0, %v1232
          %v656 = vphi 0.0, %v1233
          %v657 = vphi 0.0, %v1234
          %v658 = vphi 0.0, %v1235
          %v659 = vphi 0.0, %v1236
          %v660 = vphi 0.0, %v1237
          %v661 = vphi 0.0, %v1238
          %v662 = vphi 0.0, %v1239
          %v663 = vphi 0.0, %v1240
          %v664 = vphi 0.0, %v1241
          %v665 = vphi 0.0, %v1242
          %v666 = vphi 0.0, %v1243
          %v667 = vphi 0.0, %v1244
          %v668 = vphi 0.0, %v1245
        $region158: #{gpt_forward.9} parent=142 // loop_header_branch
          %620 = sbr.rel (%p617) target = $region162
        $region159: #{gpt_forward.9} parent=142 // loop_body
          %s669 = smul.u32 %s616, 128
          %s670 = sshra.s32 %s669, 3
          %s671 = sand.u32 %s669, 7
          %s672 = smul.addr %s670, 4
          %s673 = scalar_lea.vmem %s519, %s672 [#allocation3]
          %v674 = vld [vmem:[%s673] sm:$0xf]
          %v675 = vld [vmem:[%s673 + $0x4] sm:$0xf]
          %v676 = vld [vmem:[%s673 + $0x8] sm:$0xf]
          %v677 = vld [vmem:[%s673 + $0xc] sm:$0xf]
          %v678 = vld [vmem:[%s673 + $0x10] sm:$0xf]
          %v679 = vld [vmem:[%s673 + $0x14] sm:$0xf]
          %v680 = vld [vmem:[%s673 + $0x18] sm:$0xf]
          %v681 = vld [vmem:[%s673 + $0x1c] sm:$0xf]
          %v682 = vld [vmem:[%s673 + $0x20] sm:$0xf]
          %v683 = vld [vmem:[%s673 + $0x24] sm:$0xf]
          %v684 = vld [vmem:[%s673 + $0x28] sm:$0xf]
          %v685 = vld [vmem:[%s673 + $0x2c] sm:$0xf]
          %v686 = vld [vmem:[%s673 + $0x30] sm:$0xf]
          %v687 = vld [vmem:[%s673 + $0x34] sm:$0xf]
          %v688 = vld [vmem:[%s673 + $0x38] sm:$0xf]
          %v689 = vld [vmem:[%s673 + $0x3c] sm:$0xf]
          %s690 = smul.addr %s670, 4
          %s691 = scalar_lea.vmem %s526, %s690 [#allocation4]
          %v692 = vld [vmem:[%s691] sm:$0xf]
          %v693 = vld [vmem:[%s691 + $0x4] sm:$0xf]
          %v694 = vld [vmem:[%s691 + $0x8] sm:$0xf]
          %v695 = vld [vmem:[%s691 + $0xc] sm:$0xf]
          %v696 = vld [vmem:[%s691 + $0x10] sm:$0xf]
          %v697 = vld [vmem:[%s691 + $0x14] sm:$0xf]
          %v698 = vld [vmem:[%s691 + $0x18] sm:$0xf]
          %v699 = vld [vmem:[%s691 + $0x1c] sm:$0xf]
          %v700 = vld [vmem:[%s691 + $0x20] sm:$0xf]
          %v701 = vld [vmem:[%s691 + $0x24] sm:$0xf]
          %v702 = vld [vmem:[%s691 + $0x28] sm:$0xf]
          %v703 = vld [vmem:[%s691 + $0x2c] sm:$0xf]
          %v704 = vld [vmem:[%s691 + $0x30] sm:$0xf]
          %v705 = vld [vmem:[%s691 + $0x34] sm:$0xf]
          %v706 = vld [vmem:[%s691 + $0x38] sm:$0xf]
          %v707 = vld [vmem:[%s691 + $0x3c] sm:$0xf]
          %v724 = vunpack.c.l.b16 %v674
          %v725 = vunpack.c.l.b16 %v675
          %v726 = vunpack.c.l.b16 %v676
          %v727 = vunpack.c.l.b16 %v677
          %v728 = vunpack.c.l.b16 %v678
          %v729 = vunpack.c.l.b16 %v679
          %v730 = vunpack.c.l.b16 %v680
          %v731 = vunpack.c.l.b16 %v681
          %v732 = vunpack.c.l.b16 %v682
          %v733 = vunpack.c.l.b16 %v683
          %v734 = vunpack.c.l.b16 %v684
          %v735 = vunpack.c.l.b16 %v685
          %v736 = vunpack.c.l.b16 %v686
          %v737 = vunpack.c.l.b16 %v687
          %v738 = vunpack.c.l.b16 %v688
          %v739 = vunpack.c.l.b16 %v689
          %v740 = vpack.c.b16 %v725, %v724
          %v741 = vpack.c.b16 %v727, %v726
          %v742 = vpack.c.b16 %v729, %v728
          %v743 = vpack.c.b16 %v731, %v730
          %v744 = vpack.c.b16 %v733, %v732
          %v745 = vpack.c.b16 %v735, %v734
          %v746 = vpack.c.b16 %v737, %v736
          %v747 = vpack.c.b16 %v739, %v738
          %756 = vmatprep.subr.bf16.mxu0 0
          %757 = vmatpush1.bf16.xpose.msra.mxu0 %v740
          %758 = vmatprep.subr.bf16.mxu0 0
          %759 = vmatpush1.bf16.xpose.msra.mxu0 %v741
          %760 = vmatprep.subr.bf16.mxu0 0
          %761 = vmatpush1.bf16.xpose.msra.mxu0 %v742
          %762 = vmatprep.subr.bf16.mxu0 0
          %763 = vmatpush1.bf16.xpose.msra.mxu0 %v743
          %764 = vmatprep.subr.bf16.mxu0 0
          %765 = vmatpush1.bf16.xpose.msra.mxu0 %v744
          %766 = vmatprep.subr.bf16.mxu0 0
          %767 = vmatpush1.bf16.xpose.msra.mxu0 %v745
          %768 = vmatprep.subr.bf16.mxu0 0
          %769 = vmatpush1.bf16.xpose.msra.mxu0 %v746
          %770 = vmatprep.subr.bf16.mxu0 0
          %771 = vmatpush1.bf16.xpose.msra.mxu0 %v747
          %772 = vmatprep.subr.bf16.mxu0 0
          %773 = vmatpush1.bf16.xpose.msra.mxu0 0
          %774 = vmatprep.subr.bf16.mxu0 0
          %775 = vmatpush1.bf16.xpose.msra.mxu0 0
          %776 = vmatprep.subr.bf16.mxu0 0
          %777 = vmatpush1.bf16.xpose.msra.mxu0 0
          %778 = vmatprep.subr.bf16.mxu0 0
          %779 = vmatpush1.bf16.xpose.msra.mxu0 0
          %780 = vmatprep.subr.bf16.mxu0 0
          %781 = vmatpush1.bf16.xpose.msra.mxu0 0
          %782 = vmatprep.subr.bf16.mxu0 0
          %783 = vmatpush1.bf16.xpose.msra.mxu0 0
          %784 = vmatprep.subr.bf16.mxu0 0
          %785 = vmatpush1.bf16.xpose.msra.mxu0 0
          %786 = vmatprep.subr.bf16.mxu0 0
          %787 = vmatpush1.bf16.xpose.msra.mxu0 0
          %788 = vmatprep.mubr.bf16.mxu0 0
          %789 = vmatmul.mubr.bf16.gmra.mrb[0].mxu0 %v607
          %v790 = vpop.f32.mrb[0].mxu0
          %v791 = vadd.f32 0.0, %v790
          %v792 = vpop.f32.mrb[0].mxu0
          %v793 = vpop.f32.mrb[0].mxu0
          %v794 = vadd.f32 0.0, %v793
          %v795 = vpop.f32.mrb[0].mxu0
          %796 = vmatprep.mubr.bf16.mxu0 0
          %797 = vmatmul.mubr.bf16.gmra.mrb[0].mxu0 %v608
          %v798 = vpop.f32.mrb[0].mxu0
          %v799 = vadd.f32 0.0, %v798
          %v800 = vpop.f32.mrb[0].mxu0
          %v801 = vpop.f32.mrb[0].mxu0
          %v802 = vadd.f32 0.0, %v801
          %v803 = vpop.f32.mrb[0].mxu0
          %804 = vmatprep.mubr.bf16.mxu0 0
          %805 = vmatmul.mubr.bf16.gmra.mrb[0].mxu0 %v609
          %v806 = vpop.f32.mrb[0].mxu0
          %v807 = vadd.f32 0.0, %v806
          %v808 = vpop.f32.mrb[0].mxu0
          %v809 = vpop.f32.mrb[0].mxu0
          %v810 = vadd.f32 0.0, %v809
          %v811 = vpop.f32.mrb[0].mxu0
          %812 = vmatprep.mubr.bf16.mxu0 0
          %813 = vmatmul.mubr.bf16.gmra.mrb[0].mxu0 %v610
          %v814 = vpop.f32.mrb[0].mxu0
          %v815 = vadd.f32 0.0, %v814
          %v816 = vpop.f32.mrb[0].mxu0
          %v817 = vpop.f32.mrb[0].mxu0
          %v818 = vadd.f32 0.0, %v817
          %v819 = vpop.f32.mrb[0].mxu0
          %820 = vmatprep.mubr.bf16.mxu0 0
          %821 = vmatmul.mubr.bf16.gmra.mrb[0].mxu0 %v611
          %v822 = vpop.f32.mrb[0].mxu0
          %v823 = vadd.f32 0.0, %v822
          %v824 = vpop.f32.mrb[0].mxu0
          %v825 = vpop.f32.mrb[0].mxu0
          %v826 = vadd.f32 0.0, %v825
          %v827 = vpop.f32.mrb[0].mxu0
          %828 = vmatprep.mubr.bf16.mxu0 0
          %829 = vmatmul.mubr.bf16.gmra.mrb[0].mxu0 %v612
          %v830 = vpop.f32.mrb[0].mxu0
          %v831 = vadd.f32 0.0, %v830
          %v832 = vpop.f32.mrb[0].mxu0
          %v833 = vpop.f32.mrb[0].mxu0
          %v834 = vadd.f32 0.0, %v833
          %v835 = vpop.f32.mrb[0].mxu0
          %836 = vmatprep.mubr.bf16.mxu0 0
          %837 = vmatmul.mubr.bf16.gmra.mrb[0].mxu0 %v613
          %v838 = vpop.f32.mrb[0].mxu0
          %v839 = vadd.f32 0.0, %v838
          %v840 = vpop.f32.mrb[0].mxu0
          %v841 = vpop.f32.mrb[0].mxu0
          %v842 = vadd.f32 0.0, %v841
          %v843 = vpop.f32.mrb[0].mxu0
          %844 = vmatprep.mubr.bf16.mxu0 0
          %845 = vmatmul.mubr.bf16.gmra.mrb[0].mxu0 %v614
          %v846 = vpop.f32.mrb[0].mxu0
          %v847 = vadd.f32 0.0, %v846
          %v848 = vpop.f32.mrb[0].mxu0
          %v849 = vpop.f32.mrb[0].mxu0
          %v850 = vadd.f32 0.0, %v849
          %v851 = vpop.f32.mrb[0].mxu0
          %852 = vdwg.mxu0
          %853 = vmax.xlane.f32.xlu0 %v791
          %v854 = vpop.xlane.xlu0 %853
          %855 = vmax.xlane.f32.xlu0 %v794
          %v856 = vpop.xlane.xlu0 %855
          %857 = vmax.xlane.f32.xlu0 %v799
          %v858 = vpop.xlane.xlu0 %857
          %859 = vmax.xlane.f32.xlu0 %v802
          %v860 = vpop.xlane.xlu0 %859
          %861 = vmax.xlane.f32.xlu0 %v807
          %v862 = vpop.xlane.xlu0 %861
          %863 = vmax.xlane.f32.xlu0 %v810
          %v864 = vpop.xlane.xlu0 %863
          %865 = vmax.xlane.f32.xlu0 %v815
          %v866 = vpop.xlane.xlu0 %865
          %867 = vmax.xlane.f32.xlu0 %v818
          %v868 = vpop.xlane.xlu0 %867
          %869 = vmax.xlane.f32.xlu0 %v823
          %v870 = vpop.xlane.xlu0 %869
          %871 = vmax.xlane.f32.xlu0 %v826
          %v872 = vpop.xlane.xlu0 %871
          %873 = vmax.xlane.f32.xlu0 %v831
          %v874 = vpop.xlane.xlu0 %873
          %875 = vmax.xlane.f32.xlu0 %v834
          %v876 = vpop.xlane.xlu0 %875
          %877 = vmax.xlane.f32.xlu0 %v839
          %v878 = vpop.xlane.xlu0 %877
          %879 = vmax.xlane.f32.xlu0 %v842
          %v880 = vpop.xlane.xlu0 %879
          %881 = vmax.xlane.f32.xlu0 %v847
          %v882 = vpop.xlane.xlu0 %881
          %883 = vmax.xlane.f32.xlu0 %v850
          %v884 = vpop.xlane.xlu0 %883
          %v885 = vmax.f32 %v621, %v854
          %v886 = vmax.f32 %v622, %v856
          %v887 = vmax.f32 %v623, %v858
          %v888 = vmax.f32 %v624, %v860
          %v889 = vmax.f32 %v625, %v862
          %v890 = vmax.f32 %v626, %v864
          %v891 = vmax.f32 %v627, %v866
          %v892 = vmax.f32 %v628, %v868
          %v893 = vmax.f32 %v629, %v870
          %v894 = vmax.f32 %v630, %v872
          %v895 = vmax.f32 %v631, %v874
          %v896 = vmax.f32 %v632, %v876
          %v897 = vmax.f32 %v633, %v878
          %v898 = vmax.f32 %v634, %v880
          %v899 = vmax.f32 %v635, %v882
          %v900 = vmax.f32 %v636, %v884
          %v901 = vsub.f32 %v621, %v885
          %v902 = vsub.f32 %v622, %v886
          %v903 = vsub.f32 %v623, %v887
          %v904 = vsub.f32 %v624, %v888
          %v905 = vsub.f32 %v625, %v889
          %v906 = vsub.f32 %v626, %v890
          %v907 = vsub.f32 %v627, %v891
          %v908 = vsub.f32 %v628, %v892
          %v909 = vsub.f32 %v629, %v893
          %v910 = vsub.f32 %v630, %v894
          %v911 = vsub.f32 %v631, %v895
          %v912 = vsub.f32 %v632, %v896
          %v913 = vsub.f32 %v633, %v897
          %v914 = vsub.f32 %v634, %v898
          %v915 = vsub.f32 %v635, %v899
          %v916 = vsub.f32 %v636, %v900
          %v917 = vmul.f32 %v901, 1.442695
          %v918 = vpow.pop %v917
          %v919 = vmul.f32 %v902, 1.442695
          %v920 = vpow.pop %v919
          %v921 = vmul.f32 %v903, 1.442695
          %v922 = vpow.pop %v921
          %v923 = vmul.f32 %v904, 1.442695
          %v924 = vpow.pop %v923
          %v925 = vmul.f32 %v905, 1.442695
          %v926 = vpow.pop %v925
          %v927 = vmul.f32 %v906, 1.442695
          %v928 = vpow.pop %v927
          %v929 = vmul.f32 %v907, 1.442695
          %v930 = vpow.pop %v929
          %v931 = vmul.f32 %v908, 1.442695
          %v932 = vpow.pop %v931
          %v933 = vmul.f32 %v909, 1.442695
          %v934 = vpow.pop %v933
          %v935 = vmul.f32 %v910, 1.442695
          %v936 = vpow.pop %v935
          %v937 = vmul.f32 %v911, 1.442695
          %v938 = vpow.pop %v937
          %v939 = vmul.f32 %v912, 1.442695
          %v940 = vpow.pop %v939
          %v941 = vmul.f32 %v913, 1.442695
          %v942 = vpow.pop %v941
          %v943 = vmul.f32 %v914, 1.442695
          %v944 = vpow.pop %v943
          %v945 = vmul.f32 %v915, 1.442695
          %v946 = vpow.pop %v945
          %v947 = vmul.f32 %v916, 1.442695
          %v948 = vpow.pop %v947
          %v949 = vsub.f32 %v791, %v885
          %v950 = vsub.f32 %v794, %v886
          %v951 = vsub.f32 %v799, %v887
          %v952 = vsub.f32 %v802, %v888
          %v953 = vsub.f32 %v807, %v889
          %v954 = vsub.f32 %v810, %v890
          %v955 = vsub.f32 %v815, %v891
          %v956 = vsub.f32 %v818, %v892
          %v957 = vsub.f32 %v823, %v893
          %v958 = vsub.f32 %v826, %v894
          %v959 = vsub.f32 %v831, %v895
          %v960 = vsub.f32 %v834, %v896
          %v961 = vsub.f32 %v839, %v897
          %v962 = vsub.f32 %v842, %v898
          %v963 = vsub.f32 %v847, %v899
          %v964 = vsub.f32 %v850, %v900
          %v965 = vmul.f32 %v949, 1.442695
          %v966 = vpow.pop %v965
          %v967 = vmul.f32 %v950, 1.442695
          %v968 = vpow.pop %v967
          %v969 = vmul.f32 %v951, 1.442695
          %v970 = vpow.pop %v969
          %v971 = vmul.f32 %v952, 1.442695
          %v972 = vpow.pop %v971
          %v973 = vmul.f32 %v953, 1.442695
          %v974 = vpow.pop %v973
          %v975 = vmul.f32 %v954, 1.442695
          %v976 = vpow.pop %v975
          %v977 = vmul.f32 %v955, 1.442695
          %v978 = vpow.pop %v977
          %v979 = vmul.f32 %v956, 1.442695
          %v980 = vpow.pop %v979
          %v981 = vmul.f32 %v957, 1.442695
          %v982 = vpow.pop %v981
          %v983 = vmul.f32 %v958, 1.442695
          %v984 = vpow.pop %v983
          %v985 = vmul.f32 %v959, 1.442695
          %v986 = vpow.pop %v985
          %v987 = vmul.f32 %v960, 1.442695
          %v988 = vpow.pop %v987
          %v989 = vmul.f32 %v961, 1.442695
          %v990 = vpow.pop %v989
          %v991 = vmul.f32 %v962, 1.442695
          %v992 = vpow.pop %v991
          %v993 = vmul.f32 %v963, 1.442695
          %v994 = vpow.pop %v993
          %v995 = vmul.f32 %v964, 1.442695
          %v996 = vpow.pop %v995
          %v997 = vmul.f32 %v918, %v637
          %v998 = vmul.f32 %v920, %v638
          %v999 = vmul.f32 %v922, %v639
          %v1000 = vmul.f32 %v924, %v640
          %v1001 = vmul.f32 %v926, %v641
          %v1002 = vmul.f32 %v928, %v642
          %v1003 = vmul.f32 %v930, %v643
          %v1004 = vmul.f32 %v932, %v644
          %v1005 = vmul.f32 %v934, %v645
          %v1006 = vmul.f32 %v936, %v646
          %v1007 = vmul.f32 %v938, %v647
          %v1008 = vmul.f32 %v940, %v648
          %v1009 = vmul.f32 %v942, %v649
          %v1010 = vmul.f32 %v944, %v650
          %v1011 = vmul.f32 %v946, %v651
          %v1012 = vmul.f32 %v948, %v652
          %1013 = vadd.xlane.f32.xlu0 %v966
          %v1014 = vpop.xlane.xlu0 %1013
          %1015 = vadd.xlane.f32.xlu0 %v968
          %v1016 = vpop.xlane.xlu0 %1015
          %1017 = vadd.xlane.f32.xlu0 %v970
          %v1018 = vpop.xlane.xlu0 %1017
          %1019 = vadd.xlane.f32.xlu0 %v972
          %v1020 = vpop.xlane.xlu0 %1019
          %1021 = vadd.xlane.f32.xlu0 %v974
          %v1022 = vpop.xlane.xlu0 %1021
          %1023 = vadd.xlane.f32.xlu0 %v976
          %v1024 = vpop.xlane.xlu0 %1023
          %1025 = vadd.xlane.f32.xlu0 %v978
          %v1026 = vpop.xlane.xlu0 %1025
          %1027 = vadd.xlane.f32.xlu0 %v980
          %v1028 = vpop.xlane.xlu0 %1027
          %1029 = vadd.xlane.f32.xlu0 %v982
          %v1030 = vpop.xlane.xlu0 %1029
          %1031 = vadd.xlane.f32.xlu0 %v984
          %v1032 = vpop.xlane.xlu0 %1031
          %1033 = vadd.xlane.f32.xlu0 %v986
          %v1034 = vpop.xlane.xlu0 %1033
          %1035 = vadd.xlane.f32.xlu0 %v988
          %v1036 = vpop.xlane.xlu0 %1035
          %1037 = vadd.xlane.f32.xlu0 %v990
          %v1038 = vpop.xlane.xlu0 %1037
          %1039 = vadd.xlane.f32.xlu0 %v992
          %v1040 = vpop.xlane.xlu0 %1039
          %1041 = vadd.xlane.f32.xlu0 %v994
          %v1042 = vpop.xlane.xlu0 %1041
          %1043 = vadd.xlane.f32.xlu0 %v996
          %v1044 = vpop.xlane.xlu0 %1043
          %v1045 = vadd.f32 %v997, %v1014
          %v1046 = vadd.f32 %v998, %v1016
          %v1047 = vadd.f32 %v999, %v1018
          %v1048 = vadd.f32 %v1000, %v1020
          %v1049 = vadd.f32 %v1001, %v1022
          %v1050 = vadd.f32 %v1002, %v1024
          %v1051 = vadd.f32 %v1003, %v1026
          %v1052 = vadd.f32 %v1004, %v1028
          %v1053 = vadd.f32 %v1005, %v1030
          %v1054 = vadd.f32 %v1006, %v1032
          %v1055 = vadd.f32 %v1007, %v1034
          %v1056 = vadd.f32 %v1008, %v1036
          %v1057 = vadd.f32 %v1009, %v1038
          %v1058 = vadd.f32 %v1010, %v1040
          %v1059 = vadd.f32 %v1011, %v1042
          %v1060 = vadd.f32 %v1012, %v1044
          %v1061 = vmul.f32 %v918, %v653
          %v1062 = vmul.f32 %v920, %v654
          %v1063 = vmul.f32 %v922, %v655
          %v1064 = vmul.f32 %v924, %v656
          %v1065 = vmul.f32 %v926, %v657
          %v1066 = vmul.f32 %v928, %v658
          %v1067 = vmul.f32 %v930, %v659
          %v1068 = vmul.f32 %v932, %v660
          %v1069 = vmul.f32 %v934, %v661
          %v1070 = vmul.f32 %v936, %v662
          %v1071 = vmul.f32 %v938, %v663
          %v1072 = vmul.f32 %v940, %v664
          %v1073 = vmul.f32 %v942, %v665
          %v1074 = vmul.f32 %v944, %v666
          %v1075 = vmul.f32 %v946, %v667
          %v1076 = vmul.f32 %v948, %v668
          %v1077 = vpack.c.bf16 %v968, %v966
          %v1078 = vpack.c.bf16 %v972, %v970
          %v1079 = vpack.c.bf16 %v976, %v974
          %v1080 = vpack.c.bf16 %v980, %v978
          %v1081 = vpack.c.bf16 %v984, %v982
          %v1082 = vpack.c.bf16 %v988, %v986
          %v1083 = vpack.c.bf16 %v992, %v990
          %v1084 = vpack.c.bf16 %v996, %v994
          %v1101 = vunpack.c.l.b16 %v692
          %v1102 = vunpack.c.l.b16 %v693
          %v1103 = vunpack.c.l.b16 %v694
          %v1104 = vunpack.c.l.b16 %v695
          %v1105 = vunpack.c.l.b16 %v696
          %v1106 = vunpack.c.l.b16 %v697
          %v1107 = vunpack.c.l.b16 %v698
          %v1108 = vunpack.c.l.b16 %v699
          %v1109 = vunpack.c.l.b16 %v700
          %v1110 = vunpack.c.l.b16 %v701
          %v1111 = vunpack.c.l.b16 %v702
          %v1112 = vunpack.c.l.b16 %v703
          %v1113 = vunpack.c.l.b16 %v704
          %v1114 = vunpack.c.l.b16 %v705
          %v1115 = vunpack.c.l.b16 %v706
          %v1116 = vunpack.c.l.b16 %v707
          %v1117 = vpack.c.b16 %v1102, %v1101
          %v1118 = vpack.c.b16 %v1104, %v1103
          %v1119 = vpack.c.b16 %v1106, %v1105
          %v1120 = vpack.c.b16 %v1108, %v1107
          %v1121 = vpack.c.b16 %v1110, %v1109
          %v1122 = vpack.c.b16 %v1112, %v1111
          %v1123 = vpack.c.b16 %v1114, %v1113
          %v1124 = vpack.c.b16 %v1116, %v1115
          %1133 = vmatprep.subr.bf16.mxu0 0
          %1134 = vmatpush1.bf16.msra.mxu0 %v1117
          %1135 = vmatprep.subr.bf16.mxu0 0
          %1136 = vmatpush1.bf16.msra.mxu0 %v1118
          %1137 = vmatprep.subr.bf16.mxu0 0
          %1138 = vmatpush1.bf16.msra.mxu0 %v1119
          %1139 = vmatprep.subr.bf16.mxu0 0
          %1140 = vmatpush1.bf16.msra.mxu0 %v1120
          %1141 = vmatprep.subr.bf16.mxu0 0
          %1142 = vmatpush1.bf16.msra.mxu0 %v1121
          %1143 = vmatprep.subr.bf16.mxu0 0
          %1144 = vmatpush1.bf16.msra.mxu0 %v1122
          %1145 = vmatprep.subr.bf16.mxu0 0
          %1146 = vmatpush1.bf16.msra.mxu0 %v1123
          %1147 = vmatprep.subr.bf16.mxu0 0
          %1148 = vmatpush1.bf16.msra.mxu0 %v1124
          %1149 = vmatprep.subr.bf16.mxu0 0
          %1150 = vmatpush1.bf16.msra.mxu0 0
          %1151 = vmatprep.subr.bf16.mxu0 0
          %1152 = vmatpush1.bf16.msra.mxu0 0
          %1153 = vmatprep.subr.bf16.mxu0 0
          %1154 = vmatpush1.bf16.msra.mxu0 0
          %1155 = vmatprep.subr.bf16.mxu0 0
          %1156 = vmatpush1.bf16.msra.mxu0 0
          %1157 = vmatprep.subr.bf16.mxu0 0
          %1158 = vmatpush1.bf16.msra.mxu0 0
          %1159 = vmatprep.subr.bf16.mxu0 0
          %1160 = vmatpush1.bf16.msra.mxu0 0
          %1161 = vmatprep.subr.bf16.mxu0 0
          %1162 = vmatpush1.bf16.msra.mxu0 0
          %1163 = vmatprep.subr.bf16.mxu0 0
          %1164 = vmatpush1.bf16.msra.mxu0 0
          %1165 = vmatprep.mubr.bf16.mxu0 0
          %1166 = vmatmul.mubr.bf16.gmra.mrb[0].mxu0 %v1077
          %v1167 = vpop.f32.mrb[0].mxu0
          %v1168 = vadd.f32 0.0, %v1167
          %v1169 = vpop.f32.mrb[0].mxu0
          %v1170 = vpop.f32.mrb[0].mxu0
          %v1171 = vadd.f32 0.0, %v1170
          %v1172 = vpop.f32.mrb[0].mxu0
          %1173 = vmatprep.mubr.bf16.mxu0 0
          %1174 = vmatmul.mubr.bf16.gmra.mrb[0].mxu0 %v1078
          %v1175 = vpop.f32.mrb[0].mxu0
          %v1176 = vadd.f32 0.0, %v1175
          %v1177 = vpop.f32.mrb[0].mxu0
          %v1178 = vpop.f32.mrb[0].mxu0
          %v1179 = vadd.f32 0.0, %v1178
          %v1180 = vpop.f32.mrb[0].mxu0
          %1181 = vmatprep.mubr.bf16.mxu0 0
          %1182 = vmatmul.mubr.bf16.gmra.mrb[0].mxu0 %v1079
          %v1183 = vpop.f32.mrb[0].mxu0
          %v1184 = vadd.f32 0.0, %v1183
          %v1185 = vpop.f32.mrb[0].mxu0
          %v1186 = vpop.f32.mrb[0].mxu0
          %v1187 = vadd.f32 0.0, %v1186
          %v1188 = vpop.f32.mrb[0].mxu0
          %1189 = vmatprep.mubr.bf16.mxu0 0
          %1190 = vmatmul.mubr.bf16.gmra.mrb[0].mxu0 %v1080
          %v1191 = vpop.f32.mrb[0].mxu0
          %v1192 = vadd.f32 0.0, %v1191
          %v1193 = vpop.f32.mrb[0].mxu0
          %v1194 = vpop.f32.mrb[0].mxu0
          %v1195 = vadd.f32 0.0, %v1194
          %v1196 = vpop.f32.mrb[0].mxu0
          %1197 = vmatprep.mubr.bf16.mxu0 0
          %1198 = vmatmul.mubr.bf16.gmra.mrb[0].mxu0 %v1081
          %v1199 = vpop.f32.mrb[0].mxu0
          %v1200 = vadd.f32 0.0, %v1199
          %v1201 = vpop.f32.mrb[0].mxu0
          %v1202 = vpop.f32.mrb[0].mxu0
          %v1203 = vadd.f32 0.0, %v1202
          %v1204 = vpop.f32.mrb[0].mxu0
          %1205 = vmatprep.mubr.bf16.mxu0 0
          %1206 = vmatmul.mubr.bf16.gmra.mrb[0].mxu0 %v1082
          %v1207 = vpop.f32.mrb[0].mxu0
          %v1208 = vadd.f32 0.0, %v1207
          %v1209 = vpop.f32.mrb[0].mxu0
          %v1210 = vpop.f32.mrb[0].mxu0
          %v1211 = vadd.f32 0.0, %v1210
          %v1212 = vpop.f32.mrb[0].mxu0
          %1213 = vmatprep.mubr.bf16.mxu0 0
          %1214 = vmatmul.mubr.bf16.gmra.mrb[0].mxu0 %v1083
          %v1215 = vpop.f32.mrb[0].mxu0
          %v1216 = vadd.f32 0.0, %v1215
          %v1217 = vpop.f32.mrb[0].mxu0
          %v1218 = vpop.f32.mrb[0].mxu0
          %v1219 = vadd.f32 0.0, %v1218
          %v1220 = vpop.f32.mrb[0].mxu0
          %1221 = vmatprep.mubr.bf16.mxu0 0
          %1222 = vmatmul.mubr.bf16.gmra.mrb[0].mxu0 %v1084
          %v1223 = vpop.f32.mrb[0].mxu0
          %v1224 = vadd.f32 0.0, %v1223
          %v1225 = vpop.f32.mrb[0].mxu0
          %v1226 = vpop.f32.mrb[0].mxu0
          %v1227 = vadd.f32 0.0, %v1226
          %v1228 = vpop.f32.mrb[0].mxu0
          %1229 = vdwg.mxu0
          %v1230 = vadd.f32 %v1061, %v1168
          %v1231 = vadd.f32 %v1062, %v1171
          %v1232 = vadd.f32 %v1063, %v1176
          %v1233 = vadd.f32 %v1064, %v1179
          %v1234 = vadd.f32 %v1065, %v1184
          %v1235 = vadd.f32 %v1066, %v1187
          %v1236 = vadd.f32 %v1067, %v1192
          %v1237 = vadd.f32 %v1068, %v1195
          %v1238 = vadd.f32 %v1069, %v1200
          %v1239 = vadd.f32 %v1070, %v1203
          %v1240 = vadd.f32 %v1071, %v1208
          %v1241 = vadd.f32 %v1072, %v1211
          %v1242 = vadd.f32 %v1073, %v1216
          %v1243 = vadd.f32 %v1074, %v1219
          %v1244 = vadd.f32 %v1075, %v1224
          %v1245 = vadd.f32 %v1076, %v1227
        $region160: #{gpt_forward.9} parent=142 // loop_footer
          %s618 = sadd.s32 %s616, 1
        $region161: #{gpt_forward.9} parent=142 // loop_footer_branch
          %615 = sbr.rel target = $region157
        $region162: #{gpt_forward.9} parent=142 // loop_exit
          _
        %s1246 = smul.u32 %s21, 128
        %s1247 = sshra.s32 %s1246, 3
        %s1248 = sand.u32 %s1246, 7
        %s1249 = smul.addr %s1247, 4
        %s1250 = scalar_lea.vmem %s519, %s1249 [#allocation3]
        %v1251 = vld [vmem:[%s1250] sm:$0xf]
        %v1252 = vld [vmem:[%s1250 + $0x4] sm:$0xf]
        %v1253 = vld [vmem:[%s1250 + $0x8] sm:$0xf]
        %v1254 = vld [vmem:[%s1250 + $0xc] sm:$0xf]
        %v1255 = vld [vmem:[%s1250 + $0x10] sm:$0xf]
        %v1256 = vld [vmem:[%s1250 + $0x14] sm:$0xf]
        %v1257 = vld [vmem:[%s1250 + $0x18] sm:$0xf]
        %v1258 = vld [vmem:[%s1250 + $0x1c] sm:$0xf]
        %v1259 = vld [vmem:[%s1250 + $0x20] sm:$0xf]
        %v1260 = vld [vmem:[%s1250 + $0x24] sm:$0xf]
        %v1261 = vld [vmem:[%s1250 + $0x28] sm:$0xf]
        %v1262 = vld [vmem:[%s1250 + $0x2c] sm:$0xf]
        %v1263 = vld [vmem:[%s1250 + $0x30] sm:$0xf]
        %v1264 = vld [vmem:[%s1250 + $0x34] sm:$0xf]
        %v1265 = vld [vmem:[%s1250 + $0x38] sm:$0xf]
        %v1266 = vld [vmem:[%s1250 + $0x3c] sm:$0xf]
        %s1267 = smul.addr %s1247, 4
        %s1268 = scalar_lea.vmem %s526, %s1267 [#allocation4]
        %v1269 = vld [vmem:[%s1268] sm:$0xf]
        %v1270 = vld [vmem:[%s1268 + $0x4] sm:$0xf]
        %v1271 = vld [vmem:[%s1268 + $0x8] sm:$0xf]
        %v1272 = vld [vmem:[%s1268 + $0xc] sm:$0xf]
        %v1273 = vld [vmem:[%s1268 + $0x10] sm:$0xf]
        %v1274 = vld [vmem:[%s1268 + $0x14] sm:$0xf]
        %v1275 = vld [vmem:[%s1268 + $0x18] sm:$0xf]
        %v1276 = vld [vmem:[%s1268 + $0x1c] sm:$0xf]
        %v1277 = vld [vmem:[%s1268 + $0x20] sm:$0xf]
        %v1278 = vld [vmem:[%s1268 + $0x24] sm:$0xf]
        %v1279 = vld [vmem:[%s1268 + $0x28] sm:$0xf]
        %v1280 = vld [vmem:[%s1268 + $0x2c] sm:$0xf]
        %v1281 = vld [vmem:[%s1268 + $0x30] sm:$0xf]
        %v1282 = vld [vmem:[%s1268 + $0x34] sm:$0xf]
        %v1283 = vld [vmem:[%s1268 + $0x38] sm:$0xf]
        %v1284 = vld [vmem:[%s1268 + $0x3c] sm:$0xf]
        %v1301 = vunpack.c.l.b16 %v1251
        %v1302 = vunpack.c.l.b16 %v1252
        %v1303 = vunpack.c.l.b16 %v1253
        %v1304 = vunpack.c.l.b16 %v1254
        %v1305 = vunpack.c.l.b16 %v1255
        %v1306 = vunpack.c.l.b16 %v1256
        %v1307 = vunpack.c.l.b16 %v1257
        %v1308 = vunpack.c.l.b16 %v1258
        %v1309 = vunpack.c.l.b16 %v1259
        %v1310 = vunpack.c.l.b16 %v1260
        %v1311 = vunpack.c.l.b16 %v1261
        %v1312 = vunpack.c.l.b16 %v1262
        %v1313 = vunpack.c.l.b16 %v1263
        %v1314 = vunpack.c.l.b16 %v1264
        %v1315 = vunpack.c.l.b16 %v1265
        %v1316 = vunpack.c.l.b16 %v1266
        %v1317 = vpack.c.b16 %v1302, %v1301
        %v1318 = vpack.c.b16 %v1304, %v1303
        %v1319 = vpack.c.b16 %v1306, %v1305
        %v1320 = vpack.c.b16 %v1308, %v1307
        %v1321 = vpack.c.b16 %v1310, %v1309
        %v1322 = vpack.c.b16 %v1312, %v1311
        %v1323 = vpack.c.b16 %v1314, %v1313
        %v1324 = vpack.c.b16 %v1316, %v1315
        %1333 = vmatprep.subr.bf16.mxu0 0
        %1334 = vmatpush1.bf16.xpose.msra.mxu0 %v1317
        %1335 = vmatprep.subr.bf16.mxu0 0
        %1336 = vmatpush1.bf16.xpose.msra.mxu0 %v1318
        %1337 = vmatprep.subr.bf16.mxu0 0
        %1338 = vmatpush1.bf16.xpose.msra.mxu0 %v1319
        %1339 = vmatprep.subr.bf16.mxu0 0
        %1340 = vmatpush1.bf16.xpose.msra.mxu0 %v1320
        %1341 = vmatprep.subr.bf16.mxu0 0
        %1342 = vmatpush1.bf16.xpose.msra.mxu0 %v1321
        %1343 = vmatprep.subr.bf16.mxu0 0
        %1344 = vmatpush1.bf16.xpose.msra.mxu0 %v1322
        %1345 = vmatprep.subr.bf16.mxu0 0
        %1346 = vmatpush1.bf16.xpose.msra.mxu0 %v1323
        %1347 = vmatprep.subr.bf16.mxu0 0
        %1348 = vmatpush1.bf16.xpose.msra.mxu0 %v1324
        %1349 = vmatprep.subr.bf16.mxu0 0
        %1350 = vmatpush1.bf16.xpose.msra.mxu0 0
        %1351 = vmatprep.subr.bf16.mxu0 0
        %1352 = vmatpush1.bf16.xpose.msra.mxu0 0
        %1353 = vmatprep.subr.bf16.mxu0 0
        %1354 = vmatpush1.bf16.xpose.msra.mxu0 0
        %1355 = vmatprep.subr.bf16.mxu0 0
        %1356 = vmatpush1.bf16.xpose.msra.mxu0 0
        %1357 = vmatprep.subr.bf16.mxu0 0
        %1358 = vmatpush1.bf16.xpose.msra.mxu0 0
        %1359 = vmatprep.subr.bf16.mxu0 0
        %1360 = vmatpush1.bf16.xpose.msra.mxu0 0
        %1361 = vmatprep.subr.bf16.mxu0 0
        %1362 = vmatpush1.bf16.xpose.msra.mxu0 0
        %1363 = vmatprep.subr.bf16.mxu0 0
        %1364 = vmatpush1.bf16.xpose.msra.mxu0 0
        %1365 = vmatprep.mubr.bf16.mxu0 0
        %1366 = vmatmul.mubr.bf16.gmra.mrb[0].mxu0 %v607
        %v1367 = vpop.f32.mrb[0].mxu0
        %v1368 = vadd.f32 0.0, %v1367
        %v1369 = vpop.f32.mrb[0].mxu0
        %v1370 = vpop.f32.mrb[0].mxu0
        %v1371 = vadd.f32 0.0, %v1370
        %v1372 = vpop.f32.mrb[0].mxu0
        %1373 = vmatprep.mubr.bf16.mxu0 0
        %1374 = vmatmul.mubr.bf16.gmra.mrb[0].mxu0 %v608
        %v1375 = vpop.f32.mrb[0].mxu0
        %v1376 = vadd.f32 0.0, %v1375
        %v1377 = vpop.f32.mrb[0].mxu0
        %v1378 = vpop.f32.mrb[0].mxu0
        %v1379 = vadd.f32 0.0, %v1378
        %v1380 = vpop.f32.mrb[0].mxu0
        %1381 = vmatprep.mubr.bf16.mxu0 0
        %1382 = vmatmul.mubr.bf16.gmra.mrb[0].mxu0 %v609
        %v1383 = vpop.f32.mrb[0].mxu0
        %v1384 = vadd.f32 0.0, %v1383
        %v1385 = vpop.f32.mrb[0].mxu0
        %v1386 = vpop.f32.mrb[0].mxu0
        %v1387 = vadd.f32 0.0, %v1386
        %v1388 = vpop.f32.mrb[0].mxu0
        %1389 = vmatprep.mubr.bf16.mxu0 0
        %1390 = vmatmul.mubr.bf16.gmra.mrb[0].mxu0 %v610
        %v1391 = vpop.f32.mrb[0].mxu0
        %v1392 = vadd.f32 0.0, %v1391
        %v1393 = vpop.f32.mrb[0].mxu0
        %v1394 = vpop.f32.mrb[0].mxu0
        %v1395 = vadd.f32 0.0, %v1394
        %v1396 = vpop.f32.mrb[0].mxu0
        %1397 = vmatprep.mubr.bf16.mxu0 0
        %1398 = vmatmul.mubr.bf16.gmra.mrb[0].mxu0 %v611
        %v1399 = vpop.f32.mrb[0].mxu0
        %v1400 = vadd.f32 0.0, %v1399
        %v1401 = vpop.f32.mrb[0].mxu0
        %v1402 = vpop.f32.mrb[0].mxu0
        %v1403 = vadd.f32 0.0, %v1402
        %v1404 = vpop.f32.mrb[0].mxu0
        %1405 = vmatprep.mubr.bf16.mxu0 0
        %1406 = vmatmul.mubr.bf16.gmra.mrb[0].mxu0 %v612
        %v1407 = vpop.f32.mrb[0].mxu0
        %v1408 = vadd.f32 0.0, %v1407
        %v1409 = vpop.f32.mrb[0].mxu0
        %v1410 = vpop.f32.mrb[0].mxu0
        %v1411 = vadd.f32 0.0, %v1410
        %v1412 = vpop.f32.mrb[0].mxu0
        %1413 = vmatprep.mubr.bf16.mxu0 0
        %1414 = vmatmul.mubr.bf16.gmra.mrb[0].mxu0 %v613
        %v1415 = vpop.f32.mrb[0].mxu0
        %v1416 = vadd.f32 0.0, %v1415
        %v1417 = vpop.f32.mrb[0].mxu0
        %v1418 = vpop.f32.mrb[0].mxu0
        %v1419 = vadd.f32 0.0, %v1418
        %v1420 = vpop.f32.mrb[0].mxu0
        %1421 = vmatprep.mubr.bf16.mxu0 0
        %1422 = vmatmul.mubr.bf16.gmra.mrb[0].mxu0 %v614
        %v1423 = vpop.f32.mrb[0].mxu0
        %v1424 = vadd.f32 0.0, %v1423
        %v1425 = vpop.f32.mrb[0].mxu0
        %v1426 = vpop.f32.mrb[0].mxu0
        %v1427 = vadd.f32 0.0, %v1426
        %v1428 = vpop.f32.mrb[0].mxu0
        %1429 = vdwg.mxu0
        %v1430 = vlaneseq
        %v1431 = vshrl.u32 %v1430, 7
        %v1432 = vadd.s32 %v1431, 8
        %v1433 = vadd.s32 %v1431, 16
        %v1434 = vadd.s32 %v1431, 24
        %v1435 = vadd.s32 %v1431, 32
        %v1436 = vadd.s32 %v1431, 40
        %v1437 = vadd.s32 %v1431, 48
        %v1438 = vadd.s32 %v1431, 56
        %v1439 = vadd.s32 %v1431, 64
        %v1440 = vadd.s32 %v1431, 72
        %v1441 = vadd.s32 %v1431, 80
        %v1442 = vadd.s32 %v1431, 88
        %v1443 = vadd.s32 %v1431, 96
        %v1444 = vadd.s32 %v1431, 104
        %v1445 = vadd.s32 %v1431, 112
        %v1446 = vadd.s32 %v1431, 120
        %v1447 = vlaneseq
        %v1448 = vand.u32 %v1447, 127
        %vm1449 = vcmp.le.s32.totalorder %v1448, %v1431
        %vm1450 = vcmp.le.s32.totalorder %v1448, %v1432
        %vm1451 = vcmp.le.s32.totalorder %v1448, %v1433
        %vm1452 = vcmp.le.s32.totalorder %v1448, %v1434
        %vm1453 = vcmp.le.s32.totalorder %v1448, %v1435
        %vm1454 = vcmp.le.s32.totalorder %v1448, %v1436
        %vm1455 = vcmp.le.s32.totalorder %v1448, %v1437
        %vm1456 = vcmp.le.s32.totalorder %v1448, %v1438
        %vm1457 = vcmp.le.s32.totalorder %v1448, %v1439
        %vm1458 = vcmp.le.s32.totalorder %v1448, %v1440
        %vm1459 = vcmp.le.s32.totalorder %v1448, %v1441
        %vm1460 = vcmp.le.s32.totalorder %v1448, %v1442
        %vm1461 = vcmp.le.s32.totalorder %v1448, %v1443
        %vm1462 = vcmp.le.s32.totalorder %v1448, %v1444
        %vm1463 = vcmp.le.s32.totalorder %v1448, %v1445
        %vm1464 = vcmp.le.s32.totalorder %v1448, %v1446
        %v1465 = vsel %vm1449, %v1368, -1e+30
        %v1466 = vsel %vm1450, %v1371, -1e+30
        %v1467 = vsel %vm1451, %v1376, -1e+30
        %v1468 = vsel %vm1452, %v1379, -1e+30
        %v1469 = vsel %vm1453, %v1384, -1e+30
        %v1470 = vsel %vm1454, %v1387, -1e+30
        %v1471 = vsel %vm1455, %v1392, -1e+30
        %v1472 = vsel %vm1456, %v1395, -1e+30
        %v1473 = vsel %vm1457, %v1400, -1e+30
        %v1474 = vsel %vm1458, %v1403, -1e+30
        %v1475 = vsel %vm1459, %v1408, -1e+30
        %v1476 = vsel %vm1460, %v1411, -1e+30
        %v1477 = vsel %vm1461, %v1416, -1e+30
        %v1478 = vsel %vm1462, %v1419, -1e+30
        %v1479 = vsel %vm1463, %v1424, -1e+30
        %v1480 = vsel %vm1464, %v1427, -1e+30
        %1481 = vmax.xlane.f32.xlu0 %v1465
        %v1482 = vpop.xlane.xlu0 %1481
        %1483 = vmax.xlane.f32.xlu0 %v1466
        %v1484 = vpop.xlane.xlu0 %1483
        %1485 = vmax.xlane.f32.xlu0 %v1467
        %v1486 = vpop.xlane.xlu0 %1485
        %1487 = vmax.xlane.f32.xlu0 %v1468
        %v1488 = vpop.xlane.xlu0 %1487
        %1489 = vmax.xlane.f32.xlu0 %v1469
        %v1490 = vpop.xlane.xlu0 %1489
        %1491 = vmax.xlane.f32.xlu0 %v1470
        %v1492 = vpop.xlane.xlu0 %1491
        %1493 = vmax.xlane.f32.xlu0 %v1471
        %v1494 = vpop.xlane.xlu0 %1493
        %1495 = vmax.xlane.f32.xlu0 %v1472
        %v1496 = vpop.xlane.xlu0 %1495
        %1497 = vmax.xlane.f32.xlu0 %v1473
        %v1498 = vpop.xlane.xlu0 %1497
        %1499 = vmax.xlane.f32.xlu0 %v1474
        %v1500 = vpop.xlane.xlu0 %1499
        %1501 = vmax.xlane.f32.xlu0 %v1475
        %v1502 = vpop.xlane.xlu0 %1501
        %1503 = vmax.xlane.f32.xlu0 %v1476
        %v1504 = vpop.xlane.xlu0 %1503
        %1505 = vmax.xlane.f32.xlu0 %v1477
        %v1506 = vpop.xlane.xlu0 %1505
        %1507 = vmax.xlane.f32.xlu0 %v1478
        %v1508 = vpop.xlane.xlu0 %1507
        %1509 = vmax.xlane.f32.xlu0 %v1479
        %v1510 = vpop.xlane.xlu0 %1509
        %1511 = vmax.xlane.f32.xlu0 %v1480
        %v1512 = vpop.xlane.xlu0 %1511
        %v1513 = vmax.f32 %v621, %v1482
        %v1514 = vmax.f32 %v622, %v1484
        %v1515 = vmax.f32 %v623, %v1486
        %v1516 = vmax.f32 %v624, %v1488
        %v1517 = vmax.f32 %v625, %v1490
        %v1518 = vmax.f32 %v626, %v1492
        %v1519 = vmax.f32 %v627, %v1494
        %v1520 = vmax.f32 %v628, %v1496
        %v1521 = vmax.f32 %v629, %v1498
        %v1522 = vmax.f32 %v630, %v1500
        %v1523 = vmax.f32 %v631, %v1502
        %v1524 = vmax.f32 %v632, %v1504
        %v1525 = vmax.f32 %v633, %v1506
        %v1526 = vmax.f32 %v634, %v1508
        %v1527 = vmax.f32 %v635, %v1510
        %v1528 = vmax.f32 %v636, %v1512
        %v1529 = vsub.f32 %v621, %v1513
        %v1530 = vsub.f32 %v622, %v1514
        %v1531 = vsub.f32 %v623, %v1515
        %v1532 = vsub.f32 %v624, %v1516
        %v1533 = vsub.f32 %v625, %v1517
        %v1534 = vsub.f32 %v626, %v1518
        %v1535 = vsub.f32 %v627, %v1519
        %v1536 = vsub.f32 %v628, %v1520
        %v1537 = vsub.f32 %v629, %v1521
        %v1538 = vsub.f32 %v630, %v1522
        %v1539 = vsub.f32 %v631, %v1523
        %v1540 = vsub.f32 %v632, %v1524
        %v1541 = vsub.f32 %v633, %v1525
        %v1542 = vsub.f32 %v634, %v1526
        %v1543 = vsub.f32 %v635, %v1527
        %v1544 = vsub.f32 %v636, %v1528
        %v1545 = vmul.f32 %v1529, 1.442695
        %v1546 = vpow.pop %v1545
        %v1547 = vmul.f32 %v1530, 1.442695
        %v1548 = vpow.pop %v1547
        %v1549 = vmul.f32 %v1531, 1.442695
        %v1550 = vpow.pop %v1549
        %v1551 = vmul.f32 %v1532, 1.442695
        %v1552 = vpow.pop %v1551
        %v1553 = vmul.f32 %v1533, 1.442695
        %v1554 = vpow.pop %v1553
        %v1555 = vmul.f32 %v1534, 1.442695
        %v1556 = vpow.pop %v1555
        %v1557 = vmul.f32 %v1535, 1.442695
        %v1558 = vpow.pop %v1557
        %v1559 = vmul.f32 %v1536, 1.442695
        %v1560 = vpow.pop %v1559
        %v1561 = vmul.f32 %v1537, 1.442695
        %v1562 = vpow.pop %v1561
        %v1563 = vmul.f32 %v1538, 1.442695
        %v1564 = vpow.pop %v1563
        %v1565 = vmul.f32 %v1539, 1.442695
        %v1566 = vpow.pop %v1565
        %v1567 = vmul.f32 %v1540, 1.442695
        %v1568 = vpow.pop %v1567
        %v1569 = vmul.f32 %v1541, 1.442695
        %v1570 = vpow.pop %v1569
        %v1571 = vmul.f32 %v1542, 1.442695
        %v1572 = vpow.pop %v1571
        %v1573 = vmul.f32 %v1543, 1.442695
        %v1574 = vpow.pop %v1573
        %v1575 = vmul.f32 %v1544, 1.442695
        %v1576 = vpow.pop %v1575
        %v1577 = vsub.f32 %v1465, %v1513
        %v1578 = vsub.f32 %v1466, %v1514
        %v1579 = vsub.f32 %v1467, %v1515
        %v1580 = vsub.f32 %v1468, %v1516
        %v1581 = vsub.f32 %v1469, %v1517
        %v1582 = vsub.f32 %v1470, %v1518
        %v1583 = vsub.f32 %v1471, %v1519
        %v1584 = vsub.f32 %v1472, %v1520
        %v1585 = vsub.f32 %v1473, %v1521
        %v1586 = vsub.f32 %v1474, %v1522
        %v1587 = vsub.f32 %v1475, %v1523
        %v1588 = vsub.f32 %v1476, %v1524
        %v1589 = vsub.f32 %v1477, %v1525
        %v1590 = vsub.f32 %v1478, %v1526
        %v1591 = vsub.f32 %v1479, %v1527
        %v1592 = vsub.f32 %v1480, %v1528
        %v1593 = vmul.f32 %v1577, 1.442695
        %v1594 = vpow.pop %v1593
        %v1595 = vmul.f32 %v1578, 1.442695
        %v1596 = vpow.pop %v1595
        %v1597 = vmul.f32 %v1579, 1.442695
        %v1598 = vpow.pop %v1597
        %v1599 = vmul.f32 %v1580, 1.442695
        %v1600 = vpow.pop %v1599
        %v1601 = vmul.f32 %v1581, 1.442695
        %v1602 = vpow.pop %v1601
        %v1603 = vmul.f32 %v1582, 1.442695
        %v1604 = vpow.pop %v1603
        %v1605 = vmul.f32 %v1583, 1.442695
        %v1606 = vpow.pop %v1605
        %v1607 = vmul.f32 %v1584, 1.442695
        %v1608 = vpow.pop %v1607
        %v1609 = vmul.f32 %v1585, 1.442695
        %v1610 = vpow.pop %v1609
        %v1611 = vmul.f32 %v1586, 1.442695
        %v1612 = vpow.pop %v1611
        %v1613 = vmul.f32 %v1587, 1.442695
        %v1614 = vpow.pop %v1613
        %v1615 = vmul.f32 %v1588, 1.442695
        %v1616 = vpow.pop %v1615
        %v1617 = vmul.f32 %v1589, 1.442695
        %v1618 = vpow.pop %v1617
        %v1619 = vmul.f32 %v1590, 1.442695
        %v1620 = vpow.pop %v1619
        %v1621 = vmul.f32 %v1591, 1.442695
        %v1622 = vpow.pop %v1621
        %v1623 = vmul.f32 %v1592, 1.442695
        %v1624 = vpow.pop %v1623
        %v1625 = vmul.f32 %v1546, %v637
        %v1626 = vmul.f32 %v1548, %v638
        %v1627 = vmul.f32 %v1550, %v639
        %v1628 = vmul.f32 %v1552, %v640
        %v1629 = vmul.f32 %v1554, %v641
        %v1630 = vmul.f32 %v1556, %v642
        %v1631 = vmul.f32 %v1558, %v643
        %v1632 = vmul.f32 %v1560, %v644
        %v1633 = vmul.f32 %v1562, %v645
        %v1634 = vmul.f32 %v1564, %v646
        %v1635 = vmul.f32 %v1566, %v647
        %v1636 = vmul.f32 %v1568, %v648
        %v1637 = vmul.f32 %v1570, %v649
        %v1638 = vmul.f32 %v1572, %v650
        %v1639 = vmul.f32 %v1574, %v651
        %v1640 = vmul.f32 %v1576, %v652
        %1641 = vadd.xlane.f32.xlu0 %v1594
        %v1642 = vpop.xlane.xlu0 %1641
        %1643 = vadd.xlane.f32.xlu0 %v1596
        %v1644 = vpop.xlane.xlu0 %1643
        %1645 = vadd.xlane.f32.xlu0 %v1598
        %v1646 = vpop.xlane.xlu0 %1645
        %1647 = vadd.xlane.f32.xlu0 %v1600
        %v1648 = vpop.xlane.xlu0 %1647
        %1649 = vadd.xlane.f32.xlu0 %v1602
        %v1650 = vpop.xlane.xlu0 %1649
        %1651 = vadd.xlane.f32.xlu0 %v1604
        %v1652 = vpop.xlane.xlu0 %1651
        %1653 = vadd.xlane.f32.xlu0 %v1606
        %v1654 = vpop.xlane.xlu0 %1653
        %1655 = vadd.xlane.f32.xlu0 %v1608
        %v1656 = vpop.xlane.xlu0 %1655
        %1657 = vadd.xlane.f32.xlu0 %v1610
        %v1658 = vpop.xlane.xlu0 %1657
        %1659 = vadd.xlane.f32.xlu0 %v1612
        %v1660 = vpop.xlane.xlu0 %1659
        %1661 = vadd.xlane.f32.xlu0 %v1614
        %v1662 = vpop.xlane.xlu0 %1661
        %1663 = vadd.xlane.f32.xlu0 %v1616
        %v1664 = vpop.xlane.xlu0 %1663
        %1665 = vadd.xlane.f32.xlu0 %v1618
        %v1666 = vpop.xlane.xlu0 %1665
        %1667 = vadd.xlane.f32.xlu0 %v1620
        %v1668 = vpop.xlane.xlu0 %1667
        %1669 = vadd.xlane.f32.xlu0 %v1622
        %v1670 = vpop.xlane.xlu0 %1669
        %1671 = vadd.xlane.f32.xlu0 %v1624
        %v1672 = vpop.xlane.xlu0 %1671
        %v1673 = vadd.f32 %v1625, %v1642
        %v1674 = vadd.f32 %v1626, %v1644
        %v1675 = vadd.f32 %v1627, %v1646
        %v1676 = vadd.f32 %v1628, %v1648
        %v1677 = vadd.f32 %v1629, %v1650
        %v1678 = vadd.f32 %v1630, %v1652
        %v1679 = vadd.f32 %v1631, %v1654
        %v1680 = vadd.f32 %v1632, %v1656
        %v1681 = vadd.f32 %v1633, %v1658
        %v1682 = vadd.f32 %v1634, %v1660
        %v1683 = vadd.f32 %v1635, %v1662
        %v1684 = vadd.f32 %v1636, %v1664
        %v1685 = vadd.f32 %v1637, %v1666
        %v1686 = vadd.f32 %v1638, %v1668
        %v1687 = vadd.f32 %v1639, %v1670
        %v1688 = vadd.f32 %v1640, %v1672
        %v1689 = vmul.f32 %v1546, %v653
        %v1690 = vmul.f32 %v1548, %v654
        %v1691 = vmul.f32 %v1550, %v655
        %v1692 = vmul.f32 %v1552, %v656
        %v1693 = vmul.f32 %v1554, %v657
        %v1694 = vmul.f32 %v1556, %v658
        %v1695 = vmul.f32 %v1558, %v659
        %v1696 = vmul.f32 %v1560, %v660
        %v1697 = vmul.f32 %v1562, %v661
        %v1698 = vmul.f32 %v1564, %v662
        %v1699 = vmul.f32 %v1566, %v663
        %v1700 = vmul.f32 %v1568, %v664
        %v1701 = vmul.f32 %v1570, %v665
        %v1702 = vmul.f32 %v1572, %v666
        %v1703 = vmul.f32 %v1574, %v667
        %v1704 = vmul.f32 %v1576, %v668
        %v1705 = vpack.c.bf16 %v1596, %v1594
        %v1706 = vpack.c.bf16 %v1600, %v1598
        %v1707 = vpack.c.bf16 %v1604, %v1602
        %v1708 = vpack.c.bf16 %v1608, %v1606
        %v1709 = vpack.c.bf16 %v1612, %v1610
        %v1710 = vpack.c.bf16 %v1616, %v1614
        %v1711 = vpack.c.bf16 %v1620, %v1618
        %v1712 = vpack.c.bf16 %v1624, %v1622
        %v1729 = vunpack.c.l.b16 %v1269
        %v1730 = vunpack.c.l.b16 %v1270
        %v1731 = vunpack.c.l.b16 %v1271
        %v1732 = vunpack.c.l.b16 %v1272
        %v1733 = vunpack.c.l.b16 %v1273
        %v1734 = vunpack.c.l.b16 %v1274
        %v1735 = vunpack.c.l.b16 %v1275
        %v1736 = vunpack.c.l.b16 %v1276
        %v1737 = vunpack.c.l.b16 %v1277
        %v1738 = vunpack.c.l.b16 %v1278
        %v1739 = vunpack.c.l.b16 %v1279
        %v1740 = vunpack.c.l.b16 %v1280
        %v1741 = vunpack.c.l.b16 %v1281
        %v1742 = vunpack.c.l.b16 %v1282
        %v1743 = vunpack.c.l.b16 %v1283
        %v1744 = vunpack.c.l.b16 %v1284
        %v1745 = vpack.c.b16 %v1730, %v1729
        %v1746 = vpack.c.b16 %v1732, %v1731
        %v1747 = vpack.c.b16 %v1734, %v1733
        %v1748 = vpack.c.b16 %v1736, %v1735
        %v1749 = vpack.c.b16 %v1738, %v1737
        %v1750 = vpack.c.b16 %v1740, %v1739
        %v1751 = vpack.c.b16 %v1742, %v1741
        %v1752 = vpack.c.b16 %v1744, %v1743
        %1761 = vmatprep.subr.bf16.mxu0 0
        %1762 = vmatpush1.bf16.msra.mxu0 %v1745
        %1763 = vmatprep.subr.bf16.mxu0 0
        %1764 = vmatpush1.bf16.msra.mxu0 %v1746
        %1765 = vmatprep.subr.bf16.mxu0 0
        %1766 = vmatpush1.bf16.msra.mxu0 %v1747
        %1767 = vmatprep.subr.bf16.mxu0 0
        %1768 = vmatpush1.bf16.msra.mxu0 %v1748
        %1769 = vmatprep.subr.bf16.mxu0 0
        %1770 = vmatpush1.bf16.msra.mxu0 %v1749
        %1771 = vmatprep.subr.bf16.mxu0 0
        %1772 = vmatpush1.bf16.msra.mxu0 %v1750
        %1773 = vmatprep.subr.bf16.mxu0 0
        %1774 = vmatpush1.bf16.msra.mxu0 %v1751
        %1775 = vmatprep.subr.bf16.mxu0 0
        %1776 = vmatpush1.bf16.msra.mxu0 %v1752
        %1777 = vmatprep.subr.bf16.mxu0 0
        %1778 = vmatpush1.bf16.msra.mxu0 0
        %1779 = vmatprep.subr.bf16.mxu0 0
        %1780 = vmatpush1.bf16.msra.mxu0 0
        %1781 = vmatprep.subr.bf16.mxu0 0
        %1782 = vmatpush1.bf16.msra.mxu0 0
        %1783 = vmatprep.subr.bf16.mxu0 0
        %1784 = vmatpush1.bf16.msra.mxu0 0
        %1785 = vmatprep.subr.bf16.mxu0 0
        %1786 = vmatpush1.bf16.msra.mxu0 0
        %1787 = vmatprep.subr.bf16.mxu0 0
        %1788 = vmatpush1.bf16.msra.mxu0 0
        %1789 = vmatprep.subr.bf16.mxu0 0
        %1790 = vmatpush1.bf16.msra.mxu0 0
        %1791 = vmatprep.subr.bf16.mxu0 0
        %1792 = vmatpush1.bf16.msra.mxu0 0
        %1793 = vmatprep.mubr.bf16.mxu0 0
        %1794 = vmatmul.mubr.bf16.gmra.mrb[0].mxu0 %v1705
        %v1795 = vpop.f32.mrb[0].mxu0
        %v1796 = vadd.f32 0.0, %v1795
        %v1797 = vpop.f32.mrb[0].mxu0
        %v1798 = vpop.f32.mrb[0].mxu0
        %v1799 = vadd.f32 0.0, %v1798
        %v1800 = vpop.f32.mrb[0].mxu0
        %1801 = vmatprep.mubr.bf16.mxu0 0
        %1802 = vmatmul.mubr.bf16.gmra.mrb[0].mxu0 %v1706
        %v1803 = vpop.f32.mrb[0].mxu0
        %v1804 = vadd.f32 0.0, %v1803
        %v1805 = vpop.f32.mrb[0].mxu0
        %v1806 = vpop.f32.mrb[0].mxu0
        %v1807 = vadd.f32 0.0, %v1806
        %v1808 = vpop.f32.mrb[0].mxu0
        %1809 = vmatprep.mubr.bf16.mxu0 0
        %1810 = vmatmul.mubr.bf16.gmra.mrb[0].mxu0 %v1707
        %v1811 = vpop.f32.mrb[0].mxu0
        %v1812 = vadd.f32 0.0, %v1811
        %v1813 = vpop.f32.mrb[0].mxu0
        %v1814 = vpop.f32.mrb[0].mxu0
        %v1815 = vadd.f32 0.0, %v1814
        %v1816 = vpop.f32.mrb[0].mxu0
        %1817 = vmatprep.mubr.bf16.mxu0 0
        %1818 = vmatmul.mubr.bf16.gmra.mrb[0].mxu0 %v1708
        %v1819 = vpop.f32.mrb[0].mxu0
        %v1820 = vadd.f32 0.0, %v1819
        %v1821 = vpop.f32.mrb[0].mxu0
        %v1822 = vpop.f32.mrb[0].mxu0
        %v1823 = vadd.f32 0.0, %v1822
        %v1824 = vpop.f32.mrb[0].mxu0
        %1825 = vmatprep.mubr.bf16.mxu0 0
        %1826 = vmatmul.mubr.bf16.gmra.mrb[0].mxu0 %v1709
        %v1827 = vpop.f32.mrb[0].mxu0
        %v1828 = vadd.f32 0.0, %v1827
        %v1829 = vpop.f32.mrb[0].mxu0
        %v1830 = vpop.f32.mrb[0].mxu0
        %v1831 = vadd.f32 0.0, %v1830
        %v1832 = vpop.f32.mrb[0].mxu0
        %1833 = vmatprep.mubr.bf16.mxu0 0
        %1834 = vmatmul.mubr.bf16.gmra.mrb[0].mxu0 %v1710
        %v1835 = vpop.f32.mrb[0].mxu0
        %v1836 = vadd.f32 0.0, %v1835
        %v1837 = vpop.f32.mrb[0].mxu0
        %v1838 = vpop.f32.mrb[0].mxu0
        %v1839 = vadd.f32 0.0, %v1838
        %v1840 = vpop.f32.mrb[0].mxu0
        %1841 = vmatprep.mubr.bf16.mxu0 0
        %1842 = vmatmul.mubr.bf16.gmra.mrb[0].mxu0 %v1711
        %v1843 = vpop.f32.mrb[0].mxu0
        %v1844 = vadd.f32 0.0, %v1843
        %v1845 = vpop.f32.mrb[0].mxu0
        %v1846 = vpop.f32.mrb[0].mxu0
        %v1847 = vadd.f32 0.0, %v1846
        %v1848 = vpop.f32.mrb[0].mxu0
        %1849 = vmatprep.mubr.bf16.mxu0 0
        %1850 = vmatmul.mubr.bf16.gmra.mrb[0].mxu0 %v1712
        %v1851 = vpop.f32.mrb[0].mxu0
        %v1852 = vadd.f32 0.0, %v1851
        %v1853 = vpop.f32.mrb[0].mxu0
        %v1854 = vpop.f32.mrb[0].mxu0
        %v1855 = vadd.f32 0.0, %v1854
        %v1856 = vpop.f32.mrb[0].mxu0
        %1857 = vdwg.mxu0
        %v1858 = vadd.f32 %v1689, %v1796
        %v1859 = vadd.f32 %v1690, %v1799
        %v1860 = vadd.f32 %v1691, %v1804
        %v1861 = vadd.f32 %v1692, %v1807
        %v1862 = vadd.f32 %v1693, %v1812
        %v1863 = vadd.f32 %v1694, %v1815
        %v1864 = vadd.f32 %v1695, %v1820
        %v1865 = vadd.f32 %v1696, %v1823
        %v1866 = vadd.f32 %v1697, %v1828
        %v1867 = vadd.f32 %v1698, %v1831
        %v1868 = vadd.f32 %v1699, %v1836
        %v1869 = vadd.f32 %v1700, %v1839
        %v1870 = vadd.f32 %v1701, %v1844
        %v1871 = vadd.f32 %v1702, %v1847
        %v1872 = vadd.f32 %v1703, %v1852
        %v1873 = vadd.f32 %v1704, %v1855
        %v1874 = vrcp.pop %v1673
        %v1875 = vrcp.pop %v1674
        %v1876 = vrcp.pop %v1675
        %v1877 = vrcp.pop %v1676
        %v1878 = vrcp.pop %v1677
        %v1879 = vrcp.pop %v1678
        %v1880 = vrcp.pop %v1679
        %v1881 = vrcp.pop %v1680
        %v1882 = vrcp.pop %v1681
        %v1883 = vrcp.pop %v1682
        %v1884 = vrcp.pop %v1683
        %v1885 = vrcp.pop %v1684
        %v1886 = vrcp.pop %v1685
        %v1887 = vrcp.pop %v1686
        %v1888 = vrcp.pop %v1687
        %v1889 = vrcp.pop %v1688
        %v1890 = vmul.f32 %v1858, %v1874
        %v1891 = vmul.f32 %v1859, %v1875
        %v1892 = vmul.f32 %v1860, %v1876
        %v1893 = vmul.f32 %v1861, %v1877
        %v1894 = vmul.f32 %v1862, %v1878
        %v1895 = vmul.f32 %v1863, %v1879
        %v1896 = vmul.f32 %v1864, %v1880
        %v1897 = vmul.f32 %v1865, %v1881
        %v1898 = vmul.f32 %v1866, %v1882
        %v1899 = vmul.f32 %v1867, %v1883
        %v1900 = vmul.f32 %v1868, %v1884
        %v1901 = vmul.f32 %v1869, %v1885
        %v1902 = vmul.f32 %v1870, %v1886
        %v1903 = vmul.f32 %v1871, %v1887
        %v1904 = vmul.f32 %v1872, %v1888
        %v1905 = vmul.f32 %v1873, %v1889
        %v1906 = vpack.c.bf16 %v1891, %v1890
        %v1907 = vpack.c.bf16 %v1893, %v1892
        %v1908 = vpack.c.bf16 %v1895, %v1894
        %v1909 = vpack.c.bf16 %v1897, %v1896
        %v1910 = vpack.c.bf16 %v1899, %v1898
        %v1911 = vpack.c.bf16 %v1901, %v1900
        %v1912 = vpack.c.bf16 %v1903, %v1902
        %v1913 = vpack.c.bf16 %v1905, %v1904
        %v1922 = vunpack.c.l.b16 %v1906
        %v1923 = vunpack.c.h.b16 %v1906
        %v1924 = vunpack.c.l.b16 %v1907
        %v1925 = vunpack.c.h.b16 %v1907
        %v1926 = vunpack.c.l.b16 %v1908
        %v1927 = vunpack.c.h.b16 %v1908
        %v1928 = vunpack.c.l.b16 %v1909
        %v1929 = vunpack.c.h.b16 %v1909
        %v1930 = vunpack.c.l.b16 %v1910
        %v1931 = vunpack.c.h.b16 %v1910
        %v1932 = vunpack.c.l.b16 %v1911
        %v1933 = vunpack.c.h.b16 %v1911
        %v1934 = vunpack.c.l.b16 %v1912
        %v1935 = vunpack.c.h.b16 %v1912
        %v1936 = vunpack.c.l.b16 %v1913
        %v1937 = vunpack.c.h.b16 %v1913
        %v1938 = vpack.c.b16 %v1922, %v1922
        %v1939 = vpack.c.b16 %v1923, %v1923
        %v1940 = vpack.c.b16 %v1924, %v1924
        %v1941 = vpack.c.b16 %v1925, %v1925
        %v1942 = vpack.c.b16 %v1926, %v1926
        %v1943 = vpack.c.b16 %v1927, %v1927
        %v1944 = vpack.c.b16 %v1928, %v1928
        %v1945 = vpack.c.b16 %v1929, %v1929
        %v1946 = vpack.c.b16 %v1930, %v1930
        %v1947 = vpack.c.b16 %v1931, %v1931
        %v1948 = vpack.c.b16 %v1932, %v1932
        %v1949 = vpack.c.b16 %v1933, %v1933
        %v1950 = vpack.c.b16 %v1934, %v1934
        %v1951 = vpack.c.b16 %v1935, %v1935
        %v1952 = vpack.c.b16 %v1936, %v1936
        %v1953 = vpack.c.b16 %v1937, %v1937
        %1970 = vst [vmem:[%s553] sm:$0xf] %v1938
        %1971 = vst [vmem:[%s553 + $0x4] sm:$0xf] %v1939
        %1972 = vst [vmem:[%s553 + $0x8] sm:$0xf] %v1940
        %1973 = vst [vmem:[%s553 + $0xc] sm:$0xf] %v1941
        %1974 = vst [vmem:[%s553 + $0x10] sm:$0xf] %v1942
        %1975 = vst [vmem:[%s553 + $0x14] sm:$0xf] %v1943
        %1976 = vst [vmem:[%s553 + $0x18] sm:$0xf] %v1944
        %1977 = vst [vmem:[%s553 + $0x1c] sm:$0xf] %v1945
        %1978 = vst [vmem:[%s553 + $0x20] sm:$0xf] %v1946
        %1979 = vst [vmem:[%s553 + $0x24] sm:$0xf] %v1947
        %1980 = vst [vmem:[%s553 + $0x28] sm:$0xf] %v1948
        %1981 = vst [vmem:[%s553 + $0x2c] sm:$0xf] %v1949
        %1982 = vst [vmem:[%s553 + $0x30] sm:$0xf] %v1950
        %1983 = vst [vmem:[%s553 + $0x34] sm:$0xf] %v1951
        %1984 = vst [vmem:[%s553 + $0x38] sm:$0xf] %v1952
        %1985 = vst [vmem:[%s553 + $0x3c] sm:$0xf] %v1953
        %s1986 = sand.u32 %s135, 1
        %s1987 = sand.u32 %s135, 1
        %s1988 = smul.addr %s1987, 64
        %s1989 = scalar_lea.vmem [#allocation5], %s1988
        // Predicated region
        $region163: #{gpt_forward.9} parent=142 // pred_check
          %p1990 = pneg %p145
        $region164: #{gpt_forward.9} parent=142 // pred_check_branch
          %1992 = sbr.rel (%p1990) target = $region166
        $region165: #{gpt_forward.9} parent=142 // pred_region
          %s1993 = smul.u32 16, %s21
          %s1994 = smul.addr %s1993, 2
          %s1995 = sadd.s32 %s20, %s1994
          %s1996 = smul.addr %s19, 32
          %s1997 = sadd.s32 %s1995, %s1996
          %s1998 = smul.addr %s1997, 4
          %s1999 = scalar_lea.vmem %s3, %s1998
          // Predicated region
          $region167: #{gpt_forward.9} parent=165 // pred_check
            _
          $region168: #{gpt_forward.9} parent=165 // pred_check_branch
            %2001 = sbr.rel (0) target = $region170
          $region169: #{gpt_forward.9} parent=165 // pred_region
            // Predicated region
            $region171: #{gpt_forward.9} parent=169 // pred_check
              _
            $region172: #{gpt_forward.9} parent=169 // pred_check_branch
              %2003 = sbr.rel target = $region174
            $region173: #{gpt_forward.9} parent=169 // pred_region
              // Predicated region
              $region186: #{gpt_forward.9} parent=173 // pred_check
                _
              $region187: #{gpt_forward.9} parent=173 // pred_check_branch
                %2048 = sbr.rel (0) target = $region189
              $region188: #{gpt_forward.9} parent=173 // pred_region
                loop: start=0, step=1, limit=1
                $region190: #{gpt_forward.9} parent=188 // loop_pre_header
                  _
                $region191: #{gpt_forward.9} parent=188 // loop_header
                  %s2050 = sphi 0, %s2054
                  %p2051 = scmp.ge.s32.totalorder %s2050, 1
                  %s2055 = sphi %s1989, %s1989
                  %s2056 = sphi %s1999, %s1999
                $region192: #{gpt_forward.9} parent=188 // loop_header_branch
                  %2053 = sbr.rel (%p2051) target = $region196
                $region193: #{gpt_forward.9} parent=188 // loop_body
                  _
                $region194: #{gpt_forward.9} parent=188 // loop_footer
                  %s2054 = sadd.s32 1, %s2050
                $region195: #{gpt_forward.9} parent=188 // loop_footer_branch
                  %2049 = sbr.rel target = $region191
                $region196: #{gpt_forward.9} parent=188 // loop_exit
                  _
                loop: start=0, step=1, limit=1
                $region197: #{gpt_forward.9} parent=188 // loop_pre_header
                  _
                $region198: #{gpt_forward.9} parent=188 // loop_header
                  %s2059 = sphi 0, %s2063
                  %p2060 = scmp.ge.s32.totalorder %s2059, 1
                  %s2064 = sphi %s1989, %s1989
                  %s2065 = sphi %s1999, %s1999
                $region199: #{gpt_forward.9} parent=188 // loop_header_branch
                  %2062 = sbr.rel (%p2060) target = $region203
                $region200: #{gpt_forward.9} parent=188 // loop_body
                  %v2066 = vld [vmem:[%s2064] sm:$0xf]
                  %2067 = vst [vmem:[%s2065] sm:$0xf] %v2066
                  %v2068 = vld [vmem:[%s2064 + $0x4] sm:$0xf]
                  %2069 = vst [vmem:[%s2065 + $0x8] sm:$0xf] %v2068
                  %v2070 = vld [vmem:[%s2064 + $0x8] sm:$0xf]
                  %2071 = vst [vmem:[%s2065 + $0x10] sm:$0xf] %v2070
                  %v2072 = vld [vmem:[%s2064 + $0xc] sm:$0xf]
                  %2073 = vst [vmem:[%s2065 + $0x18] sm:$0xf] %v2072
                  %v2074 = vld [vmem:[%s2064 + $0x10] sm:$0xf]
                  %2075 = vst [vmem:[%s2065 + $0x20] sm:$0xf] %v2074
                  %v2076 = vld [vmem:[%s2064 + $0x14] sm:$0xf]
                  %2077 = vst [vmem:[%s2065 + $0x28] sm:$0xf] %v2076
                  %v2078 = vld [vmem:[%s2064 + $0x18] sm:$0xf]
                  %2079 = vst [vmem:[%s2065 + $0x30] sm:$0xf] %v2078
                  %v2080 = vld [vmem:[%s2064 + $0x1c] sm:$0xf]
                  %2081 = vst [vmem:[%s2065 + $0x38] sm:$0xf] %v2080
                  %v2082 = vld [vmem:[%s2064 + $0x20] sm:$0xf]
                  %2083 = vst [vmem:[%s2065 + $0x40] sm:$0xf] %v2082
                  %v2084 = vld [vmem:[%s2064 + $0x24] sm:$0xf]
                  %2085 = vst [vmem:[%s2065 + $0x48] sm:$0xf] %v2084
                  %v2086 = vld [vmem:[%s2064 + $0x28] sm:$0xf]
                  %2087 = vst [vmem:[%s2065 + $0x50] sm:$0xf] %v2086
                  %v2088 = vld [vmem:[%s2064 + $0x2c] sm:$0xf]
                  %2089 = vst [vmem:[%s2065 + $0x58] sm:$0xf] %v2088
                  %v2090 = vld [vmem:[%s2064 + $0x30] sm:$0xf]
                  %2091 = vst [vmem:[%s2065 + $0x60] sm:$0xf] %v2090
                  %v2092 = vld [vmem:[%s2064 + $0x34] sm:$0xf]
                  %2093 = vst [vmem:[%s2065 + $0x68] sm:$0xf] %v2092
                  %v2094 = vld [vmem:[%s2064 + $0x38] sm:$0xf]
                  %2095 = vst [vmem:[%s2065 + $0x70] sm:$0xf] %v2094
                  %v2096 = vld [vmem:[%s2064 + $0x3c] sm:$0xf]
                  %2097 = vst [vmem:[%s2065 + $0x78] sm:$0xf] %v2096
                $region201: #{gpt_forward.9} parent=188 // loop_footer
                  %s2063 = sadd.s32 1, %s2059
                $region202: #{gpt_forward.9} parent=188 // loop_footer_branch
                  %2058 = sbr.rel target = $region198
                $region203: #{gpt_forward.9} parent=188 // loop_exit
                  _
              $region189: #{gpt_forward.9} parent=173 // pred_fallthru
                _
            $region174: #{gpt_forward.9} parent=169 // pred_fallthru
              _
            // Predicated region
            $region175: #{gpt_forward.9} parent=169 // pred_check
              _
            $region176: #{gpt_forward.9} parent=169 // pred_check_branch
              %2005 = sbr.rel (0) target = $region178
            $region177: #{gpt_forward.9} parent=169 // pred_region
              loop: start=0, step=1, limit=1
              $region179: #{gpt_forward.9} parent=177 // loop_pre_header
                _
              $region180: #{gpt_forward.9} parent=177 // loop_header
                %s2008 = sphi 0, %s2012
                %p2009 = scmp.ge.s32.totalorder %s2008, 1
                %s2013 = sphi %s1989, %s1989
                %s2014 = sphi %s1999, %s1999
              $region181: #{gpt_forward.9} parent=177 // loop_header_branch
                %2011 = sbr.rel (%p2009) target = $region185
              $region182: #{gpt_forward.9} parent=177 // loop_body
                %v2015 = vld [vmem:[%s2013] sm:$0xf]
                %2016 = vst [vmem:[%s2014] sm:$0xf] %v2015
                %v2017 = vld [vmem:[%s2013 + $0x4] sm:$0xf]
                %2018 = vst [vmem:[%s2014 + $0x8] sm:$0xf] %v2017
                %v2019 = vld [vmem:[%s2013 + $0x8] sm:$0xf]
                %2020 = vst [vmem:[%s2014 + $0x10] sm:$0xf] %v2019
                %v2021 = vld [vmem:[%s2013 + $0xc] sm:$0xf]
                %2022 = vst [vmem:[%s2014 + $0x18] sm:$0xf] %v2021
                %v2023 = vld [vmem:[%s2013 + $0x10] sm:$0xf]
                %2024 = vst [vmem:[%s2014 + $0x20] sm:$0xf] %v2023
                %v2025 = vld [vmem:[%s2013 + $0x14] sm:$0xf]
                %2026 = vst [vmem:[%s2014 + $0x28] sm:$0xf] %v2025
                %v2027 = vld [vmem:[%s2013 + $0x18] sm:$0xf]
                %2028 = vst [vmem:[%s2014 + $0x30] sm:$0xf] %v2027
                %v2029 = vld [vmem:[%s2013 + $0x1c] sm:$0xf]
                %2030 = vst [vmem:[%s2014 + $0x38] sm:$0xf] %v2029
                %v2031 = vld [vmem:[%s2013 + $0x20] sm:$0xf]
                %2032 = vst [vmem:[%s2014 + $0x40] sm:$0xf] %v2031
                %v2033 = vld [vmem:[%s2013 + $0x24] sm:$0xf]
                %2034 = vst [vmem:[%s2014 + $0x48] sm:$0xf] %v2033
                %v2035 = vld [vmem:[%s2013 + $0x28] sm:$0xf]
                %2036 = vst [vmem:[%s2014 + $0x50] sm:$0xf] %v2035
                %v2037 = vld [vmem:[%s2013 + $0x2c] sm:$0xf]
                %2038 = vst [vmem:[%s2014 + $0x58] sm:$0xf] %v2037
                %v2039 = vld [vmem:[%s2013 + $0x30] sm:$0xf]
                %2040 = vst [vmem:[%s2014 + $0x60] sm:$0xf] %v2039
                %v2041 = vld [vmem:[%s2013 + $0x34] sm:$0xf]
                %2042 = vst [vmem:[%s2014 + $0x68] sm:$0xf] %v2041
                %v2043 = vld [vmem:[%s2013 + $0x38] sm:$0xf]
                %2044 = vst [vmem:[%s2014 + $0x70] sm:$0xf] %v2043
                %v2045 = vld [vmem:[%s2013 + $0x3c] sm:$0xf]
                %2046 = vst [vmem:[%s2014 + $0x78] sm:$0xf] %v2045
              $region183: #{gpt_forward.9} parent=177 // loop_footer
                %s2012 = sadd.s32 1, %s2008
              $region184: #{gpt_forward.9} parent=177 // loop_footer_branch
                %2007 = sbr.rel target = $region180
              $region185: #{gpt_forward.9} parent=177 // loop_exit
                _
            $region178: #{gpt_forward.9} parent=169 // pred_fallthru
              _
          $region170: #{gpt_forward.9} parent=165 // pred_fallthru
            _
          %2098 = vnop
        $region166: #{gpt_forward.9} parent=142 // pred_fallthru
          _
      $region143: #{gpt_forward.9} parent=5 // pred_fallthru
        _
      %p2099 = scmp.le.s32.totalorder 2, %s9
      // Predicated region
      $region204: #{gpt_forward.9} parent=5 // pred_check
        %p2100 = pneg %p2099
      $region205: #{gpt_forward.9} parent=5 // pred_check_branch
        %2102 = sbr.rel (%p2100) target = $region207
      $region206: #{gpt_forward.9} parent=5 // pred_region
        %s2103 = ssub.s32 %s9, 2
        // Predicated region
        $region208: #{gpt_forward.9} parent=206 // pred_check
          %p2104 = pneg %p151
        $region209: #{gpt_forward.9} parent=206 // pred_check_branch
          %2106 = sbr.rel (%p2104) target = $region211
        $region210: #{gpt_forward.9} parent=206 // pred_region
          %s2107 = sand.u32 %s136, 1
          %s2108 = sand.u32 %s136, 1
          %s2109 = smul.addr %s2108, 64
          %s2110 = scalar_lea.vmem [#allocation5], %s2109
        $region211: #{gpt_forward.9} parent=206 // pred_fallthru
          _
      $region207: #{gpt_forward.9} parent=5 // pred_fallthru
        _
    $region6: #{gpt_forward.9} parent=1 // loop_footer
      %s13 = sadd.s32 1, %s9
    $region7: #{gpt_forward.9} parent=1 // loop_footer_branch
      %8 = sbr.rel target = $region3
    $region8: #{gpt_forward.9} parent=1 // loop_exit
      _

// kernel: gpt_forward.15
$region0: #{gpt_forward.15}
  #allocation0 [shape = 'u32[]', space=smem, size = 0x4, offset = 0x4, fixed_abs, tag = 'smem constant byte address 0x4 - core index']
  #allocation1 [shape = 'u32[144,128]{1,0:T(1,128)}', space=vmem, size = 0x12000, scoped, tag = 'internal scratch']
  %s0 = inlined_call_operand.vmem [shape: bf16[2,256], index: 0, kind: input, shape index: {}]
  %s1 = inlined_call_operand.vmem [shape: bf16[512,256], index: 1, kind: input, shape index: {}]
  %s2 = inlined_call_operand.vmem [shape: f32[2,512], index: 2, kind: output, shape index: {}]
  %s3 = sld [smem:[#allocation0]]
  $region18: #{gpt_forward.15} parent=0
    _
  %s5 = ssub.s32 1, %s3
  %s6 = scalar_select 0, %s5, %s3
  // Predicated region
  $region2: #{gpt_forward.15} parent=0 // pred_check
    _
  $region3: #{gpt_forward.15} parent=0 // pred_check_branch
    %8 = sbr.rel (0) target = $region5
  $region4: #{gpt_forward.15} parent=0 // pred_region
    _
  $region5: #{gpt_forward.15} parent=0 // pred_fallthru
    _
  // Predicated region
  $region6: #{gpt_forward.15} parent=0 // pred_check
    _
  $region7: #{gpt_forward.15} parent=0 // pred_check_branch
    %10 = sbr.rel (0) target = $region9
  $region8: #{gpt_forward.15} parent=0 // pred_region
    _
  $region9: #{gpt_forward.15} parent=0 // pred_fallthru
    _
  %v11 = vld [vmem:[%s0] sm:$0x3]
  %v12 = vld [vmem:[%s1] sm:$0xff]
  %v13 = vld [vmem:[%s1 + $0x8] sm:$0xff]
  %v14 = vld [vmem:[%s1 + $0x10] sm:$0xff]
  %v15 = vld [vmem:[%s1 + $0x18] sm:$0xff]
  %v16 = vld [vmem:[%s1 + $0x20] sm:$0xff]
  %v17 = vld [vmem:[%s1 + $0x28] sm:$0xff]
  %v18 = vld [vmem:[%s1 + $0x30] sm:$0xff]
  %v19 = vld [vmem:[%s1 + $0x38] sm:$0xff]
  %v20 = vld [vmem:[%s1 + $0x40] sm:$0xff]
  %v21 = vld [vmem:[%s1 + $0x48] sm:$0xff]
  %v22 = vld [vmem:[%s1 + $0x50] sm:$0xff]
  %v23 = vld [vmem:[%s1 + $0x58] sm:$0xff]
  %v24 = vld [vmem:[%s1 + $0x60] sm:$0xff]
  %v25 = vld [vmem:[%s1 + $0x68] sm:$0xff]
  %v26 = vld [vmem:[%s1 + $0x70] sm:$0xff]
  %v27 = vld [vmem:[%s1 + $0x78] sm:$0xff]
  %v28 = vld [vmem:[%s1 + $0x80] sm:$0xff]
  %v29 = vld [vmem:[%s1 + $0x88] sm:$0xff]
  %v30 = vld [vmem:[%s1 + $0x90] sm:$0xff]
  %v31 = vld [vmem:[%s1 + $0x98] sm:$0xff]
  %v32 = vld [vmem:[%s1 + $0xa0] sm:$0xff]
  %v33 = vld [vmem:[%s1 + $0xa8] sm:$0xff]
  %v34 = vld [vmem:[%s1 + $0xb0] sm:$0xff]
  %v35 = vld [vmem:[%s1 + $0xb8] sm:$0xff]
  %v36 = vld [vmem:[%s1 + $0xc0] sm:$0xff]
  %v37 = vld [vmem:[%s1 + $0xc8] sm:$0xff]
  %v38 = vld [vmem:[%s1 + $0xd0] sm:$0xff]
  %v39 = vld [vmem:[%s1 + $0xd8] sm:$0xff]
  %v40 = vld [vmem:[%s1 + $0xe0] sm:$0xff]
  %v41 = vld [vmem:[%s1 + $0xe8] sm:$0xff]
  %v42 = vld [vmem:[%s1 + $0xf0] sm:$0xff]
  %v43 = vld [vmem:[%s1 + $0xf8] sm:$0xff]
  %v44 = vld [vmem:[%s1 + $0x100] sm:$0xff]
  %v45 = vld [vmem:[%s1 + $0x108] sm:$0xff]
  %v46 = vld [vmem:[%s1 + $0x110] sm:$0xff]
  %v47 = vld [vmem:[%s1 + $0x118] sm:$0xff]
  %v48 = vld [vmem:[%s1 + $0x120] sm:$0xff]
  %v49 = vld [vmem:[%s1 + $0x128] sm:$0xff]
  %v50 = vld [vmem:[%s1 + $0x130] sm:$0xff]
  %v51 = vld [vmem:[%s1 + $0x138] sm:$0xff]
  %v52 = vld [vmem:[%s1 + $0x140] sm:$0xff]
  %v53 = vld [vmem:[%s1 + $0x148] sm:$0xff]
  %v54 = vld [vmem:[%s1 + $0x150] sm:$0xff]
  %v55 = vld [vmem:[%s1 + $0x158] sm:$0xff]
  %v56 = vld [vmem:[%s1 + $0x160] sm:$0xff]
  %v57 = vld [vmem:[%s1 + $0x168] sm:$0xff]
  %v58 = vld [vmem:[%s1 + $0x170] sm:$0xff]
  %v59 = vld [vmem:[%s1 + $0x178] sm:$0xff]
  %v60 = vld [vmem:[%s1 + $0x180] sm:$0xff]
  %v61 = vld [vmem:[%s1 + $0x188] sm:$0xff]
  %v62 = vld [vmem:[%s1 + $0x190] sm:$0xff]
  %v63 = vld [vmem:[%s1 + $0x198] sm:$0xff]
  %v64 = vld [vmem:[%s1 + $0x1a0] sm:$0xff]
  %v65 = vld [vmem:[%s1 + $0x1a8] sm:$0xff]
  %v66 = vld [vmem:[%s1 + $0x1b0] sm:$0xff]
  %v67 = vld [vmem:[%s1 + $0x1b8] sm:$0xff]
  %v68 = vld [vmem:[%s1 + $0x1c0] sm:$0xff]
  %v69 = vld [vmem:[%s1 + $0x1c8] sm:$0xff]
  %v70 = vld [vmem:[%s1 + $0x1d0] sm:$0xff]
  %v71 = vld [vmem:[%s1 + $0x1d8] sm:$0xff]
  %v72 = vld [vmem:[%s1 + $0x1e0] sm:$0xff]
  %v73 = vld [vmem:[%s1 + $0x1e8] sm:$0xff]
  %v74 = vld [vmem:[%s1 + $0x1f0] sm:$0xff]
  %v75 = vld [vmem:[%s1 + $0x1f8] sm:$0xff]
  %v78 = vunpack.c.l.s4 1966171168
  %v79 = vunpack.c.0.s8 %v78
  %v80 = vlaneseq
  %v81 = vshrl.u32 %v80, 7
  %v82 = vsub.s32 %v79, %v81
  %v83 = vrot.slane %v11, %v82
  %v84 = vcombine.high %v83, %v83
  %v86 = vunpack.c.l.s4 1966171168
  %v87 = vunpack.c.0.s8 %v86
  %v88 = vlaneseq
  %v89 = vshrl.u32 %v88, 7
  %v90 = vsub.s32 %v87, %v89
  %v91 = vrot.slane %v83, %v90
  %v93 = vunpack.c.l.s4 1966171168
  %v94 = vunpack.c.0.s8 %v93
  %v95 = vlaneseq
  %v96 = vshrl.u32 %v95, 7
  %v97 = vsub.s32 %v94, %v96
  %v98 = vrot.slane %v84, %v97
  %v165 = vunpack.c.l.b16 %v12
  %v166 = vunpack.c.h.b16 %v12
  %v167 = vunpack.c.l.b16 %v13
  %v168 = vunpack.c.h.b16 %v13
  %v169 = vunpack.c.l.b16 %v14
  %v170 = vunpack.c.h.b16 %v14
  %v171 = vunpack.c.l.b16 %v15
  %v172 = vunpack.c.h.b16 %v15
  %v173 = vunpack.c.l.b16 %v16
  %v174 = vunpack.c.h.b16 %v16
  %v175 = vunpack.c.l.b16 %v17
  %v176 = vunpack.c.h.b16 %v17
  %v177 = vunpack.c.l.b16 %v18
  %v178 = vunpack.c.h.b16 %v18
  %v179 = vunpack.c.l.b16 %v19
  %v180 = vunpack.c.h.b16 %v19
  %v181 = vunpack.c.l.b16 %v20
  %v182 = vunpack.c.h.b16 %v20
  %v183 = vunpack.c.l.b16 %v21
  %v184 = vunpack.c.h.b16 %v21
  %v185 = vunpack.c.l.b16 %v22
  %v186 = vunpack.c.h.b16 %v22
  %v187 = vunpack.c.l.b16 %v23
  %v188 = vunpack.c.h.b16 %v23
  %v189 = vunpack.c.l.b16 %v24
  %v190 = vunpack.c.h.b16 %v24
  %v191 = vunpack.c.l.b16 %v25
  %v192 = vunpack.c.h.b16 %v25
  %v193 = vunpack.c.l.b16 %v26
  %v194 = vunpack.c.h.b16 %v26
  %v195 = vunpack.c.l.b16 %v27
  %v196 = vunpack.c.h.b16 %v27
  %v197 = vunpack.c.l.b16 %v28
  %v198 = vunpack.c.h.b16 %v28
  %v199 = vunpack.c.l.b16 %v29
  %v200 = vunpack.c.h.b16 %v29
  %v201 = vunpack.c.l.b16 %v30
  %v202 = vunpack.c.h.b16 %v30
  %v203 = vunpack.c.l.b16 %v31
  %v204 = vunpack.c.h.b16 %v31
  %v205 = vunpack.c.l.b16 %v32
  %v206 = vunpack.c.h.b16 %v32
  %v207 = vunpack.c.l.b16 %v33
  %v208 = vunpack.c.h.b16 %v33
  %v209 = vunpack.c.l.b16 %v34
  %v210 = vunpack.c.h.b16 %v34
  %v211 = vunpack.c.l.b16 %v35
  %v212 = vunpack.c.h.b16 %v35
  %v213 = vunpack.c.l.b16 %v36
  %v214 = vunpack.c.h.b16 %v36
  %v215 = vunpack.c.l.b16 %v37
  %v216 = vunpack.c.h.b16 %v37
  %v217 = vunpack.c.l.b16 %v38
  %v218 = vunpack.c.h.b16 %v38
  %v219 = vunpack.c.l.b16 %v39
  %v220 = vunpack.c.h.b16 %v39
  %v221 = vunpack.c.l.b16 %v40
  %v222 = vunpack.c.h.b16 %v40
  %v223 = vunpack.c.l.b16 %v41
  %v224 = vunpack.c.h.b16 %v41
  %v225 = vunpack.c.l.b16 %v42
  %v226 = vunpack.c.h.b16 %v42
  %v227 = vunpack.c.l.b16 %v43
  %v228 = vunpack.c.h.b16 %v43
  %v229 = vunpack.c.l.b16 %v44
  %v230 = vunpack.c.h.b16 %v44
  %v231 = vunpack.c.l.b16 %v45
  %v232 = vunpack.c.h.b16 %v45
  %v233 = vunpack.c.l.b16 %v46
  %v234 = vunpack.c.h.b16 %v46
  %v235 = vunpack.c.l.b16 %v47
  %v236 = vunpack.c.h.b16 %v47
  %v237 = vunpack.c.l.b16 %v48
  %v238 = vunpack.c.h.b16 %v48
  %v239 = vunpack.c.l.b16 %v49
  %v240 = vunpack.c.h.b16 %v49
  %v241 = vunpack.c.l.b16 %v50
  %v242 = vunpack.c.h.b16 %v50
  %v243 = vunpack.c.l.b16 %v51
  %v244 = vunpack.c.h.b16 %v51
  %v245 = vunpack.c.l.b16 %v52
  %v246 = vunpack.c.h.b16 %v52
  %v247 = vunpack.c.l.b16 %v53
  %v248 = vunpack.c.h.b16 %v53
  %v249 = vunpack.c.l.b16 %v54
  %v250 = vunpack.c.h.b16 %v54
  %v251 = vunpack.c.l.b16 %v55
  %v252 = vunpack.c.h.b16 %v55
  %v253 = vunpack.c.l.b16 %v56
  %v254 = vunpack.c.h.b16 %v56
  %v255 = vunpack.c.l.b16 %v57
  %v256 = vunpack.c.h.b16 %v57
  %v257 = vunpack.c.l.b16 %v58
  %v258 = vunpack.c.h.b16 %v58
  %v259 = vunpack.c.l.b16 %v59
  %v260 = vunpack.c.h.b16 %v59
  %v261 = vunpack.c.l.b16 %v60
  %v262 = vunpack.c.h.b16 %v60
  %v263 = vunpack.c.l.b16 %v61
  %v264 = vunpack.c.h.b16 %v61
  %v265 = vunpack.c.l.b16 %v62
  %v266 = vunpack.c.h.b16 %v62
  %v267 = vunpack.c.l.b16 %v63
  %v268 = vunpack.c.h.b16 %v63
  %v269 = vunpack.c.l.b16 %v64
  %v270 = vunpack.c.h.b16 %v64
  %v271 = vunpack.c.l.b16 %v65
  %v272 = vunpack.c.h.b16 %v65
  %v273 = vunpack.c.l.b16 %v66
  %v274 = vunpack.c.h.b16 %v66
  %v275 = vunpack.c.l.b16 %v67
  %v276 = vunpack.c.h.b16 %v67
  %v277 = vunpack.c.l.b16 %v68
  %v278 = vunpack.c.h.b16 %v68
  %v279 = vunpack.c.l.b16 %v69
  %v280 = vunpack.c.h.b16 %v69
  %v281 = vunpack.c.l.b16 %v70
  %v282 = vunpack.c.h.b16 %v70
  %v283 = vunpack.c.l.b16 %v71
  %v284 = vunpack.c.h.b16 %v71
  %v285 = vunpack.c.l.b16 %v72
  %v286 = vunpack.c.h.b16 %v72
  %v287 = vunpack.c.l.b16 %v73
  %v288 = vunpack.c.h.b16 %v73
  %v289 = vunpack.c.l.b16 %v74
  %v290 = vunpack.c.h.b16 %v74
  %v291 = vunpack.c.l.b16 %v75
  %v292 = vunpack.c.h.b16 %v75
  %v293 = vpack.c.b16 %v167, %v165
  %v294 = vpack.c.b16 %v168, %v166
  %v295 = vpack.c.b16 %v171, %v169
  %v296 = vpack.c.b16 %v172, %v170
  %v297 = vpack.c.b16 %v175, %v173
  %v298 = vpack.c.b16 %v176, %v174
  %v299 = vpack.c.b16 %v179, %v177
  %v300 = vpack.c.b16 %v180, %v178
  %v301 = vpack.c.b16 %v183, %v181
  %v302 = vpack.c.b16 %v184, %v182
  %v303 = vpack.c.b16 %v187, %v185
  %v304 = vpack.c.b16 %v188, %v186
  %v305 = vpack.c.b16 %v191, %v189
  %v306 = vpack.c.b16 %v192, %v190
  %v307 = vpack.c.b16 %v195, %v193
  %v308 = vpack.c.b16 %v196, %v194
  %v309 = vpack.c.b16 %v199, %v197
  %v310 = vpack.c.b16 %v200, %v198
  %v311 = vpack.c.b16 %v203, %v201
  %v312 = vpack.c.b16 %v204, %v202
  %v313 = vpack.c.b16 %v207, %v205
  %v314 = vpack.c.b16 %v208, %v206
  %v315 = vpack.c.b16 %v211, %v209
  %v316 = vpack.c.b16 %v212, %v210
  %v317 = vpack.c.b16 %v215, %v213
  %v318 = vpack.c.b16 %v216, %v214
  %v319 = vpack.c.b16 %v219, %v217
  %v320 = vpack.c.b16 %v220, %v218
  %v321 = vpack.c.b16 %v223, %v221
  %v322 = vpack.c.b16 %v224, %v222
  %v323 = vpack.c.b16 %v227, %v225
  %v324 = vpack.c.b16 %v228, %v226
  %v325 = vpack.c.b16 %v231, %v229
  %v326 = vpack.c.b16 %v232, %v230
  %v327 = vpack.c.b16 %v235, %v233
  %v328 = vpack.c.b16 %v236, %v234
  %v329 = vpack.c.b16 %v239, %v237
  %v330 = vpack.c.b16 %v240, %v238
  %v331 = vpack.c.b16 %v243, %v241
  %v332 = vpack.c.b16 %v244, %v242
  %v333 = vpack.c.b16 %v247, %v245
  %v334 = vpack.c.b16 %v248, %v246
  %v335 = vpack.c.b16 %v251, %v249
  %v336 = vpack.c.b16 %v252, %v250
  %v337 = vpack.c.b16 %v255, %v253
  %v338 = vpack.c.b16 %v256, %v254
  %v339 = vpack.c.b16 %v259, %v257
  %v340 = vpack.c.b16 %v260, %v258
  %v341 = vpack.c.b16 %v263, %v261
  %v342 = vpack.c.b16 %v264, %v262
  %v343 = vpack.c.b16 %v267, %v265
  %v344 = vpack.c.b16 %v268, %v266
  %v345 = vpack.c.b16 %v271, %v269
  %v346 = vpack.c.b16 %v272, %v270
  %v347 = vpack.c.b16 %v275, %v273
  %v348 = vpack.c.b16 %v276, %v274
  %v349 = vpack.c.b16 %v279, %v277
  %v350 = vpack.c.b16 %v280, %v278
  %v351 = vpack.c.b16 %v283, %v281
  %v352 = vpack.c.b16 %v284, %v282
  %v353 = vpack.c.b16 %v287, %v285
  %v354 = vpack.c.b16 %v288, %v286
  %v355 = vpack.c.b16 %v291, %v289
  %v356 = vpack.c.b16 %v292, %v290
  %421 = vmatprep.subr.bf16.mxu0 %v294
  %422 = vmatpush1.bf16.xpose.msra.mxu0 %v293
  %423 = vmatprep.subr.bf16.mxu0 %v296
  %424 = vmatpush1.bf16.xpose.msra.mxu0 %v295
  %425 = vmatprep.subr.bf16.mxu0 %v298
  %426 = vmatpush1.bf16.xpose.msra.mxu0 %v297
  %427 = vmatprep.subr.bf16.mxu0 %v300
  %428 = vmatpush1.bf16.xpose.msra.mxu0 %v299
  %429 = vmatprep.subr.bf16.mxu0 %v302
  %430 = vmatpush1.bf16.xpose.msra.mxu0 %v301
  %431 = vmatprep.subr.bf16.mxu0 %v304
  %432 = vmatpush1.bf16.xpose.msra.mxu0 %v303
  %433 = vmatprep.subr.bf16.mxu0 %v306
  %434 = vmatpush1.bf16.xpose.msra.mxu0 %v305
  %435 = vmatprep.subr.bf16.mxu0 %v308
  %436 = vmatpush1.bf16.xpose.msra.mxu0 %v307
  %437 = vmatprep.subr.bf16.mxu0 %v310
  %438 = vmatpush1.bf16.xpose.msra.mxu0 %v309
  %439 = vmatprep.subr.bf16.mxu0 %v312
  %440 = vmatpush1.bf16.xpose.msra.mxu0 %v311
  %441 = vmatprep.subr.bf16.mxu0 %v314
  %442 = vmatpush1.bf16.xpose.msra.mxu0 %v313
  %443 = vmatprep.subr.bf16.mxu0 %v316
  %444 = vmatpush1.bf16.xpose.msra.mxu0 %v315
  %445 = vmatprep.subr.bf16.mxu0 %v318
  %446 = vmatpush1.bf16.xpose.msra.mxu0 %v317
  %447 = vmatprep.subr.bf16.mxu0 %v320
  %448 = vmatpush1.bf16.xpose.msra.mxu0 %v319
  %449 = vmatprep.subr.bf16.mxu0 %v322
  %450 = vmatpush1.bf16.xpose.msra.mxu0 %v321
  %451 = vmatprep.subr.bf16.mxu0 %v324
  %452 = vmatpush1.bf16.xpose.msra.mxu0 %v323
  %453 = vmatprep.mubr.bf16.mxu0 %v98
  %454 = vmatmul.mubr.bf16.gmra.mrb[0].mxu0 %v91
  %v455 = vpop.f32.mrb[0].mxu0
  %v456 = vadd.f32 0.0, %v455
  %v457 = vpop.f32.mrb[0].mxu0
  %v458 = vadd.f32 0.0, %v457
  %v459 = vpop.f32.mrb[0].mxu0
  %v460 = vpop.f32.mrb[0].mxu0
  %461 = vdwg.mxu0
  %462 = vmatprep.subr.bf16.mxu0 %v326
  %463 = vmatpush1.bf16.xpose.msra.mxu0 %v325
  %464 = vmatprep.subr.bf16.mxu0 %v328
  %465 = vmatpush1.bf16.xpose.msra.mxu0 %v327
  %466 = vmatprep.subr.bf16.mxu0 %v330
  %467 = vmatpush1.bf16.xpose.msra.mxu0 %v329
  %468 = vmatprep.subr.bf16.mxu0 %v332
  %469 = vmatpush1.bf16.xpose.msra.mxu0 %v331
  %470 = vmatprep.subr.bf16.mxu0 %v334
  %471 = vmatpush1.bf16.xpose.msra.mxu0 %v333
  %472 = vmatprep.subr.bf16.mxu0 %v336
  %473 = vmatpush1.bf16.xpose.msra.mxu0 %v335
  %474 = vmatprep.subr.bf16.mxu0 %v338
  %475 = vmatpush1.bf16.xpose.msra.mxu0 %v337
  %476 = vmatprep.subr.bf16.mxu0 %v340
  %477 = vmatpush1.bf16.xpose.msra.mxu0 %v339
  %478 = vmatprep.subr.bf16.mxu0 %v342
  %479 = vmatpush1.bf16.xpose.msra.mxu0 %v341
  %480 = vmatprep.subr.bf16.mxu0 %v344
  %481 = vmatpush1.bf16.xpose.msra.mxu0 %v343
  %482 = vmatprep.subr.bf16.mxu0 %v346
  %483 = vmatpush1.bf16.xpose.msra.mxu0 %v345
  %484 = vmatprep.subr.bf16.mxu0 %v348
  %485 = vmatpush1.bf16.xpose.msra.mxu0 %v347
  %486 = vmatprep.subr.bf16.mxu0 %v350
  %487 = vmatpush1.bf16.xpose.msra.mxu0 %v349
  %488 = vmatprep.subr.bf16.mxu0 %v352
  %489 = vmatpush1.bf16.xpose.msra.mxu0 %v351
  %490 = vmatprep.subr.bf16.mxu0 %v354
  %491 = vmatpush1.bf16.xpose.msra.mxu0 %v353
  %492 = vmatprep.subr.bf16.mxu0 %v356
  %493 = vmatpush1.bf16.xpose.msra.mxu0 %v355
  %494 = vmatprep.mubr.bf16.mxu0 %v98
  %495 = vmatmul.mubr.bf16.gmra.mrb[0].mxu0 %v91
  %v496 = vpop.f32.mrb[0].mxu0
  %v497 = vadd.f32 0.0, %v496
  %v498 = vpop.f32.mrb[0].mxu0
  %v499 = vadd.f32 0.0, %v498
  %v500 = vpop.f32.mrb[0].mxu0
  %v501 = vpop.f32.mrb[0].mxu0
  %502 = vdwg.mxu0
  %v507 = vcombine.low %v456, %v458
  %v508 = vcombine.low %v497, %v499
  %v510 = vunpack.c.l.s4 1983009808
  %v511 = vunpack.c.0.s8 %v510
  %v512 = vlaneseq
  %v513 = vshrl.u32 %v512, 7
  %v514 = vsub.s32 %v511, %v513
  %v515 = vrot.slane %v507, %v514
  %v517 = vunpack.c.l.s4 1983009808
  %v518 = vunpack.c.0.s8 %v517
  %v519 = vlaneseq
  %v520 = vshrl.u32 %v519, 7
  %v521 = vsub.s32 %v518, %v520
  %v522 = vrot.slane %v508, %v521
  %v523 = vcombine.low %v515, %v522
  %525 = vst [vmem:[%s2] sm:$0xff] %v523
  // Predicated region
  $region10: #{gpt_forward.15} parent=0 // pred_check
    _
  $region11: #{gpt_forward.15} parent=0 // pred_check_branch
    %527 = sbr.rel (0) target = $region13
  $region12: #{gpt_forward.15} parent=0 // pred_region
    _
  $region13: #{gpt_forward.15} parent=0 // pred_fallthru
    _
  // Predicated region
  $region14: #{gpt_forward.15} parent=0 // pred_check
    _
  $region15: #{gpt_forward.15} parent=0 // pred_check_branch
    %529 = sbr.rel (0) target = $region17
  $region16: #{gpt_forward.15} parent=0 // pred_region
    _
  $region17: #{gpt_forward.15} parent=0 // pred_fallthru
    _

// kernel: gpt_forward.8
$region0: #{gpt_forward.8}
  #allocation0 [shape = 'u32[]', space=smem, size = 0x4, offset = 0x4, fixed_abs, tag = 'smem constant byte address 0x4 - core index']
  #allocation1 [shape = 'u32[144,128]{1,0:T(1,128)}', space=vmem, size = 0x12000, scoped, tag = 'internal scratch']
  %s0 = inlined_call_operand.vmem [shape: bf16[2,128,256], index: 0, kind: input, shape index: {}]
  %s1 = inlined_call_operand.vmem [shape: f32[1,256], index: 1, kind: input, shape index: {}]
  %s2 = inlined_call_operand.vmem [shape: f32[1,256], index: 2, kind: input, shape index: {}]
  %s3 = inlined_call_operand.vmem [shape: bf16[256,768], index: 3, kind: input, shape index: {}]
  %s4 = inlined_call_operand.vmem [shape: f32[1,768], index: 4, kind: input, shape index: {}]
  %s5 = inlined_call_operand.vmem [shape: bf16[2,128,768], index: 5, kind: output, shape index: {}]
  %s6 = sld [smem:[#allocation0]]
  $region53: #{gpt_forward.8} parent=0
    _
  %s8 = ssub.s32 1, %s6
  %s9 = scalar_select 0, %s8, %s6
  loop: start=0, step=1, limit=4
  $region2: #{gpt_forward.8} parent=0 // loop_pre_header
    _
  $region3: #{gpt_forward.8} parent=0 // loop_header
    %s11 = sphi 0, %s15
    %p12 = scmp.ge.s32.totalorder %s11, 4
    %s18 = sphi 0, %s30
    %s19 = sphi 0, %s26
    %s20 = sphi 0, %s18
    %s21 = sphi 0, %s19
    %s22 = sphi 0, %s20
    %s23 = sphi 0, %s21
    %s35 = sphi 0, %s37
    %s38 = sphi 0, %s35
    %s39 = sphi 0, %s38
    %s55 = sphi 0, %s39
    %s59 = sphi 0, %s59
    %s61 = sphi 0, %s59
    %s62 = sphi 0, %s61
    %s76 = sphi 0, %s62
    %s80 = sphi 0, %s80
    %s82 = sphi 0, %s80
    %s83 = sphi 0, %s82
    %s97 = sphi 0, %s83
    %s101 = sphi 0, %s101
    %s103 = sphi 0, %s101
    %s104 = sphi 0, %s103
    %s118 = sphi 0, %s104
    %s122 = sphi 0, %s122
    %s124 = sphi 0, %s122
    %s125 = sphi 0, %s124
    %s139 = sphi 0, %s125
    %s147 = sphi 0, %s149
    %s150 = sphi 0, %s147
    %s151 = sphi 0, %s150
    %s167 = sphi 0, %s151
  $region4: #{gpt_forward.8} parent=0 // loop_header_branch
    %14 = sbr.rel (%p12) target = $region8
  $region5: #{gpt_forward.8} parent=0 // loop_body
    %s16 = ssub.s32 %s11, 1
    %s17 = ssub.s32 %s11, 2
    %s24 = sadd.s32 1, %s19
    %p25 = scmp.ge.s32.totalorder %s24, 1
    %s26 = scalar_select %p25, 0, %s24
    %s27 = sadd.s32 1, %s18
    %s28 = scalar_select %p25, %s27, %s18
    %p29 = scmp.ge.s32.totalorder %s28, 2
    %s30 = scalar_select %p29, 0, %s28
    %s31 = ssub.s32 %s18, %s30
    %s32 = ssub.s32 %s19, %s26
    %s33 = sor.u32 %s31, %s32
    %p34 = scmp.eq.s32.totalorder %s33, 0
    %s36 = sadd.s32 %s35, 1
    %s37 = scalar_select %p34, %s35, %s36
    %p40 = pneg %p34
    %p41 = scmp.eq.s32.totalorder %s11, 1
    %p42 = por %p40, %p41
    %p43 = scmp.ne.s32.totalorder %s35, %s38
    %p44 = scmp.eq.s32.totalorder %s11, 0
    %p45 = por %p43, %p44
    %p46 = scmp.ne.s32.totalorder %s35, %s38
    %p47 = scmp.eq.s32.totalorder %s16, 1
    %p48 = por %p46, %p47
    %p49 = scmp.ne.s32.totalorder %s38, %s39
    %p50 = scmp.eq.s32.totalorder %s16, 0
    %p51 = por %p49, %p50
    %p52 = scmp.ne.s32.totalorder %s38, %s39
    %p53 = scmp.eq.s32.totalorder %s17, 1
    %p54 = por %p52, %p53
    %p56 = scmp.ne.s32.totalorder %s39, %s55
    %p57 = scmp.eq.s32.totalorder %s17, 0
    %p58 = por %p56, %p57
    %s60 = sadd.s32 %s59, 1
    %p63 = scmp.eq.s32.totalorder %s11, 1
    %p64 = scmp.ne.s32.totalorder %s59, %s61
    %p65 = scmp.eq.s32.totalorder %s11, 0
    %p66 = por %p64, %p65
    %p67 = scmp.ne.s32.totalorder %s59, %s61
    %p68 = scmp.eq.s32.totalorder %s16, 1
    %p69 = por %p67, %p68
    %p70 = scmp.ne.s32.totalorder %s61, %s62
    %p71 = scmp.eq.s32.totalorder %s16, 0
    %p72 = por %p70, %p71
    %p73 = scmp.ne.s32.totalorder %s61, %s62
    %p74 = scmp.eq.s32.totalorder %s17, 1
    %p75 = por %p73, %p74
    %p77 = scmp.ne.s32.totalorder %s62, %s76
    %p78 = scmp.eq.s32.totalorder %s17, 0
    %p79 = por %p77, %p78
    %s81 = sadd.s32 %s80, 1
    %p84 = scmp.eq.s32.totalorder %s11, 1
    %p85 = scmp.ne.s32.totalorder %s80, %s82
    %p86 = scmp.eq.s32.totalorder %s11, 0
    %p87 = por %p85, %p86
    %p88 = scmp.ne.s32.totalorder %s80, %s82
    %p89 = scmp.eq.s32.totalorder %s16, 1
    %p90 = por %p88, %p89
    %p91 = scmp.ne.s32.totalorder %s82, %s83
    %p92 = scmp.eq.s32.totalorder %s16, 0
    %p93 = por %p91, %p92
    %p94 = scmp.ne.s32.totalorder %s82, %s83
    %p95 = scmp.eq.s32.totalorder %s17, 1
    %p96 = por %p94, %p95
    %p98 = scmp.ne.s32.totalorder %s83, %s97
    %p99 = scmp.eq.s32.totalorder %s17, 0
    %p100 = por %p98, %p99
    %s102 = sadd.s32 %s101, 1
    %p105 = scmp.eq.s32.totalorder %s11, 1
    %p106 = scmp.ne.s32.totalorder %s101, %s103
    %p107 = scmp.eq.s32.totalorder %s11, 0
    %p108 = por %p106, %p107
    %p109 = scmp.ne.s32.totalorder %s101, %s103
    %p110 = scmp.eq.s32.totalorder %s16, 1
    %p111 = por %p109, %p110
    %p112 = scmp.ne.s32.totalorder %s103, %s104
    %p113 = scmp.eq.s32.totalorder %s16, 0
    %p114 = por %p112, %p113
    %p115 = scmp.ne.s32.totalorder %s103, %s104
    %p116 = scmp.eq.s32.totalorder %s17, 1
    %p117 = por %p115, %p116
    %p119 = scmp.ne.s32.totalorder %s104, %s118
    %p120 = scmp.eq.s32.totalorder %s17, 0
    %p121 = por %p119, %p120
    %s123 = sadd.s32 %s122, 1
    %p126 = scmp.eq.s32.totalorder %s11, 1
    %p127 = scmp.ne.s32.totalorder %s122, %s124
    %p128 = scmp.eq.s32.totalorder %s11, 0
    %p129 = por %p127, %p128
    %p130 = scmp.ne.s32.totalorder %s122, %s124
    %p131 = scmp.eq.s32.totalorder %s16, 1
    %p132 = por %p130, %p131
    %p133 = scmp.ne.s32.totalorder %s124, %s125
    %p134 = scmp.eq.s32.totalorder %s16, 0
    %p135 = por %p133, %p134
    %p136 = scmp.ne.s32.totalorder %s124, %s125
    %p137 = scmp.eq.s32.totalorder %s17, 1
    %p138 = por %p136, %p137
    %p140 = scmp.ne.s32.totalorder %s125, %s139
    %p141 = scmp.eq.s32.totalorder %s17, 0
    %p142 = por %p140, %p141
    %s143 = ssub.s32 %s18, %s30
    %s144 = ssub.s32 %s19, %s26
    %s145 = sor.u32 %s143, %s144
    %p146 = scmp.eq.s32.totalorder %s145, 0
    %s148 = sadd.s32 %s147, 1
    %s149 = scalar_select %p146, %s147, %s148
    %p152 = pneg %p146
    %p153 = scmp.eq.s32.totalorder %s11, 1
    %p154 = por %p152, %p153
    %p155 = scmp.ne.s32.totalorder %s147, %s150
    %p156 = scmp.eq.s32.totalorder %s11, 0
    %p157 = por %p155, %p156
    %p158 = scmp.ne.s32.totalorder %s147, %s150
    %p159 = scmp.eq.s32.totalorder %s16, 1
    %p160 = por %p158, %p159
    %p161 = scmp.ne.s32.totalorder %s150, %s151
    %p162 = scmp.eq.s32.totalorder %s16, 0
    %p163 = por %p161, %p162
    %p164 = scmp.ne.s32.totalorder %s150, %s151
    %p165 = scmp.eq.s32.totalorder %s17, 1
    %p166 = por %p164, %p165
    %p168 = scmp.ne.s32.totalorder %s151, %s167
    %p169 = scmp.eq.s32.totalorder %s17, 0
    %p170 = por %p168, %p169
    %p171 = scmp.le.s32.totalorder 1, %s11
    %p172 = scmp.lt.s32.totalorder %s11, 3
    %p173 = pnand %p171, %p172
    %p174 = pneg %p173
    // Predicated region
    $region9: #{gpt_forward.8} parent=5 // pred_check
      _
    $region10: #{gpt_forward.8} parent=5 // pred_check_branch
      %176 = sbr.rel (%p173) target = $region12
    $region11: #{gpt_forward.8} parent=5 // pred_region
      %s177 = ssub.s32 %s11, 1
      // Predicated region
      $region13: #{gpt_forward.8} parent=11 // pred_check
        %p178 = pneg %p72
      $region14: #{gpt_forward.8} parent=11 // pred_check_branch
        %180 = sbr.rel (%p178) target = $region16
      $region15: #{gpt_forward.8} parent=11 // pred_region
        _
      $region16: #{gpt_forward.8} parent=11 // pred_fallthru
        _
      // Predicated region
      $region17: #{gpt_forward.8} parent=11 // pred_check
        %p181 = pneg %p93
      $region18: #{gpt_forward.8} parent=11 // pred_check_branch
        %183 = sbr.rel (%p181) target = $region20
      $region19: #{gpt_forward.8} parent=11 // pred_region
        _
      $region20: #{gpt_forward.8} parent=11 // pred_fallthru
        _
      // Predicated region
      $region21: #{gpt_forward.8} parent=11 // pred_check
        %p184 = pneg %p114
      $region22: #{gpt_forward.8} parent=11 // pred_check_branch
        %186 = sbr.rel (%p184) target = $region24
      $region23: #{gpt_forward.8} parent=11 // pred_region
        _
      $region24: #{gpt_forward.8} parent=11 // pred_fallthru
        _
      // Predicated region
      $region25: #{gpt_forward.8} parent=11 // pred_check
        %p187 = pneg %p135
      $region26: #{gpt_forward.8} parent=11 // pred_check_branch
        %189 = sbr.rel (%p187) target = $region28
      $region27: #{gpt_forward.8} parent=11 // pred_region
        _
      $region28: #{gpt_forward.8} parent=11 // pred_fallthru
        _
    $region12: #{gpt_forward.8} parent=5 // pred_fallthru
      _
    %p190 = scmp.lt.s32.totalorder %s11, 2
    // Predicated region
    $region29: #{gpt_forward.8} parent=5 // pred_check
      %p191 = pneg %p190
    $region30: #{gpt_forward.8} parent=5 // pred_check_branch
      %193 = sbr.rel (%p191) target = $region32
    $region31: #{gpt_forward.8} parent=5 // pred_region
      // Predicated region
      $region33: #{gpt_forward.8} parent=31 // pred_check
        %p194 = pneg %p45
      $region34: #{gpt_forward.8} parent=31 // pred_check_branch
        %196 = sbr.rel (%p194) target = $region36
      $region35: #{gpt_forward.8} parent=31 // pred_region
        %s197 = smul.u32 16, %s19
        %p198 = scmp.lt.s32.totalorder %s18, 1
        %s199 = scalar_select %p198, %s18, 1
        %p200 = scmp.lt.s32.totalorder %s197, 15
        %s201 = scalar_select %p200, %s197, 15
        %s202 = smul.addr %s201, 2
        %s203 = smul.addr %s199, 32
        %s204 = sadd.s32 %s202, %s203
        %s205 = smul.addr %s204, 4
        %s206 = scalar_lea.vmem %s0, %s205
        %s207 = smul.u32 16, %s19
      $region36: #{gpt_forward.8} parent=31 // pred_fallthru
        _
    $region32: #{gpt_forward.8} parent=5 // pred_fallthru
      _
    %p208 = scmp.le.s32.totalorder 1, %s11
    %p209 = scmp.lt.s32.totalorder %s11, 3
    %p210 = pnand %p208, %p209
    %p211 = pneg %p210
    // Predicated region
    $region37: #{gpt_forward.8} parent=5 // pred_check
      _
    $region38: #{gpt_forward.8} parent=5 // pred_check_branch
      %213 = sbr.rel (%p210) target = $region40
    $region39: #{gpt_forward.8} parent=5 // pred_region
      %s214 = ssub.s32 %s11, 1
      %s215 = smul.u32 16, %s21
      %p216 = scmp.lt.s32.totalorder %s20, 1
      %s217 = scalar_select %p216, %s20, 1
      %p218 = scmp.lt.s32.totalorder %s215, 15
      %s219 = scalar_select %p218, %s215, 15
      %s220 = smul.addr %s219, 2
      %s221 = smul.addr %s217, 32
      %s222 = sadd.s32 %s220, %s221
      %s223 = smul.addr %s222, 4
      %s224 = scalar_lea.vmem %s0, %s223
      %p225 = pneg %p51
      %p226 = pneg %p48
      %p227 = pneg %p72
      %p228 = pneg %p69
      %p229 = pneg %p93
      %p230 = pneg %p90
      %p231 = pneg %p114
      %p232 = pneg %p111
      %p233 = pneg %p135
      %p234 = pneg %p132
      %p235 = pneg %p163
      %p236 = pneg %p160
      %s237 = smul.u32 16, %s21
      %p238 = scmp.lt.s32.totalorder %s20, 1
      %s239 = scalar_select %p238, %s20, 1
      %p240 = scmp.lt.s32.totalorder %s237, 15
      %s241 = scalar_select %p240, %s237, 15
      %s242 = smul.addr %s241, 6
      %s243 = smul.addr %s239, 96
      %s244 = sadd.s32 %s242, %s243
      %s245 = smul.addr %s244, 4
      %s246 = scalar_lea.vmem %s5, %s245
      %s247 = smul.u32 16, %s21
      %p248 = scmp.lt.s32.totalorder %s20, 1
      %s249 = scalar_select %p248, %s20, 1
      %p250 = scmp.lt.s32.totalorder %s247, 15
      %s251 = scalar_select %p250, %s247, 15
      %s252 = smul.addr %s251, 2
      %s253 = smul.addr %s249, 32
      %s254 = sadd.s32 %s252, %s253
      %s255 = smul.addr %s254, 4
      %s256 = scalar_lea.vmem %s0, %s255
      %s257 = smul.u32 16, %s21
      %s258 = smul.u32 16, %s21
      %p259 = scmp.lt.s32.totalorder %s20, 1
      %s260 = scalar_select %p259, %s20, 1
      %p261 = scmp.lt.s32.totalorder %s258, 15
      %s262 = scalar_select %p261, %s258, 15
      %s263 = smul.addr %s262, 6
      %s264 = smul.addr %s260, 96
      %s265 = sadd.s32 %s263, %s264
      %s266 = smul.addr %s265, 4
      %s267 = scalar_lea.vmem %s5, %s266
      %s268 = smul.u32 16, %s21
      %v269 = vld [vmem:[%s256] sm:$0xff]
      %v270 = vld [vmem:[%s256 + $0x8] sm:$0xff]
      %v271 = vld [vmem:[%s256 + $0x10] sm:$0xff]
      %v272 = vld [vmem:[%s256 + $0x18] sm:$0xff]
      %v273 = vld [vmem:[%s256 + $0x20] sm:$0xff]
      %v274 = vld [vmem:[%s256 + $0x28] sm:$0xff]
      %v275 = vld [vmem:[%s256 + $0x30] sm:$0xff]
      %v276 = vld [vmem:[%s256 + $0x38] sm:$0xff]
      %v277 = vld [vmem:[%s256 + $0x40] sm:$0xff]
      %v278 = vld [vmem:[%s256 + $0x48] sm:$0xff]
      %v279 = vld [vmem:[%s256 + $0x50] sm:$0xff]
      %v280 = vld [vmem:[%s256 + $0x58] sm:$0xff]
      %v281 = vld [vmem:[%s256 + $0x60] sm:$0xff]
      %v282 = vld [vmem:[%s256 + $0x68] sm:$0xff]
      %v283 = vld [vmem:[%s256 + $0x70] sm:$0xff]
      %v284 = vld [vmem:[%s256 + $0x78] sm:$0xff]
      %v285 = vunpack.c.l.bf16 %v269
      %v286 = vunpack.c.h.bf16 %v269
      %v287 = vunpack.c.l.bf16 %v270
      %v288 = vunpack.c.h.bf16 %v270
      %v289 = vunpack.c.l.bf16 %v271
      %v290 = vunpack.c.h.bf16 %v271
      %v291 = vunpack.c.l.bf16 %v272
      %v292 = vunpack.c.h.bf16 %v272
      %v293 = vunpack.c.l.bf16 %v273
      %v294 = vunpack.c.h.bf16 %v273
      %v295 = vunpack.c.l.bf16 %v274
      %v296 = vunpack.c.h.bf16 %v274
      %v297 = vunpack.c.l.bf16 %v275
      %v298 = vunpack.c.h.bf16 %v275
      %v299 = vunpack.c.l.bf16 %v276
      %v300 = vunpack.c.h.bf16 %v276
      %v301 = vunpack.c.l.bf16 %v277
      %v302 = vunpack.c.h.bf16 %v277
      %v303 = vunpack.c.l.bf16 %v278
      %v304 = vunpack.c.h.bf16 %v278
      %v305 = vunpack.c.l.bf16 %v279
      %v306 = vunpack.c.h.bf16 %v279
      %v307 = vunpack.c.l.bf16 %v280
      %v308 = vunpack.c.h.bf16 %v280
      %v309 = vunpack.c.l.bf16 %v281
      %v310 = vunpack.c.h.bf16 %v281
      %v311 = vunpack.c.l.bf16 %v282
      %v312 = vunpack.c.h.bf16 %v282
      %v313 = vunpack.c.l.bf16 %v283
      %v314 = vunpack.c.h.bf16 %v283
      %v315 = vunpack.c.l.bf16 %v284
      %v316 = vunpack.c.h.bf16 %v284
      %v317 = vld [vmem:[%s1] sm:$0x3]
      %v318 = vld [vmem:[%s2] sm:$0x3]
      %v319 = vadd.f32 %v285, %v286
      %320 = vadd.xlane.f32.xlu0 %v319
      %v321 = vpop.xlane.xlu0 %320
      %v322 = vadd.f32 %v287, %v288
      %323 = vadd.xlane.f32.xlu0 %v322
      %v324 = vpop.xlane.xlu0 %323
      %v325 = vadd.f32 %v289, %v290
      %326 = vadd.xlane.f32.xlu0 %v325
      %v327 = vpop.xlane.xlu0 %326
      %v328 = vadd.f32 %v291, %v292
      %329 = vadd.xlane.f32.xlu0 %v328
      %v330 = vpop.xlane.xlu0 %329
      %v331 = vadd.f32 %v293, %v294
      %332 = vadd.xlane.f32.xlu0 %v331
      %v333 = vpop.xlane.xlu0 %332
      %v334 = vadd.f32 %v295, %v296
      %335 = vadd.xlane.f32.xlu0 %v334
      %v336 = vpop.xlane.xlu0 %335
      %v337 = vadd.f32 %v297, %v298
      %338 = vadd.xlane.f32.xlu0 %v337
      %v339 = vpop.xlane.xlu0 %338
      %v340 = vadd.f32 %v299, %v300
      %341 = vadd.xlane.f32.xlu0 %v340
      %v342 = vpop.xlane.xlu0 %341
      %v343 = vadd.f32 %v301, %v302
      %344 = vadd.xlane.f32.xlu0 %v343
      %v345 = vpop.xlane.xlu0 %344
      %v346 = vadd.f32 %v303, %v304
      %347 = vadd.xlane.f32.xlu0 %v346
      %v348 = vpop.xlane.xlu0 %347
      %v349 = vadd.f32 %v305, %v306
      %350 = vadd.xlane.f32.xlu0 %v349
      %v351 = vpop.xlane.xlu0 %350
      %v352 = vadd.f32 %v307, %v308
      %353 = vadd.xlane.f32.xlu0 %v352
      %v354 = vpop.xlane.xlu0 %353
      %v355 = vadd.f32 %v309, %v310
      %356 = vadd.xlane.f32.xlu0 %v355
      %v357 = vpop.xlane.xlu0 %356
      %v358 = vadd.f32 %v311, %v312
      %359 = vadd.xlane.f32.xlu0 %v358
      %v360 = vpop.xlane.xlu0 %359
      %v361 = vadd.f32 %v313, %v314
      %362 = vadd.xlane.f32.xlu0 %v361
      %v363 = vpop.xlane.xlu0 %362
      %v364 = vadd.f32 %v315, %v316
      %365 = vadd.xlane.f32.xlu0 %v364
      %v366 = vpop.xlane.xlu0 %365
      %v367 = vrcp.pop 256.0
      %v368 = vmul.f32 %v321, %v367
      %v369 = vmul.f32 %v324, %v367
      %v370 = vmul.f32 %v327, %v367
      %v371 = vmul.f32 %v330, %v367
      %v372 = vmul.f32 %v333, %v367
      %v373 = vmul.f32 %v336, %v367
      %v374 = vmul.f32 %v339, %v367
      %v375 = vmul.f32 %v342, %v367
      %v376 = vmul.f32 %v345, %v367
      %v377 = vmul.f32 %v348, %v367
      %v378 = vmul.f32 %v351, %v367
      %v379 = vmul.f32 %v354, %v367
      %v380 = vmul.f32 %v357, %v367
      %v381 = vmul.f32 %v360, %v367
      %v382 = vmul.f32 %v363, %v367
      %v383 = vmul.f32 %v366, %v367
      %v384 = vsub.f32 %v285, %v368
      %v385 = vsub.f32 %v286, %v368
      %v386 = vsub.f32 %v287, %v369
      %v387 = vsub.f32 %v288, %v369
      %v388 = vsub.f32 %v289, %v370
      %v389 = vsub.f32 %v290, %v370
      %v390 = vsub.f32 %v291, %v371
      %v391 = vsub.f32 %v292, %v371
      %v392 = vsub.f32 %v293, %v372
      %v393 = vsub.f32 %v294, %v372
      %v394 = vsub.f32 %v295, %v373
      %v395 = vsub.f32 %v296, %v373
      %v396 = vsub.f32 %v297, %v374
      %v397 = vsub.f32 %v298, %v374
      %v398 = vsub.f32 %v299, %v375
      %v399 = vsub.f32 %v300, %v375
      %v400 = vsub.f32 %v301, %v376
      %v401 = vsub.f32 %v302, %v376
      %v402 = vsub.f32 %v303, %v377
      %v403 = vsub.f32 %v304, %v377
      %v404 = vsub.f32 %v305, %v378
      %v405 = vsub.f32 %v306, %v378
      %v406 = vsub.f32 %v307, %v379
      %v407 = vsub.f32 %v308, %v379
      %v408 = vsub.f32 %v309, %v380
      %v409 = vsub.f32 %v310, %v380
      %v410 = vsub.f32 %v311, %v381
      %v411 = vsub.f32 %v312, %v381
      %v412 = vsub.f32 %v313, %v382
      %v413 = vsub.f32 %v314, %v382
      %v414 = vsub.f32 %v315, %v383
      %v415 = vsub.f32 %v316, %v383
      %v416 = vmul.f32 %v384, %v384
      %v417 = vmul.f32 %v385, %v385
      %v418 = vmul.f32 %v386, %v386
      %v419 = vmul.f32 %v387, %v387
      %v420 = vmul.f32 %v388, %v388
      %v421 = vmul.f32 %v389, %v389
      %v422 = vmul.f32 %v390, %v390
      %v423 = vmul.f32 %v391, %v391
      %v424 = vmul.f32 %v392, %v392
      %v425 = vmul.f32 %v393, %v393
      %v426 = vmul.f32 %v394, %v394
      %v427 = vmul.f32 %v395, %v395
      %v428 = vmul.f32 %v396, %v396
      %v429 = vmul.f32 %v397, %v397
      %v430 = vmul.f32 %v398, %v398
      %v431 = vmul.f32 %v399, %v399
      %v432 = vmul.f32 %v400, %v400
      %v433 = vmul.f32 %v401, %v401
      %v434 = vmul.f32 %v402, %v402
      %v435 = vmul.f32 %v403, %v403
      %v436 = vmul.f32 %v404, %v404
      %v437 = vmul.f32 %v405, %v405
      %v438 = vmul.f32 %v406, %v406
      %v439 = vmul.f32 %v407, %v407
      %v440 = vmul.f32 %v408, %v408
      %v441 = vmul.f32 %v409, %v409
      %v442 = vmul.f32 %v410, %v410
      %v443 = vmul.f32 %v411, %v411
      %v444 = vmul.f32 %v412, %v412
      %v445 = vmul.f32 %v413, %v413
      %v446 = vmul.f32 %v414, %v414
      %v447 = vmul.f32 %v415, %v415
      %v448 = vadd.f32 %v416, %v417
      %449 = vadd.xlane.f32.xlu0 %v448
      %v450 = vpop.xlane.xlu0 %449
      %v451 = vadd.f32 %v418, %v419
      %452 = vadd.xlane.f32.xlu0 %v451
      %v453 = vpop.xlane.xlu0 %452
      %v454 = vadd.f32 %v420, %v421
      %455 = vadd.xlane.f32.xlu0 %v454
      %v456 = vpop.xlane.xlu0 %455
      %v457 = vadd.f32 %v422, %v423
      %458 = vadd.xlane.f32.xlu0 %v457
      %v459 = vpop.xlane.xlu0 %458
      %v460 = vadd.f32 %v424, %v425
      %461 = vadd.xlane.f32.xlu0 %v460
      %v462 = vpop.xlane.xlu0 %461
      %v463 = vadd.f32 %v426, %v427
      %464 = vadd.xlane.f32.xlu0 %v463
      %v465 = vpop.xlane.xlu0 %464
      %v466 = vadd.f32 %v428, %v429
      %467 = vadd.xlane.f32.xlu0 %v466
      %v468 = vpop.xlane.xlu0 %467
      %v469 = vadd.f32 %v430, %v431
      %470 = vadd.xlane.f32.xlu0 %v469
      %v471 = vpop.xlane.xlu0 %470
      %v472 = vadd.f32 %v432, %v433
      %473 = vadd.xlane.f32.xlu0 %v472
      %v474 = vpop.xlane.xlu0 %473
      %v475 = vadd.f32 %v434, %v435
      %476 = vadd.xlane.f32.xlu0 %v475
      %v477 = vpop.xlane.xlu0 %476
      %v478 = vadd.f32 %v436, %v437
      %479 = vadd.xlane.f32.xlu0 %v478
      %v480 = vpop.xlane.xlu0 %479
      %v481 = vadd.f32 %v438, %v439
      %482 = vadd.xlane.f32.xlu0 %v481
      %v483 = vpop.xlane.xlu0 %482
      %v484 = vadd.f32 %v440, %v441
      %485 = vadd.xlane.f32.xlu0 %v484
      %v486 = vpop.xlane.xlu0 %485
      %v487 = vadd.f32 %v442, %v443
      %488 = vadd.xlane.f32.xlu0 %v487
      %v489 = vpop.xlane.xlu0 %488
      %v490 = vadd.f32 %v444, %v445
      %491 = vadd.xlane.f32.xlu0 %v490
      %v492 = vpop.xlane.xlu0 %491
      %v493 = vadd.f32 %v446, %v447
      %494 = vadd.xlane.f32.xlu0 %v493
      %v495 = vpop.xlane.xlu0 %494
      %v496 = vmul.f32 %v450, %v367
      %v497 = vmul.f32 %v453, %v367
      %v498 = vmul.f32 %v456, %v367
      %v499 = vmul.f32 %v459, %v367
      %v500 = vmul.f32 %v462, %v367
      %v501 = vmul.f32 %v465, %v367
      %v502 = vmul.f32 %v468, %v367
      %v503 = vmul.f32 %v471, %v367
      %v504 = vmul.f32 %v474, %v367
      %v505 = vmul.f32 %v477, %v367
      %v506 = vmul.f32 %v480, %v367
      %v507 = vmul.f32 %v483, %v367
      %v508 = vmul.f32 %v486, %v367
      %v509 = vmul.f32 %v489, %v367
      %v510 = vmul.f32 %v492, %v367
      %v511 = vmul.f32 %v495, %v367
      %v512 = vadd.f32 %v496, 1e-05
      %v513 = vadd.f32 %v497, 1e-05
      %v514 = vadd.f32 %v498, 1e-05
      %v515 = vadd.f32 %v499, 1e-05
      %v516 = vadd.f32 %v500, 1e-05
      %v517 = vadd.f32 %v501, 1e-05
      %v518 = vadd.f32 %v502, 1e-05
      %v519 = vadd.f32 %v503, 1e-05
      %v520 = vadd.f32 %v504, 1e-05
      %v521 = vadd.f32 %v505, 1e-05
      %v522 = vadd.f32 %v506, 1e-05
      %v523 = vadd.f32 %v507, 1e-05
      %v524 = vadd.f32 %v508, 1e-05
      %v525 = vadd.f32 %v509, 1e-05
      %v526 = vadd.f32 %v510, 1e-05
      %v527 = vadd.f32 %v511, 1e-05
      %v528 = vrsqrt.pop %v512
      %v529 = vrsqrt.pop %v513
      %v530 = vrsqrt.pop %v514
      %v531 = vrsqrt.pop %v515
      %v532 = vrsqrt.pop %v516
      %v533 = vrsqrt.pop %v517
      %v534 = vrsqrt.pop %v518
      %v535 = vrsqrt.pop %v519
      %v536 = vrsqrt.pop %v520
      %v537 = vrsqrt.pop %v521
      %v538 = vrsqrt.pop %v522
      %v539 = vrsqrt.pop %v523
      %v540 = vrsqrt.pop %v524
      %v541 = vrsqrt.pop %v525
      %v542 = vrsqrt.pop %v526
      %v543 = vrsqrt.pop %v527
      %v544 = vmul.f32 %v384, %v528
      %v545 = vmul.f32 %v385, %v528
      %v546 = vmul.f32 %v386, %v529
      %v547 = vmul.f32 %v387, %v529
      %v548 = vmul.f32 %v388, %v530
      %v549 = vmul.f32 %v389, %v530
      %v550 = vmul.f32 %v390, %v531
      %v551 = vmul.f32 %v391, %v531
      %v552 = vmul.f32 %v392, %v532
      %v553 = vmul.f32 %v393, %v532
      %v554 = vmul.f32 %v394, %v533
      %v555 = vmul.f32 %v395, %v533
      %v556 = vmul.f32 %v396, %v534
      %v557 = vmul.f32 %v397, %v534
      %v558 = vmul.f32 %v398, %v535
      %v559 = vmul.f32 %v399, %v535
      %v560 = vmul.f32 %v400, %v536
      %v561 = vmul.f32 %v401, %v536
      %v562 = vmul.f32 %v402, %v537
      %v563 = vmul.f32 %v403, %v537
      %v564 = vmul.f32 %v404, %v538
      %v565 = vmul.f32 %v405, %v538
      %v566 = vmul.f32 %v406, %v539
      %v567 = vmul.f32 %v407, %v539
      %v568 = vmul.f32 %v408, %v540
      %v569 = vmul.f32 %v409, %v540
      %v570 = vmul.f32 %v410, %v541
      %v571 = vmul.f32 %v411, %v541
      %v572 = vmul.f32 %v412, %v542
      %v573 = vmul.f32 %v413, %v542
      %v574 = vmul.f32 %v414, %v543
      %v575 = vmul.f32 %v415, %v543
      %v577 = vlaneseq
      %v578 = vshrl.u32 %v577, 7
      %v579 = vsub.s32 0, %v578
      %v580 = vrot.slane %v317, %v579
      %v581 = vlaneseq
      %v582 = vshrl.u32 %v581, 7
      %v583 = vsub.s32 1, %v582
      %v584 = vrot.slane %v317, %v583
      %v587 = vmul.f32 %v544, %v580
      %v588 = vmul.f32 %v545, %v584
      %v589 = vmul.f32 %v546, %v580
      %v590 = vmul.f32 %v547, %v584
      %v591 = vmul.f32 %v548, %v580
      %v592 = vmul.f32 %v549, %v584
      %v593 = vmul.f32 %v550, %v580
      %v594 = vmul.f32 %v551, %v584
      %v595 = vmul.f32 %v552, %v580
      %v596 = vmul.f32 %v553, %v584
      %v597 = vmul.f32 %v554, %v580
      %v598 = vmul.f32 %v555, %v584
      %v599 = vmul.f32 %v556, %v580
      %v600 = vmul.f32 %v557, %v584
      %v601 = vmul.f32 %v558, %v580
      %v602 = vmul.f32 %v559, %v584
      %v603 = vmul.f32 %v560, %v580
      %v604 = vmul.f32 %v561, %v584
      %v605 = vmul.f32 %v562, %v580
      %v606 = vmul.f32 %v563, %v584
      %v607 = vmul.f32 %v564, %v580
      %v608 = vmul.f32 %v565, %v584
      %v609 = vmul.f32 %v566, %v580
      %v610 = vmul.f32 %v567, %v584
      %v611 = vmul.f32 %v568, %v580
      %v612 = vmul.f32 %v569, %v584
      %v613 = vmul.f32 %v570, %v580
      %v614 = vmul.f32 %v571, %v584
      %v615 = vmul.f32 %v572, %v580
      %v616 = vmul.f32 %v573, %v584
      %v617 = vmul.f32 %v574, %v580
      %v618 = vmul.f32 %v575, %v584
      %v620 = vlaneseq
      %v621 = vshrl.u32 %v620, 7
      %v622 = vsub.s32 0, %v621
      %v623 = vrot.slane %v318, %v622
      %v624 = vlaneseq
      %v625 = vshrl.u32 %v624, 7
      %v626 = vsub.s32 1, %v625
      %v627 = vrot.slane %v318, %v626
      %v630 = vadd.f32 %v587, %v623
      %v631 = vadd.f32 %v588, %v627
      %v632 = vadd.f32 %v589, %v623
      %v633 = vadd.f32 %v590, %v627
      %v634 = vadd.f32 %v591, %v623
      %v635 = vadd.f32 %v592, %v627
      %v636 = vadd.f32 %v593, %v623
      %v637 = vadd.f32 %v594, %v627
      %v638 = vadd.f32 %v595, %v623
      %v639 = vadd.f32 %v596, %v627
      %v640 = vadd.f32 %v597, %v623
      %v641 = vadd.f32 %v598, %v627
      %v642 = vadd.f32 %v599, %v623
      %v643 = vadd.f32 %v600, %v627
      %v644 = vadd.f32 %v601, %v623
      %v645 = vadd.f32 %v602, %v627
      %v646 = vadd.f32 %v603, %v623
      %v647 = vadd.f32 %v604, %v627
      %v648 = vadd.f32 %v605, %v623
      %v649 = vadd.f32 %v606, %v627
      %v650 = vadd.f32 %v607, %v623
      %v651 = vadd.f32 %v608, %v627
      %v652 = vadd.f32 %v609, %v623
      %v653 = vadd.f32 %v610, %v627
      %v654 = vadd.f32 %v611, %v623
      %v655 = vadd.f32 %v612, %v627
      %v656 = vadd.f32 %v613, %v623
      %v657 = vadd.f32 %v614, %v627
      %v658 = vadd.f32 %v615, %v623
      %v659 = vadd.f32 %v616, %v627
      %v660 = vadd.f32 %v617, %v623
      %v661 = vadd.f32 %v618, %v627
      %v662 = vpack.c.bf16 %v632, %v630
      %v663 = vpack.c.bf16 %v633, %v631
      %v664 = vpack.c.bf16 %v636, %v634
      %v665 = vpack.c.bf16 %v637, %v635
      %v666 = vpack.c.bf16 %v640, %v638
      %v667 = vpack.c.bf16 %v641, %v639
      %v668 = vpack.c.bf16 %v644, %v642
      %v669 = vpack.c.bf16 %v645, %v643
      %v670 = vpack.c.bf16 %v648, %v646
      %v671 = vpack.c.bf16 %v649, %v647
      %v672 = vpack.c.bf16 %v652, %v650
      %v673 = vpack.c.bf16 %v653, %v651
      %v674 = vpack.c.bf16 %v656, %v654
      %v675 = vpack.c.bf16 %v657, %v655
      %v676 = vpack.c.bf16 %v660, %v658
      %v677 = vpack.c.bf16 %v661, %v659
      %v678 = vld [vmem:[%s3] sm:$0xff]
      %v679 = vld [vmem:[%s3 + $0x8] sm:$0xff]
      %v680 = vld [vmem:[%s3 + $0x10] sm:$0xff]
      %v681 = vld [vmem:[%s3 + $0x18] sm:$0xff]
      %v682 = vld [vmem:[%s3 + $0x20] sm:$0xff]
      %v683 = vld [vmem:[%s3 + $0x28] sm:$0xff]
      %v684 = vld [vmem:[%s3 + $0x30] sm:$0xff]
      %v685 = vld [vmem:[%s3 + $0x38] sm:$0xff]
      %v686 = vld [vmem:[%s3 + $0x40] sm:$0xff]
      %v687 = vld [vmem:[%s3 + $0x48] sm:$0xff]
      %v688 = vld [vmem:[%s3 + $0x50] sm:$0xff]
      %v689 = vld [vmem:[%s3 + $0x58] sm:$0xff]
      %v690 = vld [vmem:[%s3 + $0x60] sm:$0xff]
      %v691 = vld [vmem:[%s3 + $0x68] sm:$0xff]
      %v692 = vld [vmem:[%s3 + $0x70] sm:$0xff]
      %v693 = vld [vmem:[%s3 + $0x78] sm:$0xff]
      %v694 = vld [vmem:[%s3 + $0x80] sm:$0xff]
      %v695 = vld [vmem:[%s3 + $0x88] sm:$0xff]
      %v696 = vld [vmem:[%s3 + $0x90] sm:$0xff]
      %v697 = vld [vmem:[%s3 + $0x98] sm:$0xff]
      %v698 = vld [vmem:[%s3 + $0xa0] sm:$0xff]
      %v699 = vld [vmem:[%s3 + $0xa8] sm:$0xff]
      %v700 = vld [vmem:[%s3 + $0xb0] sm:$0xff]
      %v701 = vld [vmem:[%s3 + $0xb8] sm:$0xff]
      %v702 = vld [vmem:[%s3 + $0xc0] sm:$0xff]
      %v703 = vld [vmem:[%s3 + $0xc8] sm:$0xff]
      %v704 = vld [vmem:[%s3 + $0xd0] sm:$0xff]
      %v705 = vld [vmem:[%s3 + $0xd8] sm:$0xff]
      %v706 = vld [vmem:[%s3 + $0xe0] sm:$0xff]
      %v707 = vld [vmem:[%s3 + $0xe8] sm:$0xff]
      %v708 = vld [vmem:[%s3 + $0xf0] sm:$0xff]
      %v709 = vld [vmem:[%s3 + $0xf8] sm:$0xff]
      %v710 = vld [vmem:[%s3 + $0x100] sm:$0xff]
      %v711 = vld [vmem:[%s3 + $0x108] sm:$0xff]
      %v712 = vld [vmem:[%s3 + $0x110] sm:$0xff]
      %v713 = vld [vmem:[%s3 + $0x118] sm:$0xff]
      %v714 = vld [vmem:[%s3 + $0x120] sm:$0xff]
      %v715 = vld [vmem:[%s3 + $0x128] sm:$0xff]
      %v716 = vld [vmem:[%s3 + $0x130] sm:$0xff]
      %v717 = vld [vmem:[%s3 + $0x138] sm:$0xff]
      %v718 = vld [vmem:[%s3 + $0x140] sm:$0xff]
      %v719 = vld [vmem:[%s3 + $0x148] sm:$0xff]
      %v720 = vld [vmem:[%s3 + $0x150] sm:$0xff]
      %v721 = vld [vmem:[%s3 + $0x158] sm:$0xff]
      %v722 = vld [vmem:[%s3 + $0x160] sm:$0xff]
      %v723 = vld [vmem:[%s3 + $0x168] sm:$0xff]
      %v724 = vld [vmem:[%s3 + $0x170] sm:$0xff]
      %v725 = vld [vmem:[%s3 + $0x178] sm:$0xff]
      %v726 = vld [vmem:[%s3 + $0x180] sm:$0xff]
      %v727 = vld [vmem:[%s3 + $0x188] sm:$0xff]
      %v728 = vld [vmem:[%s3 + $0x190] sm:$0xff]
      %v729 = vld [vmem:[%s3 + $0x198] sm:$0xff]
      %v730 = vld [vmem:[%s3 + $0x1a0] sm:$0xff]
      %v731 = vld [vmem:[%s3 + $0x1a8] sm:$0xff]
      %v732 = vld [vmem:[%s3 + $0x1b0] sm:$0xff]
      %v733 = vld [vmem:[%s3 + $0x1b8] sm:$0xff]
      %v734 = vld [vmem:[%s3 + $0x1c0] sm:$0xff]
      %v735 = vld [vmem:[%s3 + $0x1c8] sm:$0xff]
      %v736 = vld [vmem:[%s3 + $0x1d0] sm:$0xff]
      %v737 = vld [vmem:[%s3 + $0x1d8] sm:$0xff]
      %v738 = vld [vmem:[%s3 + $0x1e0] sm:$0xff]
      %v739 = vld [vmem:[%s3 + $0x1e8] sm:$0xff]
      %v740 = vld [vmem:[%s3 + $0x1f0] sm:$0xff]
      %v741 = vld [vmem:[%s3 + $0x1f8] sm:$0xff]
      %v742 = vld [vmem:[%s3 + $0x200] sm:$0xff]
      %v743 = vld [vmem:[%s3 + $0x208] sm:$0xff]
      %v744 = vld [vmem:[%s3 + $0x210] sm:$0xff]
      %v745 = vld [vmem:[%s3 + $0x218] sm:$0xff]
      %v746 = vld [vmem:[%s3 + $0x220] sm:$0xff]
      %v747 = vld [vmem:[%s3 + $0x228] sm:$0xff]
      %v748 = vld [vmem:[%s3 + $0x230] sm:$0xff]
      %v749 = vld [vmem:[%s3 + $0x238] sm:$0xff]
      %v750 = vld [vmem:[%s3 + $0x240] sm:$0xff]
      %v751 = vld [vmem:[%s3 + $0x248] sm:$0xff]
      %v752 = vld [vmem:[%s3 + $0x250] sm:$0xff]
      %v753 = vld [vmem:[%s3 + $0x258] sm:$0xff]
      %v754 = vld [vmem:[%s3 + $0x260] sm:$0xff]
      %v755 = vld [vmem:[%s3 + $0x268] sm:$0xff]
      %v756 = vld [vmem:[%s3 + $0x270] sm:$0xff]
      %v757 = vld [vmem:[%s3 + $0x278] sm:$0xff]
      %v758 = vld [vmem:[%s3 + $0x280] sm:$0xff]
      %v759 = vld [vmem:[%s3 + $0x288] sm:$0xff]
      %v760 = vld [vmem:[%s3 + $0x290] sm:$0xff]
      %v761 = vld [vmem:[%s3 + $0x298] sm:$0xff]
      %v762 = vld [vmem:[%s3 + $0x2a0] sm:$0xff]
      %v763 = vld [vmem:[%s3 + $0x2a8] sm:$0xff]
      %v764 = vld [vmem:[%s3 + $0x2b0] sm:$0xff]
      %v765 = vld [vmem:[%s3 + $0x2b8] sm:$0xff]
      %v766 = vld [vmem:[%s3 + $0x2c0] sm:$0xff]
      %v767 = vld [vmem:[%s3 + $0x2c8] sm:$0xff]
      %v768 = vld [vmem:[%s3 + $0x2d0] sm:$0xff]
      %v769 = vld [vmem:[%s3 + $0x2d8] sm:$0xff]
      %v770 = vld [vmem:[%s3 + $0x2e0] sm:$0xff]
      %v771 = vld [vmem:[%s3 + $0x2e8] sm:$0xff]
      %v772 = vld [vmem:[%s3 + $0x2f0] sm:$0xff]
      %v773 = vld [vmem:[%s3 + $0x2f8] sm:$0xff]
      %v774 = vld [vmem:[%s4] sm:$0x3f]
      %v776 = vlaneseq
      %v777 = vshrl.u32 %v776, 7
      %v778 = vsub.s32 0, %v777
      %v779 = vrot.slane %v774, %v778
      %v780 = vlaneseq
      %v781 = vshrl.u32 %v780, 7
      %v782 = vsub.s32 1, %v781
      %v783 = vrot.slane %v774, %v782
      %v784 = vlaneseq
      %v785 = vshrl.u32 %v784, 7
      %v786 = vsub.s32 2, %v785
      %v787 = vrot.slane %v774, %v786
      %v788 = vlaneseq
      %v789 = vshrl.u32 %v788, 7
      %v790 = vsub.s32 3, %v789
      %v791 = vrot.slane %v774, %v790
      %v792 = vlaneseq
      %v793 = vshrl.u32 %v792, 7
      %v794 = vsub.s32 4, %v793
      %v795 = vrot.slane %v774, %v794
      %v796 = vlaneseq
      %v797 = vshrl.u32 %v796, 7
      %v798 = vsub.s32 5, %v797
      %v799 = vrot.slane %v774, %v798
      %v902 = vunpack.c.l.b16 %v678
      %v903 = vunpack.c.h.b16 %v678
      %v904 = vunpack.c.l.b16 %v679
      %v905 = vunpack.c.h.b16 %v679
      %v906 = vunpack.c.l.b16 %v680
      %v907 = vunpack.c.h.b16 %v680
      %v908 = vunpack.c.l.b16 %v681
      %v909 = vunpack.c.h.b16 %v681
      %v910 = vunpack.c.l.b16 %v682
      %v911 = vunpack.c.h.b16 %v682
      %v912 = vunpack.c.l.b16 %v683
      %v913 = vunpack.c.h.b16 %v683
      %v914 = vunpack.c.l.b16 %v684
      %v915 = vunpack.c.h.b16 %v684
      %v916 = vunpack.c.l.b16 %v685
      %v917 = vunpack.c.h.b16 %v685
      %v918 = vunpack.c.l.b16 %v686
      %v919 = vunpack.c.h.b16 %v686
      %v920 = vunpack.c.l.b16 %v687
      %v921 = vunpack.c.h.b16 %v687
      %v922 = vunpack.c.l.b16 %v688
      %v923 = vunpack.c.h.b16 %v688
      %v924 = vunpack.c.l.b16 %v689
      %v925 = vunpack.c.h.b16 %v689
      %v926 = vunpack.c.l.b16 %v690
      %v927 = vunpack.c.h.b16 %v690
      %v928 = vunpack.c.l.b16 %v691
      %v929 = vunpack.c.h.b16 %v691
      %v930 = vunpack.c.l.b16 %v692
      %v931 = vunpack.c.h.b16 %v692
      %v932 = vunpack.c.l.b16 %v693
      %v933 = vunpack.c.h.b16 %v693
      %v934 = vunpack.c.l.b16 %v694
      %v935 = vunpack.c.h.b16 %v694
      %v936 = vunpack.c.l.b16 %v695
      %v937 = vunpack.c.h.b16 %v695
      %v938 = vunpack.c.l.b16 %v696
      %v939 = vunpack.c.h.b16 %v696
      %v940 = vunpack.c.l.b16 %v697
      %v941 = vunpack.c.h.b16 %v697
      %v942 = vunpack.c.l.b16 %v698
      %v943 = vunpack.c.h.b16 %v698
      %v944 = vunpack.c.l.b16 %v699
      %v945 = vunpack.c.h.b16 %v699
      %v946 = vunpack.c.l.b16 %v700
      %v947 = vunpack.c.h.b16 %v700
      %v948 = vunpack.c.l.b16 %v701
      %v949 = vunpack.c.h.b16 %v701
      %v950 = vunpack.c.l.b16 %v702
      %v951 = vunpack.c.h.b16 %v702
      %v952 = vunpack.c.l.b16 %v703
      %v953 = vunpack.c.h.b16 %v703
      %v954 = vunpack.c.l.b16 %v704
      %v955 = vunpack.c.h.b16 %v704
      %v956 = vunpack.c.l.b16 %v705
      %v957 = vunpack.c.h.b16 %v705
      %v958 = vunpack.c.l.b16 %v706
      %v959 = vunpack.c.h.b16 %v706
      %v960 = vunpack.c.l.b16 %v707
      %v961 = vunpack.c.h.b16 %v707
      %v962 = vunpack.c.l.b16 %v708
      %v963 = vunpack.c.h.b16 %v708
      %v964 = vunpack.c.l.b16 %v709
      %v965 = vunpack.c.h.b16 %v709
      %v966 = vunpack.c.l.b16 %v710
      %v967 = vunpack.c.h.b16 %v710
      %v968 = vunpack.c.l.b16 %v711
      %v969 = vunpack.c.h.b16 %v711
      %v970 = vunpack.c.l.b16 %v712
      %v971 = vunpack.c.h.b16 %v712
      %v972 = vunpack.c.l.b16 %v713
      %v973 = vunpack.c.h.b16 %v713
      %v974 = vunpack.c.l.b16 %v714
      %v975 = vunpack.c.h.b16 %v714
      %v976 = vunpack.c.l.b16 %v715
      %v977 = vunpack.c.h.b16 %v715
      %v978 = vunpack.c.l.b16 %v716
      %v979 = vunpack.c.h.b16 %v716
      %v980 = vunpack.c.l.b16 %v717
      %v981 = vunpack.c.h.b16 %v717
      %v982 = vunpack.c.l.b16 %v718
      %v983 = vunpack.c.h.b16 %v718
      %v984 = vunpack.c.l.b16 %v719
      %v985 = vunpack.c.h.b16 %v719
      %v986 = vunpack.c.l.b16 %v720
      %v987 = vunpack.c.h.b16 %v720
      %v988 = vunpack.c.l.b16 %v721
      %v989 = vunpack.c.h.b16 %v721
      %v990 = vunpack.c.l.b16 %v722
      %v991 = vunpack.c.h.b16 %v722
      %v992 = vunpack.c.l.b16 %v723
      %v993 = vunpack.c.h.b16 %v723
      %v994 = vunpack.c.l.b16 %v724
      %v995 = vunpack.c.h.b16 %v724
      %v996 = vunpack.c.l.b16 %v725
      %v997 = vunpack.c.h.b16 %v725
      %v998 = vunpack.c.l.b16 %v726
      %v999 = vunpack.c.h.b16 %v726
      %v1000 = vunpack.c.l.b16 %v727
      %v1001 = vunpack.c.h.b16 %v727
      %v1002 = vunpack.c.l.b16 %v728
      %v1003 = vunpack.c.h.b16 %v728
      %v1004 = vunpack.c.l.b16 %v729
      %v1005 = vunpack.c.h.b16 %v729
      %v1006 = vunpack.c.l.b16 %v730
      %v1007 = vunpack.c.h.b16 %v730
      %v1008 = vunpack.c.l.b16 %v731
      %v1009 = vunpack.c.h.b16 %v731
      %v1010 = vunpack.c.l.b16 %v732
      %v1011 = vunpack.c.h.b16 %v732
      %v1012 = vunpack.c.l.b16 %v733
      %v1013 = vunpack.c.h.b16 %v733
      %v1014 = vunpack.c.l.b16 %v734
      %v1015 = vunpack.c.h.b16 %v734
      %v1016 = vunpack.c.l.b16 %v735
      %v1017 = vunpack.c.h.b16 %v735
      %v1018 = vunpack.c.l.b16 %v736
      %v1019 = vunpack.c.h.b16 %v736
      %v1020 = vunpack.c.l.b16 %v737
      %v1021 = vunpack.c.h.b16 %v737
      %v1022 = vunpack.c.l.b16 %v738
      %v1023 = vunpack.c.h.b16 %v738
      %v1024 = vunpack.c.l.b16 %v739
      %v1025 = vunpack.c.h.b16 %v739
      %v1026 = vunpack.c.l.b16 %v740
      %v1027 = vunpack.c.h.b16 %v740
      %v1028 = vunpack.c.l.b16 %v741
      %v1029 = vunpack.c.h.b16 %v741
      %v1030 = vunpack.c.l.b16 %v742
      %v1031 = vunpack.c.h.b16 %v742
      %v1032 = vunpack.c.l.b16 %v743
      %v1033 = vunpack.c.h.b16 %v743
      %v1034 = vunpack.c.l.b16 %v744
      %v1035 = vunpack.c.h.b16 %v744
      %v1036 = vunpack.c.l.b16 %v745
      %v1037 = vunpack.c.h.b16 %v745
      %v1038 = vunpack.c.l.b16 %v746
      %v1039 = vunpack.c.h.b16 %v746
      %v1040 = vunpack.c.l.b16 %v747
      %v1041 = vunpack.c.h.b16 %v747
      %v1042 = vunpack.c.l.b16 %v748
      %v1043 = vunpack.c.h.b16 %v748
      %v1044 = vunpack.c.l.b16 %v749
      %v1045 = vunpack.c.h.b16 %v749
      %v1046 = vunpack.c.l.b16 %v750
      %v1047 = vunpack.c.h.b16 %v750
      %v1048 = vunpack.c.l.b16 %v751
      %v1049 = vunpack.c.h.b16 %v751
      %v1050 = vunpack.c.l.b16 %v752
      %v1051 = vunpack.c.h.b16 %v752
      %v1052 = vunpack.c.l.b16 %v753
      %v1053 = vunpack.c.h.b16 %v753
      %v1054 = vunpack.c.l.b16 %v754
      %v1055 = vunpack.c.h.b16 %v754
      %v1056 = vunpack.c.l.b16 %v755
      %v1057 = vunpack.c.h.b16 %v755
      %v1058 = vunpack.c.l.b16 %v756
      %v1059 = vunpack.c.h.b16 %v756
      %v1060 = vunpack.c.l.b16 %v757
      %v1061 = vunpack.c.h.b16 %v757
      %v1062 = vunpack.c.l.b16 %v758
      %v1063 = vunpack.c.h.b16 %v758
      %v1064 = vunpack.c.l.b16 %v759
      %v1065 = vunpack.c.h.b16 %v759
      %v1066 = vunpack.c.l.b16 %v760
      %v1067 = vunpack.c.h.b16 %v760
      %v1068 = vunpack.c.l.b16 %v761
      %v1069 = vunpack.c.h.b16 %v761
      %v1070 = vunpack.c.l.b16 %v762
      %v1071 = vunpack.c.h.b16 %v762
      %v1072 = vunpack.c.l.b16 %v763
      %v1073 = vunpack.c.h.b16 %v763
      %v1074 = vunpack.c.l.b16 %v764
      %v1075 = vunpack.c.h.b16 %v764
      %v1076 = vunpack.c.l.b16 %v765
      %v1077 = vunpack.c.h.b16 %v765
      %v1078 = vunpack.c.l.b16 %v766
      %v1079 = vunpack.c.h.b16 %v766
      %v1080 = vunpack.c.l.b16 %v767
      %v1081 = vunpack.c.h.b16 %v767
      %v1082 = vunpack.c.l.b16 %v768
      %v1083 = vunpack.c.h.b16 %v768
      %v1084 = vunpack.c.l.b16 %v769
      %v1085 = vunpack.c.h.b16 %v769
      %v1086 = vunpack.c.l.b16 %v770
      %v1087 = vunpack.c.h.b16 %v770
      %v1088 = vunpack.c.l.b16 %v771
      %v1089 = vunpack.c.h.b16 %v771
      %v1090 = vunpack.c.l.b16 %v772
      %v1091 = vunpack.c.h.b16 %v772
      %v1092 = vunpack.c.l.b16 %v773
      %v1093 = vunpack.c.h.b16 %v773
      %v1094 = vpack.c.b16 %v908, %v902
      %v1095 = vpack.c.b16 %v909, %v903
      %v1096 = vpack.c.b16 %v910, %v904
      %v1097 = vpack.c.b16 %v911, %v905
      %v1098 = vpack.c.b16 %v912, %v906
      %v1099 = vpack.c.b16 %v913, %v907
      %v1100 = vpack.c.b16 %v920, %v914
      %v1101 = vpack.c.b16 %v921, %v915
      %v1102 = vpack.c.b16 %v922, %v916
      %v1103 = vpack.c.b16 %v923, %v917
      %v1104 = vpack.c.b16 %v924, %v918
      %v1105 = vpack.c.b16 %v925, %v919
      %v1106 = vpack.c.b16 %v932, %v926
      %v1107 = vpack.c.b16 %v933, %v927
      %v1108 = vpack.c.b16 %v934, %v928
      %v1109 = vpack.c.b16 %v935, %v929
      %v1110 = vpack.c.b16 %v936, %v930
      %v1111 = vpack.c.b16 %v937, %v931
      %v1112 = vpack.c.b16 %v944, %v938
      %v1113 = vpack.c.b16 %v945, %v939
      %v1114 = vpack.c.b16 %v946, %v940
      %v1115 = vpack.c.b16 %v947, %v941
      %v1116 = vpack.c.b16 %v948, %v942
      %v1117 = vpack.c.b16 %v949, %v943
      %v1118 = vpack.c.b16 %v956, %v950
      %v1119 = vpack.c.b16 %v957, %v951
      %v1120 = vpack.c.b16 %v958, %v952
      %v1121 = vpack.c.b16 %v959, %v953
      %v1122 = vpack.c.b16 %v960, %v954
      %v1123 = vpack.c.b16 %v961, %v955
      %v1124 = vpack.c.b16 %v968, %v962
      %v1125 = vpack.c.b16 %v969, %v963
      %v1126 = vpack.c.b16 %v970, %v964
      %v1127 = vpack.c.b16 %v971, %v965
      %v1128 = vpack.c.b16 %v972, %v966
      %v1129 = vpack.c.b16 %v973, %v967
      %v1130 = vpack.c.b16 %v980, %v974
      %v1131 = vpack.c.b16 %v981, %v975
      %v1132 = vpack.c.b16 %v982, %v976
      %v1133 = vpack.c.b16 %v983, %v977
      %v1134 = vpack.c.b16 %v984, %v978
      %v1135 = vpack.c.b16 %v985, %v979
      %v1136 = vpack.c.b16 %v992, %v986
      %v1137 = vpack.c.b16 %v993, %v987
      %v1138 = vpack.c.b16 %v994, %v988
      %v1139 = vpack.c.b16 %v995, %v989
      %v1140 = vpack.c.b16 %v996, %v990
      %v1141 = vpack.c.b16 %v997, %v991
      %v1142 = vpack.c.b16 %v1004, %v998
      %v1143 = vpack.c.b16 %v1005, %v999
      %v1144 = vpack.c.b16 %v1006, %v1000
      %v1145 = vpack.c.b16 %v1007, %v1001
      %v1146 = vpack.c.b16 %v1008, %v1002
      %v1147 = vpack.c.b16 %v1009, %v1003
      %v1148 = vpack.c.b16 %v1016, %v1010
      %v1149 = vpack.c.b16 %v1017, %v1011
      %v1150 = vpack.c.b16 %v1018, %v1012
      %v1151 = vpack.c.b16 %v1019, %v1013
      %v1152 = vpack.c.b16 %v1020, %v1014
      %v1153 = vpack.c.b16 %v1021, %v1015
      %v1154 = vpack.c.b16 %v1028, %v1022
      %v1155 = vpack.c.b16 %v1029, %v1023
      %v1156 = vpack.c.b16 %v1030, %v1024
      %v1157 = vpack.c.b16 %v1031, %v1025
      %v1158 = vpack.c.b16 %v1032, %v1026
      %v1159 = vpack.c.b16 %v1033, %v1027
      %v1160 = vpack.c.b16 %v1040, %v1034
      %v1161 = vpack.c.b16 %v1041, %v1035
      %v1162 = vpack.c.b16 %v1042, %v1036
      %v1163 = vpack.c.b16 %v1043, %v1037
      %v1164 = vpack.c.b16 %v1044, %v1038
      %v1165 = vpack.c.b16 %v1045, %v1039
      %v1166 = vpack.c.b16 %v1052, %v1046
      %v1167 = vpack.c.b16 %v1053, %v1047
      %v1168 = vpack.c.b16 %v1054, %v1048
      %v1169 = vpack.c.b16 %v1055, %v1049
      %v1170 = vpack.c.b16 %v1056, %v1050
      %v1171 = vpack.c.b16 %v1057, %v1051
      %v1172 = vpack.c.b16 %v1064, %v1058
      %v1173 = vpack.c.b16 %v1065, %v1059
      %v1174 = vpack.c.b16 %v1066, %v1060
      %v1175 = vpack.c.b16 %v1067, %v1061
      %v1176 = vpack.c.b16 %v1068, %v1062
      %v1177 = vpack.c.b16 %v1069, %v1063
      %v1178 = vpack.c.b16 %v1076, %v1070
      %v1179 = vpack.c.b16 %v1077, %v1071
      %v1180 = vpack.c.b16 %v1078, %v1072
      %v1181 = vpack.c.b16 %v1079, %v1073
      %v1182 = vpack.c.b16 %v1080, %v1074
      %v1183 = vpack.c.b16 %v1081, %v1075
      %v1184 = vpack.c.b16 %v1088, %v1082
      %v1185 = vpack.c.b16 %v1089, %v1083
      %v1186 = vpack.c.b16 %v1090, %v1084
      %v1187 = vpack.c.b16 %v1091, %v1085
      %v1188 = vpack.c.b16 %v1092, %v1086
      %v1189 = vpack.c.b16 %v1093, %v1087
      %1286 = vmatprep.subr.bf16.mxu0 %v1095
      %1287 = vmatpush1.bf16.msra.mxu0 %v1094
      %1288 = vmatprep.subr.bf16.mxu0 %v1101
      %1289 = vmatpush1.bf16.msra.mxu0 %v1100
      %1290 = vmatprep.subr.bf16.mxu0 %v1107
      %1291 = vmatpush1.bf16.msra.mxu0 %v1106
      %1292 = vmatprep.subr.bf16.mxu0 %v1113
      %1293 = vmatpush1.bf16.msra.mxu0 %v1112
      %1294 = vmatprep.subr.bf16.mxu0 %v1119
      %1295 = vmatpush1.bf16.msra.mxu0 %v1118
      %1296 = vmatprep.subr.bf16.mxu0 %v1125
      %1297 = vmatpush1.bf16.msra.mxu0 %v1124
      %1298 = vmatprep.subr.bf16.mxu0 %v1131
      %1299 = vmatpush1.bf16.msra.mxu0 %v1130
      %1300 = vmatprep.subr.bf16.mxu0 %v1137
      %1301 = vmatpush1.bf16.msra.mxu0 %v1136
      %1302 = vmatprep.subr.bf16.mxu0 %v1143
      %1303 = vmatpush1.bf16.msra.mxu0 %v1142
      %1304 = vmatprep.subr.bf16.mxu0 %v1149
      %1305 = vmatpush1.bf16.msra.mxu0 %v1148
      %1306 = vmatprep.subr.bf16.mxu0 %v1155
      %1307 = vmatpush1.bf16.msra.mxu0 %v1154
      %1308 = vmatprep.subr.bf16.mxu0 %v1161
      %1309 = vmatpush1.bf16.msra.mxu0 %v1160
      %1310 = vmatprep.subr.bf16.mxu0 %v1167
      %1311 = vmatpush1.bf16.msra.mxu0 %v1166
      %1312 = vmatprep.subr.bf16.mxu0 %v1173
      %1313 = vmatpush1.bf16.msra.mxu0 %v1172
      %1314 = vmatprep.subr.bf16.mxu0 %v1179
      %1315 = vmatpush1.bf16.msra.mxu0 %v1178
      %1316 = vmatprep.subr.bf16.mxu0 %v1185
      %1317 = vmatpush1.bf16.msra.mxu0 %v1184
      %1318 = vmatprep.mubr.bf16.mxu0 %v663
      %1319 = vmatmul.mubr.bf16.gmra.mrb[0].mxu0 %v662
      %v1320 = vpop.f32.mrb[0].mxu0
      %v1321 = vadd.f32 %v779, %v1320
      %v1322 = vpop.f32.mrb[0].mxu0
      %v1323 = vadd.f32 %v783, %v1322
      %v1324 = vpop.f32.mrb[0].mxu0
      %v1325 = vadd.f32 %v779, %v1324
      %v1326 = vpop.f32.mrb[0].mxu0
      %v1327 = vadd.f32 %v783, %v1326
      %1328 = vmatprep.mubr.bf16.mxu0 %v665
      %1329 = vmatmul.mubr.bf16.gmra.mrb[0].mxu0 %v664
      %v1330 = vpop.f32.mrb[0].mxu0
      %v1331 = vadd.f32 %v779, %v1330
      %v1332 = vpop.f32.mrb[0].mxu0
      %v1333 = vadd.f32 %v783, %v1332
      %v1334 = vpop.f32.mrb[0].mxu0
      %v1335 = vadd.f32 %v779, %v1334
      %v1336 = vpop.f32.mrb[0].mxu0
      %v1337 = vadd.f32 %v783, %v1336
      %1338 = vmatprep.mubr.bf16.mxu0 %v667
      %1339 = vmatmul.mubr.bf16.gmra.mrb[0].mxu0 %v666
      %v1340 = vpop.f32.mrb[0].mxu0
      %v1341 = vadd.f32 %v779, %v1340
      %v1342 = vpop.f32.mrb[0].mxu0
      %v1343 = vadd.f32 %v783, %v1342
      %v1344 = vpop.f32.mrb[0].mxu0
      %v1345 = vadd.f32 %v779, %v1344
      %v1346 = vpop.f32.mrb[0].mxu0
      %v1347 = vadd.f32 %v783, %v1346
      %1348 = vmatprep.mubr.bf16.mxu0 %v669
      %1349 = vmatmul.mubr.bf16.gmra.mrb[0].mxu0 %v668
      %v1350 = vpop.f32.mrb[0].mxu0
      %v1351 = vadd.f32 %v779, %v1350
      %v1352 = vpop.f32.mrb[0].mxu0
      %v1353 = vadd.f32 %v783, %v1352
      %v1354 = vpop.f32.mrb[0].mxu0
      %v1355 = vadd.f32 %v779, %v1354
      %v1356 = vpop.f32.mrb[0].mxu0
      %v1357 = vadd.f32 %v783, %v1356
      %1358 = vmatprep.mubr.bf16.mxu0 %v671
      %1359 = vmatmul.mubr.bf16.gmra.mrb[0].mxu0 %v670
      %v1360 = vpop.f32.mrb[0].mxu0
      %v1361 = vadd.f32 %v779, %v1360
      %v1362 = vpop.f32.mrb[0].mxu0
      %v1363 = vadd.f32 %v783, %v1362
      %v1364 = vpop.f32.mrb[0].mxu0
      %v1365 = vadd.f32 %v779, %v1364
      %v1366 = vpop.f32.mrb[0].mxu0
      %v1367 = vadd.f32 %v783, %v1366
      %1368 = vmatprep.mubr.bf16.mxu0 %v673
      %1369 = vmatmul.mubr.bf16.gmra.mrb[0].mxu0 %v672
      %v1370 = vpop.f32.mrb[0].mxu0
      %v1371 = vadd.f32 %v779, %v1370
      %v1372 = vpop.f32.mrb[0].mxu0
      %v1373 = vadd.f32 %v783, %v1372
      %v1374 = vpop.f32.mrb[0].mxu0
      %v1375 = vadd.f32 %v779, %v1374
      %v1376 = vpop.f32.mrb[0].mxu0
      %v1377 = vadd.f32 %v783, %v1376
      %1378 = vmatprep.mubr.bf16.mxu0 %v675
      %1379 = vmatmul.mubr.bf16.gmra.mrb[0].mxu0 %v674
      %v1380 = vpop.f32.mrb[0].mxu0
      %v1381 = vadd.f32 %v779, %v1380
      %v1382 = vpop.f32.mrb[0].mxu0
      %v1383 = vadd.f32 %v783, %v1382
      %v1384 = vpop.f32.mrb[0].mxu0
      %v1385 = vadd.f32 %v779, %v1384
      %v1386 = vpop.f32.mrb[0].mxu0
      %v1387 = vadd.f32 %v783, %v1386
      %1388 = vmatprep.mubr.bf16.mxu0 %v677
      %1389 = vmatmul.mubr.bf16.gmra.mrb[0].mxu0 %v676
      %v1390 = vpop.f32.mrb[0].mxu0
      %v1391 = vadd.f32 %v779, %v1390
      %v1392 = vpop.f32.mrb[0].mxu0
      %v1393 = vadd.f32 %v783, %v1392
      %v1394 = vpop.f32.mrb[0].mxu0
      %v1395 = vadd.f32 %v779, %v1394
      %v1396 = vpop.f32.mrb[0].mxu0
      %v1397 = vadd.f32 %v783, %v1396
      %1398 = vdwg.mxu0
      %1399 = vmatprep.subr.bf16.mxu0 %v1097
      %1400 = vmatpush1.bf16.msra.mxu0 %v1096
      %1401 = vmatprep.subr.bf16.mxu0 %v1103
      %1402 = vmatpush1.bf16.msra.mxu0 %v1102
      %1403 = vmatprep.subr.bf16.mxu0 %v1109
      %1404 = vmatpush1.bf16.msra.mxu0 %v1108
      %1405 = vmatprep.subr.bf16.mxu0 %v1115
      %1406 = vmatpush1.bf16.msra.mxu0 %v1114
      %1407 = vmatprep.subr.bf16.mxu0 %v1121
      %1408 = vmatpush1.bf16.msra.mxu0 %v1120
      %1409 = vmatprep.subr.bf16.mxu0 %v1127
      %1410 = vmatpush1.bf16.msra.mxu0 %v1126
      %1411 = vmatprep.subr.bf16.mxu0 %v1133
      %1412 = vmatpush1.bf16.msra.mxu0 %v1132
      %1413 = vmatprep.subr.bf16.mxu0 %v1139
      %1414 = vmatpush1.bf16.msra.mxu0 %v1138
      %1415 = vmatprep.subr.bf16.mxu0 %v1145
      %1416 = vmatpush1.bf16.msra.mxu0 %v1144
      %1417 = vmatprep.subr.bf16.mxu0 %v1151
      %1418 = vmatpush1.bf16.msra.mxu0 %v1150
      %1419 = vmatprep.subr.bf16.mxu0 %v1157
      %1420 = vmatpush1.bf16.msra.mxu0 %v1156
      %1421 = vmatprep.subr.bf16.mxu0 %v1163
      %1422 = vmatpush1.bf16.msra.mxu0 %v1162
      %1423 = vmatprep.subr.bf16.mxu0 %v1169
      %1424 = vmatpush1.bf16.msra.mxu0 %v1168
      %1425 = vmatprep.subr.bf16.mxu0 %v1175
      %1426 = vmatpush1.bf16.msra.mxu0 %v1174
      %1427 = vmatprep.subr.bf16.mxu0 %v1181
      %1428 = vmatpush1.bf16.msra.mxu0 %v1180
      %1429 = vmatprep.subr.bf16.mxu0 %v1187
      %1430 = vmatpush1.bf16.msra.mxu0 %v1186
      %1431 = vmatprep.mubr.bf16.mxu0 %v663
      %1432 = vmatmul.mubr.bf16.gmra.mrb[0].mxu0 %v662
      %v1433 = vpop.f32.mrb[0].mxu0
      %v1434 = vadd.f32 %v787, %v1433
      %v1435 = vpop.f32.mrb[0].mxu0
      %v1436 = vadd.f32 %v791, %v1435
      %v1437 = vpop.f32.mrb[0].mxu0
      %v1438 = vadd.f32 %v787, %v1437
      %v1439 = vpop.f32.mrb[0].mxu0
      %v1440 = vadd.f32 %v791, %v1439
      %1441 = vmatprep.mubr.bf16.mxu0 %v665
      %1442 = vmatmul.mubr.bf16.gmra.mrb[0].mxu0 %v664
      %v1443 = vpop.f32.mrb[0].mxu0
      %v1444 = vadd.f32 %v787, %v1443
      %v1445 = vpop.f32.mrb[0].mxu0
      %v1446 = vadd.f32 %v791, %v1445
      %v1447 = vpop.f32.mrb[0].mxu0
      %v1448 = vadd.f32 %v787, %v1447
      %v1449 = vpop.f32.mrb[0].mxu0
      %v1450 = vadd.f32 %v791, %v1449
      %1451 = vmatprep.mubr.bf16.mxu0 %v667
      %1452 = vmatmul.mubr.bf16.gmra.mrb[0].mxu0 %v666
      %v1453 = vpop.f32.mrb[0].mxu0
      %v1454 = vadd.f32 %v787, %v1453
      %v1455 = vpop.f32.mrb[0].mxu0
      %v1456 = vadd.f32 %v791, %v1455
      %v1457 = vpop.f32.mrb[0].mxu0
      %v1458 = vadd.f32 %v787, %v1457
      %v1459 = vpop.f32.mrb[0].mxu0
      %v1460 = vadd.f32 %v791, %v1459
      %1461 = vmatprep.mubr.bf16.mxu0 %v669
      %1462 = vmatmul.mubr.bf16.gmra.mrb[0].mxu0 %v668
      %v1463 = vpop.f32.mrb[0].mxu0
      %v1464 = vadd.f32 %v787, %v1463
      %v1465 = vpop.f32.mrb[0].mxu0
      %v1466 = vadd.f32 %v791, %v1465
      %v1467 = vpop.f32.mrb[0].mxu0
      %v1468 = vadd.f32 %v787, %v1467
      %v1469 = vpop.f32.mrb[0].mxu0
      %v1470 = vadd.f32 %v791, %v1469
      %1471 = vmatprep.mubr.bf16.mxu0 %v671
      %1472 = vmatmul.mubr.bf16.gmra.mrb[0].mxu0 %v670
      %v1473 = vpop.f32.mrb[0].mxu0
      %v1474 = vadd.f32 %v787, %v1473
      %v1475 = vpop.f32.mrb[0].mxu0
      %v1476 = vadd.f32 %v791, %v1475
      %v1477 = vpop.f32.mrb[0].mxu0
      %v1478 = vadd.f32 %v787, %v1477
      %v1479 = vpop.f32.mrb[0].mxu0
      %v1480 = vadd.f32 %v791, %v1479
      %1481 = vmatprep.mubr.bf16.mxu0 %v673
      %1482 = vmatmul.mubr.bf16.gmra.mrb[0].mxu0 %v672
      %v1483 = vpop.f32.mrb[0].mxu0
      %v1484 = vadd.f32 %v787, %v1483
      %v1485 = vpop.f32.mrb[0].mxu0
      %v1486 = vadd.f32 %v791, %v1485
      %v1487 = vpop.f32.mrb[0].mxu0
      %v1488 = vadd.f32 %v787, %v1487
      %v1489 = vpop.f32.mrb[0].mxu0
      %v1490 = vadd.f32 %v791, %v1489
      %1491 = vmatprep.mubr.bf16.mxu0 %v675
      %1492 = vmatmul.mubr.bf16.gmra.mrb[0].mxu0 %v674
      %v1493 = vpop.f32.mrb[0].mxu0
      %v1494 = vadd.f32 %v787, %v1493
      %v1495 = vpop.f32.mrb[0].mxu0
      %v1496 = vadd.f32 %v791, %v1495
      %v1497 = vpop.f32.mrb[0].mxu0
      %v1498 = vadd.f32 %v787, %v1497
      %v1499 = vpop.f32.mrb[0].mxu0
      %v1500 = vadd.f32 %v791, %v1499
      %1501 = vmatprep.mubr.bf16.mxu0 %v677
      %1502 = vmatmul.mubr.bf16.gmra.mrb[0].mxu0 %v676
      %v1503 = vpop.f32.mrb[0].mxu0
      %v1504 = vadd.f32 %v787, %v1503
      %v1505 = vpop.f32.mrb[0].mxu0
      %v1506 = vadd.f32 %v791, %v1505
      %v1507 = vpop.f32.mrb[0].mxu0
      %v1508 = vadd.f32 %v787, %v1507
      %v1509 = vpop.f32.mrb[0].mxu0
      %v1510 = vadd.f32 %v791, %v1509
      %1511 = vdwg.mxu0
      %1512 = vmatprep.subr.bf16.mxu0 %v1099
      %1513 = vmatpush1.bf16.msra.mxu0 %v1098
      %1514 = vmatprep.subr.bf16.mxu0 %v1105
      %1515 = vmatpush1.bf16.msra.mxu0 %v1104
      %1516 = vmatprep.subr.bf16.mxu0 %v1111
      %1517 = vmatpush1.bf16.msra.mxu0 %v1110
      %1518 = vmatprep.subr.bf16.mxu0 %v1117
      %1519 = vmatpush1.bf16.msra.mxu0 %v1116
      %1520 = vmatprep.subr.bf16.mxu0 %v1123
      %1521 = vmatpush1.bf16.msra.mxu0 %v1122
      %1522 = vmatprep.subr.bf16.mxu0 %v1129
      %1523 = vmatpush1.bf16.msra.mxu0 %v1128
      %1524 = vmatprep.subr.bf16.mxu0 %v1135
      %1525 = vmatpush1.bf16.msra.mxu0 %v1134
      %1526 = vmatprep.subr.bf16.mxu0 %v1141
      %1527 = vmatpush1.bf16.msra.mxu0 %v1140
      %1528 = vmatprep.subr.bf16.mxu0 %v1147
      %1529 = vmatpush1.bf16.msra.mxu0 %v1146
      %1530 = vmatprep.subr.bf16.mxu0 %v1153
      %1531 = vmatpush1.bf16.msra.mxu0 %v1152
      %1532 = vmatprep.subr.bf16.mxu0 %v1159
      %1533 = vmatpush1.bf16.msra.mxu0 %v1158
      %1534 = vmatprep.subr.bf16.mxu0 %v1165
      %1535 = vmatpush1.bf16.msra.mxu0 %v1164
      %1536 = vmatprep.subr.bf16.mxu0 %v1171
      %1537 = vmatpush1.bf16.msra.mxu0 %v1170
      %1538 = vmatprep.subr.bf16.mxu0 %v1177
      %1539 = vmatpush1.bf16.msra.mxu0 %v1176
      %1540 = vmatprep.subr.bf16.mxu0 %v1183
      %1541 = vmatpush1.bf16.msra.mxu0 %v1182
      %1542 = vmatprep.subr.bf16.mxu0 %v1189
      %1543 = vmatpush1.bf16.msra.mxu0 %v1188
      %1544 = vmatprep.mubr.bf16.mxu0 %v663
      %1545 = vmatmul.mubr.bf16.gmra.mrb[0].mxu0 %v662
      %v1546 = vpop.f32.mrb[0].mxu0
      %v1547 = vadd.f32 %v795, %v1546
      %v1548 = vpop.f32.mrb[0].mxu0
      %v1549 = vadd.f32 %v799, %v1548
      %v1550 = vpop.f32.mrb[0].mxu0
      %v1551 = vadd.f32 %v795, %v1550
      %v1552 = vpop.f32.mrb[0].mxu0
      %v1553 = vadd.f32 %v799, %v1552
      %1554 = vmatprep.mubr.bf16.mxu0 %v665
      %1555 = vmatmul.mubr.bf16.gmra.mrb[0].mxu0 %v664
      %v1556 = vpop.f32.mrb[0].mxu0
      %v1557 = vadd.f32 %v795, %v1556
      %v1558 = vpop.f32.mrb[0].mxu0
      %v1559 = vadd.f32 %v799, %v1558
      %v1560 = vpop.f32.mrb[0].mxu0
      %v1561 = vadd.f32 %v795, %v1560
      %v1562 = vpop.f32.mrb[0].mxu0
      %v1563 = vadd.f32 %v799, %v1562
      %1564 = vmatprep.mubr.bf16.mxu0 %v667
      %1565 = vmatmul.mubr.bf16.gmra.mrb[0].mxu0 %v666
      %v1566 = vpop.f32.mrb[0].mxu0
      %v1567 = vadd.f32 %v795, %v1566
      %v1568 = vpop.f32.mrb[0].mxu0
      %v1569 = vadd.f32 %v799, %v1568
      %v1570 = vpop.f32.mrb[0].mxu0
      %v1571 = vadd.f32 %v795, %v1570
      %v1572 = vpop.f32.mrb[0].mxu0
      %v1573 = vadd.f32 %v799, %v1572
      %1574 = vmatprep.mubr.bf16.mxu0 %v669
      %1575 = vmatmul.mubr.bf16.gmra.mrb[0].mxu0 %v668
      %v1576 = vpop.f32.mrb[0].mxu0
      %v1577 = vadd.f32 %v795, %v1576
      %v1578 = vpop.f32.mrb[0].mxu0
      %v1579 = vadd.f32 %v799, %v1578
      %v1580 = vpop.f32.mrb[0].mxu0
      %v1581 = vadd.f32 %v795, %v1580
      %v1582 = vpop.f32.mrb[0].mxu0
      %v1583 = vadd.f32 %v799, %v1582
      %1584 = vmatprep.mubr.bf16.mxu0 %v671
      %1585 = vmatmul.mubr.bf16.gmra.mrb[0].mxu0 %v670
      %v1586 = vpop.f32.mrb[0].mxu0
      %v1587 = vadd.f32 %v795, %v1586
      %v1588 = vpop.f32.mrb[0].mxu0
      %v1589 = vadd.f32 %v799, %v1588
      %v1590 = vpop.f32.mrb[0].mxu0
      %v1591 = vadd.f32 %v795, %v1590
      %v1592 = vpop.f32.mrb[0].mxu0
      %v1593 = vadd.f32 %v799, %v1592
      %1594 = vmatprep.mubr.bf16.mxu0 %v673
      %1595 = vmatmul.mubr.bf16.gmra.mrb[0].mxu0 %v672
      %v1596 = vpop.f32.mrb[0].mxu0
      %v1597 = vadd.f32 %v795, %v1596
      %v1598 = vpop.f32.mrb[0].mxu0
      %v1599 = vadd.f32 %v799, %v1598
      %v1600 = vpop.f32.mrb[0].mxu0
      %v1601 = vadd.f32 %v795, %v1600
      %v1602 = vpop.f32.mrb[0].mxu0
      %v1603 = vadd.f32 %v799, %v1602
      %1604 = vmatprep.mubr.bf16.mxu0 %v675
      %1605 = vmatmul.mubr.bf16.gmra.mrb[0].mxu0 %v674
      %v1606 = vpop.f32.mrb[0].mxu0
      %v1607 = vadd.f32 %v795, %v1606
      %v1608 = vpop.f32.mrb[0].mxu0
      %v1609 = vadd.f32 %v799, %v1608
      %v1610 = vpop.f32.mrb[0].mxu0
      %v1611 = vadd.f32 %v795, %v1610
      %v1612 = vpop.f32.mrb[0].mxu0
      %v1613 = vadd.f32 %v799, %v1612
      %1614 = vmatprep.mubr.bf16.mxu0 %v677
      %1615 = vmatmul.mubr.bf16.gmra.mrb[0].mxu0 %v676
      %v1616 = vpop.f32.mrb[0].mxu0
      %v1617 = vadd.f32 %v795, %v1616
      %v1618 = vpop.f32.mrb[0].mxu0
      %v1619 = vadd.f32 %v799, %v1618
      %v1620 = vpop.f32.mrb[0].mxu0
      %v1621 = vadd.f32 %v795, %v1620
      %v1622 = vpop.f32.mrb[0].mxu0
      %v1623 = vadd.f32 %v799, %v1622
      %1624 = vdwg.mxu0
      %v1625 = vpack.c.bf16 %v1325, %v1321
      %v1626 = vpack.c.bf16 %v1327, %v1323
      %v1627 = vpack.c.bf16 %v1438, %v1434
      %v1628 = vpack.c.bf16 %v1440, %v1436
      %v1629 = vpack.c.bf16 %v1551, %v1547
      %v1630 = vpack.c.bf16 %v1553, %v1549
      %v1631 = vpack.c.bf16 %v1335, %v1331
      %v1632 = vpack.c.bf16 %v1337, %v1333
      %v1633 = vpack.c.bf16 %v1448, %v1444
      %v1634 = vpack.c.bf16 %v1450, %v1446
      %v1635 = vpack.c.bf16 %v1561, %v1557
      %v1636 = vpack.c.bf16 %v1563, %v1559
      %v1637 = vpack.c.bf16 %v1345, %v1341
      %v1638 = vpack.c.bf16 %v1347, %v1343
      %v1639 = vpack.c.bf16 %v1458, %v1454
      %v1640 = vpack.c.bf16 %v1460, %v1456
      %v1641 = vpack.c.bf16 %v1571, %v1567
      %v1642 = vpack.c.bf16 %v1573, %v1569
      %v1643 = vpack.c.bf16 %v1355, %v1351
      %v1644 = vpack.c.bf16 %v1357, %v1353
      %v1645 = vpack.c.bf16 %v1468, %v1464
      %v1646 = vpack.c.bf16 %v1470, %v1466
      %v1647 = vpack.c.bf16 %v1581, %v1577
      %v1648 = vpack.c.bf16 %v1583, %v1579
      %v1649 = vpack.c.bf16 %v1365, %v1361
      %v1650 = vpack.c.bf16 %v1367, %v1363
      %v1651 = vpack.c.bf16 %v1478, %v1474
      %v1652 = vpack.c.bf16 %v1480, %v1476
      %v1653 = vpack.c.bf16 %v1591, %v1587
      %v1654 = vpack.c.bf16 %v1593, %v1589
      %v1655 = vpack.c.bf16 %v1375, %v1371
      %v1656 = vpack.c.bf16 %v1377, %v1373
      %v1657 = vpack.c.bf16 %v1488, %v1484
      %v1658 = vpack.c.bf16 %v1490, %v1486
      %v1659 = vpack.c.bf16 %v1601, %v1597
      %v1660 = vpack.c.bf16 %v1603, %v1599
      %v1661 = vpack.c.bf16 %v1385, %v1381
      %v1662 = vpack.c.bf16 %v1387, %v1383
      %v1663 = vpack.c.bf16 %v1498, %v1494
      %v1664 = vpack.c.bf16 %v1500, %v1496
      %v1665 = vpack.c.bf16 %v1611, %v1607
      %v1666 = vpack.c.bf16 %v1613, %v1609
      %v1667 = vpack.c.bf16 %v1395, %v1391
      %v1668 = vpack.c.bf16 %v1397, %v1393
      %v1669 = vpack.c.bf16 %v1508, %v1504
      %v1670 = vpack.c.bf16 %v1510, %v1506
      %v1671 = vpack.c.bf16 %v1621, %v1617
      %v1672 = vpack.c.bf16 %v1623, %v1619
      %v1721 = vunpack.c.l.b16 %v1625
      %v1722 = vunpack.c.l.b16 %v1626
      %v1723 = vunpack.c.l.b16 %v1627
      %v1724 = vunpack.c.l.b16 %v1628
      %v1725 = vunpack.c.l.b16 %v1629
      %v1726 = vunpack.c.l.b16 %v1630
      %v1727 = vunpack.c.h.b16 %v1625
      %v1728 = vunpack.c.h.b16 %v1626
      %v1729 = vunpack.c.h.b16 %v1627
      %v1730 = vunpack.c.h.b16 %v1628
      %v1731 = vunpack.c.h.b16 %v1629
      %v1732 = vunpack.c.h.b16 %v1630
      %v1733 = vunpack.c.l.b16 %v1631
      %v1734 = vunpack.c.l.b16 %v1632
      %v1735 = vunpack.c.l.b16 %v1633
      %v1736 = vunpack.c.l.b16 %v1634
      %v1737 = vunpack.c.l.b16 %v1635
      %v1738 = vunpack.c.l.b16 %v1636
      %v1739 = vunpack.c.h.b16 %v1631
      %v1740 = vunpack.c.h.b16 %v1632
      %v1741 = vunpack.c.h.b16 %v1633
      %v1742 = vunpack.c.h.b16 %v1634
      %v1743 = vunpack.c.h.b16 %v1635
      %v1744 = vunpack.c.h.b16 %v1636
      %v1745 = vunpack.c.l.b16 %v1637
      %v1746 = vunpack.c.l.b16 %v1638
      %v1747 = vunpack.c.l.b16 %v1639
      %v1748 = vunpack.c.l.b16 %v1640
      %v1749 = vunpack.c.l.b16 %v1641
      %v1750 = vunpack.c.l.b16 %v1642
      %v1751 = vunpack.c.h.b16 %v1637
      %v1752 = vunpack.c.h.b16 %v1638
      %v1753 = vunpack.c.h.b16 %v1639
      %v1754 = vunpack.c.h.b16 %v1640
      %v1755 = vunpack.c.h.b16 %v1641
      %v1756 = vunpack.c.h.b16 %v1642
      %v1757 = vunpack.c.l.b16 %v1643
      %v1758 = vunpack.c.l.b16 %v1644
      %v1759 = vunpack.c.l.b16 %v1645
      %v1760 = vunpack.c.l.b16 %v1646
      %v1761 = vunpack.c.l.b16 %v1647
      %v1762 = vunpack.c.l.b16 %v1648
      %v1763 = vunpack.c.h.b16 %v1643
      %v1764 = vunpack.c.h.b16 %v1644
      %v1765 = vunpack.c.h.b16 %v1645
      %v1766 = vunpack.c.h.b16 %v1646
      %v1767 = vunpack.c.h.b16 %v1647
      %v1768 = vunpack.c.h.b16 %v1648
      %v1769 = vunpack.c.l.b16 %v1649
      %v1770 = vunpack.c.l.b16 %v1650
      %v1771 = vunpack.c.l.b16 %v1651
      %v1772 = vunpack.c.l.b16 %v1652
      %v1773 = vunpack.c.l.b16 %v1653
      %v1774 = vunpack.c.l.b16 %v1654
      %v1775 = vunpack.c.h.b16 %v1649
      %v1776 = vunpack.c.h.b16 %v1650
      %v1777 = vunpack.c.h.b16 %v1651
      %v1778 = vunpack.c.h.b16 %v1652
      %v1779 = vunpack.c.h.b16 %v1653
      %v1780 = vunpack.c.h.b16 %v1654
      %v1781 = vunpack.c.l.b16 %v1655
      %v1782 = vunpack.c.l.b16 %v1656
      %v1783 = vunpack.c.l.b16 %v1657
      %v1784 = vunpack.c.l.b16 %v1658
      %v1785 = vunpack.c.l.b16 %v1659
      %v1786 = vunpack.c.l.b16 %v1660
      %v1787 = vunpack.c.h.b16 %v1655
      %v1788 = vunpack.c.h.b16 %v1656
      %v1789 = vunpack.c.h.b16 %v1657
      %v1790 = vunpack.c.h.b16 %v1658
      %v1791 = vunpack.c.h.b16 %v1659
      %v1792 = vunpack.c.h.b16 %v1660
      %v1793 = vunpack.c.l.b16 %v1661
      %v1794 = vunpack.c.l.b16 %v1662
      %v1795 = vunpack.c.l.b16 %v1663
      %v1796 = vunpack.c.l.b16 %v1664
      %v1797 = vunpack.c.l.b16 %v1665
      %v1798 = vunpack.c.l.b16 %v1666
      %v1799 = vunpack.c.h.b16 %v1661
      %v1800 = vunpack.c.h.b16 %v1662
      %v1801 = vunpack.c.h.b16 %v1663
      %v1802 = vunpack.c.h.b16 %v1664
      %v1803 = vunpack.c.h.b16 %v1665
      %v1804 = vunpack.c.h.b16 %v1666
      %v1805 = vunpack.c.l.b16 %v1667
      %v1806 = vunpack.c.l.b16 %v1668
      %v1807 = vunpack.c.l.b16 %v1669
      %v1808 = vunpack.c.l.b16 %v1670
      %v1809 = vunpack.c.l.b16 %v1671
      %v1810 = vunpack.c.l.b16 %v1672
      %v1811 = vunpack.c.h.b16 %v1667
      %v1812 = vunpack.c.h.b16 %v1668
      %v1813 = vunpack.c.h.b16 %v1669
      %v1814 = vunpack.c.h.b16 %v1670
      %v1815 = vunpack.c.h.b16 %v1671
      %v1816 = vunpack.c.h.b16 %v1672
      %v1817 = vpack.c.b16 %v1722, %v1721
      %v1818 = vpack.c.b16 %v1724, %v1723
      %v1819 = vpack.c.b16 %v1726, %v1725
      %v1820 = vpack.c.b16 %v1728, %v1727
      %v1821 = vpack.c.b16 %v1730, %v1729
      %v1822 = vpack.c.b16 %v1732, %v1731
      %v1823 = vpack.c.b16 %v1734, %v1733
      %v1824 = vpack.c.b16 %v1736, %v1735
      %v1825 = vpack.c.b16 %v1738, %v1737
      %v1826 = vpack.c.b16 %v1740, %v1739
      %v1827 = vpack.c.b16 %v1742, %v1741
      %v1828 = vpack.c.b16 %v1744, %v1743
      %v1829 = vpack.c.b16 %v1746, %v1745
      %v1830 = vpack.c.b16 %v1748, %v1747
      %v1831 = vpack.c.b16 %v1750, %v1749
      %v1832 = vpack.c.b16 %v1752, %v1751
      %v1833 = vpack.c.b16 %v1754, %v1753
      %v1834 = vpack.c.b16 %v1756, %v1755
      %v1835 = vpack.c.b16 %v1758, %v1757
      %v1836 = vpack.c.b16 %v1760, %v1759
      %v1837 = vpack.c.b16 %v1762, %v1761
      %v1838 = vpack.c.b16 %v1764, %v1763
      %v1839 = vpack.c.b16 %v1766, %v1765
      %v1840 = vpack.c.b16 %v1768, %v1767
      %v1841 = vpack.c.b16 %v1770, %v1769
      %v1842 = vpack.c.b16 %v1772, %v1771
      %v1843 = vpack.c.b16 %v1774, %v1773
      %v1844 = vpack.c.b16 %v1776, %v1775
      %v1845 = vpack.c.b16 %v1778, %v1777
      %v1846 = vpack.c.b16 %v1780, %v1779
      %v1847 = vpack.c.b16 %v1782, %v1781
      %v1848 = vpack.c.b16 %v1784, %v1783
      %v1849 = vpack.c.b16 %v1786, %v1785
      %v1850 = vpack.c.b16 %v1788, %v1787
      %v1851 = vpack.c.b16 %v1790, %v1789
      %v1852 = vpack.c.b16 %v1792, %v1791
      %v1853 = vpack.c.b16 %v1794, %v1793
      %v1854 = vpack.c.b16 %v1796, %v1795
      %v1855 = vpack.c.b16 %v1798, %v1797
      %v1856 = vpack.c.b16 %v1800, %v1799
      %v1857 = vpack.c.b16 %v1802, %v1801
      %v1858 = vpack.c.b16 %v1804, %v1803
      %v1859 = vpack.c.b16 %v1806, %v1805
      %v1860 = vpack.c.b16 %v1808, %v1807
      %v1861 = vpack.c.b16 %v1810, %v1809
      %v1862 = vpack.c.b16 %v1812, %v1811
      %v1863 = vpack.c.b16 %v1814, %v1813
      %v1864 = vpack.c.b16 %v1816, %v1815
      %1913 = vst [vmem:[%s267] sm:$0xff] %v1817
      %1914 = vst [vmem:[%s267 + $0x8] sm:$0xff] %v1818
      %1915 = vst [vmem:[%s267 + $0x10] sm:$0xff] %v1819
      %1916 = vst [vmem:[%s267 + $0x18] sm:$0xff] %v1820
      %1917 = vst [vmem:[%s267 + $0x20] sm:$0xff] %v1821
      %1918 = vst [vmem:[%s267 + $0x28] sm:$0xff] %v1822
      %1919 = vst [vmem:[%s267 + $0x30] sm:$0xff] %v1823
      %1920 = vst [vmem:[%s267 + $0x38] sm:$0xff] %v1824
      %1921 = vst [vmem:[%s267 + $0x40] sm:$0xff] %v1825
      %1922 = vst [vmem:[%s267 + $0x48] sm:$0xff] %v1826
      %1923 = vst [vmem:[%s267 + $0x50] sm:$0xff] %v1827
      %1924 = vst [vmem:[%s267 + $0x58] sm:$0xff] %v1828
      %1925 = vst [vmem:[%s267 + $0x60] sm:$0xff] %v1829
      %1926 = vst [vmem:[%s267 + $0x68] sm:$0xff] %v1830
      %1927 = vst [vmem:[%s267 + $0x70] sm:$0xff] %v1831
      %1928 = vst [vmem:[%s267 + $0x78] sm:$0xff] %v1832
      %1929 = vst [vmem:[%s267 + $0x80] sm:$0xff] %v1833
      %1930 = vst [vmem:[%s267 + $0x88] sm:$0xff] %v1834
      %1931 = vst [vmem:[%s267 + $0x90] sm:$0xff] %v1835
      %1932 = vst [vmem:[%s267 + $0x98] sm:$0xff] %v1836
      %1933 = vst [vmem:[%s267 + $0xa0] sm:$0xff] %v1837
      %1934 = vst [vmem:[%s267 + $0xa8] sm:$0xff] %v1838
      %1935 = vst [vmem:[%s267 + $0xb0] sm:$0xff] %v1839
      %1936 = vst [vmem:[%s267 + $0xb8] sm:$0xff] %v1840
      %1937 = vst [vmem:[%s267 + $0xc0] sm:$0xff] %v1841
      %1938 = vst [vmem:[%s267 + $0xc8] sm:$0xff] %v1842
      %1939 = vst [vmem:[%s267 + $0xd0] sm:$0xff] %v1843
      %1940 = vst [vmem:[%s267 + $0xd8] sm:$0xff] %v1844
      %1941 = vst [vmem:[%s267 + $0xe0] sm:$0xff] %v1845
      %1942 = vst [vmem:[%s267 + $0xe8] sm:$0xff] %v1846
      %1943 = vst [vmem:[%s267 + $0xf0] sm:$0xff] %v1847
      %1944 = vst [vmem:[%s267 + $0xf8] sm:$0xff] %v1848
      %1945 = vst [vmem:[%s267 + $0x100] sm:$0xff] %v1849
      %1946 = vst [vmem:[%s267 + $0x108] sm:$0xff] %v1850
      %1947 = vst [vmem:[%s267 + $0x110] sm:$0xff] %v1851
      %1948 = vst [vmem:[%s267 + $0x118] sm:$0xff] %v1852
      %1949 = vst [vmem:[%s267 + $0x120] sm:$0xff] %v1853
      %1950 = vst [vmem:[%s267 + $0x128] sm:$0xff] %v1854
      %1951 = vst [vmem:[%s267 + $0x130] sm:$0xff] %v1855
      %1952 = vst [vmem:[%s267 + $0x138] sm:$0xff] %v1856
      %1953 = vst [vmem:[%s267 + $0x140] sm:$0xff] %v1857
      %1954 = vst [vmem:[%s267 + $0x148] sm:$0xff] %v1858
      %1955 = vst [vmem:[%s267 + $0x150] sm:$0xff] %v1859
      %1956 = vst [vmem:[%s267 + $0x158] sm:$0xff] %v1860
      %1957 = vst [vmem:[%s267 + $0x160] sm:$0xff] %v1861
      %1958 = vst [vmem:[%s267 + $0x168] sm:$0xff] %v1862
      %1959 = vst [vmem:[%s267 + $0x170] sm:$0xff] %v1863
      %1960 = vst [vmem:[%s267 + $0x178] sm:$0xff] %v1864
      %s1961 = smul.u32 16, %s21
      %p1962 = scmp.lt.s32.totalorder %s20, 1
      %s1963 = scalar_select %p1962, %s20, 1
      %p1964 = scmp.lt.s32.totalorder %s1961, 15
      %s1965 = scalar_select %p1964, %s1961, 15
      %s1966 = smul.addr %s1965, 6
      %s1967 = smul.addr %s1963, 96
      %s1968 = sadd.s32 %s1966, %s1967
      %s1969 = smul.addr %s1968, 4
      %s1970 = scalar_lea.vmem %s5, %s1969
      // Predicated region
      $region41: #{gpt_forward.8} parent=39 // pred_check
        %p1971 = pneg %p160
      $region42: #{gpt_forward.8} parent=39 // pred_check_branch
        %1973 = sbr.rel (%p1971) target = $region44
      $region43: #{gpt_forward.8} parent=39 // pred_region
        %s1974 = smul.u32 16, %s21
      $region44: #{gpt_forward.8} parent=39 // pred_fallthru
        _
    $region40: #{gpt_forward.8} parent=5 // pred_fallthru
      _
    %p1975 = scmp.le.s32.totalorder 2, %s11
    // Predicated region
    $region45: #{gpt_forward.8} parent=5 // pred_check
      %p1976 = pneg %p1975
    $region46: #{gpt_forward.8} parent=5 // pred_check_branch
      %1978 = sbr.rel (%p1976) target = $region48
    $region47: #{gpt_forward.8} parent=5 // pred_region
      %s1979 = ssub.s32 %s11, 2
      // Predicated region
      $region49: #{gpt_forward.8} parent=47 // pred_check
        %p1980 = pneg %p166
      $region50: #{gpt_forward.8} parent=47 // pred_check_branch
        %1982 = sbr.rel (%p1980) target = $region52
      $region51: #{gpt_forward.8} parent=47 // pred_region
        %s1983 = smul.u32 16, %s23
        %p1984 = scmp.lt.s32.totalorder %s22, 1
        %s1985 = scalar_select %p1984, %s22, 1
        %p1986 = scmp.lt.s32.totalorder %s1983, 15
        %s1987 = scalar_select %p1986, %s1983, 15
        %s1988 = smul.addr %s1987, 6
        %s1989 = smul.addr %s1985, 96
        %s1990 = sadd.s32 %s1988, %s1989
        %s1991 = smul.addr %s1990, 4
        %s1992 = scalar_lea.vmem %s5, %s1991
      $region52: #{gpt_forward.8} parent=47 // pred_fallthru
        _
    $region48: #{gpt_forward.8} parent=5 // pred_fallthru
      _
  $region6: #{gpt_forward.8} parent=0 // loop_footer
    %s15 = sadd.s32 1, %s11
  $region7: #{gpt_forward.8} parent=0 // loop_footer_branch
    %10 = sbr.rel target = $region3
  $region8: #{gpt_forward.8} parent=0 // loop_exit
    _

// kernel: gpt_forward.10
$region0: #{gpt_forward.10}
  #allocation0 [shape = 'u32[]', space=smem, size = 0x4, offset = 0x4, fixed_abs, tag = 'smem constant byte address 0x4 - core index']
  #allocation1 [shape = 'u32[144,128]{1,0:T(1,128)}', space=vmem, size = 0x12000, scoped, tag = 'internal scratch']
  %s0 = inlined_call_operand.vmem [shape: bf16[2,128,256], index: 0, kind: input, shape index: {}]
  %s1 = inlined_call_operand.vmem [shape: bf16[2,128,256], index: 1, kind: input, shape index: {}]
  %s2 = inlined_call_operand.vmem [shape: bf16[256,256], index: 2, kind: input, shape index: {}]
  %s3 = inlined_call_operand.vmem [shape: f32[1,256], index: 3, kind: input, shape index: {}]
  %s4 = inlined_call_operand.vmem [shape: f32[1,256], index: 4, kind: input, shape index: {}]
  %s5 = inlined_call_operand.vmem [shape: f32[1,256], index: 5, kind: input, shape index: {}]
  %s6 = inlined_call_operand.vmem [shape: bf16[256,1024], index: 6, kind: input, shape index: {}]
  %s7 = inlined_call_operand.vmem [shape: f32[1,1024], index: 7, kind: input, shape index: {}]
  %s8 = inlined_call_operand.vmem [shape: bf16[1024,256], index: 8, kind: input, shape index: {}]
  %s9 = inlined_call_operand.vmem [shape: f32[1,256], index: 9, kind: input, shape index: {}]
  %s10 = inlined_call_operand.vmem [shape: bf16[2,128,256], index: 10, kind: output, shape index: {}]
  %s11 = sld [smem:[#allocation0]]
  $region73: #{gpt_forward.10} parent=0
    _
  %s13 = ssub.s32 1, %s11
  %s14 = scalar_select 0, %s13, %s11
  loop: start=0, step=1, limit=4
  $region2: #{gpt_forward.10} parent=0 // loop_pre_header
    _
  $region3: #{gpt_forward.10} parent=0 // loop_header
    %s16 = sphi 0, %s20
    %p17 = scmp.ge.s32.totalorder %s16, 4
    %s23 = sphi 0, %s35
    %s24 = sphi 0, %s31
    %s25 = sphi 0, %s23
    %s26 = sphi 0, %s24
    %s27 = sphi 0, %s25
    %s28 = sphi 0, %s26
    %s40 = sphi 0, %s42
    %s43 = sphi 0, %s40
    %s44 = sphi 0, %s43
    %s60 = sphi 0, %s44
    %s68 = sphi 0, %s70
    %s71 = sphi 0, %s68
    %s72 = sphi 0, %s71
    %s88 = sphi 0, %s72
    %s92 = sphi 0, %s92
    %s94 = sphi 0, %s92
    %s95 = sphi 0, %s94
    %s109 = sphi 0, %s95
    %s113 = sphi 0, %s113
    %s115 = sphi 0, %s113
    %s116 = sphi 0, %s115
    %s130 = sphi 0, %s116
    %s134 = sphi 0, %s134
    %s136 = sphi 0, %s134
    %s137 = sphi 0, %s136
    %s151 = sphi 0, %s137
    %s155 = sphi 0, %s155
    %s157 = sphi 0, %s155
    %s158 = sphi 0, %s157
    %s172 = sphi 0, %s158
    %s176 = sphi 0, %s176
    %s178 = sphi 0, %s176
    %s179 = sphi 0, %s178
    %s193 = sphi 0, %s179
    %s197 = sphi 0, %s197
    %s199 = sphi 0, %s197
    %s200 = sphi 0, %s199
    %s214 = sphi 0, %s200
    %s218 = sphi 0, %s218
    %s220 = sphi 0, %s218
    %s221 = sphi 0, %s220
    %s235 = sphi 0, %s221
    %s239 = sphi 0, %s239
    %s241 = sphi 0, %s239
    %s242 = sphi 0, %s241
    %s256 = sphi 0, %s242
    %s264 = sphi 0, %s266
    %s267 = sphi 0, %s264
    %s268 = sphi 0, %s267
    %s284 = sphi 0, %s268
  $region4: #{gpt_forward.10} parent=0 // loop_header_branch
    %19 = sbr.rel (%p17) target = $region8
  $region5: #{gpt_forward.10} parent=0 // loop_body
    %s21 = ssub.s32 %s16, 1
    %s22 = ssub.s32 %s16, 2
    %s29 = sadd.s32 1, %s24
    %p30 = scmp.ge.s32.totalorder %s29, 1
    %s31 = scalar_select %p30, 0, %s29
    %s32 = sadd.s32 1, %s23
    %s33 = scalar_select %p30, %s32, %s23
    %p34 = scmp.ge.s32.totalorder %s33, 2
    %s35 = scalar_select %p34, 0, %s33
    %s36 = ssub.s32 %s23, %s35
    %s37 = ssub.s32 %s24, %s31
    %s38 = sor.u32 %s36, %s37
    %p39 = scmp.eq.s32.totalorder %s38, 0
    %s41 = sadd.s32 %s40, 1
    %s42 = scalar_select %p39, %s40, %s41
    %p45 = pneg %p39
    %p46 = scmp.eq.s32.totalorder %s16, 1
    %p47 = por %p45, %p46
    %p48 = scmp.ne.s32.totalorder %s40, %s43
    %p49 = scmp.eq.s32.totalorder %s16, 0
    %p50 = por %p48, %p49
    %p51 = scmp.ne.s32.totalorder %s40, %s43
    %p52 = scmp.eq.s32.totalorder %s21, 1
    %p53 = por %p51, %p52
    %p54 = scmp.ne.s32.totalorder %s43, %s44
    %p55 = scmp.eq.s32.totalorder %s21, 0
    %p56 = por %p54, %p55
    %p57 = scmp.ne.s32.totalorder %s43, %s44
    %p58 = scmp.eq.s32.totalorder %s22, 1
    %p59 = por %p57, %p58
    %p61 = scmp.ne.s32.totalorder %s44, %s60
    %p62 = scmp.eq.s32.totalorder %s22, 0
    %p63 = por %p61, %p62
    %s64 = ssub.s32 %s23, %s35
    %s65 = ssub.s32 %s24, %s31
    %s66 = sor.u32 %s64, %s65
    %p67 = scmp.eq.s32.totalorder %s66, 0
    %s69 = sadd.s32 %s68, 1
    %s70 = scalar_select %p67, %s68, %s69
    %p73 = pneg %p67
    %p74 = scmp.eq.s32.totalorder %s16, 1
    %p75 = por %p73, %p74
    %p76 = scmp.ne.s32.totalorder %s68, %s71
    %p77 = scmp.eq.s32.totalorder %s16, 0
    %p78 = por %p76, %p77
    %p79 = scmp.ne.s32.totalorder %s68, %s71
    %p80 = scmp.eq.s32.totalorder %s21, 1
    %p81 = por %p79, %p80
    %p82 = scmp.ne.s32.totalorder %s71, %s72
    %p83 = scmp.eq.s32.totalorder %s21, 0
    %p84 = por %p82, %p83
    %p85 = scmp.ne.s32.totalorder %s71, %s72
    %p86 = scmp.eq.s32.totalorder %s22, 1
    %p87 = por %p85, %p86
    %p89 = scmp.ne.s32.totalorder %s72, %s88
    %p90 = scmp.eq.s32.totalorder %s22, 0
    %p91 = por %p89, %p90
    %s93 = sadd.s32 %s92, 1
    %p96 = scmp.eq.s32.totalorder %s16, 1
    %p97 = scmp.ne.s32.totalorder %s92, %s94
    %p98 = scmp.eq.s32.totalorder %s16, 0
    %p99 = por %p97, %p98
    %p100 = scmp.ne.s32.totalorder %s92, %s94
    %p101 = scmp.eq.s32.totalorder %s21, 1
    %p102 = por %p100, %p101
    %p103 = scmp.ne.s32.totalorder %s94, %s95
    %p104 = scmp.eq.s32.totalorder %s21, 0
    %p105 = por %p103, %p104
    %p106 = scmp.ne.s32.totalorder %s94, %s95
    %p107 = scmp.eq.s32.totalorder %s22, 1
    %p108 = por %p106, %p107
    %p110 = scmp.ne.s32.totalorder %s95, %s109
    %p111 = scmp.eq.s32.totalorder %s22, 0
    %p112 = por %p110, %p111
    %s114 = sadd.s32 %s113, 1
    %p117 = scmp.eq.s32.totalorder %s16, 1
    %p118 = scmp.ne.s32.totalorder %s113, %s115
    %p119 = scmp.eq.s32.totalorder %s16, 0
    %p120 = por %p118, %p119
    %p121 = scmp.ne.s32.totalorder %s113, %s115
    %p122 = scmp.eq.s32.totalorder %s21, 1
    %p123 = por %p121, %p122
    %p124 = scmp.ne.s32.totalorder %s115, %s116
    %p125 = scmp.eq.s32.totalorder %s21, 0
    %p126 = por %p124, %p125
    %p127 = scmp.ne.s32.totalorder %s115, %s116
    %p128 = scmp.eq.s32.totalorder %s22, 1
    %p129 = por %p127, %p128
    %p131 = scmp.ne.s32.totalorder %s116, %s130
    %p132 = scmp.eq.s32.totalorder %s22, 0
    %p133 = por %p131, %p132
    %s135 = sadd.s32 %s134, 1
    %p138 = scmp.eq.s32.totalorder %s16, 1
    %p139 = scmp.ne.s32.totalorder %s134, %s136
    %p140 = scmp.eq.s32.totalorder %s16, 0
    %p141 = por %p139, %p140
    %p142 = scmp.ne.s32.totalorder %s134, %s136
    %p143 = scmp.eq.s32.totalorder %s21, 1
    %p144 = por %p142, %p143
    %p145 = scmp.ne.s32.totalorder %s136, %s137
    %p146 = scmp.eq.s32.totalorder %s21, 0
    %p147 = por %p145, %p146
    %p148 = scmp.ne.s32.totalorder %s136, %s137
    %p149 = scmp.eq.s32.totalorder %s22, 1
    %p150 = por %p148, %p149
    %p152 = scmp.ne.s32.totalorder %s137, %s151
    %p153 = scmp.eq.s32.totalorder %s22, 0
    %p154 = por %p152, %p153
    %s156 = sadd.s32 %s155, 1
    %p159 = scmp.eq.s32.totalorder %s16, 1
    %p160 = scmp.ne.s32.totalorder %s155, %s157
    %p161 = scmp.eq.s32.totalorder %s16, 0
    %p162 = por %p160, %p161
    %p163 = scmp.ne.s32.totalorder %s155, %s157
    %p164 = scmp.eq.s32.totalorder %s21, 1
    %p165 = por %p163, %p164
    %p166 = scmp.ne.s32.totalorder %s157, %s158
    %p167 = scmp.eq.s32.totalorder %s21, 0
    %p168 = por %p166, %p167
    %p169 = scmp.ne.s32.totalorder %s157, %s158
    %p170 = scmp.eq.s32.totalorder %s22, 1
    %p171 = por %p169, %p170
    %p173 = scmp.ne.s32.totalorder %s158, %s172
    %p174 = scmp.eq.s32.totalorder %s22, 0
    %p175 = por %p173, %p174
    %s177 = sadd.s32 %s176, 1
    %p180 = scmp.eq.s32.totalorder %s16, 1
    %p181 = scmp.ne.s32.totalorder %s176, %s178
    %p182 = scmp.eq.s32.totalorder %s16, 0
    %p183 = por %p181, %p182
    %p184 = scmp.ne.s32.totalorder %s176, %s178
    %p185 = scmp.eq.s32.totalorder %s21, 1
    %p186 = por %p184, %p185
    %p187 = scmp.ne.s32.totalorder %s178, %s179
    %p188 = scmp.eq.s32.totalorder %s21, 0
    %p189 = por %p187, %p188
    %p190 = scmp.ne.s32.totalorder %s178, %s179
    %p191 = scmp.eq.s32.totalorder %s22, 1
    %p192 = por %p190, %p191
    %p194 = scmp.ne.s32.totalorder %s179, %s193
    %p195 = scmp.eq.s32.totalorder %s22, 0
    %p196 = por %p194, %p195
    %s198 = sadd.s32 %s197, 1
    %p201 = scmp.eq.s32.totalorder %s16, 1
    %p202 = scmp.ne.s32.totalorder %s197, %s199
    %p203 = scmp.eq.s32.totalorder %s16, 0
    %p204 = por %p202, %p203
    %p205 = scmp.ne.s32.totalorder %s197, %s199
    %p206 = scmp.eq.s32.totalorder %s21, 1
    %p207 = por %p205, %p206
    %p208 = scmp.ne.s32.totalorder %s199, %s200
    %p209 = scmp.eq.s32.totalorder %s21, 0
    %p210 = por %p208, %p209
    %p211 = scmp.ne.s32.totalorder %s199, %s200
    %p212 = scmp.eq.s32.totalorder %s22, 1
    %p213 = por %p211, %p212
    %p215 = scmp.ne.s32.totalorder %s200, %s214
    %p216 = scmp.eq.s32.totalorder %s22, 0
    %p217 = por %p215, %p216
    %s219 = sadd.s32 %s218, 1
    %p222 = scmp.eq.s32.totalorder %s16, 1
    %p223 = scmp.ne.s32.totalorder %s218, %s220
    %p224 = scmp.eq.s32.totalorder %s16, 0
    %p225 = por %p223, %p224
    %p226 = scmp.ne.s32.totalorder %s218, %s220
    %p227 = scmp.eq.s32.totalorder %s21, 1
    %p228 = por %p226, %p227
    %p229 = scmp.ne.s32.totalorder %s220, %s221
    %p230 = scmp.eq.s32.totalorder %s21, 0
    %p231 = por %p229, %p230
    %p232 = scmp.ne.s32.totalorder %s220, %s221
    %p233 = scmp.eq.s32.totalorder %s22, 1
    %p234 = por %p232, %p233
    %p236 = scmp.ne.s32.totalorder %s221, %s235
    %p237 = scmp.eq.s32.totalorder %s22, 0
    %p238 = por %p236, %p237
    %s240 = sadd.s32 %s239, 1
    %p243 = scmp.eq.s32.totalorder %s16, 1
    %p244 = scmp.ne.s32.totalorder %s239, %s241
    %p245 = scmp.eq.s32.totalorder %s16, 0
    %p246 = por %p244, %p245
    %p247 = scmp.ne.s32.totalorder %s239, %s241
    %p248 = scmp.eq.s32.totalorder %s21, 1
    %p249 = por %p247, %p248
    %p250 = scmp.ne.s32.totalorder %s241, %s242
    %p251 = scmp.eq.s32.totalorder %s21, 0
    %p252 = por %p250, %p251
    %p253 = scmp.ne.s32.totalorder %s241, %s242
    %p254 = scmp.eq.s32.totalorder %s22, 1
    %p255 = por %p253, %p254
    %p257 = scmp.ne.s32.totalorder %s242, %s256
    %p258 = scmp.eq.s32.totalorder %s22, 0
    %p259 = por %p257, %p258
    %s260 = ssub.s32 %s23, %s35
    %s261 = ssub.s32 %s24, %s31
    %s262 = sor.u32 %s260, %s261
    %p263 = scmp.eq.s32.totalorder %s262, 0
    %s265 = sadd.s32 %s264, 1
    %s266 = scalar_select %p263, %s264, %s265
    %p269 = pneg %p263
    %p270 = scmp.eq.s32.totalorder %s16, 1
    %p271 = por %p269, %p270
    %p272 = scmp.ne.s32.totalorder %s264, %s267
    %p273 = scmp.eq.s32.totalorder %s16, 0
    %p274 = por %p272, %p273
    %p275 = scmp.ne.s32.totalorder %s264, %s267
    %p276 = scmp.eq.s32.totalorder %s21, 1
    %p277 = por %p275, %p276
    %p278 = scmp.ne.s32.totalorder %s267, %s268
    %p279 = scmp.eq.s32.totalorder %s21, 0
    %p280 = por %p278, %p279
    %p281 = scmp.ne.s32.totalorder %s267, %s268
    %p282 = scmp.eq.s32.totalorder %s22, 1
    %p283 = por %p281, %p282
    %p285 = scmp.ne.s32.totalorder %s268, %s284
    %p286 = scmp.eq.s32.totalorder %s22, 0
    %p287 = por %p285, %p286
    %p288 = scmp.le.s32.totalorder 1, %s16
    %p289 = scmp.lt.s32.totalorder %s16, 3
    %p290 = pnand %p288, %p289
    %p291 = pneg %p290
    // Predicated region
    $region9: #{gpt_forward.10} parent=5 // pred_check
      _
    $region10: #{gpt_forward.10} parent=5 // pred_check_branch
      %293 = sbr.rel (%p290) target = $region12
    $region11: #{gpt_forward.10} parent=5 // pred_region
      %s294 = ssub.s32 %s16, 1
      // Predicated region
      $region13: #{gpt_forward.10} parent=11 // pred_check
        %p295 = pneg %p105
      $region14: #{gpt_forward.10} parent=11 // pred_check_branch
        %297 = sbr.rel (%p295) target = $region16
      $region15: #{gpt_forward.10} parent=11 // pred_region
        _
      $region16: #{gpt_forward.10} parent=11 // pred_fallthru
        _
      // Predicated region
      $region17: #{gpt_forward.10} parent=11 // pred_check
        %p298 = pneg %p126
      $region18: #{gpt_forward.10} parent=11 // pred_check_branch
        %300 = sbr.rel (%p298) target = $region20
      $region19: #{gpt_forward.10} parent=11 // pred_region
        _
      $region20: #{gpt_forward.10} parent=11 // pred_fallthru
        _
      // Predicated region
      $region21: #{gpt_forward.10} parent=11 // pred_check
        %p301 = pneg %p147
      $region22: #{gpt_forward.10} parent=11 // pred_check_branch
        %303 = sbr.rel (%p301) target = $region24
      $region23: #{gpt_forward.10} parent=11 // pred_region
        _
      $region24: #{gpt_forward.10} parent=11 // pred_fallthru
        _
      // Predicated region
      $region25: #{gpt_forward.10} parent=11 // pred_check
        %p304 = pneg %p168
      $region26: #{gpt_forward.10} parent=11 // pred_check_branch
        %306 = sbr.rel (%p304) target = $region28
      $region27: #{gpt_forward.10} parent=11 // pred_region
        _
      $region28: #{gpt_forward.10} parent=11 // pred_fallthru
        _
      // Predicated region
      $region29: #{gpt_forward.10} parent=11 // pred_check
        %p307 = pneg %p189
      $region30: #{gpt_forward.10} parent=11 // pred_check_branch
        %309 = sbr.rel (%p307) target = $region32
      $region31: #{gpt_forward.10} parent=11 // pred_region
        _
      $region32: #{gpt_forward.10} parent=11 // pred_fallthru
        _
      // Predicated region
      $region33: #{gpt_forward.10} parent=11 // pred_check
        %p310 = pneg %p210
      $region34: #{gpt_forward.10} parent=11 // pred_check_branch
        %312 = sbr.rel (%p310) target = $region36
      $region35: #{gpt_forward.10} parent=11 // pred_region
        _
      $region36: #{gpt_forward.10} parent=11 // pred_fallthru
        _
      // Predicated region
      $region37: #{gpt_forward.10} parent=11 // pred_check
        %p313 = pneg %p231
      $region38: #{gpt_forward.10} parent=11 // pred_check_branch
        %315 = sbr.rel (%p313) target = $region40
      $region39: #{gpt_forward.10} parent=11 // pred_region
        _
      $region40: #{gpt_forward.10} parent=11 // pred_fallthru
        _
      // Predicated region
      $region41: #{gpt_forward.10} parent=11 // pred_check
        %p316 = pneg %p252
      $region42: #{gpt_forward.10} parent=11 // pred_check_branch
        %318 = sbr.rel (%p316) target = $region44
      $region43: #{gpt_forward.10} parent=11 // pred_region
        _
      $region44: #{gpt_forward.10} parent=11 // pred_fallthru
        _
    $region12: #{gpt_forward.10} parent=5 // pred_fallthru
      _
    %p319 = scmp.lt.s32.totalorder %s16, 2
    // Predicated region
    $region45: #{gpt_forward.10} parent=5 // pred_check
      %p320 = pneg %p319
    $region46: #{gpt_forward.10} parent=5 // pred_check_branch
      %322 = sbr.rel (%p320) target = $region48
    $region47: #{gpt_forward.10} parent=5 // pred_region
      // Predicated region
      $region49: #{gpt_forward.10} parent=47 // pred_check
        %p323 = pneg %p50
      $region50: #{gpt_forward.10} parent=47 // pred_check_branch
        %325 = sbr.rel (%p323) target = $region52
      $region51: #{gpt_forward.10} parent=47 // pred_region
        %s326 = smul.u32 16, %s24
        %p327 = scmp.lt.s32.totalorder %s23, 1
        %s328 = scalar_select %p327, %s23, 1
        %p329 = scmp.lt.s32.totalorder %s326, 15
        %s330 = scalar_select %p329, %s326, 15
        %s331 = smul.addr %s330, 2
        %s332 = smul.addr %s328, 32
        %s333 = sadd.s32 %s331, %s332
        %s334 = smul.addr %s333, 4
        %s335 = scalar_lea.vmem %s0, %s334
        %s336 = smul.u32 16, %s24
      $region52: #{gpt_forward.10} parent=47 // pred_fallthru
        _
      // Predicated region
      $region53: #{gpt_forward.10} parent=47 // pred_check
        %p337 = pneg %p78
      $region54: #{gpt_forward.10} parent=47 // pred_check_branch
        %339 = sbr.rel (%p337) target = $region56
      $region55: #{gpt_forward.10} parent=47 // pred_region
        %s340 = smul.u32 16, %s24
        %p341 = scmp.lt.s32.totalorder %s23, 1
        %s342 = scalar_select %p341, %s23, 1
        %p343 = scmp.lt.s32.totalorder %s340, 15
        %s344 = scalar_select %p343, %s340, 15
        %s345 = smul.addr %s344, 2
        %s346 = smul.addr %s342, 32
        %s347 = sadd.s32 %s345, %s346
        %s348 = smul.addr %s347, 4
        %s349 = scalar_lea.vmem %s1, %s348
        %s350 = smul.u32 16, %s24
      $region56: #{gpt_forward.10} parent=47 // pred_fallthru
        _
    $region48: #{gpt_forward.10} parent=5 // pred_fallthru
      _
    %p351 = scmp.le.s32.totalorder 1, %s16
    %p352 = scmp.lt.s32.totalorder %s16, 3
    %p353 = pnand %p351, %p352
    %p354 = pneg %p353
    // Predicated region
    $region57: #{gpt_forward.10} parent=5 // pred_check
      _
    $region58: #{gpt_forward.10} parent=5 // pred_check_branch
      %356 = sbr.rel (%p353) target = $region60
    $region59: #{gpt_forward.10} parent=5 // pred_region
      %s357 = ssub.s32 %s16, 1
      %s358 = smul.u32 16, %s26
      %p359 = scmp.lt.s32.totalorder %s25, 1
      %s360 = scalar_select %p359, %s25, 1
      %p361 = scmp.lt.s32.totalorder %s358, 15
      %s362 = scalar_select %p361, %s358, 15
      %s363 = smul.addr %s362, 2
      %s364 = smul.addr %s360, 32
      %s365 = sadd.s32 %s363, %s364
      %s366 = smul.addr %s365, 4
      %s367 = scalar_lea.vmem %s0, %s366
      %p368 = pneg %p56
      %p369 = pneg %p53
      %s370 = smul.u32 16, %s26
      %p371 = scmp.lt.s32.totalorder %s25, 1
      %s372 = scalar_select %p371, %s25, 1
      %p373 = scmp.lt.s32.totalorder %s370, 15
      %s374 = scalar_select %p373, %s370, 15
      %s375 = smul.addr %s374, 2
      %s376 = smul.addr %s372, 32
      %s377 = sadd.s32 %s375, %s376
      %s378 = smul.addr %s377, 4
      %s379 = scalar_lea.vmem %s1, %s378
      %p380 = pneg %p84
      %p381 = pneg %p81
      %p382 = pneg %p105
      %p383 = pneg %p102
      %p384 = pneg %p126
      %p385 = pneg %p123
      %p386 = pneg %p147
      %p387 = pneg %p144
      %p388 = pneg %p168
      %p389 = pneg %p165
      %p390 = pneg %p189
      %p391 = pneg %p186
      %p392 = pneg %p210
      %p393 = pneg %p207
      %p394 = pneg %p231
      %p395 = pneg %p228
      %p396 = pneg %p252
      %p397 = pneg %p249
      %p398 = pneg %p280
      %p399 = pneg %p277
      %s400 = smul.u32 16, %s26
      %p401 = scmp.lt.s32.totalorder %s25, 1
      %s402 = scalar_select %p401, %s25, 1
      %p403 = scmp.lt.s32.totalorder %s400, 15
      %s404 = scalar_select %p403, %s400, 15
      %s405 = smul.addr %s404, 2
      %s406 = smul.addr %s402, 32
      %s407 = sadd.s32 %s405, %s406
      %s408 = smul.addr %s407, 4
      %s409 = scalar_lea.vmem %s10, %s408
      %s410 = smul.u32 16, %s26
      %p411 = scmp.lt.s32.totalorder %s25, 1
      %s412 = scalar_select %p411, %s25, 1
      %p413 = scmp.lt.s32.totalorder %s410, 15
      %s414 = scalar_select %p413, %s410, 15
      %s415 = smul.addr %s414, 2
      %s416 = smul.addr %s412, 32
      %s417 = sadd.s32 %s415, %s416
      %s418 = smul.addr %s417, 4
      %s419 = scalar_lea.vmem %s0, %s418
      %s420 = smul.u32 16, %s26
      %s421 = smul.u32 16, %s26
      %p422 = scmp.lt.s32.totalorder %s25, 1
      %s423 = scalar_select %p422, %s25, 1
      %p424 = scmp.lt.s32.totalorder %s421, 15
      %s425 = scalar_select %p424, %s421, 15
      %s426 = smul.addr %s425, 2
      %s427 = smul.addr %s423, 32
      %s428 = sadd.s32 %s426, %s427
      %s429 = smul.addr %s428, 4
      %s430 = scalar_lea.vmem %s1, %s429
      %s431 = smul.u32 16, %s26
      %s432 = smul.u32 16, %s26
      %p433 = scmp.lt.s32.totalorder %s25, 1
      %s434 = scalar_select %p433, %s25, 1
      %p435 = scmp.lt.s32.totalorder %s432, 15
      %s436 = scalar_select %p435, %s432, 15
      %s437 = smul.addr %s436, 2
      %s438 = smul.addr %s434, 32
      %s439 = sadd.s32 %s437, %s438
      %s440 = smul.addr %s439, 4
      %s441 = scalar_lea.vmem %s10, %s440
      %s442 = smul.u32 16, %s26
      %v443 = vld [vmem:[%s419] sm:$0xff]
      %v444 = vld [vmem:[%s419 + $0x8] sm:$0xff]
      %v445 = vld [vmem:[%s419 + $0x10] sm:$0xff]
      %v446 = vld [vmem:[%s419 + $0x18] sm:$0xff]
      %v447 = vld [vmem:[%s419 + $0x20] sm:$0xff]
      %v448 = vld [vmem:[%s419 + $0x28] sm:$0xff]
      %v449 = vld [vmem:[%s419 + $0x30] sm:$0xff]
      %v450 = vld [vmem:[%s419 + $0x38] sm:$0xff]
      %v451 = vld [vmem:[%s419 + $0x40] sm:$0xff]
      %v452 = vld [vmem:[%s419 + $0x48] sm:$0xff]
      %v453 = vld [vmem:[%s419 + $0x50] sm:$0xff]
      %v454 = vld [vmem:[%s419 + $0x58] sm:$0xff]
      %v455 = vld [vmem:[%s419 + $0x60] sm:$0xff]
      %v456 = vld [vmem:[%s419 + $0x68] sm:$0xff]
      %v457 = vld [vmem:[%s419 + $0x70] sm:$0xff]
      %v458 = vld [vmem:[%s419 + $0x78] sm:$0xff]
      %v459 = vunpack.c.l.bf16 %v443
      %v460 = vunpack.c.h.bf16 %v443
      %v461 = vunpack.c.l.bf16 %v444
      %v462 = vunpack.c.h.bf16 %v444
      %v463 = vunpack.c.l.bf16 %v445
      %v464 = vunpack.c.h.bf16 %v445
      %v465 = vunpack.c.l.bf16 %v446
      %v466 = vunpack.c.h.bf16 %v446
      %v467 = vunpack.c.l.bf16 %v447
      %v468 = vunpack.c.h.bf16 %v447
      %v469 = vunpack.c.l.bf16 %v448
      %v470 = vunpack.c.h.bf16 %v448
      %v471 = vunpack.c.l.bf16 %v449
      %v472 = vunpack.c.h.bf16 %v449
      %v473 = vunpack.c.l.bf16 %v450
      %v474 = vunpack.c.h.bf16 %v450
      %v475 = vunpack.c.l.bf16 %v451
      %v476 = vunpack.c.h.bf16 %v451
      %v477 = vunpack.c.l.bf16 %v452
      %v478 = vunpack.c.h.bf16 %v452
      %v479 = vunpack.c.l.bf16 %v453
      %v480 = vunpack.c.h.bf16 %v453
      %v481 = vunpack.c.l.bf16 %v454
      %v482 = vunpack.c.h.bf16 %v454
      %v483 = vunpack.c.l.bf16 %v455
      %v484 = vunpack.c.h.bf16 %v455
      %v485 = vunpack.c.l.bf16 %v456
      %v486 = vunpack.c.h.bf16 %v456
      %v487 = vunpack.c.l.bf16 %v457
      %v488 = vunpack.c.h.bf16 %v457
      %v489 = vunpack.c.l.bf16 %v458
      %v490 = vunpack.c.h.bf16 %v458
      %v491 = vld [vmem:[%s430] sm:$0xff]
      %v492 = vld [vmem:[%s430 + $0x8] sm:$0xff]
      %v493 = vld [vmem:[%s430 + $0x10] sm:$0xff]
      %v494 = vld [vmem:[%s430 + $0x18] sm:$0xff]
      %v495 = vld [vmem:[%s430 + $0x20] sm:$0xff]
      %v496 = vld [vmem:[%s430 + $0x28] sm:$0xff]
      %v497 = vld [vmem:[%s430 + $0x30] sm:$0xff]
      %v498 = vld [vmem:[%s430 + $0x38] sm:$0xff]
      %v499 = vld [vmem:[%s430 + $0x40] sm:$0xff]
      %v500 = vld [vmem:[%s430 + $0x48] sm:$0xff]
      %v501 = vld [vmem:[%s430 + $0x50] sm:$0xff]
      %v502 = vld [vmem:[%s430 + $0x58] sm:$0xff]
      %v503 = vld [vmem:[%s430 + $0x60] sm:$0xff]
      %v504 = vld [vmem:[%s430 + $0x68] sm:$0xff]
      %v505 = vld [vmem:[%s430 + $0x70] sm:$0xff]
      %v506 = vld [vmem:[%s430 + $0x78] sm:$0xff]
      %v507 = vld [vmem:[%s2] sm:$0xff]
      %v508 = vld [vmem:[%s2 + $0x8] sm:$0xff]
      %v509 = vld [vmem:[%s2 + $0x10] sm:$0xff]
      %v510 = vld [vmem:[%s2 + $0x18] sm:$0xff]
      %v511 = vld [vmem:[%s2 + $0x20] sm:$0xff]
      %v512 = vld [vmem:[%s2 + $0x28] sm:$0xff]
      %v513 = vld [vmem:[%s2 + $0x30] sm:$0xff]
      %v514 = vld [vmem:[%s2 + $0x38] sm:$0xff]
      %v515 = vld [vmem:[%s2 + $0x40] sm:$0xff]
      %v516 = vld [vmem:[%s2 + $0x48] sm:$0xff]
      %v517 = vld [vmem:[%s2 + $0x50] sm:$0xff]
      %v518 = vld [vmem:[%s2 + $0x58] sm:$0xff]
      %v519 = vld [vmem:[%s2 + $0x60] sm:$0xff]
      %v520 = vld [vmem:[%s2 + $0x68] sm:$0xff]
      %v521 = vld [vmem:[%s2 + $0x70] sm:$0xff]
      %v522 = vld [vmem:[%s2 + $0x78] sm:$0xff]
      %v523 = vld [vmem:[%s2 + $0x80] sm:$0xff]
      %v524 = vld [vmem:[%s2 + $0x88] sm:$0xff]
      %v525 = vld [vmem:[%s2 + $0x90] sm:$0xff]
      %v526 = vld [vmem:[%s2 + $0x98] sm:$0xff]
      %v527 = vld [vmem:[%s2 + $0xa0] sm:$0xff]
      %v528 = vld [vmem:[%s2 + $0xa8] sm:$0xff]
      %v529 = vld [vmem:[%s2 + $0xb0] sm:$0xff]
      %v530 = vld [vmem:[%s2 + $0xb8] sm:$0xff]
      %v531 = vld [vmem:[%s2 + $0xc0] sm:$0xff]
      %v532 = vld [vmem:[%s2 + $0xc8] sm:$0xff]
      %v533 = vld [vmem:[%s2 + $0xd0] sm:$0xff]
      %v534 = vld [vmem:[%s2 + $0xd8] sm:$0xff]
      %v535 = vld [vmem:[%s2 + $0xe0] sm:$0xff]
      %v536 = vld [vmem:[%s2 + $0xe8] sm:$0xff]
      %v537 = vld [vmem:[%s2 + $0xf0] sm:$0xff]
      %v538 = vld [vmem:[%s2 + $0xf8] sm:$0xff]
      %v555 = vunpack.c.l.b16 %v491
      %v556 = vunpack.c.h.b16 %v491
      %v557 = vunpack.c.l.b16 %v492
      %v558 = vunpack.c.h.b16 %v492
      %v559 = vunpack.c.l.b16 %v493
      %v560 = vunpack.c.h.b16 %v493
      %v561 = vunpack.c.l.b16 %v494
      %v562 = vunpack.c.h.b16 %v494
      %v563 = vunpack.c.l.b16 %v495
      %v564 = vunpack.c.h.b16 %v495
      %v565 = vunpack.c.l.b16 %v496
      %v566 = vunpack.c.h.b16 %v496
      %v567 = vunpack.c.l.b16 %v497
      %v568 = vunpack.c.h.b16 %v497
      %v569 = vunpack.c.l.b16 %v498
      %v570 = vunpack.c.h.b16 %v498
      %v571 = vunpack.c.l.b16 %v499
      %v572 = vunpack.c.h.b16 %v499
      %v573 = vunpack.c.l.b16 %v500
      %v574 = vunpack.c.h.b16 %v500
      %v575 = vunpack.c.l.b16 %v501
      %v576 = vunpack.c.h.b16 %v501
      %v577 = vunpack.c.l.b16 %v502
      %v578 = vunpack.c.h.b16 %v502
      %v579 = vunpack.c.l.b16 %v503
      %v580 = vunpack.c.h.b16 %v503
      %v581 = vunpack.c.l.b16 %v504
      %v582 = vunpack.c.h.b16 %v504
      %v583 = vunpack.c.l.b16 %v505
      %v584 = vunpack.c.h.b16 %v505
      %v585 = vunpack.c.l.b16 %v506
      %v586 = vunpack.c.h.b16 %v506
      %v587 = vpack.c.b16 %v557, %v555
      %v588 = vpack.c.b16 %v558, %v556
      %v589 = vpack.c.b16 %v561, %v559
      %v590 = vpack.c.b16 %v562, %v560
      %v591 = vpack.c.b16 %v565, %v563
      %v592 = vpack.c.b16 %v566, %v564
      %v593 = vpack.c.b16 %v569, %v567
      %v594 = vpack.c.b16 %v570, %v568
      %v595 = vpack.c.b16 %v573, %v571
      %v596 = vpack.c.b16 %v574, %v572
      %v597 = vpack.c.b16 %v577, %v575
      %v598 = vpack.c.b16 %v578, %v576
      %v599 = vpack.c.b16 %v581, %v579
      %v600 = vpack.c.b16 %v582, %v580
      %v601 = vpack.c.b16 %v585, %v583
      %v602 = vpack.c.b16 %v586, %v584
      %v651 = vunpack.c.l.b16 %v507
      %v652 = vunpack.c.h.b16 %v507
      %v653 = vunpack.c.l.b16 %v508
      %v654 = vunpack.c.h.b16 %v508
      %v655 = vunpack.c.l.b16 %v509
      %v656 = vunpack.c.h.b16 %v509
      %v657 = vunpack.c.l.b16 %v510
      %v658 = vunpack.c.h.b16 %v510
      %v659 = vunpack.c.l.b16 %v511
      %v660 = vunpack.c.h.b16 %v511
      %v661 = vunpack.c.l.b16 %v512
      %v662 = vunpack.c.h.b16 %v512
      %v663 = vunpack.c.l.b16 %v513
      %v664 = vunpack.c.h.b16 %v513
      %v665 = vunpack.c.l.b16 %v514
      %v666 = vunpack.c.h.b16 %v514
      %v667 = vunpack.c.l.b16 %v515
      %v668 = vunpack.c.h.b16 %v515
      %v669 = vunpack.c.l.b16 %v516
      %v670 = vunpack.c.h.b16 %v516
      %v671 = vunpack.c.l.b16 %v517
      %v672 = vunpack.c.h.b16 %v517
      %v673 = vunpack.c.l.b16 %v518
      %v674 = vunpack.c.h.b16 %v518
      %v675 = vunpack.c.l.b16 %v519
      %v676 = vunpack.c.h.b16 %v519
      %v677 = vunpack.c.l.b16 %v520
      %v678 = vunpack.c.h.b16 %v520
      %v679 = vunpack.c.l.b16 %v521
      %v680 = vunpack.c.h.b16 %v521
      %v681 = vunpack.c.l.b16 %v522
      %v682 = vunpack.c.h.b16 %v522
      %v683 = vunpack.c.l.b16 %v523
      %v684 = vunpack.c.h.b16 %v523
      %v685 = vunpack.c.l.b16 %v524
      %v686 = vunpack.c.h.b16 %v524
      %v687 = vunpack.c.l.b16 %v525
      %v688 = vunpack.c.h.b16 %v525
      %v689 = vunpack.c.l.b16 %v526
      %v690 = vunpack.c.h.b16 %v526
      %v691 = vunpack.c.l.b16 %v527
      %v692 = vunpack.c.h.b16 %v527
      %v693 = vunpack.c.l.b16 %v528
      %v694 = vunpack.c.h.b16 %v528
      %v695 = vunpack.c.l.b16 %v529
      %v696 = vunpack.c.h.b16 %v529
      %v697 = vunpack.c.l.b16 %v530
      %v698 = vunpack.c.h.b16 %v530
      %v699 = vunpack.c.l.b16 %v531
      %v700 = vunpack.c.h.b16 %v531
      %v701 = vunpack.c.l.b16 %v532
      %v702 = vunpack.c.h.b16 %v532
      %v703 = vunpack.c.l.b16 %v533
      %v704 = vunpack.c.h.b16 %v533
      %v705 = vunpack.c.l.b16 %v534
      %v706 = vunpack.c.h.b16 %v534
      %v707 = vunpack.c.l.b16 %v535
      %v708 = vunpack.c.h.b16 %v535
      %v709 = vunpack.c.l.b16 %v536
      %v710 = vunpack.c.h.b16 %v536
      %v711 = vunpack.c.l.b16 %v537
      %v712 = vunpack.c.h.b16 %v537
      %v713 = vunpack.c.l.b16 %v538
      %v714 = vunpack.c.h.b16 %v538
      %v715 = vpack.c.b16 %v653, %v651
      %v716 = vpack.c.b16 %v654, %v652
      %v717 = vpack.c.b16 %v657, %v655
      %v718 = vpack.c.b16 %v658, %v656
      %v719 = vpack.c.b16 %v661, %v659
      %v720 = vpack.c.b16 %v662, %v660
      %v721 = vpack.c.b16 %v665, %v663
      %v722 = vpack.c.b16 %v666, %v664
      %v723 = vpack.c.b16 %v669, %v667
      %v724 = vpack.c.b16 %v670, %v668
      %v725 = vpack.c.b16 %v673, %v671
      %v726 = vpack.c.b16 %v674, %v672
      %v727 = vpack.c.b16 %v677, %v675
      %v728 = vpack.c.b16 %v678, %v676
      %v729 = vpack.c.b16 %v681, %v679
      %v730 = vpack.c.b16 %v682, %v680
      %v731 = vpack.c.b16 %v685, %v683
      %v732 = vpack.c.b16 %v686, %v684
      %v733 = vpack.c.b16 %v689, %v687
      %v734 = vpack.c.b16 %v690, %v688
      %v735 = vpack.c.b16 %v693, %v691
      %v736 = vpack.c.b16 %v694, %v692
      %v737 = vpack.c.b16 %v697, %v695
      %v738 = vpack.c.b16 %v698, %v696
      %v739 = vpack.c.b16 %v701, %v699
      %v740 = vpack.c.b16 %v702, %v700
      %v741 = vpack.c.b16 %v705, %v703
      %v742 = vpack.c.b16 %v706, %v704
      %v743 = vpack.c.b16 %v709, %v707
      %v744 = vpack.c.b16 %v710, %v708
      %v745 = vpack.c.b16 %v713, %v711
      %v746 = vpack.c.b16 %v714, %v712
      %779 = vmatprep.subr.bf16.mxu0 %v716
      %780 = vmatpush1.bf16.msra.mxu0 %v715
      %781 = vmatprep.subr.bf16.mxu0 %v718
      %782 = vmatpush1.bf16.msra.mxu0 %v717
      %783 = vmatprep.subr.bf16.mxu0 %v720
      %784 = vmatpush1.bf16.msra.mxu0 %v719
      %785 = vmatprep.subr.bf16.mxu0 %v722
      %786 = vmatpush1.bf16.msra.mxu0 %v721
      %787 = vmatprep.subr.bf16.mxu0 %v724
      %788 = vmatpush1.bf16.msra.mxu0 %v723
      %789 = vmatprep.subr.bf16.mxu0 %v726
      %790 = vmatpush1.bf16.msra.mxu0 %v725
      %791 = vmatprep.subr.bf16.mxu0 %v728
      %792 = vmatpush1.bf16.msra.mxu0 %v727
      %793 = vmatprep.subr.bf16.mxu0 %v730
      %794 = vmatpush1.bf16.msra.mxu0 %v729
      %795 = vmatprep.subr.bf16.mxu0 %v732
      %796 = vmatpush1.bf16.msra.mxu0 %v731
      %797 = vmatprep.subr.bf16.mxu0 %v734
      %798 = vmatpush1.bf16.msra.mxu0 %v733
      %799 = vmatprep.subr.bf16.mxu0 %v736
      %800 = vmatpush1.bf16.msra.mxu0 %v735
      %801 = vmatprep.subr.bf16.mxu0 %v738
      %802 = vmatpush1.bf16.msra.mxu0 %v737
      %803 = vmatprep.subr.bf16.mxu0 %v740
      %804 = vmatpush1.bf16.msra.mxu0 %v739
      %805 = vmatprep.subr.bf16.mxu0 %v742
      %806 = vmatpush1.bf16.msra.mxu0 %v741
      %807 = vmatprep.subr.bf16.mxu0 %v744
      %808 = vmatpush1.bf16.msra.mxu0 %v743
      %809 = vmatprep.subr.bf16.mxu0 %v746
      %810 = vmatpush1.bf16.msra.mxu0 %v745
      %811 = vmatprep.mubr.bf16.mxu0 %v588
      %812 = vmatmul.mubr.bf16.gmra.mrb[0].mxu0 %v587
      %v813 = vpop.f32.mrb[0].mxu0
      %v814 = vadd.f32 0.0, %v813
      %v815 = vpop.f32.mrb[0].mxu0
      %v816 = vadd.f32 0.0, %v815
      %v817 = vpop.f32.mrb[0].mxu0
      %v818 = vadd.f32 0.0, %v817
      %v819 = vpop.f32.mrb[0].mxu0
      %v820 = vadd.f32 0.0, %v819
      %821 = vmatprep.mubr.bf16.mxu0 %v590
      %822 = vmatmul.mubr.bf16.gmra.mrb[0].mxu0 %v589
      %v823 = vpop.f32.mrb[0].mxu0
      %v824 = vadd.f32 0.0, %v823
      %v825 = vpop.f32.mrb[0].mxu0
      %v826 = vadd.f32 0.0, %v825
      %v827 = vpop.f32.mrb[0].mxu0
      %v828 = vadd.f32 0.0, %v827
      %v829 = vpop.f32.mrb[0].mxu0
      %v830 = vadd.f32 0.0, %v829
      %831 = vmatprep.mubr.bf16.mxu0 %v592
      %832 = vmatmul.mubr.bf16.gmra.mrb[0].mxu0 %v591
      %v833 = vpop.f32.mrb[0].mxu0
      %v834 = vadd.f32 0.0, %v833
      %v835 = vpop.f32.mrb[0].mxu0
      %v836 = vadd.f32 0.0, %v835
      %v837 = vpop.f32.mrb[0].mxu0
      %v838 = vadd.f32 0.0, %v837
      %v839 = vpop.f32.mrb[0].mxu0
      %v840 = vadd.f32 0.0, %v839
      %841 = vmatprep.mubr.bf16.mxu0 %v594
      %842 = vmatmul.mubr.bf16.gmra.mrb[0].mxu0 %v593
      %v843 = vpop.f32.mrb[0].mxu0
      %v844 = vadd.f32 0.0, %v843
      %v845 = vpop.f32.mrb[0].mxu0
      %v846 = vadd.f32 0.0, %v845
      %v847 = vpop.f32.mrb[0].mxu0
      %v848 = vadd.f32 0.0, %v847
      %v849 = vpop.f32.mrb[0].mxu0
      %v850 = vadd.f32 0.0, %v849
      %851 = vmatprep.mubr.bf16.mxu0 %v596
      %852 = vmatmul.mubr.bf16.gmra.mrb[0].mxu0 %v595
      %v853 = vpop.f32.mrb[0].mxu0
      %v854 = vadd.f32 0.0, %v853
      %v855 = vpop.f32.mrb[0].mxu0
      %v856 = vadd.f32 0.0, %v855
      %v857 = vpop.f32.mrb[0].mxu0
      %v858 = vadd.f32 0.0, %v857
      %v859 = vpop.f32.mrb[0].mxu0
      %v860 = vadd.f32 0.0, %v859
      %861 = vmatprep.mubr.bf16.mxu0 %v598
      %862 = vmatmul.mubr.bf16.gmra.mrb[0].mxu0 %v597
      %v863 = vpop.f32.mrb[0].mxu0
      %v864 = vadd.f32 0.0, %v863
      %v865 = vpop.f32.mrb[0].mxu0
      %v866 = vadd.f32 0.0, %v865
      %v867 = vpop.f32.mrb[0].mxu0
      %v868 = vadd.f32 0.0, %v867
      %v869 = vpop.f32.mrb[0].mxu0
      %v870 = vadd.f32 0.0, %v869
      %871 = vmatprep.mubr.bf16.mxu0 %v600
      %872 = vmatmul.mubr.bf16.gmra.mrb[0].mxu0 %v599
      %v873 = vpop.f32.mrb[0].mxu0
      %v874 = vadd.f32 0.0, %v873
      %v875 = vpop.f32.mrb[0].mxu0
      %v876 = vadd.f32 0.0, %v875
      %v877 = vpop.f32.mrb[0].mxu0
      %v878 = vadd.f32 0.0, %v877
      %v879 = vpop.f32.mrb[0].mxu0
      %v880 = vadd.f32 0.0, %v879
      %881 = vmatprep.mubr.bf16.mxu0 %v602
      %882 = vmatmul.mubr.bf16.gmra.mrb[0].mxu0 %v601
      %v883 = vpop.f32.mrb[0].mxu0
      %v884 = vadd.f32 0.0, %v883
      %v885 = vpop.f32.mrb[0].mxu0
      %v886 = vadd.f32 0.0, %v885
      %v887 = vpop.f32.mrb[0].mxu0
      %v888 = vadd.f32 0.0, %v887
      %v889 = vpop.f32.mrb[0].mxu0
      %v890 = vadd.f32 0.0, %v889
      %891 = vdwg.mxu0
      %v892 = vadd.f32 %v459, %v814
      %v893 = vadd.f32 %v460, %v816
      %v894 = vadd.f32 %v461, %v818
      %v895 = vadd.f32 %v462, %v820
      %v896 = vadd.f32 %v463, %v824
      %v897 = vadd.f32 %v464, %v826
      %v898 = vadd.f32 %v465, %v828
      %v899 = vadd.f32 %v466, %v830
      %v900 = vadd.f32 %v467, %v834
      %v901 = vadd.f32 %v468, %v836
      %v902 = vadd.f32 %v469, %v838
      %v903 = vadd.f32 %v470, %v840
      %v904 = vadd.f32 %v471, %v844
      %v905 = vadd.f32 %v472, %v846
      %v906 = vadd.f32 %v473, %v848
      %v907 = vadd.f32 %v474, %v850
      %v908 = vadd.f32 %v475, %v854
      %v909 = vadd.f32 %v476, %v856
      %v910 = vadd.f32 %v477, %v858
      %v911 = vadd.f32 %v478, %v860
      %v912 = vadd.f32 %v479, %v864
      %v913 = vadd.f32 %v480, %v866
      %v914 = vadd.f32 %v481, %v868
      %v915 = vadd.f32 %v482, %v870
      %v916 = vadd.f32 %v483, %v874
      %v917 = vadd.f32 %v484, %v876
      %v918 = vadd.f32 %v485, %v878
      %v919 = vadd.f32 %v486, %v880
      %v920 = vadd.f32 %v487, %v884
      %v921 = vadd.f32 %v488, %v886
      %v922 = vadd.f32 %v489, %v888
      %v923 = vadd.f32 %v490, %v890
      %v924 = vld [vmem:[%s3] sm:$0x3]
      %v926 = vlaneseq
      %v927 = vshrl.u32 %v926, 7
      %v928 = vsub.s32 0, %v927
      %v929 = vrot.slane %v924, %v928
      %v930 = vlaneseq
      %v931 = vshrl.u32 %v930, 7
      %v932 = vsub.s32 1, %v931
      %v933 = vrot.slane %v924, %v932
      %v936 = vadd.f32 %v892, %v929
      %v937 = vadd.f32 %v893, %v933
      %v938 = vadd.f32 %v894, %v929
      %v939 = vadd.f32 %v895, %v933
      %v940 = vadd.f32 %v896, %v929
      %v941 = vadd.f32 %v897, %v933
      %v942 = vadd.f32 %v898, %v929
      %v943 = vadd.f32 %v899, %v933
      %v944 = vadd.f32 %v900, %v929
      %v945 = vadd.f32 %v901, %v933
      %v946 = vadd.f32 %v902, %v929
      %v947 = vadd.f32 %v903, %v933
      %v948 = vadd.f32 %v904, %v929
      %v949 = vadd.f32 %v905, %v933
      %v950 = vadd.f32 %v906, %v929
      %v951 = vadd.f32 %v907, %v933
      %v952 = vadd.f32 %v908, %v929
      %v953 = vadd.f32 %v909, %v933
      %v954 = vadd.f32 %v910, %v929
      %v955 = vadd.f32 %v911, %v933
      %v956 = vadd.f32 %v912, %v929
      %v957 = vadd.f32 %v913, %v933
      %v958 = vadd.f32 %v914, %v929
      %v959 = vadd.f32 %v915, %v933
      %v960 = vadd.f32 %v916, %v929
      %v961 = vadd.f32 %v917, %v933
      %v962 = vadd.f32 %v918, %v929
      %v963 = vadd.f32 %v919, %v933
      %v964 = vadd.f32 %v920, %v929
      %v965 = vadd.f32 %v921, %v933
      %v966 = vadd.f32 %v922, %v929
      %v967 = vadd.f32 %v923, %v933
      %v968 = vld [vmem:[%s4] sm:$0x3]
      %v969 = vld [vmem:[%s5] sm:$0x3]
      %v970 = vadd.f32 %v936, %v937
      %971 = vadd.xlane.f32.xlu0 %v970
      %v972 = vpop.xlane.xlu0 %971
      %v973 = vadd.f32 %v938, %v939
      %974 = vadd.xlane.f32.xlu0 %v973
      %v975 = vpop.xlane.xlu0 %974
      %v976 = vadd.f32 %v940, %v941
      %977 = vadd.xlane.f32.xlu0 %v976
      %v978 = vpop.xlane.xlu0 %977
      %v979 = vadd.f32 %v942, %v943
      %980 = vadd.xlane.f32.xlu0 %v979
      %v981 = vpop.xlane.xlu0 %980
      %v982 = vadd.f32 %v944, %v945
      %983 = vadd.xlane.f32.xlu0 %v982
      %v984 = vpop.xlane.xlu0 %983
      %v985 = vadd.f32 %v946, %v947
      %986 = vadd.xlane.f32.xlu0 %v985
      %v987 = vpop.xlane.xlu0 %986
      %v988 = vadd.f32 %v948, %v949
      %989 = vadd.xlane.f32.xlu0 %v988
      %v990 = vpop.xlane.xlu0 %989
      %v991 = vadd.f32 %v950, %v951
      %992 = vadd.xlane.f32.xlu0 %v991
      %v993 = vpop.xlane.xlu0 %992
      %v994 = vadd.f32 %v952, %v953
      %995 = vadd.xlane.f32.xlu0 %v994
      %v996 = vpop.xlane.xlu0 %995
      %v997 = vadd.f32 %v954, %v955
      %998 = vadd.xlane.f32.xlu0 %v997
      %v999 = vpop.xlane.xlu0 %998
      %v1000 = vadd.f32 %v956, %v957
      %1001 = vadd.xlane.f32.xlu0 %v1000
      %v1002 = vpop.xlane.xlu0 %1001
      %v1003 = vadd.f32 %v958, %v959
      %1004 = vadd.xlane.f32.xlu0 %v1003
      %v1005 = vpop.xlane.xlu0 %1004
      %v1006 = vadd.f32 %v960, %v961
      %1007 = vadd.xlane.f32.xlu0 %v1006
      %v1008 = vpop.xlane.xlu0 %1007
      %v1009 = vadd.f32 %v962, %v963
      %1010 = vadd.xlane.f32.xlu0 %v1009
      %v1011 = vpop.xlane.xlu0 %1010
      %v1012 = vadd.f32 %v964, %v965
      %1013 = vadd.xlane.f32.xlu0 %v1012
      %v1014 = vpop.xlane.xlu0 %1013
      %v1015 = vadd.f32 %v966, %v967
      %1016 = vadd.xlane.f32.xlu0 %v1015
      %v1017 = vpop.xlane.xlu0 %1016
      %v1018 = vrcp.pop 256.0
      %v1019 = vmul.f32 %v972, %v1018
      %v1020 = vmul.f32 %v975, %v1018
      %v1021 = vmul.f32 %v978, %v1018
      %v1022 = vmul.f32 %v981, %v1018
      %v1023 = vmul.f32 %v984, %v1018
      %v1024 = vmul.f32 %v987, %v1018
      %v1025 = vmul.f32 %v990, %v1018
      %v1026 = vmul.f32 %v993, %v1018
      %v1027 = vmul.f32 %v996, %v1018
      %v1028 = vmul.f32 %v999, %v1018
      %v1029 = vmul.f32 %v1002, %v1018
      %v1030 = vmul.f32 %v1005, %v1018
      %v1031 = vmul.f32 %v1008, %v1018
      %v1032 = vmul.f32 %v1011, %v1018
      %v1033 = vmul.f32 %v1014, %v1018
      %v1034 = vmul.f32 %v1017, %v1018
      %v1035 = vsub.f32 %v936, %v1019
      %v1036 = vsub.f32 %v937, %v1019
      %v1037 = vsub.f32 %v938, %v1020
      %v1038 = vsub.f32 %v939, %v1020
      %v1039 = vsub.f32 %v940, %v1021
      %v1040 = vsub.f32 %v941, %v1021
      %v1041 = vsub.f32 %v942, %v1022
      %v1042 = vsub.f32 %v943, %v1022
      %v1043 = vsub.f32 %v944, %v1023
      %v1044 = vsub.f32 %v945, %v1023
      %v1045 = vsub.f32 %v946, %v1024
      %v1046 = vsub.f32 %v947, %v1024
      %v1047 = vsub.f32 %v948, %v1025
      %v1048 = vsub.f32 %v949, %v1025
      %v1049 = vsub.f32 %v950, %v1026
      %v1050 = vsub.f32 %v951, %v1026
      %v1051 = vsub.f32 %v952, %v1027
      %v1052 = vsub.f32 %v953, %v1027
      %v1053 = vsub.f32 %v954, %v1028
      %v1054 = vsub.f32 %v955, %v1028
      %v1055 = vsub.f32 %v956, %v1029
      %v1056 = vsub.f32 %v957, %v1029
      %v1057 = vsub.f32 %v958, %v1030
      %v1058 = vsub.f32 %v959, %v1030
      %v1059 = vsub.f32 %v960, %v1031
      %v1060 = vsub.f32 %v961, %v1031
      %v1061 = vsub.f32 %v962, %v1032
      %v1062 = vsub.f32 %v963, %v1032
      %v1063 = vsub.f32 %v964, %v1033
      %v1064 = vsub.f32 %v965, %v1033
      %v1065 = vsub.f32 %v966, %v1034
      %v1066 = vsub.f32 %v967, %v1034
      %v1067 = vmul.f32 %v1035, %v1035
      %v1068 = vmul.f32 %v1036, %v1036
      %v1069 = vmul.f32 %v1037, %v1037
      %v1070 = vmul.f32 %v1038, %v1038
      %v1071 = vmul.f32 %v1039, %v1039
      %v1072 = vmul.f32 %v1040, %v1040
      %v1073 = vmul.f32 %v1041, %v1041
      %v1074 = vmul.f32 %v1042, %v1042
      %v1075 = vmul.f32 %v1043, %v1043
      %v1076 = vmul.f32 %v1044, %v1044
      %v1077 = vmul.f32 %v1045, %v1045
      %v1078 = vmul.f32 %v1046, %v1046
      %v1079 = vmul.f32 %v1047, %v1047
      %v1080 = vmul.f32 %v1048, %v1048
      %v1081 = vmul.f32 %v1049, %v1049
      %v1082 = vmul.f32 %v1050, %v1050
      %v1083 = vmul.f32 %v1051, %v1051
      %v1084 = vmul.f32 %v1052, %v1052
      %v1085 = vmul.f32 %v1053, %v1053
      %v1086 = vmul.f32 %v1054, %v1054
      %v1087 = vmul.f32 %v1055, %v1055
      %v1088 = vmul.f32 %v1056, %v1056
      %v1089 = vmul.f32 %v1057, %v1057
      %v1090 = vmul.f32 %v1058, %v1058
      %v1091 = vmul.f32 %v1059, %v1059
      %v1092 = vmul.f32 %v1060, %v1060
      %v1093 = vmul.f32 %v1061, %v1061
      %v1094 = vmul.f32 %v1062, %v1062
      %v1095 = vmul.f32 %v1063, %v1063
      %v1096 = vmul.f32 %v1064, %v1064
      %v1097 = vmul.f32 %v1065, %v1065
      %v1098 = vmul.f32 %v1066, %v1066
      %v1099 = vadd.f32 %v1067, %v1068
      %1100 = vadd.xlane.f32.xlu0 %v1099
      %v1101 = vpop.xlane.xlu0 %1100
      %v1102 = vadd.f32 %v1069, %v1070
      %1103 = vadd.xlane.f32.xlu0 %v1102
      %v1104 = vpop.xlane.xlu0 %1103
      %v1105 = vadd.f32 %v1071, %v1072
      %1106 = vadd.xlane.f32.xlu0 %v1105
      %v1107 = vpop.xlane.xlu0 %1106
      %v1108 = vadd.f32 %v1073, %v1074
      %1109 = vadd.xlane.f32.xlu0 %v1108
      %v1110 = vpop.xlane.xlu0 %1109
      %v1111 = vadd.f32 %v1075, %v1076
      %1112 = vadd.xlane.f32.xlu0 %v1111
      %v1113 = vpop.xlane.xlu0 %1112
      %v1114 = vadd.f32 %v1077, %v1078
      %1115 = vadd.xlane.f32.xlu0 %v1114
      %v1116 = vpop.xlane.xlu0 %1115
      %v1117 = vadd.f32 %v1079, %v1080
      %1118 = vadd.xlane.f32.xlu0 %v1117
      %v1119 = vpop.xlane.xlu0 %1118
      %v1120 = vadd.f32 %v1081, %v1082
      %1121 = vadd.xlane.f32.xlu0 %v1120
      %v1122 = vpop.xlane.xlu0 %1121
      %v1123 = vadd.f32 %v1083, %v1084
      %1124 = vadd.xlane.f32.xlu0 %v1123
      %v1125 = vpop.xlane.xlu0 %1124
      %v1126 = vadd.f32 %v1085, %v1086
      %1127 = vadd.xlane.f32.xlu0 %v1126
      %v1128 = vpop.xlane.xlu0 %1127
      %v1129 = vadd.f32 %v1087, %v1088
      %1130 = vadd.xlane.f32.xlu0 %v1129
      %v1131 = vpop.xlane.xlu0 %1130
      %v1132 = vadd.f32 %v1089, %v1090
      %1133 = vadd.xlane.f32.xlu0 %v1132
      %v1134 = vpop.xlane.xlu0 %1133
      %v1135 = vadd.f32 %v1091, %v1092
      %1136 = vadd.xlane.f32.xlu0 %v1135
      %v1137 = vpop.xlane.xlu0 %1136
      %v1138 = vadd.f32 %v1093, %v1094
      %1139 = vadd.xlane.f32.xlu0 %v1138
      %v1140 = vpop.xlane.xlu0 %1139
      %v1141 = vadd.f32 %v1095, %v1096
      %1142 = vadd.xlane.f32.xlu0 %v1141
      %v1143 = vpop.xlane.xlu0 %1142
      %v1144 = vadd.f32 %v1097, %v1098
      %1145 = vadd.xlane.f32.xlu0 %v1144
      %v1146 = vpop.xlane.xlu0 %1145
      %v1147 = vmul.f32 %v1101, %v1018
      %v1148 = vmul.f32 %v1104, %v1018
      %v1149 = vmul.f32 %v1107, %v1018
      %v1150 = vmul.f32 %v1110, %v1018
      %v1151 = vmul.f32 %v1113, %v1018
      %v1152 = vmul.f32 %v1116, %v1018
      %v1153 = vmul.f32 %v1119, %v1018
      %v1154 = vmul.f32 %v1122, %v1018
      %v1155 = vmul.f32 %v1125, %v1018
      %v1156 = vmul.f32 %v1128, %v1018
      %v1157 = vmul.f32 %v1131, %v1018
      %v1158 = vmul.f32 %v1134, %v1018
      %v1159 = vmul.f32 %v1137, %v1018
      %v1160 = vmul.f32 %v1140, %v1018
      %v1161 = vmul.f32 %v1143, %v1018
      %v1162 = vmul.f32 %v1146, %v1018
      %v1163 = vadd.f32 %v1147, 1e-05
      %v1164 = vadd.f32 %v1148, 1e-05
      %v1165 = vadd.f32 %v1149, 1e-05
      %v1166 = vadd.f32 %v1150, 1e-05
      %v1167 = vadd.f32 %v1151, 1e-05
      %v1168 = vadd.f32 %v1152, 1e-05
      %v1169 = vadd.f32 %v1153, 1e-05
      %v1170 = vadd.f32 %v1154, 1e-05
      %v1171 = vadd.f32 %v1155, 1e-05
      %v1172 = vadd.f32 %v1156, 1e-05
      %v1173 = vadd.f32 %v1157, 1e-05
      %v1174 = vadd.f32 %v1158, 1e-05
      %v1175 = vadd.f32 %v1159, 1e-05
      %v1176 = vadd.f32 %v1160, 1e-05
      %v1177 = vadd.f32 %v1161, 1e-05
      %v1178 = vadd.f32 %v1162, 1e-05
      %v1179 = vrsqrt.pop %v1163
      %v1180 = vrsqrt.pop %v1164
      %v1181 = vrsqrt.pop %v1165
      %v1182 = vrsqrt.pop %v1166
      %v1183 = vrsqrt.pop %v1167
      %v1184 = vrsqrt.pop %v1168
      %v1185 = vrsqrt.pop %v1169
      %v1186 = vrsqrt.pop %v1170
      %v1187 = vrsqrt.pop %v1171
      %v1188 = vrsqrt.pop %v1172
      %v1189 = vrsqrt.pop %v1173
      %v1190 = vrsqrt.pop %v1174
      %v1191 = vrsqrt.pop %v1175
      %v1192 = vrsqrt.pop %v1176
      %v1193 = vrsqrt.pop %v1177
      %v1194 = vrsqrt.pop %v1178
      %v1195 = vmul.f32 %v1035, %v1179
      %v1196 = vmul.f32 %v1036, %v1179
      %v1197 = vmul.f32 %v1037, %v1180
      %v1198 = vmul.f32 %v1038, %v1180
      %v1199 = vmul.f32 %v1039, %v1181
      %v1200 = vmul.f32 %v1040, %v1181
      %v1201 = vmul.f32 %v1041, %v1182
      %v1202 = vmul.f32 %v1042, %v1182
      %v1203 = vmul.f32 %v1043, %v1183
      %v1204 = vmul.f32 %v1044, %v1183
      %v1205 = vmul.f32 %v1045, %v1184
      %v1206 = vmul.f32 %v1046, %v1184
      %v1207 = vmul.f32 %v1047, %v1185
      %v1208 = vmul.f32 %v1048, %v1185
      %v1209 = vmul.f32 %v1049, %v1186
      %v1210 = vmul.f32 %v1050, %v1186
      %v1211 = vmul.f32 %v1051, %v1187
      %v1212 = vmul.f32 %v1052, %v1187
      %v1213 = vmul.f32 %v1053, %v1188
      %v1214 = vmul.f32 %v1054, %v1188
      %v1215 = vmul.f32 %v1055, %v1189
      %v1216 = vmul.f32 %v1056, %v1189
      %v1217 = vmul.f32 %v1057, %v1190
      %v1218 = vmul.f32 %v1058, %v1190
      %v1219 = vmul.f32 %v1059, %v1191
      %v1220 = vmul.f32 %v1060, %v1191
      %v1221 = vmul.f32 %v1061, %v1192
      %v1222 = vmul.f32 %v1062, %v1192
      %v1223 = vmul.f32 %v1063, %v1193
      %v1224 = vmul.f32 %v1064, %v1193
      %v1225 = vmul.f32 %v1065, %v1194
      %v1226 = vmul.f32 %v1066, %v1194
      %v1228 = vlaneseq
      %v1229 = vshrl.u32 %v1228, 7
      %v1230 = vsub.s32 0, %v1229
      %v1231 = vrot.slane %v968, %v1230
      %v1232 = vlaneseq
      %v1233 = vshrl.u32 %v1232, 7
      %v1234 = vsub.s32 1, %v1233
      %v1235 = vrot.slane %v968, %v1234
      %v1238 = vmul.f32 %v1195, %v1231
      %v1239 = vmul.f32 %v1196, %v1235
      %v1240 = vmul.f32 %v1197, %v1231
      %v1241 = vmul.f32 %v1198, %v1235
      %v1242 = vmul.f32 %v1199, %v1231
      %v1243 = vmul.f32 %v1200, %v1235
      %v1244 = vmul.f32 %v1201, %v1231
      %v1245 = vmul.f32 %v1202, %v1235
      %v1246 = vmul.f32 %v1203, %v1231
      %v1247 = vmul.f32 %v1204, %v1235
      %v1248 = vmul.f32 %v1205, %v1231
      %v1249 = vmul.f32 %v1206, %v1235
      %v1250 = vmul.f32 %v1207, %v1231
      %v1251 = vmul.f32 %v1208, %v1235
      %v1252 = vmul.f32 %v1209, %v1231
      %v1253 = vmul.f32 %v1210, %v1235
      %v1254 = vmul.f32 %v1211, %v1231
      %v1255 = vmul.f32 %v1212, %v1235
      %v1256 = vmul.f32 %v1213, %v1231
      %v1257 = vmul.f32 %v1214, %v1235
      %v1258 = vmul.f32 %v1215, %v1231
      %v1259 = vmul.f32 %v1216, %v1235
      %v1260 = vmul.f32 %v1217, %v1231
      %v1261 = vmul.f32 %v1218, %v1235
      %v1262 = vmul.f32 %v1219, %v1231
      %v1263 = vmul.f32 %v1220, %v1235
      %v1264 = vmul.f32 %v1221, %v1231
      %v1265 = vmul.f32 %v1222, %v1235
      %v1266 = vmul.f32 %v1223, %v1231
      %v1267 = vmul.f32 %v1224, %v1235
      %v1268 = vmul.f32 %v1225, %v1231
      %v1269 = vmul.f32 %v1226, %v1235
      %v1271 = vlaneseq
      %v1272 = vshrl.u32 %v1271, 7
      %v1273 = vsub.s32 0, %v1272
      %v1274 = vrot.slane %v969, %v1273
      %v1275 = vlaneseq
      %v1276 = vshrl.u32 %v1275, 7
      %v1277 = vsub.s32 1, %v1276
      %v1278 = vrot.slane %v969, %v1277
      %v1281 = vadd.f32 %v1238, %v1274
      %v1282 = vadd.f32 %v1239, %v1278
      %v1283 = vadd.f32 %v1240, %v1274
      %v1284 = vadd.f32 %v1241, %v1278
      %v1285 = vadd.f32 %v1242, %v1274
      %v1286 = vadd.f32 %v1243, %v1278
      %v1287 = vadd.f32 %v1244, %v1274
      %v1288 = vadd.f32 %v1245, %v1278
      %v1289 = vadd.f32 %v1246, %v1274
      %v1290 = vadd.f32 %v1247, %v1278
      %v1291 = vadd.f32 %v1248, %v1274
      %v1292 = vadd.f32 %v1249, %v1278
      %v1293 = vadd.f32 %v1250, %v1274
      %v1294 = vadd.f32 %v1251, %v1278
      %v1295 = vadd.f32 %v1252, %v1274
      %v1296 = vadd.f32 %v1253, %v1278
      %v1297 = vadd.f32 %v1254, %v1274
      %v1298 = vadd.f32 %v1255, %v1278
      %v1299 = vadd.f32 %v1256, %v1274
      %v1300 = vadd.f32 %v1257, %v1278
      %v1301 = vadd.f32 %v1258, %v1274
      %v1302 = vadd.f32 %v1259, %v1278
      %v1303 = vadd.f32 %v1260, %v1274
      %v1304 = vadd.f32 %v1261, %v1278
      %v1305 = vadd.f32 %v1262, %v1274
      %v1306 = vadd.f32 %v1263, %v1278
      %v1307 = vadd.f32 %v1264, %v1274
      %v1308 = vadd.f32 %v1265, %v1278
      %v1309 = vadd.f32 %v1266, %v1274
      %v1310 = vadd.f32 %v1267, %v1278
      %v1311 = vadd.f32 %v1268, %v1274
      %v1312 = vadd.f32 %v1269, %v1278
      %v1313 = vpack.c.bf16 %v1283, %v1281
      %v1314 = vpack.c.bf16 %v1284, %v1282
      %v1315 = vpack.c.bf16 %v1287, %v1285
      %v1316 = vpack.c.bf16 %v1288, %v1286
      %v1317 = vpack.c.bf16 %v1291, %v1289
      %v1318 = vpack.c.bf16 %v1292, %v1290
      %v1319 = vpack.c.bf16 %v1295, %v1293
      %v1320 = vpack.c.bf16 %v1296, %v1294
      %v1321 = vpack.c.bf16 %v1299, %v1297
      %v1322 = vpack.c.bf16 %v1300, %v1298
      %v1323 = vpack.c.bf16 %v1303, %v1301
      %v1324 = vpack.c.bf16 %v1304, %v1302
      %v1325 = vpack.c.bf16 %v1307, %v1305
      %v1326 = vpack.c.bf16 %v1308, %v1306
      %v1327 = vpack.c.bf16 %v1311, %v1309
      %v1328 = vpack.c.bf16 %v1312, %v1310
      %v1329 = vld [vmem:[%s6] sm:$0xff]
      %v1330 = vld [vmem:[%s6 + $0x8] sm:$0xff]
      %v1331 = vld [vmem:[%s6 + $0x10] sm:$0xff]
      %v1332 = vld [vmem:[%s6 + $0x18] sm:$0xff]
      %v1333 = vld [vmem:[%s6 + $0x20] sm:$0xff]
      %v1334 = vld [vmem:[%s6 + $0x28] sm:$0xff]
      %v1335 = vld [vmem:[%s6 + $0x30] sm:$0xff]
      %v1336 = vld [vmem:[%s6 + $0x38] sm:$0xff]
      %v1337 = vld [vmem:[%s6 + $0x40] sm:$0xff]
      %v1338 = vld [vmem:[%s6 + $0x48] sm:$0xff]
      %v1339 = vld [vmem:[%s6 + $0x50] sm:$0xff]
      %v1340 = vld [vmem:[%s6 + $0x58] sm:$0xff]
      %v1341 = vld [vmem:[%s6 + $0x60] sm:$0xff]
      %v1342 = vld [vmem:[%s6 + $0x68] sm:$0xff]
      %v1343 = vld [vmem:[%s6 + $0x70] sm:$0xff]
      %v1344 = vld [vmem:[%s6 + $0x78] sm:$0xff]
      %v1345 = vld [vmem:[%s6 + $0x80] sm:$0xff]
      %v1346 = vld [vmem:[%s6 + $0x88] sm:$0xff]
      %v1347 = vld [vmem:[%s6 + $0x90] sm:$0xff]
      %v1348 = vld [vmem:[%s6 + $0x98] sm:$0xff]
      %v1349 = vld [vmem:[%s6 + $0xa0] sm:$0xff]
      %v1350 = vld [vmem:[%s6 + $0xa8] sm:$0xff]
      %v1351 = vld [vmem:[%s6 + $0xb0] sm:$0xff]
      %v1352 = vld [vmem:[%s6 + $0xb8] sm:$0xff]
      %v1353 = vld [vmem:[%s6 + $0xc0] sm:$0xff]
      %v1354 = vld [vmem:[%s6 + $0xc8] sm:$0xff]
      %v1355 = vld [vmem:[%s6 + $0xd0] sm:$0xff]
      %v1356 = vld [vmem:[%s6 + $0xd8] sm:$0xff]
      %v1357 = vld [vmem:[%s6 + $0xe0] sm:$0xff]
      %v1358 = vld [vmem:[%s6 + $0xe8] sm:$0xff]
      %v1359 = vld [vmem:[%s6 + $0xf0] sm:$0xff]
      %v1360 = vld [vmem:[%s6 + $0xf8] sm:$0xff]
      %v1361 = vld [vmem:[%s6 + $0x100] sm:$0xff]
      %v1362 = vld [vmem:[%s6 + $0x108] sm:$0xff]
      %v1363 = vld [vmem:[%s6 + $0x110] sm:$0xff]
      %v1364 = vld [vmem:[%s6 + $0x118] sm:$0xff]
      %v1365 = vld [vmem:[%s6 + $0x120] sm:$0xff]
      %v1366 = vld [vmem:[%s6 + $0x128] sm:$0xff]
      %v1367 = vld [vmem:[%s6 + $0x130] sm:$0xff]
      %v1368 = vld [vmem:[%s6 + $0x138] sm:$0xff]
      %v1369 = vld [vmem:[%s6 + $0x140] sm:$0xff]
      %v1370 = vld [vmem:[%s6 + $0x148] sm:$0xff]
      %v1371 = vld [vmem:[%s6 + $0x150] sm:$0xff]
      %v1372 = vld [vmem:[%s6 + $0x158] sm:$0xff]
      %v1373 = vld [vmem:[%s6 + $0x160] sm:$0xff]
      %v1374 = vld [vmem:[%s6 + $0x168] sm:$0xff]
      %v1375 = vld [vmem:[%s6 + $0x170] sm:$0xff]
      %v1376 = vld [vmem:[%s6 + $0x178] sm:$0xff]
      %v1377 = vld [vmem:[%s6 + $0x180] sm:$0xff]
      %v1378 = vld [vmem:[%s6 + $0x188] sm:$0xff]
      %v1379 = vld [vmem:[%s6 + $0x190] sm:$0xff]
      %v1380 = vld [vmem:[%s6 + $0x198] sm:$0xff]
      %v1381 = vld [vmem:[%s6 + $0x1a0] sm:$0xff]
      %v1382 = vld [vmem:[%s6 + $0x1a8] sm:$0xff]
      %v1383 = vld [vmem:[%s6 + $0x1b0] sm:$0xff]
      %v1384 = vld [vmem:[%s6 + $0x1b8] sm:$0xff]
      %v1385 = vld [vmem:[%s6 + $0x1c0] sm:$0xff]
      %v1386 = vld [vmem:[%s6 + $0x1c8] sm:$0xff]
      %v1387 = vld [vmem:[%s6 + $0x1d0] sm:$0xff]
      %v1388 = vld [vmem:[%s6 + $0x1d8] sm:$0xff]
      %v1389 = vld [vmem:[%s6 + $0x1e0] sm:$0xff]
      %v1390 = vld [vmem:[%s6 + $0x1e8] sm:$0xff]
      %v1391 = vld [vmem:[%s6 + $0x1f0] sm:$0xff]
      %v1392 = vld [vmem:[%s6 + $0x1f8] sm:$0xff]
      %v1393 = vld [vmem:[%s6 + $0x200] sm:$0xff]
      %v1394 = vld [vmem:[%s6 + $0x208] sm:$0xff]
      %v1395 = vld [vmem:[%s6 + $0x210] sm:$0xff]
      %v1396 = vld [vmem:[%s6 + $0x218] sm:$0xff]
      %v1397 = vld [vmem:[%s6 + $0x220] sm:$0xff]
      %v1398 = vld [vmem:[%s6 + $0x228] sm:$0xff]
      %v1399 = vld [vmem:[%s6 + $0x230] sm:$0xff]
      %v1400 = vld [vmem:[%s6 + $0x238] sm:$0xff]
      %v1401 = vld [vmem:[%s6 + $0x240] sm:$0xff]
      %v1402 = vld [vmem:[%s6 + $0x248] sm:$0xff]
      %v1403 = vld [vmem:[%s6 + $0x250] sm:$0xff]
      %v1404 = vld [vmem:[%s6 + $0x258] sm:$0xff]
      %v1405 = vld [vmem:[%s6 + $0x260] sm:$0xff]
      %v1406 = vld [vmem:[%s6 + $0x268] sm:$0xff]
      %v1407 = vld [vmem:[%s6 + $0x270] sm:$0xff]
      %v1408 = vld [vmem:[%s6 + $0x278] sm:$0xff]
      %v1409 = vld [vmem:[%s6 + $0x280] sm:$0xff]
      %v1410 = vld [vmem:[%s6 + $0x288] sm:$0xff]
      %v1411 = vld [vmem:[%s6 + $0x290] sm:$0xff]
      %v1412 = vld [vmem:[%s6 + $0x298] sm:$0xff]
      %v1413 = vld [vmem:[%s6 + $0x2a0] sm:$0xff]
      %v1414 = vld [vmem:[%s6 + $0x2a8] sm:$0xff]
      %v1415 = vld [vmem:[%s6 + $0x2b0] sm:$0xff]
      %v1416 = vld [vmem:[%s6 + $0x2b8] sm:$0xff]
      %v1417 = vld [vmem:[%s6 + $0x2c0] sm:$0xff]
      %v1418 = vld [vmem:[%s6 + $0x2c8] sm:$0xff]
      %v1419 = vld [vmem:[%s6 + $0x2d0] sm:$0xff]
      %v1420 = vld [vmem:[%s6 + $0x2d8] sm:$0xff]
      %v1421 = vld [vmem:[%s6 + $0x2e0] sm:$0xff]
      %v1422 = vld [vmem:[%s6 + $0x2e8] sm:$0xff]
      %v1423 = vld [vmem:[%s6 + $0x2f0] sm:$0xff]
      %v1424 = vld [vmem:[%s6 + $0x2f8] sm:$0xff]
      %v1425 = vld [vmem:[%s6 + $0x300] sm:$0xff]
      %v1426 = vld [vmem:[%s6 + $0x308] sm:$0xff]
      %v1427 = vld [vmem:[%s6 + $0x310] sm:$0xff]
      %v1428 = vld [vmem:[%s6 + $0x318] sm:$0xff]
      %v1429 = vld [vmem:[%s6 + $0x320] sm:$0xff]
      %v1430 = vld [vmem:[%s6 + $0x328] sm:$0xff]
      %v1431 = vld [vmem:[%s6 + $0x330] sm:$0xff]
      %v1432 = vld [vmem:[%s6 + $0x338] sm:$0xff]
      %v1433 = vld [vmem:[%s6 + $0x340] sm:$0xff]
      %v1434 = vld [vmem:[%s6 + $0x348] sm:$0xff]
      %v1435 = vld [vmem:[%s6 + $0x350] sm:$0xff]
      %v1436 = vld [vmem:[%s6 + $0x358] sm:$0xff]
      %v1437 = vld [vmem:[%s6 + $0x360] sm:$0xff]
      %v1438 = vld [vmem:[%s6 + $0x368] sm:$0xff]
      %v1439 = vld [vmem:[%s6 + $0x370] sm:$0xff]
      %v1440 = vld [vmem:[%s6 + $0x378] sm:$0xff]
      %v1441 = vld [vmem:[%s6 + $0x380] sm:$0xff]
      %v1442 = vld [vmem:[%s6 + $0x388] sm:$0xff]
      %v1443 = vld [vmem:[%s6 + $0x390] sm:$0xff]
      %v1444 = vld [vmem:[%s6 + $0x398] sm:$0xff]
      %v1445 = vld [vmem:[%s6 + $0x3a0] sm:$0xff]
      %v1446 = vld [vmem:[%s6 + $0x3a8] sm:$0xff]
      %v1447 = vld [vmem:[%s6 + $0x3b0] sm:$0xff]
      %v1448 = vld [vmem:[%s6 + $0x3b8] sm:$0xff]
      %v1449 = vld [vmem:[%s6 + $0x3c0] sm:$0xff]
      %v1450 = vld [vmem:[%s6 + $0x3c8] sm:$0xff]
      %v1451 = vld [vmem:[%s6 + $0x3d0] sm:$0xff]
      %v1452 = vld [vmem:[%s6 + $0x3d8] sm:$0xff]
      %v1453 = vld [vmem:[%s6 + $0x3e0] sm:$0xff]
      %v1454 = vld [vmem:[%s6 + $0x3e8] sm:$0xff]
      %v1455 = vld [vmem:[%s6 + $0x3f0] sm:$0xff]
      %v1456 = vld [vmem:[%s6 + $0x3f8] sm:$0xff]
      %v1457 = vld [vmem:[%s7] sm:$0xff]
      %v1459 = vlaneseq
      %v1460 = vshrl.u32 %v1459, 7
      %v1461 = vsub.s32 0, %v1460
      %v1462 = vrot.slane %v1457, %v1461
      %v1463 = vlaneseq
      %v1464 = vshrl.u32 %v1463, 7
      %v1465 = vsub.s32 1, %v1464
      %v1466 = vrot.slane %v1457, %v1465
      %v1467 = vlaneseq
      %v1468 = vshrl.u32 %v1467, 7
      %v1469 = vsub.s32 2, %v1468
      %v1470 = vrot.slane %v1457, %v1469
      %v1471 = vlaneseq
      %v1472 = vshrl.u32 %v1471, 7
      %v1473 = vsub.s32 3, %v1472
      %v1474 = vrot.slane %v1457, %v1473
      %v1475 = vlaneseq
      %v1476 = vshrl.u32 %v1475, 7
      %v1477 = vsub.s32 4, %v1476
      %v1478 = vrot.slane %v1457, %v1477
      %v1479 = vlaneseq
      %v1480 = vshrl.u32 %v1479, 7
      %v1481 = vsub.s32 5, %v1480
      %v1482 = vrot.slane %v1457, %v1481
      %v1483 = vlaneseq
      %v1484 = vshrl.u32 %v1483, 7
      %v1485 = vsub.s32 6, %v1484
      %v1486 = vrot.slane %v1457, %v1485
      %v1487 = vlaneseq
      %v1488 = vshrl.u32 %v1487, 7
      %v1489 = vsub.s32 7, %v1488
      %v1490 = vrot.slane %v1457, %v1489
      %v1627 = vunpack.c.l.b16 %v1329
      %v1628 = vunpack.c.h.b16 %v1329
      %v1629 = vunpack.c.l.b16 %v1330
      %v1630 = vunpack.c.h.b16 %v1330
      %v1631 = vunpack.c.l.b16 %v1331
      %v1632 = vunpack.c.h.b16 %v1331
      %v1633 = vunpack.c.l.b16 %v1332
      %v1634 = vunpack.c.h.b16 %v1332
      %v1635 = vunpack.c.l.b16 %v1333
      %v1636 = vunpack.c.h.b16 %v1333
      %v1637 = vunpack.c.l.b16 %v1334
      %v1638 = vunpack.c.h.b16 %v1334
      %v1639 = vunpack.c.l.b16 %v1335
      %v1640 = vunpack.c.h.b16 %v1335
      %v1641 = vunpack.c.l.b16 %v1336
      %v1642 = vunpack.c.h.b16 %v1336
      %v1643 = vunpack.c.l.b16 %v1337
      %v1644 = vunpack.c.h.b16 %v1337
      %v1645 = vunpack.c.l.b16 %v1338
      %v1646 = vunpack.c.h.b16 %v1338
      %v1647 = vunpack.c.l.b16 %v1339
      %v1648 = vunpack.c.h.b16 %v1339
      %v1649 = vunpack.c.l.b16 %v1340
      %v1650 = vunpack.c.h.b16 %v1340
      %v1651 = vunpack.c.l.b16 %v1341
      %v1652 = vunpack.c.h.b16 %v1341
      %v1653 = vunpack.c.l.b16 %v1342
      %v1654 = vunpack.c.h.b16 %v1342
      %v1655 = vunpack.c.l.b16 %v1343
      %v1656 = vunpack.c.h.b16 %v1343
      %v1657 = vunpack.c.l.b16 %v1344
      %v1658 = vunpack.c.h.b16 %v1344
      %v1659 = vunpack.c.l.b16 %v1345
      %v1660 = vunpack.c.h.b16 %v1345
      %v1661 = vunpack.c.l.b16 %v1346
      %v1662 = vunpack.c.h.b16 %v1346
      %v1663 = vunpack.c.l.b16 %v1347
      %v1664 = vunpack.c.h.b16 %v1347
      %v1665 = vunpack.c.l.b16 %v1348
      %v1666 = vunpack.c.h.b16 %v1348
      %v1667 = vunpack.c.l.b16 %v1349
      %v1668 = vunpack.c.h.b16 %v1349
      %v1669 = vunpack.c.l.b16 %v1350
      %v1670 = vunpack.c.h.b16 %v1350
      %v1671 = vunpack.c.l.b16 %v1351
      %v1672 = vunpack.c.h.b16 %v1351
      %v1673 = vunpack.c.l.b16 %v1352
      %v1674 = vunpack.c.h.b16 %v1352
      %v1675 = vunpack.c.l.b16 %v1353
      %v1676 = vunpack.c.h.b16 %v1353
      %v1677 = vunpack.c.l.b16 %v1354
      %v1678 = vunpack.c.h.b16 %v1354
      %v1679 = vunpack.c.l.b16 %v1355
      %v1680 = vunpack.c.h.b16 %v1355
      %v1681 = vunpack.c.l.b16 %v1356
      %v1682 = vunpack.c.h.b16 %v1356
      %v1683 = vunpack.c.l.b16 %v1357
      %v1684 = vunpack.c.h.b16 %v1357
      %v1685 = vunpack.c.l.b16 %v1358
      %v1686 = vunpack.c.h.b16 %v1358
      %v1687 = vunpack.c.l.b16 %v1359
      %v1688 = vunpack.c.h.b16 %v1359
      %v1689 = vunpack.c.l.b16 %v1360
      %v1690 = vunpack.c.h.b16 %v1360
      %v1691 = vunpack.c.l.b16 %v1361
      %v1692 = vunpack.c.h.b16 %v1361
      %v1693 = vunpack.c.l.b16 %v1362
      %v1694 = vunpack.c.h.b16 %v1362
      %v1695 = vunpack.c.l.b16 %v1363
      %v1696 = vunpack.c.h.b16 %v1363
      %v1697 = vunpack.c.l.b16 %v1364
      %v1698 = vunpack.c.h.b16 %v1364
      %v1699 = vunpack.c.l.b16 %v1365
      %v1700 = vunpack.c.h.b16 %v1365
      %v1701 = vunpack.c.l.b16 %v1366
      %v1702 = vunpack.c.h.b16 %v1366
      %v1703 = vunpack.c.l.b16 %v1367
      %v1704 = vunpack.c.h.b16 %v1367
      %v1705 = vunpack.c.l.b16 %v1368
      %v1706 = vunpack.c.h.b16 %v1368
      %v1707 = vunpack.c.l.b16 %v1369
      %v1708 = vunpack.c.h.b16 %v1369
      %v1709 = vunpack.c.l.b16 %v1370
      %v1710 = vunpack.c.h.b16 %v1370
      %v1711 = vunpack.c.l.b16 %v1371
      %v1712 = vunpack.c.h.b16 %v1371
      %v1713 = vunpack.c.l.b16 %v1372
      %v1714 = vunpack.c.h.b16 %v1372
      %v1715 = vunpack.c.l.b16 %v1373
      %v1716 = vunpack.c.h.b16 %v1373
      %v1717 = vunpack.c.l.b16 %v1374
      %v1718 = vunpack.c.h.b16 %v1374
      %v1719 = vunpack.c.l.b16 %v1375
      %v1720 = vunpack.c.h.b16 %v1375
      %v1721 = vunpack.c.l.b16 %v1376
      %v1722 = vunpack.c.h.b16 %v1376
      %v1723 = vunpack.c.l.b16 %v1377
      %v1724 = vunpack.c.h.b16 %v1377
      %v1725 = vunpack.c.l.b16 %v1378
      %v1726 = vunpack.c.h.b16 %v1378
      %v1727 = vunpack.c.l.b16 %v1379
      %v1728 = vunpack.c.h.b16 %v1379
      %v1729 = vunpack.c.l.b16 %v1380
      %v1730 = vunpack.c.h.b16 %v1380
      %v1731 = vunpack.c.l.b16 %v1381
      %v1732 = vunpack.c.h.b16 %v1381
      %v1733 = vunpack.c.l.b16 %v1382
      %v1734 = vunpack.c.h.b16 %v1382
      %v1735 = vunpack.c.l.b16 %v1383
      %v1736 = vunpack.c.h.b16 %v1383
      %v1737 = vunpack.c.l.b16 %v1384
      %v1738 = vunpack.c.h.b16 %v1384
      %v1739 = vunpack.c.l.b16 %v1385
      %v1740 = vunpack.c.h.b16 %v1385
      %v1741 = vunpack.c.l.b16 %v1386
      %v1742 = vunpack.c.h.b16 %v1386
      %v1743 = vunpack.c.l.b16 %v1387
      %v1744 = vunpack.c.h.b16 %v1387
      %v1745 = vunpack.c.l.b16 %v1388
      %v1746 = vunpack.c.h.b16 %v1388
      %v1747 = vunpack.c.l.b16 %v1389
      %v1748 = vunpack.c.h.b16 %v1389
      %v1749 = vunpack.c.l.b16 %v1390
      %v1750 = vunpack.c.h.b16 %v1390
      %v1751 = vunpack.c.l.b16 %v1391
      %v1752 = vunpack.c.h.b16 %v1391
      %v1753 = vunpack.c.l.b16 %v1392
      %v1754 = vunpack.c.h.b16 %v1392
      %v1755 = vunpack.c.l.b16 %v1393
      %v1756 = vunpack.c.h.b16 %v1393
      %v1757 = vunpack.c.l.b16 %v1394
      %v1758 = vunpack.c.h.b16 %v1394
      %v1759 = vunpack.c.l.b16 %v1395
      %v1760 = vunpack.c.h.b16 %v1395
      %v1761 = vunpack.c.l.b16 %v1396
      %v1762 = vunpack.c.h.b16 %v1396
      %v1763 = vunpack.c.l.b16 %v1397
      %v1764 = vunpack.c.h.b16 %v1397
      %v1765 = vunpack.c.l.b16 %v1398
      %v1766 = vunpack.c.h.b16 %v1398
      %v1767 = vunpack.c.l.b16 %v1399
      %v1768 = vunpack.c.h.b16 %v1399
      %v1769 = vunpack.c.l.b16 %v1400
      %v1770 = vunpack.c.h.b16 %v1400
      %v1771 = vunpack.c.l.b16 %v1401
      %v1772 = vunpack.c.h.b16 %v1401
      %v1773 = vunpack.c.l.b16 %v1402
      %v1774 = vunpack.c.h.b16 %v1402
      %v1775 = vunpack.c.l.b16 %v1403
      %v1776 = vunpack.c.h.b16 %v1403
      %v1777 = vunpack.c.l.b16 %v1404
      %v1778 = vunpack.c.h.b16 %v1404
      %v1779 = vunpack.c.l.b16 %v1405
      %v1780 = vunpack.c.h.b16 %v1405
      %v1781 = vunpack.c.l.b16 %v1406
      %v1782 = vunpack.c.h.b16 %v1406
      %v1783 = vunpack.c.l.b16 %v1407
      %v1784 = vunpack.c.h.b16 %v1407
      %v1785 = vunpack.c.l.b16 %v1408
      %v1786 = vunpack.c.h.b16 %v1408
      %v1787 = vunpack.c.l.b16 %v1409
      %v1788 = vunpack.c.h.b16 %v1409
      %v1789 = vunpack.c.l.b16 %v1410
      %v1790 = vunpack.c.h.b16 %v1410
      %v1791 = vunpack.c.l.b16 %v1411
      %v1792 = vunpack.c.h.b16 %v1411
      %v1793 = vunpack.c.l.b16 %v1412
      %v1794 = vunpack.c.h.b16 %v1412
      %v1795 = vunpack.c.l.b16 %v1413
      %v1796 = vunpack.c.h.b16 %v1413
      %v1797 = vunpack.c.l.b16 %v1414
      %v1798 = vunpack.c.h.b16 %v1414
      %v1799 = vunpack.c.l.b16 %v1415
      %v1800 = vunpack.c.h.b16 %v1415
      %v1801 = vunpack.c.l.b16 %v1416
      %v1802 = vunpack.c.h.b16 %v1416
      %v1803 = vunpack.c.l.b16 %v1417
      %v1804 = vunpack.c.h.b16 %v1417
      %v1805 = vunpack.c.l.b16 %v1418
      %v1806 = vunpack.c.h.b16 %v1418
      %v1807 = vunpack.c.l.b16 %v1419
      %v1808 = vunpack.c.h.b16 %v1419
      %v1809 = vunpack.c.l.b16 %v1420
      %v1810 = vunpack.c.h.b16 %v1420
      %v1811 = vunpack.c.l.b16 %v1421
      %v1812 = vunpack.c.h.b16 %v1421
      %v1813 = vunpack.c.l.b16 %v1422
      %v1814 = vunpack.c.h.b16 %v1422
      %v1815 = vunpack.c.l.b16 %v1423
      %v1816 = vunpack.c.h.b16 %v1423
      %v1817 = vunpack.c.l.b16 %v1424
      %v1818 = vunpack.c.h.b16 %v1424
      %v1819 = vunpack.c.l.b16 %v1425
      %v1820 = vunpack.c.h.b16 %v1425
      %v1821 = vunpack.c.l.b16 %v1426
      %v1822 = vunpack.c.h.b16 %v1426
      %v1823 = vunpack.c.l.b16 %v1427
      %v1824 = vunpack.c.h.b16 %v1427
      %v1825 = vunpack.c.l.b16 %v1428
      %v1826 = vunpack.c.h.b16 %v1428
      %v1827 = vunpack.c.l.b16 %v1429
      %v1828 = vunpack.c.h.b16 %v1429
      %v1829 = vunpack.c.l.b16 %v1430
      %v1830 = vunpack.c.h.b16 %v1430
      %v1831 = vunpack.c.l.b16 %v1431
      %v1832 = vunpack.c.h.b16 %v1431
      %v1833 = vunpack.c.l.b16 %v1432
      %v1834 = vunpack.c.h.b16 %v1432
      %v1835 = vunpack.c.l.b16 %v1433
      %v1836 = vunpack.c.h.b16 %v1433
      %v1837 = vunpack.c.l.b16 %v1434
      %v1838 = vunpack.c.h.b16 %v1434
      %v1839 = vunpack.c.l.b16 %v1435
      %v1840 = vunpack.c.h.b16 %v1435
      %v1841 = vunpack.c.l.b16 %v1436
      %v1842 = vunpack.c.h.b16 %v1436
      %v1843 = vunpack.c.l.b16 %v1437
      %v1844 = vunpack.c.h.b16 %v1437
      %v1845 = vunpack.c.l.b16 %v1438
      %v1846 = vunpack.c.h.b16 %v1438
      %v1847 = vunpack.c.l.b16 %v1439
      %v1848 = vunpack.c.h.b16 %v1439
      %v1849 = vunpack.c.l.b16 %v1440
      %v1850 = vunpack.c.h.b16 %v1440
      %v1851 = vunpack.c.l.b16 %v1441
      %v1852 = vunpack.c.h.b16 %v1441
      %v1853 = vunpack.c.l.b16 %v1442
      %v1854 = vunpack.c.h.b16 %v1442
      %v1855 = vunpack.c.l.b16 %v1443
      %v1856 = vunpack.c.h.b16 %v1443
      %v1857 = vunpack.c.l.b16 %v1444
      %v1858 = vunpack.c.h.b16 %v1444
      %v1859 = vunpack.c.l.b16 %v1445
      %v1860 = vunpack.c.h.b16 %v1445
      %v1861 = vunpack.c.l.b16 %v1446
      %v1862 = vunpack.c.h.b16 %v1446
      %v1863 = vunpack.c.l.b16 %v1447
      %v1864 = vunpack.c.h.b16 %v1447
      %v1865 = vunpack.c.l.b16 %v1448
      %v1866 = vunpack.c.h.b16 %v1448
      %v1867 = vunpack.c.l.b16 %v1449
      %v1868 = vunpack.c.h.b16 %v1449
      %v1869 = vunpack.c.l.b16 %v1450
      %v1870 = vunpack.c.h.b16 %v1450
      %v1871 = vunpack.c.l.b16 %v1451
      %v1872 = vunpack.c.h.b16 %v1451
      %v1873 = vunpack.c.l.b16 %v1452
      %v1874 = vunpack.c.h.b16 %v1452
      %v1875 = vunpack.c.l.b16 %v1453
      %v1876 = vunpack.c.h.b16 %v1453
      %v1877 = vunpack.c.l.b16 %v1454
      %v1878 = vunpack.c.h.b16 %v1454
      %v1879 = vunpack.c.l.b16 %v1455
      %v1880 = vunpack.c.h.b16 %v1455
      %v1881 = vunpack.c.l.b16 %v1456
      %v1882 = vunpack.c.h.b16 %v1456
      %v1883 = vpack.c.b16 %v1635, %v1627
      %v1884 = vpack.c.b16 %v1636, %v1628
      %v1885 = vpack.c.b16 %v1637, %v1629
      %v1886 = vpack.c.b16 %v1638, %v1630
      %v1887 = vpack.c.b16 %v1639, %v1631
      %v1888 = vpack.c.b16 %v1640, %v1632
      %v1889 = vpack.c.b16 %v1641, %v1633
      %v1890 = vpack.c.b16 %v1642, %v1634
      %v1891 = vpack.c.b16 %v1651, %v1643
      %v1892 = vpack.c.b16 %v1652, %v1644
      %v1893 = vpack.c.b16 %v1653, %v1645
      %v1894 = vpack.c.b16 %v1654, %v1646
      %v1895 = vpack.c.b16 %v1655, %v1647
      %v1896 = vpack.c.b16 %v1656, %v1648
      %v1897 = vpack.c.b16 %v1657, %v1649
      %v1898 = vpack.c.b16 %v1658, %v1650
      %v1899 = vpack.c.b16 %v1667, %v1659
      %v1900 = vpack.c.b16 %v1668, %v1660
      %v1901 = vpack.c.b16 %v1669, %v1661
      %v1902 = vpack.c.b16 %v1670, %v1662
      %v1903 = vpack.c.b16 %v1671, %v1663
      %v1904 = vpack.c.b16 %v1672, %v1664
      %v1905 = vpack.c.b16 %v1673, %v1665
      %v1906 = vpack.c.b16 %v1674, %v1666
      %v1907 = vpack.c.b16 %v1683, %v1675
      %v1908 = vpack.c.b16 %v1684, %v1676
      %v1909 = vpack.c.b16 %v1685, %v1677
      %v1910 = vpack.c.b16 %v1686, %v1678
      %v1911 = vpack.c.b16 %v1687, %v1679
      %v1912 = vpack.c.b16 %v1688, %v1680
      %v1913 = vpack.c.b16 %v1689, %v1681
      %v1914 = vpack.c.b16 %v1690, %v1682
      %v1915 = vpack.c.b16 %v1699, %v1691
      %v1916 = vpack.c.b16 %v1700, %v1692
      %v1917 = vpack.c.b16 %v1701, %v1693
      %v1918 = vpack.c.b16 %v1702, %v1694
      %v1919 = vpack.c.b16 %v1703, %v1695
      %v1920 = vpack.c.b16 %v1704, %v1696
      %v1921 = vpack.c.b16 %v1705, %v1697
      %v1922 = vpack.c.b16 %v1706, %v1698
      %v1923 = vpack.c.b16 %v1715, %v1707
      %v1924 = vpack.c.b16 %v1716, %v1708
      %v1925 = vpack.c.b16 %v1717, %v1709
      %v1926 = vpack.c.b16 %v1718, %v1710
      %v1927 = vpack.c.b16 %v1719, %v1711
      %v1928 = vpack.c.b16 %v1720, %v1712
      %v1929 = vpack.c.b16 %v1721, %v1713
      %v1930 = vpack.c.b16 %v1722, %v1714
      %v1931 = vpack.c.b16 %v1731, %v1723
      %v1932 = vpack.c.b16 %v1732, %v1724
      %v1933 = vpack.c.b16 %v1733, %v1725
      %v1934 = vpack.c.b16 %v1734, %v1726
      %v1935 = vpack.c.b16 %v1735, %v1727
      %v1936 = vpack.c.b16 %v1736, %v1728
      %v1937 = vpack.c.b16 %v1737, %v1729
      %v1938 = vpack.c.b16 %v1738, %v1730
      %v1939 = vpack.c.b16 %v1747, %v1739
      %v1940 = vpack.c.b16 %v1748, %v1740
      %v1941 = vpack.c.b16 %v1749, %v1741
      %v1942 = vpack.c.b16 %v1750, %v1742
      %v1943 = vpack.c.b16 %v1751, %v1743
      %v1944 = vpack.c.b16 %v1752, %v1744
      %v1945 = vpack.c.b16 %v1753, %v1745
      %v1946 = vpack.c.b16 %v1754, %v1746
      %v1947 = vpack.c.b16 %v1763, %v1755
      %v1948 = vpack.c.b16 %v1764, %v1756
      %v1949 = vpack.c.b16 %v1765, %v1757
      %v1950 = vpack.c.b16 %v1766, %v1758
      %v1951 = vpack.c.b16 %v1767, %v1759
      %v1952 = vpack.c.b16 %v1768, %v1760
      %v1953 = vpack.c.b16 %v1769, %v1761
      %v1954 = vpack.c.b16 %v1770, %v1762
      %v1955 = vpack.c.b16 %v1779, %v1771
      %v1956 = vpack.c.b16 %v1780, %v1772
      %v1957 = vpack.c.b16 %v1781, %v1773
      %v1958 = vpack.c.b16 %v1782, %v1774
      %v1959 = vpack.c.b16 %v1783, %v1775
      %v1960 = vpack.c.b16 %v1784, %v1776
      %v1961 = vpack.c.b16 %v1785, %v1777
      %v1962 = vpack.c.b16 %v1786, %v1778
      %v1963 = vpack.c.b16 %v1795, %v1787
      %v1964 = vpack.c.b16 %v1796, %v1788
      %v1965 = vpack.c.b16 %v1797, %v1789
      %v1966 = vpack.c.b16 %v1798, %v1790
      %v1967 = vpack.c.b16 %v1799, %v1791
      %v1968 = vpack.c.b16 %v1800, %v1792
      %v1969 = vpack.c.b16 %v1801, %v1793
      %v1970 = vpack.c.b16 %v1802, %v1794
      %v1971 = vpack.c.b16 %v1811, %v1803
      %v1972 = vpack.c.b16 %v1812, %v1804
      %v1973 = vpack.c.b16 %v1813, %v1805
      %v1974 = vpack.c.b16 %v1814, %v1806
      %v1975 = vpack.c.b16 %v1815, %v1807
      %v1976 = vpack.c.b16 %v1816, %v1808
      %v1977 = vpack.c.b16 %v1817, %v1809
      %v1978 = vpack.c.b16 %v1818, %v1810
      %v1979 = vpack.c.b16 %v1827, %v1819
      %v1980 = vpack.c.b16 %v1828, %v1820
      %v1981 = vpack.c.b16 %v1829, %v1821
      %v1982 = vpack.c.b16 %v1830, %v1822
      %v1983 = vpack.c.b16 %v1831, %v1823
      %v1984 = vpack.c.b16 %v1832, %v1824
      %v1985 = vpack.c.b16 %v1833, %v1825
      %v1986 = vpack.c.b16 %v1834, %v1826
      %v1987 = vpack.c.b16 %v1843, %v1835
      %v1988 = vpack.c.b16 %v1844, %v1836
      %v1989 = vpack.c.b16 %v1845, %v1837
      %v1990 = vpack.c.b16 %v1846, %v1838
      %v1991 = vpack.c.b16 %v1847, %v1839
      %v1992 = vpack.c.b16 %v1848, %v1840
      %v1993 = vpack.c.b16 %v1849, %v1841
      %v1994 = vpack.c.b16 %v1850, %v1842
      %v1995 = vpack.c.b16 %v1859, %v1851
      %v1996 = vpack.c.b16 %v1860, %v1852
      %v1997 = vpack.c.b16 %v1861, %v1853
      %v1998 = vpack.c.b16 %v1862, %v1854
      %v1999 = vpack.c.b16 %v1863, %v1855
      %v2000 = vpack.c.b16 %v1864, %v1856
      %v2001 = vpack.c.b16 %v1865, %v1857
      %v2002 = vpack.c.b16 %v1866, %v1858
      %v2003 = vpack.c.b16 %v1875, %v1867
      %v2004 = vpack.c.b16 %v1876, %v1868
      %v2005 = vpack.c.b16 %v1877, %v1869
      %v2006 = vpack.c.b16 %v1878, %v1870
      %v2007 = vpack.c.b16 %v1879, %v1871
      %v2008 = vpack.c.b16 %v1880, %v1872
      %v2009 = vpack.c.b16 %v1881, %v1873
      %v2010 = vpack.c.b16 %v1882, %v1874
      %2139 = vmatprep.subr.bf16.mxu0 %v1884
      %2140 = vmatpush1.bf16.msra.mxu0 %v1883
      %2141 = vmatprep.subr.bf16.mxu0 %v1892
      %2142 = vmatpush1.bf16.msra.mxu0 %v1891
      %2143 = vmatprep.subr.bf16.mxu0 %v1900
      %2144 = vmatpush1.bf16.msra.mxu0 %v1899
      %2145 = vmatprep.subr.bf16.mxu0 %v1908
      %2146 = vmatpush1.bf16.msra.mxu0 %v1907
      %2147 = vmatprep.subr.bf16.mxu0 %v1916
      %2148 = vmatpush1.bf16.msra.mxu0 %v1915
      %2149 = vmatprep.subr.bf16.mxu0 %v1924
      %2150 = vmatpush1.bf16.msra.mxu0 %v1923
      %2151 = vmatprep.subr.bf16.mxu0 %v1932
      %2152 = vmatpush1.bf16.msra.mxu0 %v1931
      %2153 = vmatprep.subr.bf16.mxu0 %v1940
      %2154 = vmatpush1.bf16.msra.mxu0 %v1939
      %2155 = vmatprep.subr.bf16.mxu0 %v1948
      %2156 = vmatpush1.bf16.msra.mxu0 %v1947
      %2157 = vmatprep.subr.bf16.mxu0 %v1956
      %2158 = vmatpush1.bf16.msra.mxu0 %v1955
      %2159 = vmatprep.subr.bf16.mxu0 %v1964
      %2160 = vmatpush1.bf16.msra.mxu0 %v1963
      %2161 = vmatprep.subr.bf16.mxu0 %v1972
      %2162 = vmatpush1.bf16.msra.mxu0 %v1971
      %2163 = vmatprep.subr.bf16.mxu0 %v1980
      %2164 = vmatpush1.bf16.msra.mxu0 %v1979
      %2165 = vmatprep.subr.bf16.mxu0 %v1988
      %2166 = vmatpush1.bf16.msra.mxu0 %v1987
      %2167 = vmatprep.subr.bf16.mxu0 %v1996
      %2168 = vmatpush1.bf16.msra.mxu0 %v1995
      %2169 = vmatprep.subr.bf16.mxu0 %v2004
      %2170 = vmatpush1.bf16.msra.mxu0 %v2003
      %2171 = vmatprep.mubr.bf16.mxu0 %v1314
      %2172 = vmatmul.mubr.bf16.gmra.mrb[0].mxu0 %v1313
      %v2173 = vpop.f32.mrb[0].mxu0
      %v2174 = vadd.f32 %v1462, %v2173
      %v2175 = vpop.f32.mrb[0].mxu0
      %v2176 = vadd.f32 %v1466, %v2175
      %v2177 = vpop.f32.mrb[0].mxu0
      %v2178 = vadd.f32 %v1462, %v2177
      %v2179 = vpop.f32.mrb[0].mxu0
      %v2180 = vadd.f32 %v1466, %v2179
      %2181 = vmatprep.mubr.bf16.mxu0 %v1316
      %2182 = vmatmul.mubr.bf16.gmra.mrb[0].mxu0 %v1315
      %v2183 = vpop.f32.mrb[0].mxu0
      %v2184 = vadd.f32 %v1462, %v2183
      %v2185 = vpop.f32.mrb[0].mxu0
      %v2186 = vadd.f32 %v1466, %v2185
      %v2187 = vpop.f32.mrb[0].mxu0
      %v2188 = vadd.f32 %v1462, %v2187
      %v2189 = vpop.f32.mrb[0].mxu0
      %v2190 = vadd.f32 %v1466, %v2189
      %2191 = vmatprep.mubr.bf16.mxu0 %v1318
      %2192 = vmatmul.mubr.bf16.gmra.mrb[0].mxu0 %v1317
      %v2193 = vpop.f32.mrb[0].mxu0
      %v2194 = vadd.f32 %v1462, %v2193
      %v2195 = vpop.f32.mrb[0].mxu0
      %v2196 = vadd.f32 %v1466, %v2195
      %v2197 = vpop.f32.mrb[0].mxu0
      %v2198 = vadd.f32 %v1462, %v2197
      %v2199 = vpop.f32.mrb[0].mxu0
      %v2200 = vadd.f32 %v1466, %v2199
      %2201 = vmatprep.mubr.bf16.mxu0 %v1320
      %2202 = vmatmul.mubr.bf16.gmra.mrb[0].mxu0 %v1319
      %v2203 = vpop.f32.mrb[0].mxu0
      %v2204 = vadd.f32 %v1462, %v2203
      %v2205 = vpop.f32.mrb[0].mxu0
      %v2206 = vadd.f32 %v1466, %v2205
      %v2207 = vpop.f32.mrb[0].mxu0
      %v2208 = vadd.f32 %v1462, %v2207
      %v2209 = vpop.f32.mrb[0].mxu0
      %v2210 = vadd.f32 %v1466, %v2209
      %2211 = vmatprep.mubr.bf16.mxu0 %v1322
      %2212 = vmatmul.mubr.bf16.gmra.mrb[0].mxu0 %v1321
      %v2213 = vpop.f32.mrb[0].mxu0
      %v2214 = vadd.f32 %v1462, %v2213
      %v2215 = vpop.f32.mrb[0].mxu0
      %v2216 = vadd.f32 %v1466, %v2215
      %v2217 = vpop.f32.mrb[0].mxu0
      %v2218 = vadd.f32 %v1462, %v2217
      %v2219 = vpop.f32.mrb[0].mxu0
      %v2220 = vadd.f32 %v1466, %v2219
      %2221 = vmatprep.mubr.bf16.mxu0 %v1324
      %2222 = vmatmul.mubr.bf16.gmra.mrb[0].mxu0 %v1323
      %v2223 = vpop.f32.mrb[0].mxu0
      %v2224 = vadd.f32 %v1462, %v2223
      %v2225 = vpop.f32.mrb[0].mxu0
      %v2226 = vadd.f32 %v1466, %v2225
      %v2227 = vpop.f32.mrb[0].mxu0
      %v2228 = vadd.f32 %v1462, %v2227
      %v2229 = vpop.f32.mrb[0].mxu0
      %v2230 = vadd.f32 %v1466, %v2229
      %2231 = vmatprep.mubr.bf16.mxu0 %v1326
      %2232 = vmatmul.mubr.bf16.gmra.mrb[0].mxu0 %v1325
      %v2233 = vpop.f32.mrb[0].mxu0
      %v2234 = vadd.f32 %v1462, %v2233
      %v2235 = vpop.f32.mrb[0].mxu0
      %v2236 = vadd.f32 %v1466, %v2235
      %v2237 = vpop.f32.mrb[0].mxu0
      %v2238 = vadd.f32 %v1462, %v2237
      %v2239 = vpop.f32.mrb[0].mxu0
      %v2240 = vadd.f32 %v1466, %v2239
      %2241 = vmatprep.mubr.bf16.mxu0 %v1328
      %2242 = vmatmul.mubr.bf16.gmra.mrb[0].mxu0 %v1327
      %v2243 = vpop.f32.mrb[0].mxu0
      %v2244 = vadd.f32 %v1462, %v2243
      %v2245 = vpop.f32.mrb[0].mxu0
      %v2246 = vadd.f32 %v1466, %v2245
      %v2247 = vpop.f32.mrb[0].mxu0
      %v2248 = vadd.f32 %v1462, %v2247
      %v2249 = vpop.f32.mrb[0].mxu0
      %v2250 = vadd.f32 %v1466, %v2249
      %2251 = vdwg.mxu0
      %2252 = vmatprep.subr.bf16.mxu0 %v1886
      %2253 = vmatpush1.bf16.msra.mxu0 %v1885
      %2254 = vmatprep.subr.bf16.mxu0 %v1894
      %2255 = vmatpush1.bf16.msra.mxu0 %v1893
      %2256 = vmatprep.subr.bf16.mxu0 %v1902
      %2257 = vmatpush1.bf16.msra.mxu0 %v1901
      %2258 = vmatprep.subr.bf16.mxu0 %v1910
      %2259 = vmatpush1.bf16.msra.mxu0 %v1909
      %2260 = vmatprep.subr.bf16.mxu0 %v1918
      %2261 = vmatpush1.bf16.msra.mxu0 %v1917
      %2262 = vmatprep.subr.bf16.mxu0 %v1926
      %2263 = vmatpush1.bf16.msra.mxu0 %v1925
      %2264 = vmatprep.subr.bf16.mxu0 %v1934
      %2265 = vmatpush1.bf16.msra.mxu0 %v1933
      %2266 = vmatprep.subr.bf16.mxu0 %v1942
      %2267 = vmatpush1.bf16.msra.mxu0 %v1941
      %2268 = vmatprep.subr.bf16.mxu0 %v1950
      %2269 = vmatpush1.bf16.msra.mxu0 %v1949
      %2270 = vmatprep.subr.bf16.mxu0 %v1958
      %2271 = vmatpush1.bf16.msra.mxu0 %v1957
      %2272 = vmatprep.subr.bf16.mxu0 %v1966
      %2273 = vmatpush1.bf16.msra.mxu0 %v1965
      %2274 = vmatprep.subr.bf16.mxu0 %v1974
      %2275 = vmatpush1.bf16.msra.mxu0 %v1973
      %2276 = vmatprep.subr.bf16.mxu0 %v1982
      %2277 = vmatpush1.bf16.msra.mxu0 %v1981
      %2278 = vmatprep.subr.bf16.mxu0 %v1990
      %2279 = vmatpush1.bf16.msra.mxu0 %v1989
      %2280 = vmatprep.subr.bf16.mxu0 %v1998
      %2281 = vmatpush1.bf16.msra.mxu0 %v1997
      %2282 = vmatprep.subr.bf16.mxu0 %v2006
      %2283 = vmatpush1.bf16.msra.mxu0 %v2005
      %2284 = vmatprep.mubr.bf16.mxu0 %v1314
      %2285 = vmatmul.mubr.bf16.gmra.mrb[0].mxu0 %v1313
      %v2286 = vpop.f32.mrb[0].mxu0
      %v2287 = vadd.f32 %v1470, %v2286
      %v2288 = vpop.f32.mrb[0].mxu0
      %v2289 = vadd.f32 %v1474, %v2288
      %v2290 = vpop.f32.mrb[0].mxu0
      %v2291 = vadd.f32 %v1470, %v2290
      %v2292 = vpop.f32.mrb[0].mxu0
      %v2293 = vadd.f32 %v1474, %v2292
      %2294 = vmatprep.mubr.bf16.mxu0 %v1316
      %2295 = vmatmul.mubr.bf16.gmra.mrb[0].mxu0 %v1315
      %v2296 = vpop.f32.mrb[0].mxu0
      %v2297 = vadd.f32 %v1470, %v2296
      %v2298 = vpop.f32.mrb[0].mxu0
      %v2299 = vadd.f32 %v1474, %v2298
      %v2300 = vpop.f32.mrb[0].mxu0
      %v2301 = vadd.f32 %v1470, %v2300
      %v2302 = vpop.f32.mrb[0].mxu0
      %v2303 = vadd.f32 %v1474, %v2302
      %2304 = vmatprep.mubr.bf16.mxu0 %v1318
      %2305 = vmatmul.mubr.bf16.gmra.mrb[0].mxu0 %v1317
      %v2306 = vpop.f32.mrb[0].mxu0
      %v2307 = vadd.f32 %v1470, %v2306
      %v2308 = vpop.f32.mrb[0].mxu0
      %v2309 = vadd.f32 %v1474, %v2308
      %v2310 = vpop.f32.mrb[0].mxu0
      %v2311 = vadd.f32 %v1470, %v2310
      %v2312 = vpop.f32.mrb[0].mxu0
      %v2313 = vadd.f32 %v1474, %v2312
      %2314 = vmatprep.mubr.bf16.mxu0 %v1320
      %2315 = vmatmul.mubr.bf16.gmra.mrb[0].mxu0 %v1319
      %v2316 = vpop.f32.mrb[0].mxu0
      %v2317 = vadd.f32 %v1470, %v2316
      %v2318 = vpop.f32.mrb[0].mxu0
      %v2319 = vadd.f32 %v1474, %v2318
      %v2320 = vpop.f32.mrb[0].mxu0
      %v2321 = vadd.f32 %v1470, %v2320
      %v2322 = vpop.f32.mrb[0].mxu0
      %v2323 = vadd.f32 %v1474, %v2322
      %2324 = vmatprep.mubr.bf16.mxu0 %v1322
      %2325 = vmatmul.mubr.bf16.gmra.mrb[0].mxu0 %v1321
      %v2326 = vpop.f32.mrb[0].mxu0
      %v2327 = vadd.f32 %v1470, %v2326
      %v2328 = vpop.f32.mrb[0].mxu0
      %v2329 = vadd.f32 %v1474, %v2328
      %v2330 = vpop.f32.mrb[0].mxu0
      %v2331 = vadd.f32 %v1470, %v2330
      %v2332 = vpop.f32.mrb[0].mxu0
      %v2333 = vadd.f32 %v1474, %v2332
      %2334 = vmatprep.mubr.bf16.mxu0 %v1324
      %2335 = vmatmul.mubr.bf16.gmra.mrb[0].mxu0 %v1323
      %v2336 = vpop.f32.mrb[0].mxu0
      %v2337 = vadd.f32 %v1470, %v2336
      %v2338 = vpop.f32.mrb[0].mxu0
      %v2339 = vadd.f32 %v1474, %v2338
      %v2340 = vpop.f32.mrb[0].mxu0
      %v2341 = vadd.f32 %v1470, %v2340
      %v2342 = vpop.f32.mrb[0].mxu0
      %v2343 = vadd.f32 %v1474, %v2342
      %2344 = vmatprep.mubr.bf16.mxu0 %v1326
      %2345 = vmatmul.mubr.bf16.gmra.mrb[0].mxu0 %v1325
      %v2346 = vpop.f32.mrb[0].mxu0
      %v2347 = vadd.f32 %v1470, %v2346
      %v2348 = vpop.f32.mrb[0].mxu0
      %v2349 = vadd.f32 %v1474, %v2348
      %v2350 = vpop.f32.mrb[0].mxu0
      %v2351 = vadd.f32 %v1470, %v2350
      %v2352 = vpop.f32.mrb[0].mxu0
      %v2353 = vadd.f32 %v1474, %v2352
      %2354 = vmatprep.mubr.bf16.mxu0 %v1328
      %2355 = vmatmul.mubr.bf16.gmra.mrb[0].mxu0 %v1327
      %v2356 = vpop.f32.mrb[0].mxu0
      %v2357 = vadd.f32 %v1470, %v2356
      %v2358 = vpop.f32.mrb[0].mxu0
      %v2359 = vadd.f32 %v1474, %v2358
      %v2360 = vpop.f32.mrb[0].mxu0
      %v2361 = vadd.f32 %v1470, %v2360
      %v2362 = vpop.f32.mrb[0].mxu0
      %v2363 = vadd.f32 %v1474, %v2362
      %2364 = vdwg.mxu0
      %2365 = vmatprep.subr.bf16.mxu0 %v1888
      %2366 = vmatpush1.bf16.msra.mxu0 %v1887
      %2367 = vmatprep.subr.bf16.mxu0 %v1896
      %2368 = vmatpush1.bf16.msra.mxu0 %v1895
      %2369 = vmatprep.subr.bf16.mxu0 %v1904
      %2370 = vmatpush1.bf16.msra.mxu0 %v1903
      %2371 = vmatprep.subr.bf16.mxu0 %v1912
      %2372 = vmatpush1.bf16.msra.mxu0 %v1911
      %2373 = vmatprep.subr.bf16.mxu0 %v1920
      %2374 = vmatpush1.bf16.msra.mxu0 %v1919
      %2375 = vmatprep.subr.bf16.mxu0 %v1928
      %2376 = vmatpush1.bf16.msra.mxu0 %v1927
      %2377 = vmatprep.subr.bf16.mxu0 %v1936
      %2378 = vmatpush1.bf16.msra.mxu0 %v1935
      %2379 = vmatprep.subr.bf16.mxu0 %v1944
      %2380 = vmatpush1.bf16.msra.mxu0 %v1943
      %2381 = vmatprep.subr.bf16.mxu0 %v1952
      %2382 = vmatpush1.bf16.msra.mxu0 %v1951
      %2383 = vmatprep.subr.bf16.mxu0 %v1960
      %2384 = vmatpush1.bf16.msra.mxu0 %v1959
      %2385 = vmatprep.subr.bf16.mxu0 %v1968
      %2386 = vmatpush1.bf16.msra.mxu0 %v1967
      %2387 = vmatprep.subr.bf16.mxu0 %v1976
      %2388 = vmatpush1.bf16.msra.mxu0 %v1975
      %2389 = vmatprep.subr.bf16.mxu0 %v1984
      %2390 = vmatpush1.bf16.msra.mxu0 %v1983
      %2391 = vmatprep.subr.bf16.mxu0 %v1992
      %2392 = vmatpush1.bf16.msra.mxu0 %v1991
      %2393 = vmatprep.subr.bf16.mxu0 %v2000
      %2394 = vmatpush1.bf16.msra.mxu0 %v1999
      %2395 = vmatprep.subr.bf16.mxu0 %v2008
      %2396 = vmatpush1.bf16.msra.mxu0 %v2007
      %2397 = vmatprep.mubr.bf16.mxu0 %v1314
      %2398 = vmatmul.mubr.bf16.gmra.mrb[0].mxu0 %v1313
      %v2399 = vpop.f32.mrb[0].mxu0
      %v2400 = vadd.f32 %v1478, %v2399
      %v2401 = vpop.f32.mrb[0].mxu0
      %v2402 = vadd.f32 %v1482, %v2401
      %v2403 = vpop.f32.mrb[0].mxu0
      %v2404 = vadd.f32 %v1478, %v2403
      %v2405 = vpop.f32.mrb[0].mxu0
      %v2406 = vadd.f32 %v1482, %v2405
      %2407 = vmatprep.mubr.bf16.mxu0 %v1316
      %2408 = vmatmul.mubr.bf16.gmra.mrb[0].mxu0 %v1315
      %v2409 = vpop.f32.mrb[0].mxu0
      %v2410 = vadd.f32 %v1478, %v2409
      %v2411 = vpop.f32.mrb[0].mxu0
      %v2412 = vadd.f32 %v1482, %v2411
      %v2413 = vpop.f32.mrb[0].mxu0
      %v2414 = vadd.f32 %v1478, %v2413
      %v2415 = vpop.f32.mrb[0].mxu0
      %v2416 = vadd.f32 %v1482, %v2415
      %2417 = vmatprep.mubr.bf16.mxu0 %v1318
      %2418 = vmatmul.mubr.bf16.gmra.mrb[0].mxu0 %v1317
      %v2419 = vpop.f32.mrb[0].mxu0
      %v2420 = vadd.f32 %v1478, %v2419
      %v2421 = vpop.f32.mrb[0].mxu0
      %v2422 = vadd.f32 %v1482, %v2421
      %v2423 = vpop.f32.mrb[0].mxu0
      %v2424 = vadd.f32 %v1478, %v2423
      %v2425 = vpop.f32.mrb[0].mxu0
      %v2426 = vadd.f32 %v1482, %v2425
      %2427 = vmatprep.mubr.bf16.mxu0 %v1320
      %2428 = vmatmul.mubr.bf16.gmra.mrb[0].mxu0 %v1319
      %v2429 = vpop.f32.mrb[0].mxu0
      %v2430 = vadd.f32 %v1478, %v2429
      %v2431 = vpop.f32.mrb[0].mxu0
      %v2432 = vadd.f32 %v1482, %v2431
      %v2433 = vpop.f32.mrb[0].mxu0
      %v2434 = vadd.f32 %v1478, %v2433
      %v2435 = vpop.f32.mrb[0].mxu0
      %v2436 = vadd.f32 %v1482, %v2435
      %2437 = vmatprep.mubr.bf16.mxu0 %v1322
      %2438 = vmatmul.mubr.bf16.gmra.mrb[0].mxu0 %v1321
      %v2439 = vpop.f32.mrb[0].mxu0
      %v2440 = vadd.f32 %v1478, %v2439
      %v2441 = vpop.f32.mrb[0].mxu0
      %v2442 = vadd.f32 %v1482, %v2441
      %v2443 = vpop.f32.mrb[0].mxu0
      %v2444 = vadd.f32 %v1478, %v2443
      %v2445 = vpop.f32.mrb[0].mxu0
      %v2446 = vadd.f32 %v1482, %v2445
      %2447 = vmatprep.mubr.bf16.mxu0 %v1324
      %2448 = vmatmul.mubr.bf16.gmra.mrb[0].mxu0 %v1323
      %v2449 = vpop.f32.mrb[0].mxu0
      %v2450 = vadd.f32 %v1478, %v2449
      %v2451 = vpop.f32.mrb[0].mxu0
      %v2452 = vadd.f32 %v1482, %v2451
      %v2453 = vpop.f32.mrb[0].mxu0
      %v2454 = vadd.f32 %v1478, %v2453
      %v2455 = vpop.f32.mrb[0].mxu0
      %v2456 = vadd.f32 %v1482, %v2455
      %2457 = vmatprep.mubr.bf16.mxu0 %v1326
      %2458 = vmatmul.mubr.bf16.gmra.mrb[0].mxu0 %v1325
      %v2459 = vpop.f32.mrb[0].mxu0
      %v2460 = vadd.f32 %v1478, %v2459
      %v2461 = vpop.f32.mrb[0].mxu0
      %v2462 = vadd.f32 %v1482, %v2461
      %v2463 = vpop.f32.mrb[0].mxu0
      %v2464 = vadd.f32 %v1478, %v2463
      %v2465 = vpop.f32.mrb[0].mxu0
      %v2466 = vadd.f32 %v1482, %v2465
      %2467 = vmatprep.mubr.bf16.mxu0 %v1328
      %2468 = vmatmul.mubr.bf16.gmra.mrb[0].mxu0 %v1327
      %v2469 = vpop.f32.mrb[0].mxu0
      %v2470 = vadd.f32 %v1478, %v2469
      %v2471 = vpop.f32.mrb[0].mxu0
      %v2472 = vadd.f32 %v1482, %v2471
      %v2473 = vpop.f32.mrb[0].mxu0
      %v2474 = vadd.f32 %v1478, %v2473
      %v2475 = vpop.f32.mrb[0].mxu0
      %v2476 = vadd.f32 %v1482, %v2475
      %2477 = vdwg.mxu0
      %2478 = vmatprep.subr.bf16.mxu0 %v1890
      %2479 = vmatpush1.bf16.msra.mxu0 %v1889
      %2480 = vmatprep.subr.bf16.mxu0 %v1898
      %2481 = vmatpush1.bf16.msra.mxu0 %v1897
      %2482 = vmatprep.subr.bf16.mxu0 %v1906
      %2483 = vmatpush1.bf16.msra.mxu0 %v1905
      %2484 = vmatprep.subr.bf16.mxu0 %v1914
      %2485 = vmatpush1.bf16.msra.mxu0 %v1913
      %2486 = vmatprep.subr.bf16.mxu0 %v1922
      %2487 = vmatpush1.bf16.msra.mxu0 %v1921
      %2488 = vmatprep.subr.bf16.mxu0 %v1930
      %2489 = vmatpush1.bf16.msra.mxu0 %v1929
      %2490 = vmatprep.subr.bf16.mxu0 %v1938
      %2491 = vmatpush1.bf16.msra.mxu0 %v1937
      %2492 = vmatprep.subr.bf16.mxu0 %v1946
      %2493 = vmatpush1.bf16.msra.mxu0 %v1945
      %2494 = vmatprep.subr.bf16.mxu0 %v1954
      %2495 = vmatpush1.bf16.msra.mxu0 %v1953
      %2496 = vmatprep.subr.bf16.mxu0 %v1962
      %2497 = vmatpush1.bf16.msra.mxu0 %v1961
      %2498 = vmatprep.subr.bf16.mxu0 %v1970
      %2499 = vmatpush1.bf16.msra.mxu0 %v1969
      %2500 = vmatprep.subr.bf16.mxu0 %v1978
      %2501 = vmatpush1.bf16.msra.mxu0 %v1977
      %2502 = vmatprep.subr.bf16.mxu0 %v1986
      %2503 = vmatpush1.bf16.msra.mxu0 %v1985
      %2504 = vmatprep.subr.bf16.mxu0 %v1994
      %2505 = vmatpush1.bf16.msra.mxu0 %v1993
      %2506 = vmatprep.subr.bf16.mxu0 %v2002
      %2507 = vmatpush1.bf16.msra.mxu0 %v2001
      %2508 = vmatprep.subr.bf16.mxu0 %v2010
      %2509 = vmatpush1.bf16.msra.mxu0 %v2009
      %2510 = vmatprep.mubr.bf16.mxu0 %v1314
      %2511 = vmatmul.mubr.bf16.gmra.mrb[0].mxu0 %v1313
      %v2512 = vpop.f32.mrb[0].mxu0
      %v2513 = vadd.f32 %v1486, %v2512
      %v2514 = vpop.f32.mrb[0].mxu0
      %v2515 = vadd.f32 %v1490, %v2514
      %v2516 = vpop.f32.mrb[0].mxu0
      %v2517 = vadd.f32 %v1486, %v2516
      %v2518 = vpop.f32.mrb[0].mxu0
      %v2519 = vadd.f32 %v1490, %v2518
      %2520 = vmatprep.mubr.bf16.mxu0 %v1316
      %2521 = vmatmul.mubr.bf16.gmra.mrb[0].mxu0 %v1315
      %v2522 = vpop.f32.mrb[0].mxu0
      %v2523 = vadd.f32 %v1486, %v2522
      %v2524 = vpop.f32.mrb[0].mxu0
      %v2525 = vadd.f32 %v1490, %v2524
      %v2526 = vpop.f32.mrb[0].mxu0
      %v2527 = vadd.f32 %v1486, %v2526
      %v2528 = vpop.f32.mrb[0].mxu0
      %v2529 = vadd.f32 %v1490, %v2528
      %2530 = vmatprep.mubr.bf16.mxu0 %v1318
      %2531 = vmatmul.mubr.bf16.gmra.mrb[0].mxu0 %v1317
      %v2532 = vpop.f32.mrb[0].mxu0
      %v2533 = vadd.f32 %v1486, %v2532
      %v2534 = vpop.f32.mrb[0].mxu0
      %v2535 = vadd.f32 %v1490, %v2534
      %v2536 = vpop.f32.mrb[0].mxu0
      %v2537 = vadd.f32 %v1486, %v2536
      %v2538 = vpop.f32.mrb[0].mxu0
      %v2539 = vadd.f32 %v1490, %v2538
      %2540 = vmatprep.mubr.bf16.mxu0 %v1320
      %2541 = vmatmul.mubr.bf16.gmra.mrb[0].mxu0 %v1319
      %v2542 = vpop.f32.mrb[0].mxu0
      %v2543 = vadd.f32 %v1486, %v2542
      %v2544 = vpop.f32.mrb[0].mxu0
      %v2545 = vadd.f32 %v1490, %v2544
      %v2546 = vpop.f32.mrb[0].mxu0
      %v2547 = vadd.f32 %v1486, %v2546
      %v2548 = vpop.f32.mrb[0].mxu0
      %v2549 = vadd.f32 %v1490, %v2548
      %2550 = vmatprep.mubr.bf16.mxu0 %v1322
      %2551 = vmatmul.mubr.bf16.gmra.mrb[0].mxu0 %v1321
      %v2552 = vpop.f32.mrb[0].mxu0
      %v2553 = vadd.f32 %v1486, %v2552
      %v2554 = vpop.f32.mrb[0].mxu0
      %v2555 = vadd.f32 %v1490, %v2554
      %v2556 = vpop.f32.mrb[0].mxu0
      %v2557 = vadd.f32 %v1486, %v2556
      %v2558 = vpop.f32.mrb[0].mxu0
      %v2559 = vadd.f32 %v1490, %v2558
      %2560 = vmatprep.mubr.bf16.mxu0 %v1324
      %2561 = vmatmul.mubr.bf16.gmra.mrb[0].mxu0 %v1323
      %v2562 = vpop.f32.mrb[0].mxu0
      %v2563 = vadd.f32 %v1486, %v2562
      %v2564 = vpop.f32.mrb[0].mxu0
      %v2565 = vadd.f32 %v1490, %v2564
      %v2566 = vpop.f32.mrb[0].mxu0
      %v2567 = vadd.f32 %v1486, %v2566
      %v2568 = vpop.f32.mrb[0].mxu0
      %v2569 = vadd.f32 %v1490, %v2568
      %2570 = vmatprep.mubr.bf16.mxu0 %v1326
      %2571 = vmatmul.mubr.bf16.gmra.mrb[0].mxu0 %v1325
      %v2572 = vpop.f32.mrb[0].mxu0
      %v2573 = vadd.f32 %v1486, %v2572
      %v2574 = vpop.f32.mrb[0].mxu0
      %v2575 = vadd.f32 %v1490, %v2574
      %v2576 = vpop.f32.mrb[0].mxu0
      %v2577 = vadd.f32 %v1486, %v2576
      %v2578 = vpop.f32.mrb[0].mxu0
      %v2579 = vadd.f32 %v1490, %v2578
      %2580 = vmatprep.mubr.bf16.mxu0 %v1328
      %2581 = vmatmul.mubr.bf16.gmra.mrb[0].mxu0 %v1327
      %v2582 = vpop.f32.mrb[0].mxu0
      %v2583 = vadd.f32 %v1486, %v2582
      %v2584 = vpop.f32.mrb[0].mxu0
      %v2585 = vadd.f32 %v1490, %v2584
      %v2586 = vpop.f32.mrb[0].mxu0
      %v2587 = vadd.f32 %v1486, %v2586
      %v2588 = vpop.f32.mrb[0].mxu0
      %v2589 = vadd.f32 %v1490, %v2588
      %2590 = vdwg.mxu0
      %v2591 = vmul.f32 %v2174, 0.5
      %v2592 = vmul.f32 %v2176, 0.5
      %v2593 = vmul.f32 %v2287, 0.5
      %v2594 = vmul.f32 %v2289, 0.5
      %v2595 = vmul.f32 %v2400, 0.5
      %v2596 = vmul.f32 %v2402, 0.5
      %v2597 = vmul.f32 %v2513, 0.5
      %v2598 = vmul.f32 %v2515, 0.5
      %v2599 = vmul.f32 %v2178, 0.5
      %v2600 = vmul.f32 %v2180, 0.5
      %v2601 = vmul.f32 %v2291, 0.5
      %v2602 = vmul.f32 %v2293, 0.5
      %v2603 = vmul.f32 %v2404, 0.5
      %v2604 = vmul.f32 %v2406, 0.5
      %v2605 = vmul.f32 %v2517, 0.5
      %v2606 = vmul.f32 %v2519, 0.5
      %v2607 = vmul.f32 %v2184, 0.5
      %v2608 = vmul.f32 %v2186, 0.5
      %v2609 = vmul.f32 %v2297, 0.5
      %v2610 = vmul.f32 %v2299, 0.5
      %v2611 = vmul.f32 %v2410, 0.5
      %v2612 = vmul.f32 %v2412, 0.5
      %v2613 = vmul.f32 %v2523, 0.5
      %v2614 = vmul.f32 %v2525, 0.5
      %v2615 = vmul.f32 %v2188, 0.5
      %v2616 = vmul.f32 %v2190, 0.5
      %v2617 = vmul.f32 %v2301, 0.5
      %v2618 = vmul.f32 %v2303, 0.5
      %v2619 = vmul.f32 %v2414, 0.5
      %v2620 = vmul.f32 %v2416, 0.5
      %v2621 = vmul.f32 %v2527, 0.5
      %v2622 = vmul.f32 %v2529, 0.5
      %v2623 = vmul.f32 %v2194, 0.5
      %v2624 = vmul.f32 %v2196, 0.5
      %v2625 = vmul.f32 %v2307, 0.5
      %v2626 = vmul.f32 %v2309, 0.5
      %v2627 = vmul.f32 %v2420, 0.5
      %v2628 = vmul.f32 %v2422, 0.5
      %v2629 = vmul.f32 %v2533, 0.5
      %v2630 = vmul.f32 %v2535, 0.5
      %v2631 = vmul.f32 %v2198, 0.5
      %v2632 = vmul.f32 %v2200, 0.5
      %v2633 = vmul.f32 %v2311, 0.5
      %v2634 = vmul.f32 %v2313, 0.5
      %v2635 = vmul.f32 %v2424, 0.5
      %v2636 = vmul.f32 %v2426, 0.5
      %v2637 = vmul.f32 %v2537, 0.5
      %v2638 = vmul.f32 %v2539, 0.5
      %v2639 = vmul.f32 %v2204, 0.5
      %v2640 = vmul.f32 %v2206, 0.5
      %v2641 = vmul.f32 %v2317, 0.5
      %v2642 = vmul.f32 %v2319, 0.5
      %v2643 = vmul.f32 %v2430, 0.5
      %v2644 = vmul.f32 %v2432, 0.5
      %v2645 = vmul.f32 %v2543, 0.5
      %v2646 = vmul.f32 %v2545, 0.5
      %v2647 = vmul.f32 %v2208, 0.5
      %v2648 = vmul.f32 %v2210, 0.5
      %v2649 = vmul.f32 %v2321, 0.5
      %v2650 = vmul.f32 %v2323, 0.5
      %v2651 = vmul.f32 %v2434, 0.5
      %v2652 = vmul.f32 %v2436, 0.5
      %v2653 = vmul.f32 %v2547, 0.5
      %v2654 = vmul.f32 %v2549, 0.5
      %v2655 = vmul.f32 %v2214, 0.5
      %v2656 = vmul.f32 %v2216, 0.5
      %v2657 = vmul.f32 %v2327, 0.5
      %v2658 = vmul.f32 %v2329, 0.5
      %v2659 = vmul.f32 %v2440, 0.5
      %v2660 = vmul.f32 %v2442, 0.5
      %v2661 = vmul.f32 %v2553, 0.5
      %v2662 = vmul.f32 %v2555, 0.5
      %v2663 = vmul.f32 %v2218, 0.5
      %v2664 = vmul.f32 %v2220, 0.5
      %v2665 = vmul.f32 %v2331, 0.5
      %v2666 = vmul.f32 %v2333, 0.5
      %v2667 = vmul.f32 %v2444, 0.5
      %v2668 = vmul.f32 %v2446, 0.5
      %v2669 = vmul.f32 %v2557, 0.5
      %v2670 = vmul.f32 %v2559, 0.5
      %v2671 = vmul.f32 %v2224, 0.5
      %v2672 = vmul.f32 %v2226, 0.5
      %v2673 = vmul.f32 %v2337, 0.5
      %v2674 = vmul.f32 %v2339, 0.5
      %v2675 = vmul.f32 %v2450, 0.5
      %v2676 = vmul.f32 %v2452, 0.5
      %v2677 = vmul.f32 %v2563, 0.5
      %v2678 = vmul.f32 %v2565, 0.5
      %v2679 = vmul.f32 %v2228, 0.5
      %v2680 = vmul.f32 %v2230, 0.5
      %v2681 = vmul.f32 %v2341, 0.5
      %v2682 = vmul.f32 %v2343, 0.5
      %v2683 = vmul.f32 %v2454, 0.5
      %v2684 = vmul.f32 %v2456, 0.5
      %v2685 = vmul.f32 %v2567, 0.5
      %v2686 = vmul.f32 %v2569, 0.5
      %v2687 = vmul.f32 %v2234, 0.5
      %v2688 = vmul.f32 %v2236, 0.5
      %v2689 = vmul.f32 %v2347, 0.5
      %v2690 = vmul.f32 %v2349, 0.5
      %v2691 = vmul.f32 %v2460, 0.5
      %v2692 = vmul.f32 %v2462, 0.5
      %v2693 = vmul.f32 %v2573, 0.5
      %v2694 = vmul.f32 %v2575, 0.5
      %v2695 = vmul.f32 %v2238, 0.5
      %v2696 = vmul.f32 %v2240, 0.5
      %v2697 = vmul.f32 %v2351, 0.5
      %v2698 = vmul.f32 %v2353, 0.5
      %v2699 = vmul.f32 %v2464, 0.5
      %v2700 = vmul.f32 %v2466, 0.5
      %v2701 = vmul.f32 %v2577, 0.5
      %v2702 = vmul.f32 %v2579, 0.5
      %v2703 = vmul.f32 %v2244, 0.5
      %v2704 = vmul.f32 %v2246, 0.5
      %v2705 = vmul.f32 %v2357, 0.5
      %v2706 = vmul.f32 %v2359, 0.5
      %v2707 = vmul.f32 %v2470, 0.5
      %v2708 = vmul.f32 %v2472, 0.5
      %v2709 = vmul.f32 %v2583, 0.5
      %v2710 = vmul.f32 %v2585, 0.5
      %v2711 = vmul.f32 %v2248, 0.5
      %v2712 = vmul.f32 %v2250, 0.5
      %v2713 = vmul.f32 %v2361, 0.5
      %v2714 = vmul.f32 %v2363, 0.5
      %v2715 = vmul.f32 %v2474, 0.5
      %v2716 = vmul.f32 %v2476, 0.5
      %v2717 = vmul.f32 %v2587, 0.5
      %v2718 = vmul.f32 %v2589, 0.5
      %v2719 = vmul.f32 %v2174, 0.70710677
      %v2720 = vmul.f32 %v2176, 0.70710677
      %v2721 = vmul.f32 %v2287, 0.70710677
      %v2722 = vmul.f32 %v2289, 0.70710677
      %v2723 = vmul.f32 %v2400, 0.70710677
      %v2724 = vmul.f32 %v2402, 0.70710677
      %v2725 = vmul.f32 %v2513, 0.70710677
      %v2726 = vmul.f32 %v2515, 0.70710677
      %v2727 = vmul.f32 %v2178, 0.70710677
      %v2728 = vmul.f32 %v2180, 0.70710677
      %v2729 = vmul.f32 %v2291, 0.70710677
      %v2730 = vmul.f32 %v2293, 0.70710677
      %v2731 = vmul.f32 %v2404, 0.70710677
      %v2732 = vmul.f32 %v2406, 0.70710677
      %v2733 = vmul.f32 %v2517, 0.70710677
      %v2734 = vmul.f32 %v2519, 0.70710677
      %v2735 = vmul.f32 %v2184, 0.70710677
      %v2736 = vmul.f32 %v2186, 0.70710677
      %v2737 = vmul.f32 %v2297, 0.70710677
      %v2738 = vmul.f32 %v2299, 0.70710677
      %v2739 = vmul.f32 %v2410, 0.70710677
      %v2740 = vmul.f32 %v2412, 0.70710677
      %v2741 = vmul.f32 %v2523, 0.70710677
      %v2742 = vmul.f32 %v2525, 0.70710677
      %v2743 = vmul.f32 %v2188, 0.70710677
      %v2744 = vmul.f32 %v2190, 0.70710677
      %v2745 = vmul.f32 %v2301, 0.70710677
      %v2746 = vmul.f32 %v2303, 0.70710677
      %v2747 = vmul.f32 %v2414, 0.70710677
      %v2748 = vmul.f32 %v2416, 0.70710677
      %v2749 = vmul.f32 %v2527, 0.70710677
      %v2750 = vmul.f32 %v2529, 0.70710677
      %v2751 = vmul.f32 %v2194, 0.70710677
      %v2752 = vmul.f32 %v2196, 0.70710677
      %v2753 = vmul.f32 %v2307, 0.70710677
      %v2754 = vmul.f32 %v2309, 0.70710677
      %v2755 = vmul.f32 %v2420, 0.70710677
      %v2756 = vmul.f32 %v2422, 0.70710677
      %v2757 = vmul.f32 %v2533, 0.70710677
      %v2758 = vmul.f32 %v2535, 0.70710677
      %v2759 = vmul.f32 %v2198, 0.70710677
      %v2760 = vmul.f32 %v2200, 0.70710677
      %v2761 = vmul.f32 %v2311, 0.70710677
      %v2762 = vmul.f32 %v2313, 0.70710677
      %v2763 = vmul.f32 %v2424, 0.70710677
      %v2764 = vmul.f32 %v2426, 0.70710677
      %v2765 = vmul.f32 %v2537, 0.70710677
      %v2766 = vmul.f32 %v2539, 0.70710677
      %v2767 = vmul.f32 %v2204, 0.70710677
      %v2768 = vmul.f32 %v2206, 0.70710677
      %v2769 = vmul.f32 %v2317, 0.70710677
      %v2770 = vmul.f32 %v2319, 0.70710677
      %v2771 = vmul.f32 %v2430, 0.70710677
      %v2772 = vmul.f32 %v2432, 0.70710677
      %v2773 = vmul.f32 %v2543, 0.70710677
      %v2774 = vmul.f32 %v2545, 0.70710677
      %v2775 = vmul.f32 %v2208, 0.70710677
      %v2776 = vmul.f32 %v2210, 0.70710677
      %v2777 = vmul.f32 %v2321, 0.70710677
      %v2778 = vmul.f32 %v2323, 0.70710677
      %v2779 = vmul.f32 %v2434, 0.70710677
      %v2780 = vmul.f32 %v2436, 0.70710677
      %v2781 = vmul.f32 %v2547, 0.70710677
      %v2782 = vmul.f32 %v2549, 0.70710677
      %v2783 = vmul.f32 %v2214, 0.70710677
      %v2784 = vmul.f32 %v2216, 0.70710677
      %v2785 = vmul.f32 %v2327, 0.70710677
      %v2786 = vmul.f32 %v2329, 0.70710677
      %v2787 = vmul.f32 %v2440, 0.70710677
      %v2788 = vmul.f32 %v2442, 0.70710677
      %v2789 = vmul.f32 %v2553, 0.70710677
      %v2790 = vmul.f32 %v2555, 0.70710677
      %v2791 = vmul.f32 %v2218, 0.70710677
      %v2792 = vmul.f32 %v2220, 0.70710677
      %v2793 = vmul.f32 %v2331, 0.70710677
      %v2794 = vmul.f32 %v2333, 0.70710677
      %v2795 = vmul.f32 %v2444, 0.70710677
      %v2796 = vmul.f32 %v2446, 0.70710677
      %v2797 = vmul.f32 %v2557, 0.70710677
      %v2798 = vmul.f32 %v2559, 0.70710677
      %v2799 = vmul.f32 %v2224, 0.70710677
      %v2800 = vmul.f32 %v2226, 0.70710677
      %v2801 = vmul.f32 %v2337, 0.70710677
      %v2802 = vmul.f32 %v2339, 0.70710677
      %v2803 = vmul.f32 %v2450, 0.70710677
      %v2804 = vmul.f32 %v2452, 0.70710677
      %v2805 = vmul.f32 %v2563, 0.70710677
      %v2806 = vmul.f32 %v2565, 0.70710677
      %v2807 = vmul.f32 %v2228, 0.70710677
      %v2808 = vmul.f32 %v2230, 0.70710677
      %v2809 = vmul.f32 %v2341, 0.70710677
      %v2810 = vmul.f32 %v2343, 0.70710677
      %v2811 = vmul.f32 %v2454, 0.70710677
      %v2812 = vmul.f32 %v2456, 0.70710677
      %v2813 = vmul.f32 %v2567, 0.70710677
      %v2814 = vmul.f32 %v2569, 0.70710677
      %v2815 = vmul.f32 %v2234, 0.70710677
      %v2816 = vmul.f32 %v2236, 0.70710677
      %v2817 = vmul.f32 %v2347, 0.70710677
      %v2818 = vmul.f32 %v2349, 0.70710677
      %v2819 = vmul.f32 %v2460, 0.70710677
      %v2820 = vmul.f32 %v2462, 0.70710677
      %v2821 = vmul.f32 %v2573, 0.70710677
      %v2822 = vmul.f32 %v2575, 0.70710677
      %v2823 = vmul.f32 %v2238, 0.70710677
      %v2824 = vmul.f32 %v2240, 0.70710677
      %v2825 = vmul.f32 %v2351, 0.70710677
      %v2826 = vmul.f32 %v2353, 0.70710677
      %v2827 = vmul.f32 %v2464, 0.70710677
      %v2828 = vmul.f32 %v2466, 0.70710677
      %v2829 = vmul.f32 %v2577, 0.70710677
      %v2830 = vmul.f32 %v2579, 0.70710677
      %v2831 = vmul.f32 %v2244, 0.70710677
      %v2832 = vmul.f32 %v2246, 0.70710677
      %v2833 = vmul.f32 %v2357, 0.70710677
      %v2834 = vmul.f32 %v2359, 0.70710677
      %v2835 = vmul.f32 %v2470, 0.70710677
      %v2836 = vmul.f32 %v2472, 0.70710677
      %v2837 = vmul.f32 %v2583, 0.70710677
      %v2838 = vmul.f32 %v2585, 0.70710677
      %v2839 = vmul.f32 %v2248, 0.70710677
      %v2840 = vmul.f32 %v2250, 0.70710677
      %v2841 = vmul.f32 %v2361, 0.70710677
      %v2842 = vmul.f32 %v2363, 0.70710677
      %v2843 = vmul.f32 %v2474, 0.70710677
      %v2844 = vmul.f32 %v2476, 0.70710677
      %v2845 = vmul.f32 %v2587, 0.70710677
      %v2846 = vmul.f32 %v2589, 0.70710677
      %v2847 = verf.f32.pop %v2719
      %v2848 = verf.f32.pop %v2720
      %v2849 = verf.f32.pop %v2721
      %v2850 = verf.f32.pop %v2722
      %v2851 = verf.f32.pop %v2723
      %v2852 = verf.f32.pop %v2724
      %v2853 = verf.f32.pop %v2725
      %v2854 = verf.f32.pop %v2726
      %v2855 = verf.f32.pop %v2727
      %v2856 = verf.f32.pop %v2728
      %v2857 = verf.f32.pop %v2729
      %v2858 = verf.f32.pop %v2730
      %v2859 = verf.f32.pop %v2731
      %v2860 = verf.f32.pop %v2732
      %v2861 = verf.f32.pop %v2733
      %v2862 = verf.f32.pop %v2734
      %v2863 = verf.f32.pop %v2735
      %v2864 = verf.f32.pop %v2736
      %v2865 = verf.f32.pop %v2737
      %v2866 = verf.f32.pop %v2738
      %v2867 = verf.f32.pop %v2739
      %v2868 = verf.f32.pop %v2740
      %v2869 = verf.f32.pop %v2741
      %v2870 = verf.f32.pop %v2742
      %v2871 = verf.f32.pop %v2743
      %v2872 = verf.f32.pop %v2744
      %v2873 = verf.f32.pop %v2745
      %v2874 = verf.f32.pop %v2746
      %v2875 = verf.f32.pop %v2747
      %v2876 = verf.f32.pop %v2748
      %v2877 = verf.f32.pop %v2749
      %v2878 = verf.f32.pop %v2750
      %v2879 = verf.f32.pop %v2751
      %v2880 = verf.f32.pop %v2752
      %v2881 = verf.f32.pop %v2753
      %v2882 = verf.f32.pop %v2754
      %v2883 = verf.f32.pop %v2755
      %v2884 = verf.f32.pop %v2756
      %v2885 = verf.f32.pop %v2757
      %v2886 = verf.f32.pop %v2758
      %v2887 = verf.f32.pop %v2759
      %v2888 = verf.f32.pop %v2760
      %v2889 = verf.f32.pop %v2761
      %v2890 = verf.f32.pop %v2762
      %v2891 = verf.f32.pop %v2763
      %v2892 = verf.f32.pop %v2764
      %v2893 = verf.f32.pop %v2765
      %v2894 = verf.f32.pop %v2766
      %v2895 = verf.f32.pop %v2767
      %v2896 = verf.f32.pop %v2768
      %v2897 = verf.f32.pop %v2769
      %v2898 = verf.f32.pop %v2770
      %v2899 = verf.f32.pop %v2771
      %v2900 = verf.f32.pop %v2772
      %v2901 = verf.f32.pop %v2773
      %v2902 = verf.f32.pop %v2774
      %v2903 = verf.f32.pop %v2775
      %v2904 = verf.f32.pop %v2776
      %v2905 = verf.f32.pop %v2777
      %v2906 = verf.f32.pop %v2778
      %v2907 = verf.f32.pop %v2779
      %v2908 = verf.f32.pop %v2780
      %v2909 = verf.f32.pop %v2781
      %v2910 = verf.f32.pop %v2782
      %v2911 = verf.f32.pop %v2783
      %v2912 = verf.f32.pop %v2784
      %v2913 = verf.f32.pop %v2785
      %v2914 = verf.f32.pop %v2786
      %v2915 = verf.f32.pop %v2787
      %v2916 = verf.f32.pop %v2788
      %v2917 = verf.f32.pop %v2789
      %v2918 = verf.f32.pop %v2790
      %v2919 = verf.f32.pop %v2791
      %v2920 = verf.f32.pop %v2792
      %v2921 = verf.f32.pop %v2793
      %v2922 = verf.f32.pop %v2794
      %v2923 = verf.f32.pop %v2795
      %v2924 = verf.f32.pop %v2796
      %v2925 = verf.f32.pop %v2797
      %v2926 = verf.f32.pop %v2798
      %v2927 = verf.f32.pop %v2799
      %v2928 = verf.f32.pop %v2800
      %v2929 = verf.f32.pop %v2801
      %v2930 = verf.f32.pop %v2802
      %v2931 = verf.f32.pop %v2803
      %v2932 = verf.f32.pop %v2804
      %v2933 = verf.f32.pop %v2805
      %v2934 = verf.f32.pop %v2806
      %v2935 = verf.f32.pop %v2807
      %v2936 = verf.f32.pop %v2808
      %v2937 = verf.f32.pop %v2809
      %v2938 = verf.f32.pop %v2810
      %v2939 = verf.f32.pop %v2811
      %v2940 = verf.f32.pop %v2812
      %v2941 = verf.f32.pop %v2813
      %v2942 = verf.f32.pop %v2814
      %v2943 = verf.f32.pop %v2815
      %v2944 = verf.f32.pop %v2816
      %v2945 = verf.f32.pop %v2817
      %v2946 = verf.f32.pop %v2818
      %v2947 = verf.f32.pop %v2819
      %v2948 = verf.f32.pop %v2820
      %v2949 = verf.f32.pop %v2821
      %v2950 = verf.f32.pop %v2822
      %v2951 = verf.f32.pop %v2823
      %v2952 = verf.f32.pop %v2824
      %v2953 = verf.f32.pop %v2825
      %v2954 = verf.f32.pop %v2826
      %v2955 = verf.f32.pop %v2827
      %v2956 = verf.f32.pop %v2828
      %v2957 = verf.f32.pop %v2829
      %v2958 = verf.f32.pop %v2830
      %v2959 = verf.f32.pop %v2831
      %v2960 = verf.f32.pop %v2832
      %v2961 = verf.f32.pop %v2833
      %v2962 = verf.f32.pop %v2834
      %v2963 = verf.f32.pop %v2835
      %v2964 = verf.f32.pop %v2836
      %v2965 = verf.f32.pop %v2837
      %v2966 = verf.f32.pop %v2838
      %v2967 = verf.f32.pop %v2839
      %v2968 = verf.f32.pop %v2840
      %v2969 = verf.f32.pop %v2841
      %v2970 = verf.f32.pop %v2842
      %v2971 = verf.f32.pop %v2843
      %v2972 = verf.f32.pop %v2844
      %v2973 = verf.f32.pop %v2845
      %v2974 = verf.f32.pop %v2846
      %v2975 = vadd.f32 %v2847, 1.0
      %v2976 = vadd.f32 %v2848, 1.0
      %v2977 = vadd.f32 %v2849, 1.0
      %v2978 = vadd.f32 %v2850, 1.0
      %v2979 = vadd.f32 %v2851, 1.0
      %v2980 = vadd.f32 %v2852, 1.0
      %v2981 = vadd.f32 %v2853, 1.0
      %v2982 = vadd.f32 %v2854, 1.0
      %v2983 = vadd.f32 %v2855, 1.0
      %v2984 = vadd.f32 %v2856, 1.0
      %v2985 = vadd.f32 %v2857, 1.0
      %v2986 = vadd.f32 %v2858, 1.0
      %v2987 = vadd.f32 %v2859, 1.0
      %v2988 = vadd.f32 %v2860, 1.0
      %v2989 = vadd.f32 %v2861, 1.0
      %v2990 = vadd.f32 %v2862, 1.0
      %v2991 = vadd.f32 %v2863, 1.0
      %v2992 = vadd.f32 %v2864, 1.0
      %v2993 = vadd.f32 %v2865, 1.0
      %v2994 = vadd.f32 %v2866, 1.0
      %v2995 = vadd.f32 %v2867, 1.0
      %v2996 = vadd.f32 %v2868, 1.0
      %v2997 = vadd.f32 %v2869, 1.0
      %v2998 = vadd.f32 %v2870, 1.0
      %v2999 = vadd.f32 %v2871, 1.0
      %v3000 = vadd.f32 %v2872, 1.0
      %v3001 = vadd.f32 %v2873, 1.0
      %v3002 = vadd.f32 %v2874, 1.0
      %v3003 = vadd.f32 %v2875, 1.0
      %v3004 = vadd.f32 %v2876, 1.0
      %v3005 = vadd.f32 %v2877, 1.0
      %v3006 = vadd.f32 %v2878, 1.0
      %v3007 = vadd.f32 %v2879, 1.0
      %v3008 = vadd.f32 %v2880, 1.0
      %v3009 = vadd.f32 %v2881, 1.0
      %v3010 = vadd.f32 %v2882, 1.0
      %v3011 = vadd.f32 %v2883, 1.0
      %v3012 = vadd.f32 %v2884, 1.0
      %v3013 = vadd.f32 %v2885, 1.0
      %v3014 = vadd.f32 %v2886, 1.0
      %v3015 = vadd.f32 %v2887, 1.0
      %v3016 = vadd.f32 %v2888, 1.0
      %v3017 = vadd.f32 %v2889, 1.0
      %v3018 = vadd.f32 %v2890, 1.0
      %v3019 = vadd.f32 %v2891, 1.0
      %v3020 = vadd.f32 %v2892, 1.0
      %v3021 = vadd.f32 %v2893, 1.0
      %v3022 = vadd.f32 %v2894, 1.0
      %v3023 = vadd.f32 %v2895, 1.0
      %v3024 = vadd.f32 %v2896, 1.0
      %v3025 = vadd.f32 %v2897, 1.0
      %v3026 = vadd.f32 %v2898, 1.0
      %v3027 = vadd.f32 %v2899, 1.0
      %v3028 = vadd.f32 %v2900, 1.0
      %v3029 = vadd.f32 %v2901, 1.0
      %v3030 = vadd.f32 %v2902, 1.0
      %v3031 = vadd.f32 %v2903, 1.0
      %v3032 = vadd.f32 %v2904, 1.0
      %v3033 = vadd.f32 %v2905, 1.0
      %v3034 = vadd.f32 %v2906, 1.0
      %v3035 = vadd.f32 %v2907, 1.0
      %v3036 = vadd.f32 %v2908, 1.0
      %v3037 = vadd.f32 %v2909, 1.0
      %v3038 = vadd.f32 %v2910, 1.0
      %v3039 = vadd.f32 %v2911, 1.0
      %v3040 = vadd.f32 %v2912, 1.0
      %v3041 = vadd.f32 %v2913, 1.0
      %v3042 = vadd.f32 %v2914, 1.0
      %v3043 = vadd.f32 %v2915, 1.0
      %v3044 = vadd.f32 %v2916, 1.0
      %v3045 = vadd.f32 %v2917, 1.0
      %v3046 = vadd.f32 %v2918, 1.0
      %v3047 = vadd.f32 %v2919, 1.0
      %v3048 = vadd.f32 %v2920, 1.0
      %v3049 = vadd.f32 %v2921, 1.0
      %v3050 = vadd.f32 %v2922, 1.0
      %v3051 = vadd.f32 %v2923, 1.0
      %v3052 = vadd.f32 %v2924, 1.0
      %v3053 = vadd.f32 %v2925, 1.0
      %v3054 = vadd.f32 %v2926, 1.0
      %v3055 = vadd.f32 %v2927, 1.0
      %v3056 = vadd.f32 %v2928, 1.0
      %v3057 = vadd.f32 %v2929, 1.0
      %v3058 = vadd.f32 %v2930, 1.0
      %v3059 = vadd.f32 %v2931, 1.0
      %v3060 = vadd.f32 %v2932, 1.0
      %v3061 = vadd.f32 %v2933, 1.0
      %v3062 = vadd.f32 %v2934, 1.0
      %v3063 = vadd.f32 %v2935, 1.0
      %v3064 = vadd.f32 %v2936, 1.0
      %v3065 = vadd.f32 %v2937, 1.0
      %v3066 = vadd.f32 %v2938, 1.0
      %v3067 = vadd.f32 %v2939, 1.0
      %v3068 = vadd.f32 %v2940, 1.0
      %v3069 = vadd.f32 %v2941, 1.0
      %v3070 = vadd.f32 %v2942, 1.0
      %v3071 = vadd.f32 %v2943, 1.0
      %v3072 = vadd.f32 %v2944, 1.0
      %v3073 = vadd.f32 %v2945, 1.0
      %v3074 = vadd.f32 %v2946, 1.0
      %v3075 = vadd.f32 %v2947, 1.0
      %v3076 = vadd.f32 %v2948, 1.0
      %v3077 = vadd.f32 %v2949, 1.0
      %v3078 = vadd.f32 %v2950, 1.0
      %v3079 = vadd.f32 %v2951, 1.0
      %v3080 = vadd.f32 %v2952, 1.0
      %v3081 = vadd.f32 %v2953, 1.0
      %v3082 = vadd.f32 %v2954, 1.0
      %v3083 = vadd.f32 %v2955, 1.0
      %v3084 = vadd.f32 %v2956, 1.0
      %v3085 = vadd.f32 %v2957, 1.0
      %v3086 = vadd.f32 %v2958, 1.0
      %v3087 = vadd.f32 %v2959, 1.0
      %v3088 = vadd.f32 %v2960, 1.0
      %v3089 = vadd.f32 %v2961, 1.0
      %v3090 = vadd.f32 %v2962, 1.0
      %v3091 = vadd.f32 %v2963, 1.0
      %v3092 = vadd.f32 %v2964, 1.0
      %v3093 = vadd.f32 %v2965, 1.0
      %v3094 = vadd.f32 %v2966, 1.0
      %v3095 = vadd.f32 %v2967, 1.0
      %v3096 = vadd.f32 %v2968, 1.0
      %v3097 = vadd.f32 %v2969, 1.0
      %v3098 = vadd.f32 %v2970, 1.0
      %v3099 = vadd.f32 %v2971, 1.0
      %v3100 = vadd.f32 %v2972, 1.0
      %v3101 = vadd.f32 %v2973, 1.0
      %v3102 = vadd.f32 %v2974, 1.0
      %v3103 = vmul.f32 %v2591, %v2975
      %v3104 = vmul.f32 %v2592, %v2976
      %v3105 = vmul.f32 %v2593, %v2977
      %v3106 = vmul.f32 %v2594, %v2978
      %v3107 = vmul.f32 %v2595, %v2979
      %v3108 = vmul.f32 %v2596, %v2980
      %v3109 = vmul.f32 %v2597, %v2981
      %v3110 = vmul.f32 %v2598, %v2982
      %v3111 = vmul.f32 %v2599, %v2983
      %v3112 = vmul.f32 %v2600, %v2984
      %v3113 = vmul.f32 %v2601, %v2985
      %v3114 = vmul.f32 %v2602, %v2986
      %v3115 = vmul.f32 %v2603, %v2987
      %v3116 = vmul.f32 %v2604, %v2988
      %v3117 = vmul.f32 %v2605, %v2989
      %v3118 = vmul.f32 %v2606, %v2990
      %v3119 = vmul.f32 %v2607, %v2991
      %v3120 = vmul.f32 %v2608, %v2992
      %v3121 = vmul.f32 %v2609, %v2993
      %v3122 = vmul.f32 %v2610, %v2994
      %v3123 = vmul.f32 %v2611, %v2995
      %v3124 = vmul.f32 %v2612, %v2996
      %v3125 = vmul.f32 %v2613, %v2997
      %v3126 = vmul.f32 %v2614, %v2998
      %v3127 = vmul.f32 %v2615, %v2999
      %v3128 = vmul.f32 %v2616, %v3000
      %v3129 = vmul.f32 %v2617, %v3001
      %v3130 = vmul.f32 %v2618, %v3002
      %v3131 = vmul.f32 %v2619, %v3003
      %v3132 = vmul.f32 %v2620, %v3004
      %v3133 = vmul.f32 %v2621, %v3005
      %v3134 = vmul.f32 %v2622, %v3006
      %v3135 = vmul.f32 %v2623, %v3007
      %v3136 = vmul.f32 %v2624, %v3008
      %v3137 = vmul.f32 %v2625, %v3009
      %v3138 = vmul.f32 %v2626, %v3010
      %v3139 = vmul.f32 %v2627, %v3011
      %v3140 = vmul.f32 %v2628, %v3012
      %v3141 = vmul.f32 %v2629, %v3013
      %v3142 = vmul.f32 %v2630, %v3014
      %v3143 = vmul.f32 %v2631, %v3015
      %v3144 = vmul.f32 %v2632, %v3016
      %v3145 = vmul.f32 %v2633, %v3017
      %v3146 = vmul.f32 %v2634, %v3018
      %v3147 = vmul.f32 %v2635, %v3019
      %v3148 = vmul.f32 %v2636, %v3020
      %v3149 = vmul.f32 %v2637, %v3021
      %v3150 = vmul.f32 %v2638, %v3022
      %v3151 = vmul.f32 %v2639, %v3023
      %v3152 = vmul.f32 %v2640, %v3024
      %v3153 = vmul.f32 %v2641, %v3025
      %v3154 = vmul.f32 %v2642, %v3026
      %v3155 = vmul.f32 %v2643, %v3027
      %v3156 = vmul.f32 %v2644, %v3028
      %v3157 = vmul.f32 %v2645, %v3029
      %v3158 = vmul.f32 %v2646, %v3030
      %v3159 = vmul.f32 %v2647, %v3031
      %v3160 = vmul.f32 %v2648, %v3032
      %v3161 = vmul.f32 %v2649, %v3033
      %v3162 = vmul.f32 %v2650, %v3034
      %v3163 = vmul.f32 %v2651, %v3035
      %v3164 = vmul.f32 %v2652, %v3036
      %v3165 = vmul.f32 %v2653, %v3037
      %v3166 = vmul.f32 %v2654, %v3038
      %v3167 = vmul.f32 %v2655, %v3039
      %v3168 = vmul.f32 %v2656, %v3040
      %v3169 = vmul.f32 %v2657, %v3041
      %v3170 = vmul.f32 %v2658, %v3042
      %v3171 = vmul.f32 %v2659, %v3043
      %v3172 = vmul.f32 %v2660, %v3044
      %v3173 = vmul.f32 %v2661, %v3045
      %v3174 = vmul.f32 %v2662, %v3046
      %v3175 = vmul.f32 %v2663, %v3047
      %v3176 = vmul.f32 %v2664, %v3048
      %v3177 = vmul.f32 %v2665, %v3049
      %v3178 = vmul.f32 %v2666, %v3050
      %v3179 = vmul.f32 %v2667, %v3051
      %v3180 = vmul.f32 %v2668, %v3052
      %v3181 = vmul.f32 %v2669, %v3053
      %v3182 = vmul.f32 %v2670, %v3054
      %v3183 = vmul.f32 %v2671, %v3055
      %v3184 = vmul.f32 %v2672, %v3056
      %v3185 = vmul.f32 %v2673, %v3057
      %v3186 = vmul.f32 %v2674, %v3058
      %v3187 = vmul.f32 %v2675, %v3059
      %v3188 = vmul.f32 %v2676, %v3060
      %v3189 = vmul.f32 %v2677, %v3061
      %v3190 = vmul.f32 %v2678, %v3062
      %v3191 = vmul.f32 %v2679, %v3063
      %v3192 = vmul.f32 %v2680, %v3064
      %v3193 = vmul.f32 %v2681, %v3065
      %v3194 = vmul.f32 %v2682, %v3066
      %v3195 = vmul.f32 %v2683, %v3067
      %v3196 = vmul.f32 %v2684, %v3068
      %v3197 = vmul.f32 %v2685, %v3069
      %v3198 = vmul.f32 %v2686, %v3070
      %v3199 = vmul.f32 %v2687, %v3071
      %v3200 = vmul.f32 %v2688, %v3072
      %v3201 = vmul.f32 %v2689, %v3073
      %v3202 = vmul.f32 %v2690, %v3074
      %v3203 = vmul.f32 %v2691, %v3075
      %v3204 = vmul.f32 %v2692, %v3076
      %v3205 = vmul.f32 %v2693, %v3077
      %v3206 = vmul.f32 %v2694, %v3078
      %v3207 = vmul.f32 %v2695, %v3079
      %v3208 = vmul.f32 %v2696, %v3080
      %v3209 = vmul.f32 %v2697, %v3081
      %v3210 = vmul.f32 %v2698, %v3082
      %v3211 = vmul.f32 %v2699, %v3083
      %v3212 = vmul.f32 %v2700, %v3084
      %v3213 = vmul.f32 %v2701, %v3085
      %v3214 = vmul.f32 %v2702, %v3086
      %v3215 = vmul.f32 %v2703, %v3087
      %v3216 = vmul.f32 %v2704, %v3088
      %v3217 = vmul.f32 %v2705, %v3089
      %v3218 = vmul.f32 %v2706, %v3090
      %v3219 = vmul.f32 %v2707, %v3091
      %v3220 = vmul.f32 %v2708, %v3092
      %v3221 = vmul.f32 %v2709, %v3093
      %v3222 = vmul.f32 %v2710, %v3094
      %v3223 = vmul.f32 %v2711, %v3095
      %v3224 = vmul.f32 %v2712, %v3096
      %v3225 = vmul.f32 %v2713, %v3097
      %v3226 = vmul.f32 %v2714, %v3098
      %v3227 = vmul.f32 %v2715, %v3099
      %v3228 = vmul.f32 %v2716, %v3100
      %v3229 = vmul.f32 %v2717, %v3101
      %v3230 = vmul.f32 %v2718, %v3102
      %v3231 = vpack.c.bf16 %v3111, %v3103
      %v3232 = vpack.c.bf16 %v3112, %v3104
      %v3233 = vpack.c.bf16 %v3113, %v3105
      %v3234 = vpack.c.bf16 %v3114, %v3106
      %v3235 = vpack.c.bf16 %v3115, %v3107
      %v3236 = vpack.c.bf16 %v3116, %v3108
      %v3237 = vpack.c.bf16 %v3117, %v3109
      %v3238 = vpack.c.bf16 %v3118, %v3110
      %v3239 = vpack.c.bf16 %v3127, %v3119
      %v3240 = vpack.c.bf16 %v3128, %v3120
      %v3241 = vpack.c.bf16 %v3129, %v3121
      %v3242 = vpack.c.bf16 %v3130, %v3122
      %v3243 = vpack.c.bf16 %v3131, %v3123
      %v3244 = vpack.c.bf16 %v3132, %v3124
      %v3245 = vpack.c.bf16 %v3133, %v3125
      %v3246 = vpack.c.bf16 %v3134, %v3126
      %v3247 = vpack.c.bf16 %v3143, %v3135
      %v3248 = vpack.c.bf16 %v3144, %v3136
      %v3249 = vpack.c.bf16 %v3145, %v3137
      %v3250 = vpack.c.bf16 %v3146, %v3138
      %v3251 = vpack.c.bf16 %v3147, %v3139
      %v3252 = vpack.c.bf16 %v3148, %v3140
      %v3253 = vpack.c.bf16 %v3149, %v3141
      %v3254 = vpack.c.bf16 %v3150, %v3142
      %v3255 = vpack.c.bf16 %v3159, %v3151
      %v3256 = vpack.c.bf16 %v3160, %v3152
      %v3257 = vpack.c.bf16 %v3161, %v3153
      %v3258 = vpack.c.bf16 %v3162, %v3154
      %v3259 = vpack.c.bf16 %v3163, %v3155
      %v3260 = vpack.c.bf16 %v3164, %v3156
      %v3261 = vpack.c.bf16 %v3165, %v3157
      %v3262 = vpack.c.bf16 %v3166, %v3158
      %v3263 = vpack.c.bf16 %v3175, %v3167
      %v3264 = vpack.c.bf16 %v3176, %v3168
      %v3265 = vpack.c.bf16 %v3177, %v3169
      %v3266 = vpack.c.bf16 %v3178, %v3170
      %v3267 = vpack.c.bf16 %v3179, %v3171
      %v3268 = vpack.c.bf16 %v3180, %v3172
      %v3269 = vpack.c.bf16 %v3181, %v3173
      %v3270 = vpack.c.bf16 %v3182, %v3174
      %v3271 = vpack.c.bf16 %v3191, %v3183
      %v3272 = vpack.c.bf16 %v3192, %v3184
      %v3273 = vpack.c.bf16 %v3193, %v3185
      %v3274 = vpack.c.bf16 %v3194, %v3186
      %v3275 = vpack.c.bf16 %v3195, %v3187
      %v3276 = vpack.c.bf16 %v3196, %v3188
      %v3277 = vpack.c.bf16 %v3197, %v3189
      %v3278 = vpack.c.bf16 %v3198, %v3190
      %v3279 = vpack.c.bf16 %v3207, %v3199
      %v3280 = vpack.c.bf16 %v3208, %v3200
      %v3281 = vpack.c.bf16 %v3209, %v3201
      %v3282 = vpack.c.bf16 %v3210, %v3202
      %v3283 = vpack.c.bf16 %v3211, %v3203
      %v3284 = vpack.c.bf16 %v3212, %v3204
      %v3285 = vpack.c.bf16 %v3213, %v3205
      %v3286 = vpack.c.bf16 %v3214, %v3206
      %v3287 = vpack.c.bf16 %v3223, %v3215
      %v3288 = vpack.c.bf16 %v3224, %v3216
      %v3289 = vpack.c.bf16 %v3225, %v3217
      %v3290 = vpack.c.bf16 %v3226, %v3218
      %v3291 = vpack.c.bf16 %v3227, %v3219
      %v3292 = vpack.c.bf16 %v3228, %v3220
      %v3293 = vpack.c.bf16 %v3229, %v3221
      %v3294 = vpack.c.bf16 %v3230, %v3222
      %v3295 = vld [vmem:[%s8] sm:$0xff]
      %v3296 = vld [vmem:[%s8 + $0x8] sm:$0xff]
      %v3297 = vld [vmem:[%s8 + $0x10] sm:$0xff]
      %v3298 = vld [vmem:[%s8 + $0x18] sm:$0xff]
      %v3299 = vld [vmem:[%s8 + $0x20] sm:$0xff]
      %v3300 = vld [vmem:[%s8 + $0x28] sm:$0xff]
      %v3301 = vld [vmem:[%s8 + $0x30] sm:$0xff]
      %v3302 = vld [vmem:[%s8 + $0x38] sm:$0xff]
      %v3303 = vld [vmem:[%s8 + $0x40] sm:$0xff]
      %v3304 = vld [vmem:[%s8 + $0x48] sm:$0xff]
      %v3305 = vld [vmem:[%s8 + $0x50] sm:$0xff]
      %v3306 = vld [vmem:[%s8 + $0x58] sm:$0xff]
      %v3307 = vld [vmem:[%s8 + $0x60] sm:$0xff]
      %v3308 = vld [vmem:[%s8 + $0x68] sm:$0xff]
      %v3309 = vld [vmem:[%s8 + $0x70] sm:$0xff]
      %v3310 = vld [vmem:[%s8 + $0x78] sm:$0xff]
      %v3311 = vld [vmem:[%s8 + $0x80] sm:$0xff]
      %v3312 = vld [vmem:[%s8 + $0x88] sm:$0xff]
      %v3313 = vld [vmem:[%s8 + $0x90] sm:$0xff]
      %v3314 = vld [vmem:[%s8 + $0x98] sm:$0xff]
      %v3315 = vld [vmem:[%s8 + $0xa0] sm:$0xff]
      %v3316 = vld [vmem:[%s8 + $0xa8] sm:$0xff]
      %v3317 = vld [vmem:[%s8 + $0xb0] sm:$0xff]
      %v3318 = vld [vmem:[%s8 + $0xb8] sm:$0xff]
      %v3319 = vld [vmem:[%s8 + $0xc0] sm:$0xff]
      %v3320 = vld [vmem:[%s8 + $0xc8] sm:$0xff]
      %v3321 = vld [vmem:[%s8 + $0xd0] sm:$0xff]
      %v3322 = vld [vmem:[%s8 + $0xd8] sm:$0xff]
      %v3323 = vld [vmem:[%s8 + $0xe0] sm:$0xff]
      %v3324 = vld [vmem:[%s8 + $0xe8] sm:$0xff]
      %v3325 = vld [vmem:[%s8 + $0xf0] sm:$0xff]
      %v3326 = vld [vmem:[%s8 + $0xf8] sm:$0xff]
      %v3327 = vld [vmem:[%s8 + $0x100] sm:$0xff]
      %v3328 = vld [vmem:[%s8 + $0x108] sm:$0xff]
      %v3329 = vld [vmem:[%s8 + $0x110] sm:$0xff]
      %v3330 = vld [vmem:[%s8 + $0x118] sm:$0xff]
      %v3331 = vld [vmem:[%s8 + $0x120] sm:$0xff]
      %v3332 = vld [vmem:[%s8 + $0x128] sm:$0xff]
      %v3333 = vld [vmem:[%s8 + $0x130] sm:$0xff]
      %v3334 = vld [vmem:[%s8 + $0x138] sm:$0xff]
      %v3335 = vld [vmem:[%s8 + $0x140] sm:$0xff]
      %v3336 = vld [vmem:[%s8 + $0x148] sm:$0xff]
      %v3337 = vld [vmem:[%s8 + $0x150] sm:$0xff]
      %v3338 = vld [vmem:[%s8 + $0x158] sm:$0xff]
      %v3339 = vld [vmem:[%s8 + $0x160] sm:$0xff]
      %v3340 = vld [vmem:[%s8 + $0x168] sm:$0xff]
      %v3341 = vld [vmem:[%s8 + $0x170] sm:$0xff]
      %v3342 = vld [vmem:[%s8 + $0x178] sm:$0xff]
      %v3343 = vld [vmem:[%s8 + $0x180] sm:$0xff]
      %v3344 = vld [vmem:[%s8 + $0x188] sm:$0xff]
      %v3345 = vld [vmem:[%s8 + $0x190] sm:$0xff]
      %v3346 = vld [vmem:[%s8 + $0x198] sm:$0xff]
      %v3347 = vld [vmem:[%s8 + $0x1a0] sm:$0xff]
      %v3348 = vld [vmem:[%s8 + $0x1a8] sm:$0xff]
      %v3349 = vld [vmem:[%s8 + $0x1b0] sm:$0xff]
      %v3350 = vld [vmem:[%s8 + $0x1b8] sm:$0xff]
      %v3351 = vld [vmem:[%s8 + $0x1c0] sm:$0xff]
      %v3352 = vld [vmem:[%s8 + $0x1c8] sm:$0xff]
      %v3353 = vld [vmem:[%s8 + $0x1d0] sm:$0xff]
      %v3354 = vld [vmem:[%s8 + $0x1d8] sm:$0xff]
      %v3355 = vld [vmem:[%s8 + $0x1e0] sm:$0xff]
      %v3356 = vld [vmem:[%s8 + $0x1e8] sm:$0xff]
      %v3357 = vld [vmem:[%s8 + $0x1f0] sm:$0xff]
      %v3358 = vld [vmem:[%s8 + $0x1f8] sm:$0xff]
      %v3359 = vld [vmem:[%s8 + $0x200] sm:$0xff]
      %v3360 = vld [vmem:[%s8 + $0x208] sm:$0xff]
      %v3361 = vld [vmem:[%s8 + $0x210] sm:$0xff]
      %v3362 = vld [vmem:[%s8 + $0x218] sm:$0xff]
      %v3363 = vld [vmem:[%s8 + $0x220] sm:$0xff]
      %v3364 = vld [vmem:[%s8 + $0x228] sm:$0xff]
      %v3365 = vld [vmem:[%s8 + $0x230] sm:$0xff]
      %v3366 = vld [vmem:[%s8 + $0x238] sm:$0xff]
      %v3367 = vld [vmem:[%s8 + $0x240] sm:$0xff]
      %v3368 = vld [vmem:[%s8 + $0x248] sm:$0xff]
      %v3369 = vld [vmem:[%s8 + $0x250] sm:$0xff]
      %v3370 = vld [vmem:[%s8 + $0x258] sm:$0xff]
      %v3371 = vld [vmem:[%s8 + $0x260] sm:$0xff]
      %v3372 = vld [vmem:[%s8 + $0x268] sm:$0xff]
      %v3373 = vld [vmem:[%s8 + $0x270] sm:$0xff]
      %v3374 = vld [vmem:[%s8 + $0x278] sm:$0xff]
      %v3375 = vld [vmem:[%s8 + $0x280] sm:$0xff]
      %v3376 = vld [vmem:[%s8 + $0x288] sm:$0xff]
      %v3377 = vld [vmem:[%s8 + $0x290] sm:$0xff]
      %v3378 = vld [vmem:[%s8 + $0x298] sm:$0xff]
      %v3379 = vld [vmem:[%s8 + $0x2a0] sm:$0xff]
      %v3380 = vld [vmem:[%s8 + $0x2a8] sm:$0xff]
      %v3381 = vld [vmem:[%s8 + $0x2b0] sm:$0xff]
      %v3382 = vld [vmem:[%s8 + $0x2b8] sm:$0xff]
      %v3383 = vld [vmem:[%s8 + $0x2c0] sm:$0xff]
      %v3384 = vld [vmem:[%s8 + $0x2c8] sm:$0xff]
      %v3385 = vld [vmem:[%s8 + $0x2d0] sm:$0xff]
      %v3386 = vld [vmem:[%s8 + $0x2d8] sm:$0xff]
      %v3387 = vld [vmem:[%s8 + $0x2e0] sm:$0xff]
      %v3388 = vld [vmem:[%s8 + $0x2e8] sm:$0xff]
      %v3389 = vld [vmem:[%s8 + $0x2f0] sm:$0xff]
      %v3390 = vld [vmem:[%s8 + $0x2f8] sm:$0xff]
      %v3391 = vld [vmem:[%s8 + $0x300] sm:$0xff]
      %v3392 = vld [vmem:[%s8 + $0x308] sm:$0xff]
      %v3393 = vld [vmem:[%s8 + $0x310] sm:$0xff]
      %v3394 = vld [vmem:[%s8 + $0x318] sm:$0xff]
      %v3395 = vld [vmem:[%s8 + $0x320] sm:$0xff]
      %v3396 = vld [vmem:[%s8 + $0x328] sm:$0xff]
      %v3397 = vld [vmem:[%s8 + $0x330] sm:$0xff]
      %v3398 = vld [vmem:[%s8 + $0x338] sm:$0xff]
      %v3399 = vld [vmem:[%s8 + $0x340] sm:$0xff]
      %v3400 = vld [vmem:[%s8 + $0x348] sm:$0xff]
      %v3401 = vld [vmem:[%s8 + $0x350] sm:$0xff]
      %v3402 = vld [vmem:[%s8 + $0x358] sm:$0xff]
      %v3403 = vld [vmem:[%s8 + $0x360] sm:$0xff]
      %v3404 = vld [vmem:[%s8 + $0x368] sm:$0xff]
      %v3405 = vld [vmem:[%s8 + $0x370] sm:$0xff]
      %v3406 = vld [vmem:[%s8 + $0x378] sm:$0xff]
      %v3407 = vld [vmem:[%s8 + $0x380] sm:$0xff]
      %v3408 = vld [vmem:[%s8 + $0x388] sm:$0xff]
      %v3409 = vld [vmem:[%s8 + $0x390] sm:$0xff]
      %v3410 = vld [vmem:[%s8 + $0x398] sm:$0xff]
      %v3411 = vld [vmem:[%s8 + $0x3a0] sm:$0xff]
      %v3412 = vld [vmem:[%s8 + $0x3a8] sm:$0xff]
      %v3413 = vld [vmem:[%s8 + $0x3b0] sm:$0xff]
      %v3414 = vld [vmem:[%s8 + $0x3b8] sm:$0xff]
      %v3415 = vld [vmem:[%s8 + $0x3c0] sm:$0xff]
      %v3416 = vld [vmem:[%s8 + $0x3c8] sm:$0xff]
      %v3417 = vld [vmem:[%s8 + $0x3d0] sm:$0xff]
      %v3418 = vld [vmem:[%s8 + $0x3d8] sm:$0xff]
      %v3419 = vld [vmem:[%s8 + $0x3e0] sm:$0xff]
      %v3420 = vld [vmem:[%s8 + $0x3e8] sm:$0xff]
      %v3421 = vld [vmem:[%s8 + $0x3f0] sm:$0xff]
      %v3422 = vld [vmem:[%s8 + $0x3f8] sm:$0xff]
      %v3423 = vld [vmem:[%s9] sm:$0x3]
      %v3425 = vlaneseq
      %v3426 = vshrl.u32 %v3425, 7
      %v3427 = vsub.s32 0, %v3426
      %v3428 = vrot.slane %v3423, %v3427
      %v3429 = vlaneseq
      %v3430 = vshrl.u32 %v3429, 7
      %v3431 = vsub.s32 1, %v3430
      %v3432 = vrot.slane %v3423, %v3431
      %v3563 = vunpack.c.l.b16 %v3295
      %v3564 = vunpack.c.h.b16 %v3295
      %v3565 = vunpack.c.l.b16 %v3296
      %v3566 = vunpack.c.h.b16 %v3296
      %v3567 = vunpack.c.l.b16 %v3297
      %v3568 = vunpack.c.h.b16 %v3297
      %v3569 = vunpack.c.l.b16 %v3298
      %v3570 = vunpack.c.h.b16 %v3298
      %v3571 = vunpack.c.l.b16 %v3299
      %v3572 = vunpack.c.h.b16 %v3299
      %v3573 = vunpack.c.l.b16 %v3300
      %v3574 = vunpack.c.h.b16 %v3300
      %v3575 = vunpack.c.l.b16 %v3301
      %v3576 = vunpack.c.h.b16 %v3301
      %v3577 = vunpack.c.l.b16 %v3302
      %v3578 = vunpack.c.h.b16 %v3302
      %v3579 = vunpack.c.l.b16 %v3303
      %v3580 = vunpack.c.h.b16 %v3303
      %v3581 = vunpack.c.l.b16 %v3304
      %v3582 = vunpack.c.h.b16 %v3304
      %v3583 = vunpack.c.l.b16 %v3305
      %v3584 = vunpack.c.h.b16 %v3305
      %v3585 = vunpack.c.l.b16 %v3306
      %v3586 = vunpack.c.h.b16 %v3306
      %v3587 = vunpack.c.l.b16 %v3307
      %v3588 = vunpack.c.h.b16 %v3307
      %v3589 = vunpack.c.l.b16 %v3308
      %v3590 = vunpack.c.h.b16 %v3308
      %v3591 = vunpack.c.l.b16 %v3309
      %v3592 = vunpack.c.h.b16 %v3309
      %v3593 = vunpack.c.l.b16 %v3310
      %v3594 = vunpack.c.h.b16 %v3310
      %v3595 = vunpack.c.l.b16 %v3311
      %v3596 = vunpack.c.h.b16 %v3311
      %v3597 = vunpack.c.l.b16 %v3312
      %v3598 = vunpack.c.h.b16 %v3312
      %v3599 = vunpack.c.l.b16 %v3313
      %v3600 = vunpack.c.h.b16 %v3313
      %v3601 = vunpack.c.l.b16 %v3314
      %v3602 = vunpack.c.h.b16 %v3314
      %v3603 = vunpack.c.l.b16 %v3315
      %v3604 = vunpack.c.h.b16 %v3315
      %v3605 = vunpack.c.l.b16 %v3316
      %v3606 = vunpack.c.h.b16 %v3316
      %v3607 = vunpack.c.l.b16 %v3317
      %v3608 = vunpack.c.h.b16 %v3317
      %v3609 = vunpack.c.l.b16 %v3318
      %v3610 = vunpack.c.h.b16 %v3318
      %v3611 = vunpack.c.l.b16 %v3319
      %v3612 = vunpack.c.h.b16 %v3319
      %v3613 = vunpack.c.l.b16 %v3320
      %v3614 = vunpack.c.h.b16 %v3320
      %v3615 = vunpack.c.l.b16 %v3321
      %v3616 = vunpack.c.h.b16 %v3321
      %v3617 = vunpack.c.l.b16 %v3322
      %v3618 = vunpack.c.h.b16 %v3322
      %v3619 = vunpack.c.l.b16 %v3323
      %v3620 = vunpack.c.h.b16 %v3323
      %v3621 = vunpack.c.l.b16 %v3324
      %v3622 = vunpack.c.h.b16 %v3324
      %v3623 = vunpack.c.l.b16 %v3325
      %v3624 = vunpack.c.h.b16 %v3325
      %v3625 = vunpack.c.l.b16 %v3326
      %v3626 = vunpack.c.h.b16 %v3326
      %v3627 = vunpack.c.l.b16 %v3327
      %v3628 = vunpack.c.h.b16 %v3327
      %v3629 = vunpack.c.l.b16 %v3328
      %v3630 = vunpack.c.h.b16 %v3328
      %v3631 = vunpack.c.l.b16 %v3329
      %v3632 = vunpack.c.h.b16 %v3329
      %v3633 = vunpack.c.l.b16 %v3330
      %v3634 = vunpack.c.h.b16 %v3330
      %v3635 = vunpack.c.l.b16 %v3331
      %v3636 = vunpack.c.h.b16 %v3331
      %v3637 = vunpack.c.l.b16 %v3332
      %v3638 = vunpack.c.h.b16 %v3332
      %v3639 = vunpack.c.l.b16 %v3333
      %v3640 = vunpack.c.h.b16 %v3333
      %v3641 = vunpack.c.l.b16 %v3334
      %v3642 = vunpack.c.h.b16 %v3334
      %v3643 = vunpack.c.l.b16 %v3335
      %v3644 = vunpack.c.h.b16 %v3335
      %v3645 = vunpack.c.l.b16 %v3336
      %v3646 = vunpack.c.h.b16 %v3336
      %v3647 = vunpack.c.l.b16 %v3337
      %v3648 = vunpack.c.h.b16 %v3337
      %v3649 = vunpack.c.l.b16 %v3338
      %v3650 = vunpack.c.h.b16 %v3338
      %v3651 = vunpack.c.l.b16 %v3339
      %v3652 = vunpack.c.h.b16 %v3339
      %v3653 = vunpack.c.l.b16 %v3340
      %v3654 = vunpack.c.h.b16 %v3340
      %v3655 = vunpack.c.l.b16 %v3341
      %v3656 = vunpack.c.h.b16 %v3341
      %v3657 = vunpack.c.l.b16 %v3342
      %v3658 = vunpack.c.h.b16 %v3342
      %v3659 = vunpack.c.l.b16 %v3343
      %v3660 = vunpack.c.h.b16 %v3343
      %v3661 = vunpack.c.l.b16 %v3344
      %v3662 = vunpack.c.h.b16 %v3344
      %v3663 = vunpack.c.l.b16 %v3345
      %v3664 = vunpack.c.h.b16 %v3345
      %v3665 = vunpack.c.l.b16 %v3346
      %v3666 = vunpack.c.h.b16 %v3346
      %v3667 = vunpack.c.l.b16 %v3347
      %v3668 = vunpack.c.h.b16 %v3347
      %v3669 = vunpack.c.l.b16 %v3348
      %v3670 = vunpack.c.h.b16 %v3348
      %v3671 = vunpack.c.l.b16 %v3349
      %v3672 = vunpack.c.h.b16 %v3349
      %v3673 = vunpack.c.l.b16 %v3350
      %v3674 = vunpack.c.h.b16 %v3350
      %v3675 = vunpack.c.l.b16 %v3351
      %v3676 = vunpack.c.h.b16 %v3351
      %v3677 = vunpack.c.l.b16 %v3352
      %v3678 = vunpack.c.h.b16 %v3352
      %v3679 = vunpack.c.l.b16 %v3353
      %v3680 = vunpack.c.h.b16 %v3353
      %v3681 = vunpack.c.l.b16 %v3354
      %v3682 = vunpack.c.h.b16 %v3354
      %v3683 = vunpack.c.l.b16 %v3355
      %v3684 = vunpack.c.h.b16 %v3355
      %v3685 = vunpack.c.l.b16 %v3356
      %v3686 = vunpack.c.h.b16 %v3356
      %v3687 = vunpack.c.l.b16 %v3357
      %v3688 = vunpack.c.h.b16 %v3357
      %v3689 = vunpack.c.l.b16 %v3358
      %v3690 = vunpack.c.h.b16 %v3358
      %v3691 = vunpack.c.l.b16 %v3359
      %v3692 = vunpack.c.h.b16 %v3359
      %v3693 = vunpack.c.l.b16 %v3360
      %v3694 = vunpack.c.h.b16 %v3360
      %v3695 = vunpack.c.l.b16 %v3361
      %v3696 = vunpack.c.h.b16 %v3361
      %v3697 = vunpack.c.l.b16 %v3362
      %v3698 = vunpack.c.h.b16 %v3362
      %v3699 = vunpack.c.l.b16 %v3363
      %v3700 = vunpack.c.h.b16 %v3363
      %v3701 = vunpack.c.l.b16 %v3364
      %v3702 = vunpack.c.h.b16 %v3364
      %v3703 = vunpack.c.l.b16 %v3365
      %v3704 = vunpack.c.h.b16 %v3365
      %v3705 = vunpack.c.l.b16 %v3366
      %v3706 = vunpack.c.h.b16 %v3366
      %v3707 = vunpack.c.l.b16 %v3367
      %v3708 = vunpack.c.h.b16 %v3367
      %v3709 = vunpack.c.l.b16 %v3368
      %v3710 = vunpack.c.h.b16 %v3368
      %v3711 = vunpack.c.l.b16 %v3369
      %v3712 = vunpack.c.h.b16 %v3369
      %v3713 = vunpack.c.l.b16 %v3370
      %v3714 = vunpack.c.h.b16 %v3370
      %v3715 = vunpack.c.l.b16 %v3371
      %v3716 = vunpack.c.h.b16 %v3371
      %v3717 = vunpack.c.l.b16 %v3372
      %v3718 = vunpack.c.h.b16 %v3372
      %v3719 = vunpack.c.l.b16 %v3373
      %v3720 = vunpack.c.h.b16 %v3373
      %v3721 = vunpack.c.l.b16 %v3374
      %v3722 = vunpack.c.h.b16 %v3374
      %v3723 = vunpack.c.l.b16 %v3375
      %v3724 = vunpack.c.h.b16 %v3375
      %v3725 = vunpack.c.l.b16 %v3376
      %v3726 = vunpack.c.h.b16 %v3376
      %v3727 = vunpack.c.l.b16 %v3377
      %v3728 = vunpack.c.h.b16 %v3377
      %v3729 = vunpack.c.l.b16 %v3378
      %v3730 = vunpack.c.h.b16 %v3378
      %v3731 = vunpack.c.l.b16 %v3379
      %v3732 = vunpack.c.h.b16 %v3379
      %v3733 = vunpack.c.l.b16 %v3380
      %v3734 = vunpack.c.h.b16 %v3380
      %v3735 = vunpack.c.l.b16 %v3381
      %v3736 = vunpack.c.h.b16 %v3381
      %v3737 = vunpack.c.l.b16 %v3382
      %v3738 = vunpack.c.h.b16 %v3382
      %v3739 = vunpack.c.l.b16 %v3383
      %v3740 = vunpack.c.h.b16 %v3383
      %v3741 = vunpack.c.l.b16 %v3384
      %v3742 = vunpack.c.h.b16 %v3384
      %v3743 = vunpack.c.l.b16 %v3385
      %v3744 = vunpack.c.h.b16 %v3385
      %v3745 = vunpack.c.l.b16 %v3386
      %v3746 = vunpack.c.h.b16 %v3386
      %v3747 = vunpack.c.l.b16 %v3387
      %v3748 = vunpack.c.h.b16 %v3387
      %v3749 = vunpack.c.l.b16 %v3388
      %v3750 = vunpack.c.h.b16 %v3388
      %v3751 = vunpack.c.l.b16 %v3389
      %v3752 = vunpack.c.h.b16 %v3389
      %v3753 = vunpack.c.l.b16 %v3390
      %v3754 = vunpack.c.h.b16 %v3390
      %v3755 = vunpack.c.l.b16 %v3391
      %v3756 = vunpack.c.h.b16 %v3391
      %v3757 = vunpack.c.l.b16 %v3392
      %v3758 = vunpack.c.h.b16 %v3392
      %v3759 = vunpack.c.l.b16 %v3393
      %v3760 = vunpack.c.h.b16 %v3393
      %v3761 = vunpack.c.l.b16 %v3394
      %v3762 = vunpack.c.h.b16 %v3394
      %v3763 = vunpack.c.l.b16 %v3395
      %v3764 = vunpack.c.h.b16 %v3395
      %v3765 = vunpack.c.l.b16 %v3396
      %v3766 = vunpack.c.h.b16 %v3396
      %v3767 = vunpack.c.l.b16 %v3397
      %v3768 = vunpack.c.h.b16 %v3397
      %v3769 = vunpack.c.l.b16 %v3398
      %v3770 = vunpack.c.h.b16 %v3398
      %v3771 = vunpack.c.l.b16 %v3399
      %v3772 = vunpack.c.h.b16 %v3399
      %v3773 = vunpack.c.l.b16 %v3400
      %v3774 = vunpack.c.h.b16 %v3400
      %v3775 = vunpack.c.l.b16 %v3401
      %v3776 = vunpack.c.h.b16 %v3401
      %v3777 = vunpack.c.l.b16 %v3402
      %v3778 = vunpack.c.h.b16 %v3402
      %v3779 = vunpack.c.l.b16 %v3403
      %v3780 = vunpack.c.h.b16 %v3403
      %v3781 = vunpack.c.l.b16 %v3404
      %v3782 = vunpack.c.h.b16 %v3404
      %v3783 = vunpack.c.l.b16 %v3405
      %v3784 = vunpack.c.h.b16 %v3405
      %v3785 = vunpack.c.l.b16 %v3406
      %v3786 = vunpack.c.h.b16 %v3406
      %v3787 = vunpack.c.l.b16 %v3407
      %v3788 = vunpack.c.h.b16 %v3407
      %v3789 = vunpack.c.l.b16 %v3408
      %v3790 = vunpack.c.h.b16 %v3408
      %v3791 = vunpack.c.l.b16 %v3409
      %v3792 = vunpack.c.h.b16 %v3409
      %v3793 = vunpack.c.l.b16 %v3410
      %v3794 = vunpack.c.h.b16 %v3410
      %v3795 = vunpack.c.l.b16 %v3411
      %v3796 = vunpack.c.h.b16 %v3411
      %v3797 = vunpack.c.l.b16 %v3412
      %v3798 = vunpack.c.h.b16 %v3412
      %v3799 = vunpack.c.l.b16 %v3413
      %v3800 = vunpack.c.h.b16 %v3413
      %v3801 = vunpack.c.l.b16 %v3414
      %v3802 = vunpack.c.h.b16 %v3414
      %v3803 = vunpack.c.l.b16 %v3415
      %v3804 = vunpack.c.h.b16 %v3415
      %v3805 = vunpack.c.l.b16 %v3416
      %v3806 = vunpack.c.h.b16 %v3416
      %v3807 = vunpack.c.l.b16 %v3417
      %v3808 = vunpack.c.h.b16 %v3417
      %v3809 = vunpack.c.l.b16 %v3418
      %v3810 = vunpack.c.h.b16 %v3418
      %v3811 = vunpack.c.l.b16 %v3419
      %v3812 = vunpack.c.h.b16 %v3419
      %v3813 = vunpack.c.l.b16 %v3420
      %v3814 = vunpack.c.h.b16 %v3420
      %v3815 = vunpack.c.l.b16 %v3421
      %v3816 = vunpack.c.h.b16 %v3421
      %v3817 = vunpack.c.l.b16 %v3422
      %v3818 = vunpack.c.h.b16 %v3422
      %v3819 = vpack.c.b16 %v3565, %v3563
      %v3820 = vpack.c.b16 %v3566, %v3564
      %v3821 = vpack.c.b16 %v3569, %v3567
      %v3822 = vpack.c.b16 %v3570, %v3568
      %v3823 = vpack.c.b16 %v3573, %v3571
      %v3824 = vpack.c.b16 %v3574, %v3572
      %v3825 = vpack.c.b16 %v3577, %v3575
      %v3826 = vpack.c.b16 %v3578, %v3576
      %v3827 = vpack.c.b16 %v3581, %v3579
      %v3828 = vpack.c.b16 %v3582, %v3580
      %v3829 = vpack.c.b16 %v3585, %v3583
      %v3830 = vpack.c.b16 %v3586, %v3584
      %v3831 = vpack.c.b16 %v3589, %v3587
      %v3832 = vpack.c.b16 %v3590, %v3588
      %v3833 = vpack.c.b16 %v3593, %v3591
      %v3834 = vpack.c.b16 %v3594, %v3592
      %v3835 = vpack.c.b16 %v3597, %v3595
      %v3836 = vpack.c.b16 %v3598, %v3596
      %v3837 = vpack.c.b16 %v3601, %v3599
      %v3838 = vpack.c.b16 %v3602, %v3600
      %v3839 = vpack.c.b16 %v3605, %v3603
      %v3840 = vpack.c.b16 %v3606, %v3604
      %v3841 = vpack.c.b16 %v3609, %v3607
      %v3842 = vpack.c.b16 %v3610, %v3608
      %v3843 = vpack.c.b16 %v3613, %v3611
      %v3844 = vpack.c.b16 %v3614, %v3612
      %v3845 = vpack.c.b16 %v3617, %v3615
      %v3846 = vpack.c.b16 %v3618, %v3616
      %v3847 = vpack.c.b16 %v3621, %v3619
      %v3848 = vpack.c.b16 %v3622, %v3620
      %v3849 = vpack.c.b16 %v3625, %v3623
      %v3850 = vpack.c.b16 %v3626, %v3624
      %v3851 = vpack.c.b16 %v3629, %v3627
      %v3852 = vpack.c.b16 %v3630, %v3628
      %v3853 = vpack.c.b16 %v3633, %v3631
      %v3854 = vpack.c.b16 %v3634, %v3632
      %v3855 = vpack.c.b16 %v3637, %v3635
      %v3856 = vpack.c.b16 %v3638, %v3636
      %v3857 = vpack.c.b16 %v3641, %v3639
      %v3858 = vpack.c.b16 %v3642, %v3640
      %v3859 = vpack.c.b16 %v3645, %v3643
      %v3860 = vpack.c.b16 %v3646, %v3644
      %v3861 = vpack.c.b16 %v3649, %v3647
      %v3862 = vpack.c.b16 %v3650, %v3648
      %v3863 = vpack.c.b16 %v3653, %v3651
      %v3864 = vpack.c.b16 %v3654, %v3652
      %v3865 = vpack.c.b16 %v3657, %v3655
      %v3866 = vpack.c.b16 %v3658, %v3656
      %v3867 = vpack.c.b16 %v3661, %v3659
      %v3868 = vpack.c.b16 %v3662, %v3660
      %v3869 = vpack.c.b16 %v3665, %v3663
      %v3870 = vpack.c.b16 %v3666, %v3664
      %v3871 = vpack.c.b16 %v3669, %v3667
      %v3872 = vpack.c.b16 %v3670, %v3668
      %v3873 = vpack.c.b16 %v3673, %v3671
      %v3874 = vpack.c.b16 %v3674, %v3672
      %v3875 = vpack.c.b16 %v3677, %v3675
      %v3876 = vpack.c.b16 %v3678, %v3676
      %v3877 = vpack.c.b16 %v3681, %v3679
      %v3878 = vpack.c.b16 %v3682, %v3680
      %v3879 = vpack.c.b16 %v3685, %v3683
      %v3880 = vpack.c.b16 %v3686, %v3684
      %v3881 = vpack.c.b16 %v3689, %v3687
      %v3882 = vpack.c.b16 %v3690, %v3688
      %v3883 = vpack.c.b16 %v3693, %v3691
      %v3884 = vpack.c.b16 %v3694, %v3692
      %v3885 = vpack.c.b16 %v3697, %v3695
      %v3886 = vpack.c.b16 %v3698, %v3696
      %v3887 = vpack.c.b16 %v3701, %v3699
      %v3888 = vpack.c.b16 %v3702, %v3700
      %v3889 = vpack.c.b16 %v3705, %v3703
      %v3890 = vpack.c.b16 %v3706, %v3704
      %v3891 = vpack.c.b16 %v3709, %v3707
      %v3892 = vpack.c.b16 %v3710, %v3708
      %v3893 = vpack.c.b16 %v3713, %v3711
      %v3894 = vpack.c.b16 %v3714, %v3712
      %v3895 = vpack.c.b16 %v3717, %v3715
      %v3896 = vpack.c.b16 %v3718, %v3716
      %v3897 = vpack.c.b16 %v3721, %v3719
      %v3898 = vpack.c.b16 %v3722, %v3720
      %v3899 = vpack.c.b16 %v3725, %v3723
      %v3900 = vpack.c.b16 %v3726, %v3724
      %v3901 = vpack.c.b16 %v3729, %v3727
      %v3902 = vpack.c.b16 %v3730, %v3728
      %v3903 = vpack.c.b16 %v3733, %v3731
      %v3904 = vpack.c.b16 %v3734, %v3732
      %v3905 = vpack.c.b16 %v3737, %v3735
      %v3906 = vpack.c.b16 %v3738, %v3736
      %v3907 = vpack.c.b16 %v3741, %v3739
      %v3908 = vpack.c.b16 %v3742, %v3740
      %v3909 = vpack.c.b16 %v3745, %v3743
      %v3910 = vpack.c.b16 %v3746, %v3744
      %v3911 = vpack.c.b16 %v3749, %v3747
      %v3912 = vpack.c.b16 %v3750, %v3748
      %v3913 = vpack.c.b16 %v3753, %v3751
      %v3914 = vpack.c.b16 %v3754, %v3752
      %v3915 = vpack.c.b16 %v3757, %v3755
      %v3916 = vpack.c.b16 %v3758, %v3756
      %v3917 = vpack.c.b16 %v3761, %v3759
      %v3918 = vpack.c.b16 %v3762, %v3760
      %v3919 = vpack.c.b16 %v3765, %v3763
      %v3920 = vpack.c.b16 %v3766, %v3764
      %v3921 = vpack.c.b16 %v3769, %v3767
      %v3922 = vpack.c.b16 %v3770, %v3768
      %v3923 = vpack.c.b16 %v3773, %v3771
      %v3924 = vpack.c.b16 %v3774, %v3772
      %v3925 = vpack.c.b16 %v3777, %v3775
      %v3926 = vpack.c.b16 %v3778, %v3776
      %v3927 = vpack.c.b16 %v3781, %v3779
      %v3928 = vpack.c.b16 %v3782, %v3780
      %v3929 = vpack.c.b16 %v3785, %v3783
      %v3930 = vpack.c.b16 %v3786, %v3784
      %v3931 = vpack.c.b16 %v3789, %v3787
      %v3932 = vpack.c.b16 %v3790, %v3788
      %v3933 = vpack.c.b16 %v3793, %v3791
      %v3934 = vpack.c.b16 %v3794, %v3792
      %v3935 = vpack.c.b16 %v3797, %v3795
      %v3936 = vpack.c.b16 %v3798, %v3796
      %v3937 = vpack.c.b16 %v3801, %v3799
      %v3938 = vpack.c.b16 %v3802, %v3800
      %v3939 = vpack.c.b16 %v3805, %v3803
      %v3940 = vpack.c.b16 %v3806, %v3804
      %v3941 = vpack.c.b16 %v3809, %v3807
      %v3942 = vpack.c.b16 %v3810, %v3808
      %v3943 = vpack.c.b16 %v3813, %v3811
      %v3944 = vpack.c.b16 %v3814, %v3812
      %v3945 = vpack.c.b16 %v3817, %v3815
      %v3946 = vpack.c.b16 %v3818, %v3816
      %4075 = vmatprep.subr.bf16.mxu0 %v3820
      %4076 = vmatpush1.bf16.msra.mxu0 %v3819
      %4077 = vmatprep.subr.bf16.mxu0 %v3822
      %4078 = vmatpush1.bf16.msra.mxu0 %v3821
      %4079 = vmatprep.subr.bf16.mxu0 %v3824
      %4080 = vmatpush1.bf16.msra.mxu0 %v3823
      %4081 = vmatprep.subr.bf16.mxu0 %v3826
      %4082 = vmatpush1.bf16.msra.mxu0 %v3825
      %4083 = vmatprep.subr.bf16.mxu0 %v3828
      %4084 = vmatpush1.bf16.msra.mxu0 %v3827
      %4085 = vmatprep.subr.bf16.mxu0 %v3830
      %4086 = vmatpush1.bf16.msra.mxu0 %v3829
      %4087 = vmatprep.subr.bf16.mxu0 %v3832
      %4088 = vmatpush1.bf16.msra.mxu0 %v3831
      %4089 = vmatprep.subr.bf16.mxu0 %v3834
      %4090 = vmatpush1.bf16.msra.mxu0 %v3833
      %4091 = vmatprep.subr.bf16.mxu0 %v3836
      %4092 = vmatpush1.bf16.msra.mxu0 %v3835
      %4093 = vmatprep.subr.bf16.mxu0 %v3838
      %4094 = vmatpush1.bf16.msra.mxu0 %v3837
      %4095 = vmatprep.subr.bf16.mxu0 %v3840
      %4096 = vmatpush1.bf16.msra.mxu0 %v3839
      %4097 = vmatprep.subr.bf16.mxu0 %v3842
      %4098 = vmatpush1.bf16.msra.mxu0 %v3841
      %4099 = vmatprep.subr.bf16.mxu0 %v3844
      %4100 = vmatpush1.bf16.msra.mxu0 %v3843
      %4101 = vmatprep.subr.bf16.mxu0 %v3846
      %4102 = vmatpush1.bf16.msra.mxu0 %v3845
      %4103 = vmatprep.subr.bf16.mxu0 %v3848
      %4104 = vmatpush1.bf16.msra.mxu0 %v3847
      %4105 = vmatprep.subr.bf16.mxu0 %v3850
      %4106 = vmatpush1.bf16.msra.mxu0 %v3849
      %4107 = vmatprep.mubr.bf16.mxu0 %v3232
      %4108 = vmatmul.mubr.bf16.gmra.mrb[0].mxu0 %v3231
      %v4109 = vpop.f32.mrb[0].mxu0
      %v4110 = vadd.f32 %v3428, %v4109
      %v4111 = vpop.f32.mrb[0].mxu0
      %v4112 = vadd.f32 %v3432, %v4111
      %v4113 = vpop.f32.mrb[0].mxu0
      %v4114 = vadd.f32 %v3428, %v4113
      %v4115 = vpop.f32.mrb[0].mxu0
      %v4116 = vadd.f32 %v3432, %v4115
      %4117 = vmatprep.mubr.bf16.mxu0 %v3240
      %4118 = vmatmul.mubr.bf16.gmra.mrb[0].mxu0 %v3239
      %v4119 = vpop.f32.mrb[0].mxu0
      %v4120 = vadd.f32 %v3428, %v4119
      %v4121 = vpop.f32.mrb[0].mxu0
      %v4122 = vadd.f32 %v3432, %v4121
      %v4123 = vpop.f32.mrb[0].mxu0
      %v4124 = vadd.f32 %v3428, %v4123
      %v4125 = vpop.f32.mrb[0].mxu0
      %v4126 = vadd.f32 %v3432, %v4125
      %4127 = vmatprep.mubr.bf16.mxu0 %v3248
      %4128 = vmatmul.mubr.bf16.gmra.mrb[0].mxu0 %v3247
      %v4129 = vpop.f32.mrb[0].mxu0
      %v4130 = vadd.f32 %v3428, %v4129
      %v4131 = vpop.f32.mrb[0].mxu0
      %v4132 = vadd.f32 %v3432, %v4131
      %v4133 = vpop.f32.mrb[0].mxu0
      %v4134 = vadd.f32 %v3428, %v4133
      %v4135 = vpop.f32.mrb[0].mxu0
      %v4136 = vadd.f32 %v3432, %v4135
      %4137 = vmatprep.mubr.bf16.mxu0 %v3256
      %4138 = vmatmul.mubr.bf16.gmra.mrb[0].mxu0 %v3255
      %v4139 = vpop.f32.mrb[0].mxu0
      %v4140 = vadd.f32 %v3428, %v4139
      %v4141 = vpop.f32.mrb[0].mxu0
      %v4142 = vadd.f32 %v3432, %v4141
      %v4143 = vpop.f32.mrb[0].mxu0
      %v4144 = vadd.f32 %v3428, %v4143
      %v4145 = vpop.f32.mrb[0].mxu0
      %v4146 = vadd.f32 %v3432, %v4145
      %4147 = vmatprep.mubr.bf16.mxu0 %v3264
      %4148 = vmatmul.mubr.bf16.gmra.mrb[0].mxu0 %v3263
      %v4149 = vpop.f32.mrb[0].mxu0
      %v4150 = vadd.f32 %v3428, %v4149
      %v4151 = vpop.f32.mrb[0].mxu0
      %v4152 = vadd.f32 %v3432, %v4151
      %v4153 = vpop.f32.mrb[0].mxu0
      %v4154 = vadd.f32 %v3428, %v4153
      %v4155 = vpop.f32.mrb[0].mxu0
      %v4156 = vadd.f32 %v3432, %v4155
      %4157 = vmatprep.mubr.bf16.mxu0 %v3272
      %4158 = vmatmul.mubr.bf16.gmra.mrb[0].mxu0 %v3271
      %v4159 = vpop.f32.mrb[0].mxu0
      %v4160 = vadd.f32 %v3428, %v4159
      %v4161 = vpop.f32.mrb[0].mxu0
      %v4162 = vadd.f32 %v3432, %v4161
      %v4163 = vpop.f32.mrb[0].mxu0
      %v4164 = vadd.f32 %v3428, %v4163
      %v4165 = vpop.f32.mrb[0].mxu0
      %v4166 = vadd.f32 %v3432, %v4165
      %4167 = vmatprep.mubr.bf16.mxu0 %v3280
      %4168 = vmatmul.mubr.bf16.gmra.mrb[0].mxu0 %v3279
      %v4169 = vpop.f32.mrb[0].mxu0
      %v4170 = vadd.f32 %v3428, %v4169
      %v4171 = vpop.f32.mrb[0].mxu0
      %v4172 = vadd.f32 %v3432, %v4171
      %v4173 = vpop.f32.mrb[0].mxu0
      %v4174 = vadd.f32 %v3428, %v4173
      %v4175 = vpop.f32.mrb[0].mxu0
      %v4176 = vadd.f32 %v3432, %v4175
      %4177 = vmatprep.mubr.bf16.mxu0 %v3288
      %4178 = vmatmul.mubr.bf16.gmra.mrb[0].mxu0 %v3287
      %v4179 = vpop.f32.mrb[0].mxu0
      %v4180 = vadd.f32 %v3428, %v4179
      %v4181 = vpop.f32.mrb[0].mxu0
      %v4182 = vadd.f32 %v3432, %v4181
      %v4183 = vpop.f32.mrb[0].mxu0
      %v4184 = vadd.f32 %v3428, %v4183
      %v4185 = vpop.f32.mrb[0].mxu0
      %v4186 = vadd.f32 %v3432, %v4185
      %4187 = vdwg.mxu0
      %4188 = vmatprep.subr.bf16.mxu0 %v3852
      %4189 = vmatpush1.bf16.msra.mxu0 %v3851
      %4190 = vmatprep.subr.bf16.mxu0 %v3854
      %4191 = vmatpush1.bf16.msra.mxu0 %v3853
      %4192 = vmatprep.subr.bf16.mxu0 %v3856
      %4193 = vmatpush1.bf16.msra.mxu0 %v3855
      %4194 = vmatprep.subr.bf16.mxu0 %v3858
      %4195 = vmatpush1.bf16.msra.mxu0 %v3857
      %4196 = vmatprep.subr.bf16.mxu0 %v3860
      %4197 = vmatpush1.bf16.msra.mxu0 %v3859
      %4198 = vmatprep.subr.bf16.mxu0 %v3862
      %4199 = vmatpush1.bf16.msra.mxu0 %v3861
      %4200 = vmatprep.subr.bf16.mxu0 %v3864
      %4201 = vmatpush1.bf16.msra.mxu0 %v3863
      %4202 = vmatprep.subr.bf16.mxu0 %v3866
      %4203 = vmatpush1.bf16.msra.mxu0 %v3865
      %4204 = vmatprep.subr.bf16.mxu0 %v3868
      %4205 = vmatpush1.bf16.msra.mxu0 %v3867
      %4206 = vmatprep.subr.bf16.mxu0 %v3870
      %4207 = vmatpush1.bf16.msra.mxu0 %v3869
      %4208 = vmatprep.subr.bf16.mxu0 %v3872
      %4209 = vmatpush1.bf16.msra.mxu0 %v3871
      %4210 = vmatprep.subr.bf16.mxu0 %v3874
      %4211 = vmatpush1.bf16.msra.mxu0 %v3873
      %4212 = vmatprep.subr.bf16.mxu0 %v3876
      %4213 = vmatpush1.bf16.msra.mxu0 %v3875
      %4214 = vmatprep.subr.bf16.mxu0 %v3878
      %4215 = vmatpush1.bf16.msra.mxu0 %v3877
      %4216 = vmatprep.subr.bf16.mxu0 %v3880
      %4217 = vmatpush1.bf16.msra.mxu0 %v3879
      %4218 = vmatprep.subr.bf16.mxu0 %v3882
      %4219 = vmatpush1.bf16.msra.mxu0 %v3881
      %4220 = vmatprep.mubr.bf16.mxu0 %v3234
      %4221 = vmatmul.mubr.bf16.gmra.mrb[0].mxu0 %v3233
      %v4222 = vpop.f32.mrb[0].mxu0
      %v4223 = vadd.f32 %v4110, %v4222
      %v4224 = vpop.f32.mrb[0].mxu0
      %v4225 = vadd.f32 %v4112, %v4224
      %v4226 = vpop.f32.mrb[0].mxu0
      %v4227 = vadd.f32 %v4114, %v4226
      %v4228 = vpop.f32.mrb[0].mxu0
      %v4229 = vadd.f32 %v4116, %v4228
      %4230 = vmatprep.mubr.bf16.mxu0 %v3242
      %4231 = vmatmul.mubr.bf16.gmra.mrb[0].mxu0 %v3241
      %v4232 = vpop.f32.mrb[0].mxu0
      %v4233 = vadd.f32 %v4120, %v4232
      %v4234 = vpop.f32.mrb[0].mxu0
      %v4235 = vadd.f32 %v4122, %v4234
      %v4236 = vpop.f32.mrb[0].mxu0
      %v4237 = vadd.f32 %v4124, %v4236
      %v4238 = vpop.f32.mrb[0].mxu0
      %v4239 = vadd.f32 %v4126, %v4238
      %4240 = vmatprep.mubr.bf16.mxu0 %v3250
      %4241 = vmatmul.mubr.bf16.gmra.mrb[0].mxu0 %v3249
      %v4242 = vpop.f32.mrb[0].mxu0
      %v4243 = vadd.f32 %v4130, %v4242
      %v4244 = vpop.f32.mrb[0].mxu0
      %v4245 = vadd.f32 %v4132, %v4244
      %v4246 = vpop.f32.mrb[0].mxu0
      %v4247 = vadd.f32 %v4134, %v4246
      %v4248 = vpop.f32.mrb[0].mxu0
      %v4249 = vadd.f32 %v4136, %v4248
      %4250 = vmatprep.mubr.bf16.mxu0 %v3258
      %4251 = vmatmul.mubr.bf16.gmra.mrb[0].mxu0 %v3257
      %v4252 = vpop.f32.mrb[0].mxu0
      %v4253 = vadd.f32 %v4140, %v4252
      %v4254 = vpop.f32.mrb[0].mxu0
      %v4255 = vadd.f32 %v4142, %v4254
      %v4256 = vpop.f32.mrb[0].mxu0
      %v4257 = vadd.f32 %v4144, %v4256
      %v4258 = vpop.f32.mrb[0].mxu0
      %v4259 = vadd.f32 %v4146, %v4258
      %4260 = vmatprep.mubr.bf16.mxu0 %v3266
      %4261 = vmatmul.mubr.bf16.gmra.mrb[0].mxu0 %v3265
      %v4262 = vpop.f32.mrb[0].mxu0
      %v4263 = vadd.f32 %v4150, %v4262
      %v4264 = vpop.f32.mrb[0].mxu0
      %v4265 = vadd.f32 %v4152, %v4264
      %v4266 = vpop.f32.mrb[0].mxu0
      %v4267 = vadd.f32 %v4154, %v4266
      %v4268 = vpop.f32.mrb[0].mxu0
      %v4269 = vadd.f32 %v4156, %v4268
      %4270 = vmatprep.mubr.bf16.mxu0 %v3274
      %4271 = vmatmul.mubr.bf16.gmra.mrb[0].mxu0 %v3273
      %v4272 = vpop.f32.mrb[0].mxu0
      %v4273 = vadd.f32 %v4160, %v4272
      %v4274 = vpop.f32.mrb[0].mxu0
      %v4275 = vadd.f32 %v4162, %v4274
      %v4276 = vpop.f32.mrb[0].mxu0
      %v4277 = vadd.f32 %v4164, %v4276
      %v4278 = vpop.f32.mrb[0].mxu0
      %v4279 = vadd.f32 %v4166, %v4278
      %4280 = vmatprep.mubr.bf16.mxu0 %v3282
      %4281 = vmatmul.mubr.bf16.gmra.mrb[0].mxu0 %v3281
      %v4282 = vpop.f32.mrb[0].mxu0
      %v4283 = vadd.f32 %v4170, %v4282
      %v4284 = vpop.f32.mrb[0].mxu0
      %v4285 = vadd.f32 %v4172, %v4284
      %v4286 = vpop.f32.mrb[0].mxu0
      %v4287 = vadd.f32 %v4174, %v4286
      %v4288 = vpop.f32.mrb[0].mxu0
      %v4289 = vadd.f32 %v4176, %v4288
      %4290 = vmatprep.mubr.bf16.mxu0 %v3290
      %4291 = vmatmul.mubr.bf16.gmra.mrb[0].mxu0 %v3289
      %v4292 = vpop.f32.mrb[0].mxu0
      %v4293 = vadd.f32 %v4180, %v4292
      %v4294 = vpop.f32.mrb[0].mxu0
      %v4295 = vadd.f32 %v4182, %v4294
      %v4296 = vpop.f32.mrb[0].mxu0
      %v4297 = vadd.f32 %v4184, %v4296
      %v4298 = vpop.f32.mrb[0].mxu0
      %v4299 = vadd.f32 %v4186, %v4298
      %4300 = vdwg.mxu0
      %4301 = vmatprep.subr.bf16.mxu0 %v3884
      %4302 = vmatpush1.bf16.msra.mxu0 %v3883
      %4303 = vmatprep.subr.bf16.mxu0 %v3886
      %4304 = vmatpush1.bf16.msra.mxu0 %v3885
      %4305 = vmatprep.subr.bf16.mxu0 %v3888
      %4306 = vmatpush1.bf16.msra.mxu0 %v3887
      %4307 = vmatprep.subr.bf16.mxu0 %v3890
      %4308 = vmatpush1.bf16.msra.mxu0 %v3889
      %4309 = vmatprep.subr.bf16.mxu0 %v3892
      %4310 = vmatpush1.bf16.msra.mxu0 %v3891
      %4311 = vmatprep.subr.bf16.mxu0 %v3894
      %4312 = vmatpush1.bf16.msra.mxu0 %v3893
      %4313 = vmatprep.subr.bf16.mxu0 %v3896
      %4314 = vmatpush1.bf16.msra.mxu0 %v3895
      %4315 = vmatprep.subr.bf16.mxu0 %v3898
      %4316 = vmatpush1.bf16.msra.mxu0 %v3897
      %4317 = vmatprep.subr.bf16.mxu0 %v3900
      %4318 = vmatpush1.bf16.msra.mxu0 %v3899
      %4319 = vmatprep.subr.bf16.mxu0 %v3902
      %4320 = vmatpush1.bf16.msra.mxu0 %v3901
      %4321 = vmatprep.subr.bf16.mxu0 %v3904
      %4322 = vmatpush1.bf16.msra.mxu0 %v3903
      %4323 = vmatprep.subr.bf16.mxu0 %v3906
      %4324 = vmatpush1.bf16.msra.mxu0 %v3905
      %4325 = vmatprep.subr.bf16.mxu0 %v3908
      %4326 = vmatpush1.bf16.msra.mxu0 %v3907
      %4327 = vmatprep.subr.bf16.mxu0 %v3910
      %4328 = vmatpush1.bf16.msra.mxu0 %v3909
      %4329 = vmatprep.subr.bf16.mxu0 %v3912
      %4330 = vmatpush1.bf16.msra.mxu0 %v3911
      %4331 = vmatprep.subr.bf16.mxu0 %v3914
      %4332 = vmatpush1.bf16.msra.mxu0 %v3913
      %4333 = vmatprep.mubr.bf16.mxu0 %v3236
      %4334 = vmatmul.mubr.bf16.gmra.mrb[0].mxu0 %v3235
      %v4335 = vpop.f32.mrb[0].mxu0
      %v4336 = vadd.f32 %v4223, %v4335
      %v4337 = vpop.f32.mrb[0].mxu0
      %v4338 = vadd.f32 %v4225, %v4337
      %v4339 = vpop.f32.mrb[0].mxu0
      %v4340 = vadd.f32 %v4227, %v4339
      %v4341 = vpop.f32.mrb[0].mxu0
      %v4342 = vadd.f32 %v4229, %v4341
      %4343 = vmatprep.mubr.bf16.mxu0 %v3244
      %4344 = vmatmul.mubr.bf16.gmra.mrb[0].mxu0 %v3243
      %v4345 = vpop.f32.mrb[0].mxu0
      %v4346 = vadd.f32 %v4233, %v4345
      %v4347 = vpop.f32.mrb[0].mxu0
      %v4348 = vadd.f32 %v4235, %v4347
      %v4349 = vpop.f32.mrb[0].mxu0
      %v4350 = vadd.f32 %v4237, %v4349
      %v4351 = vpop.f32.mrb[0].mxu0
      %v4352 = vadd.f32 %v4239, %v4351
      %4353 = vmatprep.mubr.bf16.mxu0 %v3252
      %4354 = vmatmul.mubr.bf16.gmra.mrb[0].mxu0 %v3251
      %v4355 = vpop.f32.mrb[0].mxu0
      %v4356 = vadd.f32 %v4243, %v4355
      %v4357 = vpop.f32.mrb[0].mxu0
      %v4358 = vadd.f32 %v4245, %v4357
      %v4359 = vpop.f32.mrb[0].mxu0
      %v4360 = vadd.f32 %v4247, %v4359
      %v4361 = vpop.f32.mrb[0].mxu0
      %v4362 = vadd.f32 %v4249, %v4361
      %4363 = vmatprep.mubr.bf16.mxu0 %v3260
      %4364 = vmatmul.mubr.bf16.gmra.mrb[0].mxu0 %v3259
      %v4365 = vpop.f32.mrb[0].mxu0
      %v4366 = vadd.f32 %v4253, %v4365
      %v4367 = vpop.f32.mrb[0].mxu0
      %v4368 = vadd.f32 %v4255, %v4367
      %v4369 = vpop.f32.mrb[0].mxu0
      %v4370 = vadd.f32 %v4257, %v4369
      %v4371 = vpop.f32.mrb[0].mxu0
      %v4372 = vadd.f32 %v4259, %v4371
      %4373 = vmatprep.mubr.bf16.mxu0 %v3268
      %4374 = vmatmul.mubr.bf16.gmra.mrb[0].mxu0 %v3267
      %v4375 = vpop.f32.mrb[0].mxu0
      %v4376 = vadd.f32 %v4263, %v4375
      %v4377 = vpop.f32.mrb[0].mxu0
      %v4378 = vadd.f32 %v4265, %v4377
      %v4379 = vpop.f32.mrb[0].mxu0
      %v4380 = vadd.f32 %v4267, %v4379
      %v4381 = vpop.f32.mrb[0].mxu0
      %v4382 = vadd.f32 %v4269, %v4381
      %4383 = vmatprep.mubr.bf16.mxu0 %v3276
      %4384 = vmatmul.mubr.bf16.gmra.mrb[0].mxu0 %v3275
      %v4385 = vpop.f32.mrb[0].mxu0
      %v4386 = vadd.f32 %v4273, %v4385
      %v4387 = vpop.f32.mrb[0].mxu0
      %v4388 = vadd.f32 %v4275, %v4387
      %v4389 = vpop.f32.mrb[0].mxu0
      %v4390 = vadd.f32 %v4277, %v4389
      %v4391 = vpop.f32.mrb[0].mxu0
      %v4392 = vadd.f32 %v4279, %v4391
      %4393 = vmatprep.mubr.bf16.mxu0 %v3284
      %4394 = vmatmul.mubr.bf16.gmra.mrb[0].mxu0 %v3283
      %v4395 = vpop.f32.mrb[0].mxu0
      %v4396 = vadd.f32 %v4283, %v4395
      %v4397 = vpop.f32.mrb[0].mxu0
      %v4398 = vadd.f32 %v4285, %v4397
      %v4399 = vpop.f32.mrb[0].mxu0
      %v4400 = vadd.f32 %v4287, %v4399
      %v4401 = vpop.f32.mrb[0].mxu0
      %v4402 = vadd.f32 %v4289, %v4401
      %4403 = vmatprep.mubr.bf16.mxu0 %v3292
      %4404 = vmatmul.mubr.bf16.gmra.mrb[0].mxu0 %v3291
      %v4405 = vpop.f32.mrb[0].mxu0
      %v4406 = vadd.f32 %v4293, %v4405
      %v4407 = vpop.f32.mrb[0].mxu0
      %v4408 = vadd.f32 %v4295, %v4407
      %v4409 = vpop.f32.mrb[0].mxu0
      %v4410 = vadd.f32 %v4297, %v4409
      %v4411 = vpop.f32.mrb[0].mxu0
      %v4412 = vadd.f32 %v4299, %v4411
      %4413 = vdwg.mxu0
      %4414 = vmatprep.subr.bf16.mxu0 %v3916
      %4415 = vmatpush1.bf16.msra.mxu0 %v3915
      %4416 = vmatprep.subr.bf16.mxu0 %v3918
      %4417 = vmatpush1.bf16.msra.mxu0 %v3917
      %4418 = vmatprep.subr.bf16.mxu0 %v3920
      %4419 = vmatpush1.bf16.msra.mxu0 %v3919
      %4420 = vmatprep.subr.bf16.mxu0 %v3922
      %4421 = vmatpush1.bf16.msra.mxu0 %v3921
      %4422 = vmatprep.subr.bf16.mxu0 %v3924
      %4423 = vmatpush1.bf16.msra.mxu0 %v3923
      %4424 = vmatprep.subr.bf16.mxu0 %v3926
      %4425 = vmatpush1.bf16.msra.mxu0 %v3925
      %4426 = vmatprep.subr.bf16.mxu0 %v3928
      %4427 = vmatpush1.bf16.msra.mxu0 %v3927
      %4428 = vmatprep.subr.bf16.mxu0 %v3930
      %4429 = vmatpush1.bf16.msra.mxu0 %v3929
      %4430 = vmatprep.subr.bf16.mxu0 %v3932
      %4431 = vmatpush1.bf16.msra.mxu0 %v3931
      %4432 = vmatprep.subr.bf16.mxu0 %v3934
      %4433 = vmatpush1.bf16.msra.mxu0 %v3933
      %4434 = vmatprep.subr.bf16.mxu0 %v3936
      %4435 = vmatpush1.bf16.msra.mxu0 %v3935
      %4436 = vmatprep.subr.bf16.mxu0 %v3938
      %4437 = vmatpush1.bf16.msra.mxu0 %v3937
      %4438 = vmatprep.subr.bf16.mxu0 %v3940
      %4439 = vmatpush1.bf16.msra.mxu0 %v3939
      %4440 = vmatprep.subr.bf16.mxu0 %v3942
      %4441 = vmatpush1.bf16.msra.mxu0 %v3941
      %4442 = vmatprep.subr.bf16.mxu0 %v3944
      %4443 = vmatpush1.bf16.msra.mxu0 %v3943
      %4444 = vmatprep.subr.bf16.mxu0 %v3946
      %4445 = vmatpush1.bf16.msra.mxu0 %v3945
      %4446 = vmatprep.mubr.bf16.mxu0 %v3238
      %4447 = vmatmul.mubr.bf16.gmra.mrb[0].mxu0 %v3237
      %v4448 = vpop.f32.mrb[0].mxu0
      %v4449 = vadd.f32 %v4336, %v4448
      %v4450 = vpop.f32.mrb[0].mxu0
      %v4451 = vadd.f32 %v4338, %v4450
      %v4452 = vpop.f32.mrb[0].mxu0
      %v4453 = vadd.f32 %v4340, %v4452
      %v4454 = vpop.f32.mrb[0].mxu0
      %v4455 = vadd.f32 %v4342, %v4454
      %4456 = vmatprep.mubr.bf16.mxu0 %v3246
      %4457 = vmatmul.mubr.bf16.gmra.mrb[0].mxu0 %v3245
      %v4458 = vpop.f32.mrb[0].mxu0
      %v4459 = vadd.f32 %v4346, %v4458
      %v4460 = vpop.f32.mrb[0].mxu0
      %v4461 = vadd.f32 %v4348, %v4460
      %v4462 = vpop.f32.mrb[0].mxu0
      %v4463 = vadd.f32 %v4350, %v4462
      %v4464 = vpop.f32.mrb[0].mxu0
      %v4465 = vadd.f32 %v4352, %v4464
      %4466 = vmatprep.mubr.bf16.mxu0 %v3254
      %4467 = vmatmul.mubr.bf16.gmra.mrb[0].mxu0 %v3253
      %v4468 = vpop.f32.mrb[0].mxu0
      %v4469 = vadd.f32 %v4356, %v4468
      %v4470 = vpop.f32.mrb[0].mxu0
      %v4471 = vadd.f32 %v4358, %v4470
      %v4472 = vpop.f32.mrb[0].mxu0
      %v4473 = vadd.f32 %v4360, %v4472
      %v4474 = vpop.f32.mrb[0].mxu0
      %v4475 = vadd.f32 %v4362, %v4474
      %4476 = vmatprep.mubr.bf16.mxu0 %v3262
      %4477 = vmatmul.mubr.bf16.gmra.mrb[0].mxu0 %v3261
      %v4478 = vpop.f32.mrb[0].mxu0
      %v4479 = vadd.f32 %v4366, %v4478
      %v4480 = vpop.f32.mrb[0].mxu0
      %v4481 = vadd.f32 %v4368, %v4480
      %v4482 = vpop.f32.mrb[0].mxu0
      %v4483 = vadd.f32 %v4370, %v4482
      %v4484 = vpop.f32.mrb[0].mxu0
      %v4485 = vadd.f32 %v4372, %v4484
      %4486 = vmatprep.mubr.bf16.mxu0 %v3270
      %4487 = vmatmul.mubr.bf16.gmra.mrb[0].mxu0 %v3269
      %v4488 = vpop.f32.mrb[0].mxu0
      %v4489 = vadd.f32 %v4376, %v4488
      %v4490 = vpop.f32.mrb[0].mxu0
      %v4491 = vadd.f32 %v4378, %v4490
      %v4492 = vpop.f32.mrb[0].mxu0
      %v4493 = vadd.f32 %v4380, %v4492
      %v4494 = vpop.f32.mrb[0].mxu0
      %v4495 = vadd.f32 %v4382, %v4494
      %4496 = vmatprep.mubr.bf16.mxu0 %v3278
      %4497 = vmatmul.mubr.bf16.gmra.mrb[0].mxu0 %v3277
      %v4498 = vpop.f32.mrb[0].mxu0
      %v4499 = vadd.f32 %v4386, %v4498
      %v4500 = vpop.f32.mrb[0].mxu0
      %v4501 = vadd.f32 %v4388, %v4500
      %v4502 = vpop.f32.mrb[0].mxu0
      %v4503 = vadd.f32 %v4390, %v4502
      %v4504 = vpop.f32.mrb[0].mxu0
      %v4505 = vadd.f32 %v4392, %v4504
      %4506 = vmatprep.mubr.bf16.mxu0 %v3286
      %4507 = vmatmul.mubr.bf16.gmra.mrb[0].mxu0 %v3285
      %v4508 = vpop.f32.mrb[0].mxu0
      %v4509 = vadd.f32 %v4396, %v4508
      %v4510 = vpop.f32.mrb[0].mxu0
      %v4511 = vadd.f32 %v4398, %v4510
      %v4512 = vpop.f32.mrb[0].mxu0
      %v4513 = vadd.f32 %v4400, %v4512
      %v4514 = vpop.f32.mrb[0].mxu0
      %v4515 = vadd.f32 %v4402, %v4514
      %4516 = vmatprep.mubr.bf16.mxu0 %v3294
      %4517 = vmatmul.mubr.bf16.gmra.mrb[0].mxu0 %v3293
      %v4518 = vpop.f32.mrb[0].mxu0
      %v4519 = vadd.f32 %v4406, %v4518
      %v4520 = vpop.f32.mrb[0].mxu0
      %v4521 = vadd.f32 %v4408, %v4520
      %v4522 = vpop.f32.mrb[0].mxu0
      %v4523 = vadd.f32 %v4410, %v4522
      %v4524 = vpop.f32.mrb[0].mxu0
      %v4525 = vadd.f32 %v4412, %v4524
      %4526 = vdwg.mxu0
      %v4527 = vadd.f32 %v936, %v4449
      %v4528 = vadd.f32 %v937, %v4451
      %v4529 = vadd.f32 %v938, %v4453
      %v4530 = vadd.f32 %v939, %v4455
      %v4531 = vadd.f32 %v940, %v4459
      %v4532 = vadd.f32 %v941, %v4461
      %v4533 = vadd.f32 %v942, %v4463
      %v4534 = vadd.f32 %v943, %v4465
      %v4535 = vadd.f32 %v944, %v4469
      %v4536 = vadd.f32 %v945, %v4471
      %v4537 = vadd.f32 %v946, %v4473
      %v4538 = vadd.f32 %v947, %v4475
      %v4539 = vadd.f32 %v948, %v4479
      %v4540 = vadd.f32 %v949, %v4481
      %v4541 = vadd.f32 %v950, %v4483
      %v4542 = vadd.f32 %v951, %v4485
      %v4543 = vadd.f32 %v952, %v4489
      %v4544 = vadd.f32 %v953, %v4491
      %v4545 = vadd.f32 %v954, %v4493
      %v4546 = vadd.f32 %v955, %v4495
      %v4547 = vadd.f32 %v956, %v4499
      %v4548 = vadd.f32 %v957, %v4501
      %v4549 = vadd.f32 %v958, %v4503
      %v4550 = vadd.f32 %v959, %v4505
      %v4551 = vadd.f32 %v960, %v4509
      %v4552 = vadd.f32 %v961, %v4511
      %v4553 = vadd.f32 %v962, %v4513
      %v4554 = vadd.f32 %v963, %v4515
      %v4555 = vadd.f32 %v964, %v4519
      %v4556 = vadd.f32 %v965, %v4521
      %v4557 = vadd.f32 %v966, %v4523
      %v4558 = vadd.f32 %v967, %v4525
      %v4559 = vpack.c.bf16 %v4529, %v4527
      %v4560 = vpack.c.bf16 %v4530, %v4528
      %v4561 = vpack.c.bf16 %v4533, %v4531
      %v4562 = vpack.c.bf16 %v4534, %v4532
      %v4563 = vpack.c.bf16 %v4537, %v4535
      %v4564 = vpack.c.bf16 %v4538, %v4536
      %v4565 = vpack.c.bf16 %v4541, %v4539
      %v4566 = vpack.c.bf16 %v4542, %v4540
      %v4567 = vpack.c.bf16 %v4545, %v4543
      %v4568 = vpack.c.bf16 %v4546, %v4544
      %v4569 = vpack.c.bf16 %v4549, %v4547
      %v4570 = vpack.c.bf16 %v4550, %v4548
      %v4571 = vpack.c.bf16 %v4553, %v4551
      %v4572 = vpack.c.bf16 %v4554, %v4552
      %v4573 = vpack.c.bf16 %v4557, %v4555
      %v4574 = vpack.c.bf16 %v4558, %v4556
      %v4591 = vunpack.c.l.b16 %v4559
      %v4592 = vunpack.c.l.b16 %v4560
      %v4593 = vunpack.c.h.b16 %v4559
      %v4594 = vunpack.c.h.b16 %v4560
      %v4595 = vunpack.c.l.b16 %v4561
      %v4596 = vunpack.c.l.b16 %v4562
      %v4597 = vunpack.c.h.b16 %v4561
      %v4598 = vunpack.c.h.b16 %v4562
      %v4599 = vunpack.c.l.b16 %v4563
      %v4600 = vunpack.c.l.b16 %v4564
      %v4601 = vunpack.c.h.b16 %v4563
      %v4602 = vunpack.c.h.b16 %v4564
      %v4603 = vunpack.c.l.b16 %v4565
      %v4604 = vunpack.c.l.b16 %v4566
      %v4605 = vunpack.c.h.b16 %v4565
      %v4606 = vunpack.c.h.b16 %v4566
      %v4607 = vunpack.c.l.b16 %v4567
      %v4608 = vunpack.c.l.b16 %v4568
      %v4609 = vunpack.c.h.b16 %v4567
      %v4610 = vunpack.c.h.b16 %v4568
      %v4611 = vunpack.c.l.b16 %v4569
      %v4612 = vunpack.c.l.b16 %v4570
      %v4613 = vunpack.c.h.b16 %v4569
      %v4614 = vunpack.c.h.b16 %v4570
      %v4615 = vunpack.c.l.b16 %v4571
      %v4616 = vunpack.c.l.b16 %v4572
      %v4617 = vunpack.c.h.b16 %v4571
      %v4618 = vunpack.c.h.b16 %v4572
      %v4619 = vunpack.c.l.b16 %v4573
      %v4620 = vunpack.c.l.b16 %v4574
      %v4621 = vunpack.c.h.b16 %v4573
      %v4622 = vunpack.c.h.b16 %v4574
      %v4623 = vpack.c.b16 %v4592, %v4591
      %v4624 = vpack.c.b16 %v4594, %v4593
      %v4625 = vpack.c.b16 %v4596, %v4595
      %v4626 = vpack.c.b16 %v4598, %v4597
      %v4627 = vpack.c.b16 %v4600, %v4599
      %v4628 = vpack.c.b16 %v4602, %v4601
      %v4629 = vpack.c.b16 %v4604, %v4603
      %v4630 = vpack.c.b16 %v4606, %v4605
      %v4631 = vpack.c.b16 %v4608, %v4607
      %v4632 = vpack.c.b16 %v4610, %v4609
      %v4633 = vpack.c.b16 %v4612, %v4611
      %v4634 = vpack.c.b16 %v4614, %v4613
      %v4635 = vpack.c.b16 %v4616, %v4615
      %v4636 = vpack.c.b16 %v4618, %v4617
      %v4637 = vpack.c.b16 %v4620, %v4619
      %v4638 = vpack.c.b16 %v4622, %v4621
      %4655 = vst [vmem:[%s441] sm:$0xff] %v4623
      %4656 = vst [vmem:[%s441 + $0x8] sm:$0xff] %v4624
      %4657 = vst [vmem:[%s441 + $0x10] sm:$0xff] %v4625
      %4658 = vst [vmem:[%s441 + $0x18] sm:$0xff] %v4626
      %4659 = vst [vmem:[%s441 + $0x20] sm:$0xff] %v4627
      %4660 = vst [vmem:[%s441 + $0x28] sm:$0xff] %v4628
      %4661 = vst [vmem:[%s441 + $0x30] sm:$0xff] %v4629
      %4662 = vst [vmem:[%s441 + $0x38] sm:$0xff] %v4630
      %4663 = vst [vmem:[%s441 + $0x40] sm:$0xff] %v4631
      %4664 = vst [vmem:[%s441 + $0x48] sm:$0xff] %v4632
      %4665 = vst [vmem:[%s441 + $0x50] sm:$0xff] %v4633
      %4666 = vst [vmem:[%s441 + $0x58] sm:$0xff] %v4634
      %4667 = vst [vmem:[%s441 + $0x60] sm:$0xff] %v4635
      %4668 = vst [vmem:[%s441 + $0x68] sm:$0xff] %v4636
      %4669 = vst [vmem:[%s441 + $0x70] sm:$0xff] %v4637
      %4670 = vst [vmem:[%s441 + $0x78] sm:$0xff] %v4638
      %s4671 = smul.u32 16, %s26
      %p4672 = scmp.lt.s32.totalorder %s25, 1
      %s4673 = scalar_select %p4672, %s25, 1
      %p4674 = scmp.lt.s32.totalorder %s4671, 15
      %s4675 = scalar_select %p4674, %s4671, 15
      %s4676 = smul.addr %s4675, 2
      %s4677 = smul.addr %s4673, 32
      %s4678 = sadd.s32 %s4676, %s4677
      %s4679 = smul.addr %s4678, 4
      %s4680 = scalar_lea.vmem %s10, %s4679
      // Predicated region
      $region61: #{gpt_forward.10} parent=59 // pred_check
        %p4681 = pneg %p277
      $region62: #{gpt_forward.10} parent=59 // pred_check_branch
        %4683 = sbr.rel (%p4681) target = $region64
      $region63: #{gpt_forward.10} parent=59 // pred_region
        %s4684 = smul.u32 16, %s26
      $region64: #{gpt_forward.10} parent=59 // pred_fallthru
        _
    $region60: #{gpt_forward.10} parent=5 // pred_fallthru
      _
    %p4685 = scmp.le.s32.totalorder 2, %s16
    // Predicated region
    $region65: #{gpt_forward.10} parent=5 // pred_check
      %p4686 = pneg %p4685
    $region66: #{gpt_forward.10} parent=5 // pred_check_branch
      %4688 = sbr.rel (%p4686) target = $region68
    $region67: #{gpt_forward.10} parent=5 // pred_region
      %s4689 = ssub.s32 %s16, 2
      // Predicated region
      $region69: #{gpt_forward.10} parent=67 // pred_check
        %p4690 = pneg %p283
      $region70: #{gpt_forward.10} parent=67 // pred_check_branch
        %4692 = sbr.rel (%p4690) target = $region72
      $region71: #{gpt_forward.10} parent=67 // pred_region
        %s4693 = smul.u32 16, %s28
        %p4694 = scmp.lt.s32.totalorder %s27, 1
        %s4695 = scalar_select %p4694, %s27, 1
        %p4696 = scmp.lt.s32.totalorder %s4693, 15
        %s4697 = scalar_select %p4696, %s4693, 15
        %s4698 = smul.addr %s4697, 2
        %s4699 = smul.addr %s4695, 32
        %s4700 = sadd.s32 %s4698, %s4699
        %s4701 = smul.addr %s4700, 4
        %s4702 = scalar_lea.vmem %s10, %s4701
      $region72: #{gpt_forward.10} parent=67 // pred_fallthru
        _
    $region68: #{gpt_forward.10} parent=5 // pred_fallthru
      _
  $region6: #{gpt_forward.10} parent=0 // loop_footer
    %s20 = sadd.s32 1, %s16
  $region7: #{gpt_forward.10} parent=0 // loop_footer_branch
    %15 = sbr.rel target = $region3
  $region8: #{gpt_forward.10} parent=0 // loop_exit
    _

</llo_original>
